<compile_context>
chip_gen: v6e
topology: v6e:2x2x1
jax: 0.10.0
libtpu: 0.0.40
codegen_flags: <defaults>
</compile_context>

<pallas_src>
import jax
import jax.numpy as jnp
import numpy as np
from jax import lax
from jax.experimental import pallas as pl
from jax.experimental.pallas import tpu as pltpu

BN_EPS = 1e-5


# --------------------------------------------------------------------------- #
# wrapper-side weight packing: HWIO 3x3 kernel -> block-Toeplitz matmul weight
# --------------------------------------------------------------------------- #
def _toeplitz_weight(w_hwio, width, k_pad=None):
    """HWIO 3x3 kernel -> block-Toeplitz weight, no horizontal zero-pad columns.

        Wt[dy*width*cin + x*cin + ci, w*cout + co] = w_hwio[dy, x - w + 1, ci, co]

    for |x - w| <= 1 (zero elsewhere).  With lhs rows carrying the three
    vertically shifted input rows (each row-flattened as (x, ci) lanes), a single
    lhs @ Wt matmul realises conv3x3(padding=1); border (pad) columns contribute
    zero and are simply absent, shrinking K by 2*cin per vertical tap.
    """
    _, _, cin, cout = w_hwio.shape
    # shift[dx, x, w] = 1 iff x == w + dx - 1
    shift = jnp.stack(
        [jnp.eye(width, width, k=1 - dx, dtype=w_hwio.dtype) for dx in range(3)],
        axis=0)                                               # (3, width, width)
    wt = jnp.einsum("yxio,xpw->ypiwo", w_hwio, shift)         # (3, width, cin, width, cout)
    wt = wt.reshape(3 * width * cin, width * cout)
    if k_pad is not None and k_pad > wt.shape[0]:
        wt = jnp.pad(wt, ((0, k_pad - wt.shape[0]), (0, 0)))
    return wt


def _pool_selector(width, nb):
    """(2*ho*nb, width*nb) 0/1 selector for the (y-major, n-minor) row stack:
    top half picks even rows (y = 2*yo), bottom half the odd rows (y = 2*yo+1)."""
    ho = width // 2
    pv = np.zeros((2 * ho * nb, width * nb), np.float32)
    for yo in range(ho):
        for n in range(nb):
            r = yo * nb + n
            pv[r, (2 * yo) * nb + n] = 1.0
            pv[ho * nb + r, (2 * yo + 1) * nb + n] = 1.0
    return jnp.asarray(pv)


def _fold_blocks(row, width, cout):
    """Sum the `width` column blocks (each `cout` lanes) of a (1, width*cout) row
    down to (1, cout) with a log2(width) halving tree (width is a power of two)."""
    t = row
    blocks = width
    while blocks > 1:
        half = (blocks // 2) * cout
        t = t[:, :half] + t[:, half:]
        blocks //= 2
    return t


# --------------------------------------------------------------------------- #
# the single fused kernel: 4 x [conv + BN(train) + ReLU + pool2x2] + linear
# --------------------------------------------------------------------------- #
def _make_fused_kernel(n_batch, hs, cout):
    n_layers = len(hs)

    def kernel(x_ref, w0_hbm, w1_hbm, w2_hbm, w3_hbm, g_ref, be_ref,
               pv0_ref, pv1_ref, pv2_ref, pv3_ref, wl_ref, bl_ref,
               out_ref,
               wv0, wv1, wv2, wv3, act1, act2, act3, sem):
        w_hbm = (w0_hbm, w1_hbm, w2_hbm, w3_hbm)
        w_vmem = (wv0, wv1, wv2, wv3)
        act_refs = (act1, act2, act3)
        pv_refs = (pv0_ref, pv1_ref, pv2_ref, pv3_ref)

        # Kick off all four weight HBM->VMEM copies up front; layer i only waits
        # on its own copy, so later layers' weight DMA overlaps earlier compute.
        copies = [pltpu.make_async_copy(w_hbm[i], w_vmem[i], sem.at[i])
                  for i in range(n_layers)]
        for cp in copies:
            cp.start()

        lhs = x_ref[...]                                     # (16*N, K0) bf16
        for i in range(n_layers):
            width = hs[i]                                    # input/conv spatial size
            ho = width // 2                                  # spatial size after pool
            hb = ho * n_batch
            copies[i].wait()

            # ---- conv3x3(pad=1): ONE bf16 MXU matmul, M = width*N rows -------
            acc = jnp.dot(lhs, w_vmem[i][...],
                          preferred_element_type=jnp.float32)    # (width*N, width*cout)

            # ---- BatchNorm (training): centered two-pass batch stats ---------
            # (conv bias omitted: a per-channel constant cancels under train BN)
            inv_cnt = 1.0 / float(n_batch * width * width)
            tot1 = jnp.sum(acc, axis=0, keepdims=True)           # (1, width*cout)
            mean = _fold_blocks(tot1, width, cout) * inv_cnt     # (1, cout)
            mean_t = jnp.concatenate([mean] * width, axis=-1)
            centered = acc - mean_t
            tot2 = jnp.sum(centered * centered, axis=0, keepdims=True)
            var = _fold_blocks(tot2, width, cout) * inv_cnt      # biased variance
            scale = g_ref[i:i + 1, :] * lax.rsqrt(var + BN_EPS)  # (1, cout)
            scale_t = jnp.concatenate([scale] * width, axis=-1)
            beta_t = jnp.concatenate([be_ref[i:i + 1, :]] * width, axis=-1)
            y = jnp.maximum(centered * scale_t + beta_t, 0.0)    # ReLU

            # ---- 2x2 max-pool -------------------------------------------------
            # Horizontal: block b of m_all = max(column blocks b, b+1); keep the
            # even blocks (128-lane-aligned starts).  The single 64-lane-offset
            # read happens once per layer, not ho*N times.
            m_all = jnp.maximum(y[:, : (width - 1) * cout], y[:, cout:])
            hsel = jnp.concatenate(
                [m_all[:, (2 * wo) * cout:(2 * wo + 1) * cout] for wo in range(ho)],
                axis=-1)                                         # (width*N, ho*cout)
            # Vertical: one fused even|odd row-selection matmul, then max halves.
            z = jnp.dot(pv_refs[i][...], hsel,
                        preferred_element_type=jnp.float32)      # (2*ho*N, ho*cout)
            pooled = jnp.maximum(z[:hb, :], z[hb:, :])           # (ho*N, ho*cout)

            if i + 1 < n_layers:
                # Next layer's activation slab: bf16, vertical zero-pad rows only
                # (row length stays a multiple of 128 lanes), ONE full-width store.
                pooled_b = pooled.astype(jnp.bfloat16)
                zrow = jnp.zeros((n_batch, ho * cout), jnp.bfloat16)
                act_refs[i][...] = jnp.concatenate([zrow, pooled_b, zrow], axis=0)
                # Three vertical conv taps = three row-shifted full-row reads.
                lhs = jnp.concatenate(
                    [act_refs[i][dy * n_batch:(dy + ho) * n_batch, :]
                     for dy in range(3)], axis=-1)               # (ho*N, 3*ho*cout)
            else:
                # Final spatial is 1x1 -> features == channels, so torch's
                # x.view(N, -1) flatten order is trivially matched.  Batched head
                # matmul + one lane-padded (128-wide) store.
                out_ref[...] = (jnp.dot(pooled, wl_ref[...],
                                        preferred_element_type=jnp.float32)
                                + bl_ref[...])

    return kernel


# --------------------------------------------------------------------------- #
# public entry point
# --------------------------------------------------------------------------- #
def few_shot_classifier_forward(x_nchw, params):
    """forward(): 4 x [conv3x3(pad=1) -> BN(train) -> ReLU -> maxpool2x2], flatten, linear."""
    x = jnp.transpose(x_nchw, (0, 2, 3, 1)).astype(jnp.float32)     # NCHW -> NHWC
    n, h, w, cin = x.shape
    assert h == w and h == 16, "fused kernel assumes 16x16 input (4 pools -> 1x1)"
    # TODO(synk): miniImageNet (84x84 -> 5x5x64 = 1600 features) would need an
    # NCHW-ordered flatten before the head; only the Omniglot-style 1x1 case is wired.
    cout = params["conv0_w"].shape[-1]
    kway = params["logits_w"].shape[-1]
    assert kway <= 128
    hs = [h // (2 ** i) for i in range(4)]                          # [16, 8, 4, 2]
    hdim = 128                                                      # lane-padded head width

    # layer-0 lhs: (y-major, n-minor) row stack, 3 vertical taps concatenated
    # along lanes, K zero-padded up to a multiple of 64, bf16 for the MXU.
    rowflat = jnp.transpose(x.reshape(n, h, w * cin), (1, 0, 2))    # (16, N, 16*cin)
    zrow = jnp.zeros((1, n, w * cin), jnp.float32)
    pstack0 = jnp.concatenate([zrow, rowflat, zrow], 0).reshape((h + 2) * n, w * cin)
    x_lhs = jnp.concatenate([pstack0[dy * n:(dy + h) * n, :] for dy in range(3)],
                            axis=-1)                                # (16*N, 3*16*cin)
    k0 = 3 * h * cin
    k0_pad = ((k0 + 63) // 64) * 64
    x_lhs = jnp.pad(x_lhs, ((0, 0), (0, k0_pad - k0))).astype(jnp.bfloat16)

    # block-Toeplitz conv weights (bf16); left in HBM (pl.ANY) and DMA'd by the
    # kernel so later layers' weight traffic overlaps earlier layers' compute.
    wts = []
    for i in range(4):
        kp = k0_pad if i == 0 else None
        wts.append(_toeplitz_weight(params[f"conv{i}_w"], hs[i], k_pad=kp)
                   .astype(jnp.bfloat16))

    gammas = jnp.stack([params[f"bn{i}_gamma"] for i in range(4)]).astype(jnp.float32)
    betas = jnp.stack([params[f"bn{i}_beta"] for i in range(4)]).astype(jnp.float32)
    pvs = [_pool_selector(hs[i], n) for i in range(4)]

    wl = jnp.pad(params["logits_w"].astype(jnp.float32), ((0, 0), (0, hdim - kway)))
    bl = jnp.pad(params["logits_b"].reshape(1, kway).astype(jnp.float32),
                 ((0, 0), (0, hdim - kway)))

    vmem = pl.BlockSpec(memory_space=pltpu.MemorySpace.VMEM)
    hbm = pl.BlockSpec(memory_space=pl.ANY)

    out_pad = pl.pallas_call(
        _make_fused_kernel(n, hs, cout),
        out_shape=jax.ShapeDtypeStruct((n, hdim), jnp.float32),
        in_specs=[vmem, hbm, hbm, hbm, hbm] + [vmem] * 8,
        out_specs=vmem,
        scratch_shapes=(
            [pltpu.VMEM(wt.shape, jnp.bfloat16) for wt in wts]            # staged weights
            + [pltpu.VMEM(((hs[i] + 2) * n, hs[i] * cout), jnp.bfloat16)  # padded acts
               for i in range(1, 4)]
            + [pltpu.SemaphoreType.DMA((4,))]),
        compiler_params=pltpu.CompilerParams(vmem_limit_bytes=32 * 1024 * 1024),
    )(x_lhs, *wts, gammas, betas, *pvs, wl, bl)
    return out_pad[:, :kway]


# --------------------------------------------------------------------------- #
# pure-JAX reference (same semantics as the PyTorch module in train mode)
# --------------------------------------------------------------------------- #
def reference_forward(x_nchw, params):
    x = x_nchw.astype(jnp.float32)
    for i in range(4):
        x = lax.conv_general_dilated(
            x, params[f"conv{i}_w"], window_strides=(1, 1),
            padding=((1, 1), (1, 1)),
            dimension_numbers=("NCHW", "HWIO", "NCHW"))
        x = x + params[f"conv{i}_b"].reshape(1, -1, 1, 1)
        mean = jnp.mean(x, axis=(0, 2, 3), keepdims=True)
        var = jnp.mean(jnp.square(x - mean), axis=(0, 2, 3), keepdims=True)
        x = (x - mean) * lax.rsqrt(var + BN_EPS)
        x = x * params[f"bn{i}_gamma"].reshape(1, -1, 1, 1) + \
            params[f"bn{i}_beta"].reshape(1, -1, 1, 1)
        x = jnp.maximum(x, 0.0)
        x = lax.reduce_window(x, -jnp.inf, lax.max,
                              (1, 1, 2, 2), (1, 1, 2, 2), "VALID")
    x = x.reshape(x.shape[0], -1)
    return x @ params["logits_w"] + params["logits_b"]


if __name__ == "__main__":
    num_input_channels = 1      # Omniglot-style
    k_way = 5
    batch, hw = 2, 16           # 16x16 -> 4 pools -> 1x1x64 => final_layer_size = 64

    key = jax.random.PRNGKey(0)
    chans = [num_input_channels, 64, 64, 64, 64]
    params = {}
    for i in range(4):
        key, kw, kb, kg, kbe = jax.random.split(key, 5)
        params[f"conv{i}_w"] = 0.1 * jax.random.normal(
            kw, (3, 3, chans[i], chans[i + 1]), jnp.float32)           # HWIO
        params[f"conv{i}_b"] = 0.05 * jax.random.normal(
            kb, (chans[i + 1],), jnp.float32)
        params[f"bn{i}_gamma"] = 1.0 + 0.1 * jax.random.normal(
            kg, (chans[i + 1],), jnp.float32)
        params[f"bn{i}_beta"] = 0.05 * jax.random.normal(
            kbe, (chans[i + 1],), jnp.float32)
    key, kl, klb, kx = jax.random.split(key, 4)
    params["logits_w"] = 0.1 * jax.random.normal(kl, (64, k_way), jnp.float32)
    params["logits_b"] = 0.05 * jax.random.normal(klb, (k_way,), jnp.float32)

    x = jax.random.normal(kx, (batch, num_input_channels, hw, hw), jnp.float32)  # NCHW

    out = jax.jit(few_shot_classifier_forward)(x, params)
    out = jax.block_until_ready(out)
    assert out.shape == (batch, k_way)

    ref = reference_forward(x, params)
    # bf16 matmul operands across 4 stacked conv layers -> intentionally loose tol.
    np.testing.assert_allclose(np.asarray(out), np.asarray(ref), rtol=2e-2, atol=2e-2)

    print("KERNEL_OK")
</pallas_src>

<mosaic_0001>
module attributes {stable_mosaic.version = 11 : i64} {
  func.func @kernel(%arg0: memref<32x64xbf16, #tpu.memory_space<vmem>>, %arg1: memref<64x1024xbf16, #tpu.memory_space<any>>, %arg2: memref<1536x512xbf16, #tpu.memory_space<any>>, %arg3: memref<768x256xbf16, #tpu.memory_space<any>>, %arg4: memref<384x128xbf16, #tpu.memory_space<any>>, %arg5: memref<4x64xf32, #tpu.memory_space<vmem>>, %arg6: memref<4x64xf32, #tpu.memory_space<vmem>>, %arg7: memref<32x32xf32, #tpu.memory_space<vmem>>, %arg8: memref<16x16xf32, #tpu.memory_space<vmem>>, %arg9: memref<8x8xf32, #tpu.memory_space<vmem>>, %arg10: memref<4x4xf32, #tpu.memory_space<vmem>>, %arg11: memref<64x128xf32, #tpu.memory_space<vmem>>, %arg12: memref<1x128xf32, #tpu.memory_space<vmem>>, %arg13: memref<2x128xf32, #tpu.memory_space<vmem>>, %arg14: memref<64x1024xbf16, #tpu.memory_space<vmem>>, %arg15: memref<1536x512xbf16, #tpu.memory_space<vmem>>, %arg16: memref<768x256xbf16, #tpu.memory_space<vmem>>, %arg17: memref<384x128xbf16, #tpu.memory_space<vmem>>, %arg18: memref<20x512xbf16, #tpu.memory_space<vmem>>, %arg19: memref<12x256xbf16, #tpu.memory_space<vmem>>, %arg20: memref<8x128xbf16, #tpu.memory_space<vmem>>, %arg21: memref<4x!tpu.dma_semaphore, #tpu.memory_space<semaphore_mem>>) attributes {dimension_semantics = [], scalar_prefetch = 0 : i64, scratch_operands = 8 : i64, tpu.core_type = #tpu.core_type<tc>} {
    %c0_i32 = arith.constant 0 : i32
    %0 = tpu.memref_slice %arg21[%c0_i32] : memref<4x!tpu.dma_semaphore, #tpu.memory_space<semaphore_mem>> -> memref<1x!tpu.dma_semaphore, #tpu.memory_space<semaphore_mem>>
    %1 = tpu.memref_squeeze %0 : memref<1x!tpu.dma_semaphore, #tpu.memory_space<semaphore_mem>> -> memref<!tpu.dma_semaphore, #tpu.memory_space<semaphore_mem>>
    tpu.enqueue_dma source(%arg1 : memref<64x1024xbf16, #tpu.memory_space<any>>) target(%arg14 : memref<64x1024xbf16, #tpu.memory_space<vmem>>) target_semaphore(%1 : memref<!tpu.dma_semaphore, #tpu.memory_space<semaphore_mem>>)
    %c1_i32 = arith.constant 1 : i32
    %2 = tpu.memref_slice %arg21[%c1_i32] : memref<4x!tpu.dma_semaphore, #tpu.memory_space<semaphore_mem>> -> memref<1x!tpu.dma_semaphore, #tpu.memory_space<semaphore_mem>>
    %3 = tpu.memref_squeeze %2 : memref<1x!tpu.dma_semaphore, #tpu.memory_space<semaphore_mem>> -> memref<!tpu.dma_semaphore, #tpu.memory_space<semaphore_mem>>
    tpu.enqueue_dma source(%arg2 : memref<1536x512xbf16, #tpu.memory_space<any>>) target(%arg15 : memref<1536x512xbf16, #tpu.memory_space<vmem>>) target_semaphore(%3 : memref<!tpu.dma_semaphore, #tpu.memory_space<semaphore_mem>>)
    %c2_i32 = arith.constant 2 : i32
    %4 = tpu.memref_slice %arg21[%c2_i32] : memref<4x!tpu.dma_semaphore, #tpu.memory_space<semaphore_mem>> -> memref<1x!tpu.dma_semaphore, #tpu.memory_space<semaphore_mem>>
    %5 = tpu.memref_squeeze %4 : memref<1x!tpu.dma_semaphore, #tpu.memory_space<semaphore_mem>> -> memref<!tpu.dma_semaphore, #tpu.memory_space<semaphore_mem>>
    tpu.enqueue_dma source(%arg3 : memref<768x256xbf16, #tpu.memory_space<any>>) target(%arg16 : memref<768x256xbf16, #tpu.memory_space<vmem>>) target_semaphore(%5 : memref<!tpu.dma_semaphore, #tpu.memory_space<semaphore_mem>>)
    %c3_i32 = arith.constant 3 : i32
    %6 = tpu.memref_slice %arg21[%c3_i32] : memref<4x!tpu.dma_semaphore, #tpu.memory_space<semaphore_mem>> -> memref<1x!tpu.dma_semaphore, #tpu.memory_space<semaphore_mem>>
    %7 = tpu.memref_squeeze %6 : memref<1x!tpu.dma_semaphore, #tpu.memory_space<semaphore_mem>> -> memref<!tpu.dma_semaphore, #tpu.memory_space<semaphore_mem>>
    tpu.enqueue_dma source(%arg4 : memref<384x128xbf16, #tpu.memory_space<any>>) target(%arg17 : memref<384x128xbf16, #tpu.memory_space<vmem>>) target_semaphore(%7 : memref<!tpu.dma_semaphore, #tpu.memory_space<semaphore_mem>>)
    %c0 = arith.constant 0 : index
    %c0_0 = arith.constant 0 : index
    %8 = vector.load %arg0[%c0, %c0_0] : memref<32x64xbf16, #tpu.memory_space<vmem>>, vector<32x64xbf16>
    %c0_i32_1 = arith.constant 0 : i32
    %9 = tpu.memref_slice %arg21[%c0_i32_1] : memref<4x!tpu.dma_semaphore, #tpu.memory_space<semaphore_mem>> -> memref<1x!tpu.dma_semaphore, #tpu.memory_space<semaphore_mem>>
    %10 = tpu.memref_squeeze %9 : memref<1x!tpu.dma_semaphore, #tpu.memory_space<semaphore_mem>> -> memref<!tpu.dma_semaphore, #tpu.memory_space<semaphore_mem>>
    tpu.wait_dma2 semaphore(%10 : memref<!tpu.dma_semaphore, #tpu.memory_space<semaphore_mem>>) src(%arg1 : memref<64x1024xbf16, #tpu.memory_space<any>>) dst(%arg14 : memref<64x1024xbf16, #tpu.memory_space<vmem>>)
    %c0_2 = arith.constant 0 : index
    %c0_3 = arith.constant 0 : index
    %11 = vector.load %arg14[%c0_2, %c0_3] : memref<64x1024xbf16, #tpu.memory_space<vmem>>, vector<64x1024xbf16>
    %cst = arith.constant dense<0.000000e+00> : vector<32x1024xf32>
    %12 = tpu.matmul %8, %11, %cst {dimension_numbers = #tpu.dot_dimension_numbers<[1], [0], [0], [1], [0, 0, 1, 1], [], []>} : vector<32x64xbf16>, vector<64x1024xbf16>, vector<32x1024xf32> -> vector<32x1024xf32>
    %cst_4 = arith.constant dense<0.000000e+00> : vector<1024xf32>
    %13 = vector.multi_reduction <add>, %12, %cst_4 [0] : vector<32x1024xf32> to vector<1024xf32>
    %14 = vector.shape_cast %13 : vector<1024xf32> to vector<1x1024xf32>
    %15 = vector.extract_strided_slice %14 {offsets = [0, 0], sizes = [1, 512], strides = [1, 1]} : vector<1x1024xf32> to vector<1x512xf32>
    %16 = vector.extract_strided_slice %14 {offsets = [0, 512], sizes = [1, 512], strides = [1, 1]} : vector<1x1024xf32> to vector<1x512xf32>
    %17 = arith.addf %15, %16 : vector<1x512xf32>
    %18 = vector.extract_strided_slice %17 {offsets = [0, 0], sizes = [1, 256], strides = [1, 1]} : vector<1x512xf32> to vector<1x256xf32>
    %19 = vector.extract_strided_slice %17 {offsets = [0, 256], sizes = [1, 256], strides = [1, 1]} : vector<1x512xf32> to vector<1x256xf32>
    %20 = arith.addf %18, %19 : vector<1x256xf32>
    %21 = vector.extract_strided_slice %20 {offsets = [0, 0], sizes = [1, 128], strides = [1, 1]} : vector<1x256xf32> to vector<1x128xf32>
    %22 = vector.extract_strided_slice %20 {offsets = [0, 128], sizes = [1, 128], strides = [1, 1]} : vector<1x256xf32> to vector<1x128xf32>
    %23 = arith.addf %21, %22 : vector<1x128xf32>
    %24 = vector.extract_strided_slice %23 {offsets = [0, 0], sizes = [1, 64], strides = [1, 1]} : vector<1x128xf32> to vector<1x64xf32>
    %25 = vector.extract_strided_slice %23 {offsets = [0, 64], sizes = [1, 64], strides = [1, 1]} : vector<1x128xf32> to vector<1x64xf32>
    %26 = arith.addf %24, %25 : vector<1x64xf32>
    %cst_5 = arith.constant 0.001953125 : f32
    %27 = vector.broadcast %cst_5 : f32 to vector<1x64xf32>
    %28 = arith.mulf %26, %27 : vector<1x64xf32>
    %29 = tpu.concatenate %28, %28, %28, %28, %28, %28, %28, %28, %28, %28, %28, %28, %28, %28, %28, %28 in 1 : vector<1x64xf32>, vector<1x64xf32>, vector<1x64xf32>, vector<1x64xf32>, vector<1x64xf32>, vector<1x64xf32>, vector<1x64xf32>, vector<1x64xf32>, vector<1x64xf32>, vector<1x64xf32>, vector<1x64xf32>, vector<1x64xf32>, vector<1x64xf32>, vector<1x64xf32>, vector<1x64xf32>, vector<1x64xf32> -> vector<1x1024xf32>
    %30 = vector.broadcast %29 : vector<1x1024xf32> to vector<32x1024xf32>
    %31 = arith.subf %12, %30 : vector<32x1024xf32>
    %32 = arith.mulf %31, %31 : vector<32x1024xf32>
    %cst_6 = arith.constant dense<0.000000e+00> : vector<1024xf32>
    %33 = vector.multi_reduction <add>, %32, %cst_6 [0] : vector<32x1024xf32> to vector<1024xf32>
    %34 = vector.shape_cast %33 : vector<1024xf32> to vector<1x1024xf32>
    %35 = vector.extract_strided_slice %34 {offsets = [0, 0], sizes = [1, 512], strides = [1, 1]} : vector<1x1024xf32> to vector<1x512xf32>
    %36 = vector.extract_strided_slice %34 {offsets = [0, 512], sizes = [1, 512], strides = [1, 1]} : vector<1x1024xf32> to vector<1x512xf32>
    %37 = arith.addf %35, %36 : vector<1x512xf32>
    %38 = vector.extract_strided_slice %37 {offsets = [0, 0], sizes = [1, 256], strides = [1, 1]} : vector<1x512xf32> to vector<1x256xf32>
    %39 = vector.extract_strided_slice %37 {offsets = [0, 256], sizes = [1, 256], strides = [1, 1]} : vector<1x512xf32> to vector<1x256xf32>
    %40 = arith.addf %38, %39 : vector<1x256xf32>
    %41 = vector.extract_strided_slice %40 {offsets = [0, 0], sizes = [1, 128], strides = [1, 1]} : vector<1x256xf32> to vector<1x128xf32>
    %42 = vector.extract_strided_slice %40 {offsets = [0, 128], sizes = [1, 128], strides = [1, 1]} : vector<1x256xf32> to vector<1x128xf32>
    %43 = arith.addf %41, %42 : vector<1x128xf32>
    %44 = vector.extract_strided_slice %43 {offsets = [0, 0], sizes = [1, 64], strides = [1, 1]} : vector<1x128xf32> to vector<1x64xf32>
    %45 = vector.extract_strided_slice %43 {offsets = [0, 64], sizes = [1, 64], strides = [1, 1]} : vector<1x128xf32> to vector<1x64xf32>
    %46 = arith.addf %44, %45 : vector<1x64xf32>
    %cst_7 = arith.constant 0.001953125 : f32
    %47 = vector.broadcast %cst_7 : f32 to vector<1x64xf32>
    %48 = arith.mulf %46, %47 : vector<1x64xf32>
    %c0_8 = arith.constant 0 : index
    %c0_9 = arith.constant 0 : index
    %49 = vector.load %arg5[%c0_8, %c0_9] : memref<4x64xf32, #tpu.memory_space<vmem>>, vector<1x64xf32>
    %cst_10 = arith.constant 9.99999974E-6 : f32
    %50 = vector.broadcast %cst_10 : f32 to vector<1x64xf32>
    %51 = arith.addf %48, %50 : vector<1x64xf32>
    %52 = math.rsqrt %51 : vector<1x64xf32>
    %53 = arith.mulf %49, %52 : vector<1x64xf32>
    %54 = tpu.concatenate %53, %53, %53, %53, %53, %53, %53, %53, %53, %53, %53, %53, %53, %53, %53, %53 in 1 : vector<1x64xf32>, vector<1x64xf32>, vector<1x64xf32>, vector<1x64xf32>, vector<1x64xf32>, vector<1x64xf32>, vector<1x64xf32>, vector<1x64xf32>, vector<1x64xf32>, vector<1x64xf32>, vector<1x64xf32>, vector<1x64xf32>, vector<1x64xf32>, vector<1x64xf32>, vector<1x64xf32>, vector<1x64xf32> -> vector<1x1024xf32>
    %c0_11 = arith.constant 0 : index
    %c0_12 = arith.constant 0 : index
    %55 = vector.load %arg6[%c0_11, %c0_12] : memref<4x64xf32, #tpu.memory_space<vmem>>, vector<1x64xf32>
    %56 = tpu.concatenate %55, %55, %55, %55, %55, %55, %55, %55, %55, %55, %55, %55, %55, %55, %55, %55 in 1 : vector<1x64xf32>, vector<1x64xf32>, vector<1x64xf32>, vector<1x64xf32>, vector<1x64xf32>, vector<1x64xf32>, vector<1x64xf32>, vector<1x64xf32>, vector<1x64xf32>, vector<1x64xf32>, vector<1x64xf32>, vector<1x64xf32>, vector<1x64xf32>, vector<1x64xf32>, vector<1x64xf32>, vector<1x64xf32> -> vector<1x1024xf32>
    %57 = vector.broadcast %54 : vector<1x1024xf32> to vector<32x1024xf32>
    %58 = arith.mulf %31, %57 : vector<32x1024xf32>
    %59 = vector.broadcast %56 : vector<1x1024xf32> to vector<32x1024xf32>
    %60 = arith.addf %58, %59 : vector<32x1024xf32>
    %cst_13 = arith.constant 0.000000e+00 : f32
    %61 = vector.broadcast %cst_13 : f32 to vector<32x1024xf32>
    %62 = arith.maximumf %60, %61 : vector<32x1024xf32>
    %63 = vector.extract_strided_slice %62 {offsets = [0, 0], sizes = [32, 960], strides = [1, 1]} : vector<32x1024xf32> to vector<32x960xf32>
    %64 = vector.extract_strided_slice %62 {offsets = [0, 64], sizes = [32, 960], strides = [1, 1]} : vector<32x1024xf32> to vector<32x960xf32>
    %65 = arith.maximumf %63, %64 : vector<32x960xf32>
    %66 = vector.extract_strided_slice %65 {offsets = [0, 0], sizes = [32, 64], strides = [1, 1]} : vector<32x960xf32> to vector<32x64xf32>
    %67 = vector.extract_strided_slice %65 {offsets = [0, 128], sizes = [32, 64], strides = [1, 1]} : vector<32x960xf32> to vector<32x64xf32>
    %68 = vector.extract_strided_slice %65 {offsets = [0, 256], sizes = [32, 64], strides = [1, 1]} : vector<32x960xf32> to vector<32x64xf32>
    %69 = vector.extract_strided_slice %65 {offsets = [0, 384], sizes = [32, 64], strides = [1, 1]} : vector<32x960xf32> to vector<32x64xf32>
    %70 = vector.extract_strided_slice %65 {offsets = [0, 512], sizes = [32, 64], strides = [1, 1]} : vector<32x960xf32> to vector<32x64xf32>
    %71 = vector.extract_strided_slice %65 {offsets = [0, 640], sizes = [32, 64], strides = [1, 1]} : vector<32x960xf32> to vector<32x64xf32>
    %72 = vector.extract_strided_slice %65 {offsets = [0, 768], sizes = [32, 64], strides = [1, 1]} : vector<32x960xf32> to vector<32x64xf32>
    %73 = vector.extract_strided_slice %65 {offsets = [0, 896], sizes = [32, 64], strides = [1, 1]} : vector<32x960xf32> to vector<32x64xf32>
    %74 = tpu.concatenate %66, %67, %68, %69, %70, %71, %72, %73 in 1 : vector<32x64xf32>, vector<32x64xf32>, vector<32x64xf32>, vector<32x64xf32>, vector<32x64xf32>, vector<32x64xf32>, vector<32x64xf32>, vector<32x64xf32> -> vector<32x512xf32>
    %c0_14 = arith.constant 0 : index
    %c0_15 = arith.constant 0 : index
    %75 = vector.load %arg7[%c0_14, %c0_15] : memref<32x32xf32, #tpu.memory_space<vmem>>, vector<32x32xf32>
    %cst_16 = arith.constant dense<0.000000e+00> : vector<32x512xf32>
    %76 = tpu.matmul %75, %74, %cst_16 {dimension_numbers = #tpu.dot_dimension_numbers<[1], [0], [0], [1], [0, 0, 1, 1], [], []>} : vector<32x32xf32>, vector<32x512xf32>, vector<32x512xf32> -> vector<32x512xf32>
    %77 = vector.extract_strided_slice %76 {offsets = [0, 0], sizes = [16, 512], strides = [1, 1]} : vector<32x512xf32> to vector<16x512xf32>
    %78 = vector.extract_strided_slice %76 {offsets = [16, 0], sizes = [16, 512], strides = [1, 1]} : vector<32x512xf32> to vector<16x512xf32>
    %79 = arith.maximumf %77, %78 : vector<16x512xf32>
    %80 = arith.truncf %79 : vector<16x512xf32> to vector<16x512xbf16>
    %cst_17 = arith.constant 0.000000e+00 : bf16
    %81 = vector.broadcast %cst_17 : bf16 to vector<2x512xbf16>
    %82 = tpu.concatenate %81, %80, %81 in 0 : vector<2x512xbf16>, vector<16x512xbf16>, vector<2x512xbf16> -> vector<20x512xbf16>
    %c0_18 = arith.constant 0 : index
    %c0_19 = arith.constant 0 : index
    %83 = vector.load %arg18[%c0_18, %c0_19] : memref<20x512xbf16, #tpu.memory_space<vmem>>, vector<20x512xbf16>
    tpu.vector_store %arg18[%c0_18, %c0_19], %82 {strides = array<i32>} : memref<20x512xbf16, #tpu.memory_space<vmem>>, vector<20x512xbf16>,
    %c0_20 = arith.constant 0 : index
    %c0_21 = arith.constant 0 : index
    %84 = vector.load %arg18[%c0_20, %c0_21] : memref<20x512xbf16, #tpu.memory_space<vmem>>, vector<16x512xbf16>
    %c2 = arith.constant 2 : index
    %c0_22 = arith.constant 0 : index
    %85 = vector.load %arg18[%c2, %c0_22] : memref<20x512xbf16, #tpu.memory_space<vmem>>, vector<16x512xbf16>
    %c4 = arith.constant 4 : index
    %c0_23 = arith.constant 0 : index
    %86 = vector.load %arg18[%c4, %c0_23] : memref<20x512xbf16, #tpu.memory_space<vmem>>, vector<16x512xbf16>
    %87 = tpu.concatenate %84, %85, %86 in 1 : vector<16x512xbf16>, vector<16x512xbf16>, vector<16x512xbf16> -> vector<16x1536xbf16>
    %c1_i32_24 = arith.constant 1 : i32
    %88 = tpu.memref_slice %arg21[%c1_i32_24] : memref<4x!tpu.dma_semaphore, #tpu.memory_space<semaphore_mem>> -> memref<1x!tpu.dma_semaphore, #tpu.memory_space<semaphore_mem>>
    %89 = tpu.memref_squeeze %88 : memref<1x!tpu.dma_semaphore, #tpu.memory_space<semaphore_mem>> -> memref<!tpu.dma_semaphore, #tpu.memory_space<semaphore_mem>>
    tpu.wait_dma2 semaphore(%89 : memref<!tpu.dma_semaphore, #tpu.memory_space<semaphore_mem>>) src(%arg2 : memref<1536x512xbf16, #tpu.memory_space<any>>) dst(%arg15 : memref<1536x512xbf16, #tpu.memory_space<vmem>>)
    %c0_25 = arith.constant 0 : index
    %c0_26 = arith.constant 0 : index
    %90 = vector.load %arg15[%c0_25, %c0_26] : memref<1536x512xbf16, #tpu.memory_space<vmem>>, vector<1536x512xbf16>
    %cst_27 = arith.constant dense<0.000000e+00> : vector<16x512xf32>
    %91 = tpu.matmul %87, %90, %cst_27 {dimension_numbers = #tpu.dot_dimension_numbers<[1], [0], [0], [1], [0, 0, 1, 1], [], []>} : vector<16x1536xbf16>, vector<1536x512xbf16>, vector<16x512xf32> -> vector<16x512xf32>
    %cst_28 = arith.constant dense<0.000000e+00> : vector<512xf32>
    %92 = vector.multi_reduction <add>, %91, %cst_28 [0] : vector<16x512xf32> to vector<512xf32>
    %93 = vector.shape_cast %92 : vector<512xf32> to vector<1x512xf32>
    %94 = vector.extract_strided_slice %93 {offsets = [0, 0], sizes = [1, 256], strides = [1, 1]} : vector<1x512xf32> to vector<1x256xf32>
    %95 = vector.extract_strided_slice %93 {offsets = [0, 256], sizes = [1, 256], strides = [1, 1]} : vector<1x512xf32> to vector<1x256xf32>
    %96 = arith.addf %94, %95 : vector<1x256xf32>
    %97 = vector.extract_strided_slice %96 {offsets = [0, 0], sizes = [1, 128], strides = [1, 1]} : vector<1x256xf32> to vector<1x128xf32>
    %98 = vector.extract_strided_slice %96 {offsets = [0, 128], sizes = [1, 128], strides = [1, 1]} : vector<1x256xf32> to vector<1x128xf32>
    %99 = arith.addf %97, %98 : vector<1x128xf32>
    %100 = vector.extract_strided_slice %99 {offsets = [0, 0], sizes = [1, 64], strides = [1, 1]} : vector<1x128xf32> to vector<1x64xf32>
    %101 = vector.extract_strided_slice %99 {offsets = [0, 64], sizes = [1, 64], strides = [1, 1]} : vector<1x128xf32> to vector<1x64xf32>
    %102 = arith.addf %100, %101 : vector<1x64xf32>
    %cst_29 = arith.constant 7.812500e-03 : f32
    %103 = vector.broadcast %cst_29 : f32 to vector<1x64xf32>
    %104 = arith.mulf %102, %103 : vector<1x64xf32>
    %105 = tpu.concatenate %104, %104, %104, %104, %104, %104, %104, %104 in 1 : vector<1x64xf32>, vector<1x64xf32>, vector<1x64xf32>, vector<1x64xf32>, vector<1x64xf32>, vector<1x64xf32>, vector<1x64xf32>, vector<1x64xf32> -> vector<1x512xf32>
    %106 = vector.broadcast %105 : vector<1x512xf32> to vector<16x512xf32>
    %107 = arith.subf %91, %106 : vector<16x512xf32>
    %108 = arith.mulf %107, %107 : vector<16x512xf32>
    %cst_30 = arith.constant dense<0.000000e+00> : vector<512xf32>
    %109 = vector.multi_reduction <add>, %108, %cst_30 [0] : vector<16x512xf32> to vector<512xf32>
    %110 = vector.shape_cast %109 : vector<512xf32> to vector<1x512xf32>
    %111 = vector.extract_strided_slice %110 {offsets = [0, 0], sizes = [1, 256], strides = [1, 1]} : vector<1x512xf32> to vector<1x256xf32>
    %112 = vector.extract_strided_slice %110 {offsets = [0, 256], sizes = [1, 256], strides = [1, 1]} : vector<1x512xf32> to vector<1x256xf32>
    %113 = arith.addf %111, %112 : vector<1x256xf32>
    %114 = vector.extract_strided_slice %113 {offsets = [0, 0], sizes = [1, 128], strides = [1, 1]} : vector<1x256xf32> to vector<1x128xf32>
    %115 = vector.extract_strided_slice %113 {offsets = [0, 128], sizes = [1, 128], strides = [1, 1]} : vector<1x256xf32> to vector<1x128xf32>
    %116 = arith.addf %114, %115 : vector<1x128xf32>
    %117 = vector.extract_strided_slice %116 {offsets = [0, 0], sizes = [1, 64], strides = [1, 1]} : vector<1x128xf32> to vector<1x64xf32>
    %118 = vector.extract_strided_slice %116 {offsets = [0, 64], sizes = [1, 64], strides = [1, 1]} : vector<1x128xf32> to vector<1x64xf32>
    %119 = arith.addf %117, %118 : vector<1x64xf32>
    %cst_31 = arith.constant 7.812500e-03 : f32
    %120 = vector.broadcast %cst_31 : f32 to vector<1x64xf32>
    %121 = arith.mulf %119, %120 : vector<1x64xf32>
    %c1 = arith.constant 1 : index
    %c0_32 = arith.constant 0 : index
    %122 = vector.load %arg5[%c1, %c0_32] : memref<4x64xf32, #tpu.memory_space<vmem>>, vector<1x64xf32>
    %cst_33 = arith.constant 9.99999974E-6 : f32
    %123 = vector.broadcast %cst_33 : f32 to vector<1x64xf32>
    %124 = arith.addf %121, %123 : vector<1x64xf32>
    %125 = math.rsqrt %124 : vector<1x64xf32>
    %126 = arith.mulf %122, %125 : vector<1x64xf32>
    %127 = tpu.concatenate %126, %126, %126, %126, %126, %126, %126, %126 in 1 : vector<1x64xf32>, vector<1x64xf32>, vector<1x64xf32>, vector<1x64xf32>, vector<1x64xf32>, vector<1x64xf32>, vector<1x64xf32>, vector<1x64xf32> -> vector<1x512xf32>
    %c1_34 = arith.constant 1 : index
    %c0_35 = arith.constant 0 : index
    %128 = vector.load %arg6[%c1_34, %c0_35] : memref<4x64xf32, #tpu.memory_space<vmem>>, vector<1x64xf32>
    %129 = tpu.concatenate %128, %128, %128, %128, %128, %128, %128, %128 in 1 : vector<1x64xf32>, vector<1x64xf32>, vector<1x64xf32>, vector<1x64xf32>, vector<1x64xf32>, vector<1x64xf32>, vector<1x64xf32>, vector<1x64xf32> -> vector<1x512xf32>
    %130 = vector.broadcast %127 : vector<1x512xf32> to vector<16x512xf32>
    %131 = arith.mulf %107, %130 : vector<16x512xf32>
    %132 = vector.broadcast %129 : vector<1x512xf32> to vector<16x512xf32>
    %133 = arith.addf %131, %132 : vector<16x512xf32>
    %cst_36 = arith.constant 0.000000e+00 : f32
    %134 = vector.broadcast %cst_36 : f32 to vector<16x512xf32>
    %135 = arith.maximumf %133, %134 : vector<16x512xf32>
    %136 = vector.extract_strided_slice %135 {offsets = [0, 0], sizes = [16, 448], strides = [1, 1]} : vector<16x512xf32> to vector<16x448xf32>
    %137 = vector.extract_strided_slice %135 {offsets = [0, 64], sizes = [16, 448], strides = [1, 1]} : vector<16x512xf32> to vector<16x448xf32>
    %138 = arith.maximumf %136, %137 : vector<16x448xf32>
    %139 = vector.extract_strided_slice %138 {offsets = [0, 0], sizes = [16, 64], strides = [1, 1]} : vector<16x448xf32> to vector<16x64xf32>
    %140 = vector.extract_strided_slice %138 {offsets = [0, 128], sizes = [16, 64], strides = [1, 1]} : vector<16x448xf32> to vector<16x64xf32>
    %141 = vector.extract_strided_slice %138 {offsets = [0, 256], sizes = [16, 64], strides = [1, 1]} : vector<16x448xf32> to vector<16x64xf32>
    %142 = vector.extract_strided_slice %138 {offsets = [0, 384], sizes = [16, 64], strides = [1, 1]} : vector<16x448xf32> to vector<16x64xf32>
    %143 = tpu.concatenate %139, %140, %141, %142 in 1 : vector<16x64xf32>, vector<16x64xf32>, vector<16x64xf32>, vector<16x64xf32> -> vector<16x256xf32>
    %c0_37 = arith.constant 0 : index
    %c0_38 = arith.constant 0 : index
    %144 = vector.load %arg8[%c0_37, %c0_38] : memref<16x16xf32, #tpu.memory_space<vmem>>, vector<16x16xf32>
    %cst_39 = arith.constant dense<0.000000e+00> : vector<16x256xf32>
    %145 = tpu.matmul %144, %143, %cst_39 {dimension_numbers = #tpu.dot_dimension_numbers<[1], [0], [0], [1], [0, 0, 1, 1], [], []>} : vector<16x16xf32>, vector<16x256xf32>, vector<16x256xf32> -> vector<16x256xf32>
    %146 = vector.extract_strided_slice %145 {offsets = [0, 0], sizes = [8, 256], strides = [1, 1]} : vector<16x256xf32> to vector<8x256xf32>
    %147 = vector.extract_strided_slice %145 {offsets = [8, 0], sizes = [8, 256], strides = [1, 1]} : vector<16x256xf32> to vector<8x256xf32>
    %148 = arith.maximumf %146, %147 : vector<8x256xf32>
    %149 = arith.truncf %148 : vector<8x256xf32> to vector<8x256xbf16>
    %cst_40 = arith.constant 0.000000e+00 : bf16
    %150 = vector.broadcast %cst_40 : bf16 to vector<2x256xbf16>
    %151 = tpu.concatenate %150, %149, %150 in 0 : vector<2x256xbf16>, vector<8x256xbf16>, vector<2x256xbf16> -> vector<12x256xbf16>
    %c0_41 = arith.constant 0 : index
    %c0_42 = arith.constant 0 : index
    %152 = vector.load %arg19[%c0_41, %c0_42] : memref<12x256xbf16, #tpu.memory_space<vmem>>, vector<12x256xbf16>
    tpu.vector_store %arg19[%c0_41, %c0_42], %151 {strides = array<i32>} : memref<12x256xbf16, #tpu.memory_space<vmem>>, vector<12x256xbf16>,
    %c0_43 = arith.constant 0 : index
    %c0_44 = arith.constant 0 : index
    %153 = vector.load %arg19[%c0_43, %c0_44] : memref<12x256xbf16, #tpu.memory_space<vmem>>, vector<8x256xbf16>
    %c2_45 = arith.constant 2 : index
    %c0_46 = arith.constant 0 : index
    %154 = vector.load %arg19[%c2_45, %c0_46] : memref<12x256xbf16, #tpu.memory_space<vmem>>, vector<8x256xbf16>
    %c4_47 = arith.constant 4 : index
    %c0_48 = arith.constant 0 : index
    %155 = vector.load %arg19[%c4_47, %c0_48] : memref<12x256xbf16, #tpu.memory_space<vmem>>, vector<8x256xbf16>
    %156 = tpu.concatenate %153, %154, %155 in 1 : vector<8x256xbf16>, vector<8x256xbf16>, vector<8x256xbf16> -> vector<8x768xbf16>
    %c2_i32_49 = arith.constant 2 : i32
    %157 = tpu.memref_slice %arg21[%c2_i32_49] : memref<4x!tpu.dma_semaphore, #tpu.memory_space<semaphore_mem>> -> memref<1x!tpu.dma_semaphore, #tpu.memory_space<semaphore_mem>>
    %158 = tpu.memref_squeeze %157 : memref<1x!tpu.dma_semaphore, #tpu.memory_space<semaphore_mem>> -> memref<!tpu.dma_semaphore, #tpu.memory_space<semaphore_mem>>
    tpu.wait_dma2 semaphore(%158 : memref<!tpu.dma_semaphore, #tpu.memory_space<semaphore_mem>>) src(%arg3 : memref<768x256xbf16, #tpu.memory_space<any>>) dst(%arg16 : memref<768x256xbf16, #tpu.memory_space<vmem>>)
    %c0_50 = arith.constant 0 : index
    %c0_51 = arith.constant 0 : index
    %159 = vector.load %arg16[%c0_50, %c0_51] : memref<768x256xbf16, #tpu.memory_space<vmem>>, vector<768x256xbf16>
    %cst_52 = arith.constant dense<0.000000e+00> : vector<8x256xf32>
    %160 = tpu.matmul %156, %159, %cst_52 {dimension_numbers = #tpu.dot_dimension_numbers<[1], [0], [0], [1], [0, 0, 1, 1], [], []>} : vector<8x768xbf16>, vector<768x256xbf16>, vector<8x256xf32> -> vector<8x256xf32>
    %cst_53 = arith.constant dense<0.000000e+00> : vector<256xf32>
    %161 = vector.multi_reduction <add>, %160, %cst_53 [0] : vector<8x256xf32> to vector<256xf32>
    %162 = vector.shape_cast %161 : vector<256xf32> to vector<1x256xf32>
    %163 = vector.extract_strided_slice %162 {offsets = [0, 0], sizes = [1, 128], strides = [1, 1]} : vector<1x256xf32> to vector<1x128xf32>
    %164 = vector.extract_strided_slice %162 {offsets = [0, 128], sizes = [1, 128], strides = [1, 1]} : vector<1x256xf32> to vector<1x128xf32>
    %165 = arith.addf %163, %164 : vector<1x128xf32>
    %166 = vector.extract_strided_slice %165 {offsets = [0, 0], sizes = [1, 64], strides = [1, 1]} : vector<1x128xf32> to vector<1x64xf32>
    %167 = vector.extract_strided_slice %165 {offsets = [0, 64], sizes = [1, 64], strides = [1, 1]} : vector<1x128xf32> to vector<1x64xf32>
    %168 = arith.addf %166, %167 : vector<1x64xf32>
    %cst_54 = arith.constant 3.125000e-02 : f32
    %169 = vector.broadcast %cst_54 : f32 to vector<1x64xf32>
    %170 = arith.mulf %168, %169 : vector<1x64xf32>
    %171 = tpu.concatenate %170, %170, %170, %170 in 1 : vector<1x64xf32>, vector<1x64xf32>, vector<1x64xf32>, vector<1x64xf32> -> vector<1x256xf32>
    %172 = vector.broadcast %171 : vector<1x256xf32> to vector<8x256xf32>
    %173 = arith.subf %160, %172 : vector<8x256xf32>
    %174 = arith.mulf %173, %173 : vector<8x256xf32>
    %cst_55 = arith.constant dense<0.000000e+00> : vector<256xf32>
    %175 = vector.multi_reduction <add>, %174, %cst_55 [0] : vector<8x256xf32> to vector<256xf32>
    %176 = vector.shape_cast %175 : vector<256xf32> to vector<1x256xf32>
    %177 = vector.extract_strided_slice %176 {offsets = [0, 0], sizes = [1, 128], strides = [1, 1]} : vector<1x256xf32> to vector<1x128xf32>
    %178 = vector.extract_strided_slice %176 {offsets = [0, 128], sizes = [1, 128], strides = [1, 1]} : vector<1x256xf32> to vector<1x128xf32>
    %179 = arith.addf %177, %178 : vector<1x128xf32>
    %180 = vector.extract_strided_slice %179 {offsets = [0, 0], sizes = [1, 64], strides = [1, 1]} : vector<1x128xf32> to vector<1x64xf32>
    %181 = vector.extract_strided_slice %179 {offsets = [0, 64], sizes = [1, 64], strides = [1, 1]} : vector<1x128xf32> to vector<1x64xf32>
    %182 = arith.addf %180, %181 : vector<1x64xf32>
    %cst_56 = arith.constant 3.125000e-02 : f32
    %183 = vector.broadcast %cst_56 : f32 to vector<1x64xf32>
    %184 = arith.mulf %182, %183 : vector<1x64xf32>
    %c2_57 = arith.constant 2 : index
    %c0_58 = arith.constant 0 : index
    %185 = vector.load %arg5[%c2_57, %c0_58] : memref<4x64xf32, #tpu.memory_space<vmem>>, vector<1x64xf32>
    %cst_59 = arith.constant 9.99999974E-6 : f32
    %186 = vector.broadcast %cst_59 : f32 to vector<1x64xf32>
    %187 = arith.addf %184, %186 : vector<1x64xf32>
    %188 = math.rsqrt %187 : vector<1x64xf32>
    %189 = arith.mulf %185, %188 : vector<1x64xf32>
    %190 = tpu.concatenate %189, %189, %189, %189 in 1 : vector<1x64xf32>, vector<1x64xf32>, vector<1x64xf32>, vector<1x64xf32> -> vector<1x256xf32>
    %c2_60 = arith.constant 2 : index
    %c0_61 = arith.constant 0 : index
    %191 = vector.load %arg6[%c2_60, %c0_61] : memref<4x64xf32, #tpu.memory_space<vmem>>, vector<1x64xf32>
    %192 = tpu.concatenate %191, %191, %191, %191 in 1 : vector<1x64xf32>, vector<1x64xf32>, vector<1x64xf32>, vector<1x64xf32> -> vector<1x256xf32>
    %193 = vector.broadcast %190 : vector<1x256xf32> to vector<8x256xf32>
    %194 = arith.mulf %173, %193 : vector<8x256xf32>
    %195 = vector.broadcast %192 : vector<1x256xf32> to vector<8x256xf32>
    %196 = arith.addf %194, %195 : vector<8x256xf32>
    %cst_62 = arith.constant 0.000000e+00 : f32
    %197 = vector.broadcast %cst_62 : f32 to vector<8x256xf32>
    %198 = arith.maximumf %196, %197 : vector<8x256xf32>
    %199 = vector.extract_strided_slice %198 {offsets = [0, 0], sizes = [8, 192], strides = [1, 1]} : vector<8x256xf32> to vector<8x192xf32>
    %200 = vector.extract_strided_slice %198 {offsets = [0, 64], sizes = [8, 192], strides = [1, 1]} : vector<8x256xf32> to vector<8x192xf32>
    %201 = arith.maximumf %199, %200 : vector<8x192xf32>
    %202 = vector.extract_strided_slice %201 {offsets = [0, 0], sizes = [8, 64], strides = [1, 1]} : vector<8x192xf32> to vector<8x64xf32>
    %203 = vector.extract_strided_slice %201 {offsets = [0, 128], sizes = [8, 64], strides = [1, 1]} : vector<8x192xf32> to vector<8x64xf32>
    %204 = tpu.concatenate %202, %203 in 1 : vector<8x64xf32>, vector<8x64xf32> -> vector<8x128xf32>
    %c0_63 = arith.constant 0 : index
    %c0_64 = arith.constant 0 : index
    %205 = vector.load %arg9[%c0_63, %c0_64] : memref<8x8xf32, #tpu.memory_space<vmem>>, vector<8x8xf32>
    %cst_65 = arith.constant dense<0.000000e+00> : vector<8x128xf32>
    %206 = tpu.matmul %205, %204, %cst_65 {dimension_numbers = #tpu.dot_dimension_numbers<[1], [0], [0], [1], [0, 0, 1, 1], [], []>} : vector<8x8xf32>, vector<8x128xf32>, vector<8x128xf32> -> vector<8x128xf32>
    %207 = vector.extract_strided_slice %206 {offsets = [0, 0], sizes = [4, 128], strides = [1, 1]} : vector<8x128xf32> to vector<4x128xf32>
    %208 = vector.extract_strided_slice %206 {offsets = [4, 0], sizes = [4, 128], strides = [1, 1]} : vector<8x128xf32> to vector<4x128xf32>
    %209 = arith.maximumf %207, %208 : vector<4x128xf32>
    %210 = arith.truncf %209 : vector<4x128xf32> to vector<4x128xbf16>
    %cst_66 = arith.constant 0.000000e+00 : bf16
    %211 = vector.broadcast %cst_66 : bf16 to vector<2x128xbf16>
    %212 = tpu.concatenate %211, %210, %211 in 0 : vector<2x128xbf16>, vector<4x128xbf16>, vector<2x128xbf16> -> vector<8x128xbf16>
    %c0_67 = arith.constant 0 : index
    %c0_68 = arith.constant 0 : index
    %213 = vector.load %arg20[%c0_67, %c0_68] : memref<8x128xbf16, #tpu.memory_space<vmem>>, vector<8x128xbf16>
    tpu.vector_store %arg20[%c0_67, %c0_68], %212 {strides = array<i32>} : memref<8x128xbf16, #tpu.memory_space<vmem>>, vector<8x128xbf16>,
    %c0_69 = arith.constant 0 : index
    %c0_70 = arith.constant 0 : index
    %214 = vector.load %arg20[%c0_69, %c0_70] : memref<8x128xbf16, #tpu.memory_space<vmem>>, vector<4x128xbf16>
    %c2_71 = arith.constant 2 : index
    %c0_72 = arith.constant 0 : index
    %215 = vector.load %arg20[%c2_71, %c0_72] : memref<8x128xbf16, #tpu.memory_space<vmem>>, vector<4x128xbf16>
    %c4_73 = arith.constant 4 : index
    %c0_74 = arith.constant 0 : index
    %216 = vector.load %arg20[%c4_73, %c0_74] : memref<8x128xbf16, #tpu.memory_space<vmem>>, vector<4x128xbf16>
    %217 = tpu.concatenate %214, %215, %216 in 1 : vector<4x128xbf16>, vector<4x128xbf16>, vector<4x128xbf16> -> vector<4x384xbf16>
    %c3_i32_75 = arith.constant 3 : i32
    %218 = tpu.memref_slice %arg21[%c3_i32_75] : memref<4x!tpu.dma_semaphore, #tpu.memory_space<semaphore_mem>> -> memref<1x!tpu.dma_semaphore, #tpu.memory_space<semaphore_mem>>
    %219 = tpu.memref_squeeze %218 : memref<1x!tpu.dma_semaphore, #tpu.memory_space<semaphore_mem>> -> memref<!tpu.dma_semaphore, #tpu.memory_space<semaphore_mem>>
    tpu.wait_dma2 semaphore(%219 : memref<!tpu.dma_semaphore, #tpu.memory_space<semaphore_mem>>) src(%arg4 : memref<384x128xbf16, #tpu.memory_space<any>>) dst(%arg17 : memref<384x128xbf16, #tpu.memory_space<vmem>>)
    %c0_76 = arith.constant 0 : index
    %c0_77 = arith.constant 0 : index
    %220 = vector.load %arg17[%c0_76, %c0_77] : memref<384x128xbf16, #tpu.memory_space<vmem>>, vector<384x128xbf16>
    %cst_78 = arith.constant dense<0.000000e+00> : vector<4x128xf32>
    %221 = tpu.matmul %217, %220, %cst_78 {dimension_numbers = #tpu.dot_dimension_numbers<[1], [0], [0], [1], [0, 0, 1, 1], [], []>} : vector<4x384xbf16>, vector<384x128xbf16>, vector<4x128xf32> -> vector<4x128xf32>
    %cst_79 = arith.constant dense<0.000000e+00> : vector<128xf32>
    %222 = vector.multi_reduction <add>, %221, %cst_79 [0] : vector<4x128xf32> to vector<128xf32>
    %223 = vector.shape_cast %222 : vector<128xf32> to vector<1x128xf32>
    %224 = vector.extract_strided_slice %223 {offsets = [0, 0], sizes = [1, 64], strides = [1, 1]} : vector<1x128xf32> to vector<1x64xf32>
    %225 = vector.extract_strided_slice %223 {offsets = [0, 64], sizes = [1, 64], strides = [1, 1]} : vector<1x128xf32> to vector<1x64xf32>
    %226 = arith.addf %224, %225 : vector<1x64xf32>
    %cst_80 = arith.constant 1.250000e-01 : f32
    %227 = vector.broadcast %cst_80 : f32 to vector<1x64xf32>
    %228 = arith.mulf %226, %227 : vector<1x64xf32>
    %229 = tpu.concatenate %228, %228 in 1 : vector<1x64xf32>, vector<1x64xf32> -> vector<1x128xf32>
    %230 = vector.broadcast %229 : vector<1x128xf32> to vector<4x128xf32>
    %231 = arith.subf %221, %230 : vector<4x128xf32>
    %232 = arith.mulf %231, %231 : vector<4x128xf32>
    %cst_81 = arith.constant dense<0.000000e+00> : vector<128xf32>
    %233 = vector.multi_reduction <add>, %232, %cst_81 [0] : vector<4x128xf32> to vector<128xf32>
    %234 = vector.shape_cast %233 : vector<128xf32> to vector<1x128xf32>
    %235 = vector.extract_strided_slice %234 {offsets = [0, 0], sizes = [1, 64], strides = [1, 1]} : vector<1x128xf32> to vector<1x64xf32>
    %236 = vector.extract_strided_slice %234 {offsets = [0, 64], sizes = [1, 64], strides = [1, 1]} : vector<1x128xf32> to vector<1x64xf32>
    %237 = arith.addf %235, %236 : vector<1x64xf32>
    %cst_82 = arith.constant 1.250000e-01 : f32
    %238 = vector.broadcast %cst_82 : f32 to vector<1x64xf32>
    %239 = arith.mulf %237, %238 : vector<1x64xf32>
    %c3 = arith.constant 3 : index
    %c0_83 = arith.constant 0 : index
    %240 = vector.load %arg5[%c3, %c0_83] : memref<4x64xf32, #tpu.memory_space<vmem>>, vector<1x64xf32>
    %cst_84 = arith.constant 9.99999974E-6 : f32
    %241 = vector.broadcast %cst_84 : f32 to vector<1x64xf32>
    %242 = arith.addf %239, %241 : vector<1x64xf32>
    %243 = math.rsqrt %242 : vector<1x64xf32>
    %244 = arith.mulf %240, %243 : vector<1x64xf32>
    %245 = tpu.concatenate %244, %244 in 1 : vector<1x64xf32>, vector<1x64xf32> -> vector<1x128xf32>
    %c3_85 = arith.constant 3 : index
    %c0_86 = arith.constant 0 : index
    %246 = vector.load %arg6[%c3_85, %c0_86] : memref<4x64xf32, #tpu.memory_space<vmem>>, vector<1x64xf32>
    %247 = tpu.concatenate %246, %246 in 1 : vector<1x64xf32>, vector<1x64xf32> -> vector<1x128xf32>
    %248 = vector.broadcast %245 : vector<1x128xf32> to vector<4x128xf32>
    %249 = arith.mulf %231, %248 : vector<4x128xf32>
    %250 = vector.broadcast %247 : vector<1x128xf32> to vector<4x128xf32>
    %251 = arith.addf %249, %250 : vector<4x128xf32>
    %cst_87 = arith.constant 0.000000e+00 : f32
    %252 = vector.broadcast %cst_87 : f32 to vector<4x128xf32>
    %253 = arith.maximumf %251, %252 : vector<4x128xf32>
    %254 = vector.extract_strided_slice %253 {offsets = [0, 0], sizes = [4, 64], strides = [1, 1]} : vector<4x128xf32> to vector<4x64xf32>
    %255 = vector.extract_strided_slice %253 {offsets = [0, 64], sizes = [4, 64], strides = [1, 1]} : vector<4x128xf32> to vector<4x64xf32>
    %256 = arith.maximumf %254, %255 : vector<4x64xf32>
    %c0_88 = arith.constant 0 : index
    %c0_89 = arith.constant 0 : index
    %257 = vector.load %arg10[%c0_88, %c0_89] : memref<4x4xf32, #tpu.memory_space<vmem>>, vector<4x4xf32>
    %cst_90 = arith.constant dense<0.000000e+00> : vector<4x64xf32>
    %258 = tpu.matmul %257, %256, %cst_90 {dimension_numbers = #tpu.dot_dimension_numbers<[1], [0], [0], [1], [0, 0, 1, 1], [], []>} : vector<4x4xf32>, vector<4x64xf32>, vector<4x64xf32> -> vector<4x64xf32>
    %259 = vector.extract_strided_slice %258 {offsets = [0, 0], sizes = [2, 64], strides = [1, 1]} : vector<4x64xf32> to vector<2x64xf32>
    %260 = vector.extract_strided_slice %258 {offsets = [2, 0], sizes = [2, 64], strides = [1, 1]} : vector<4x64xf32> to vector<2x64xf32>
    %261 = arith.maximumf %259, %260 : vector<2x64xf32>
    %c0_91 = arith.constant 0 : index
    %c0_92 = arith.constant 0 : index
    %262 = vector.load %arg11[%c0_91, %c0_92] : memref<64x128xf32, #tpu.memory_space<vmem>>, vector<64x128xf32>
    %cst_93 = arith.constant dense<0.000000e+00> : vector<2x128xf32>
    %263 = tpu.matmul %261, %262, %cst_93 {dimension_numbers = #tpu.dot_dimension_numbers<[1], [0], [0], [1], [0, 0, 1, 1], [], []>} : vector<2x64xf32>, vector<64x128xf32>, vector<2x128xf32> -> vector<2x128xf32>
    %c0_94 = arith.constant 0 : index
    %c0_95 = arith.constant 0 : index
    %264 = vector.load %arg12[%c0_94, %c0_95] : memref<1x128xf32, #tpu.memory_space<vmem>>, vector<1x128xf32>
    %265 = vector.broadcast %264 : vector<1x128xf32> to vector<2x128xf32>
    %266 = arith.addf %263, %265 : vector<2x128xf32>
    %c0_96 = arith.constant 0 : index
    %c0_97 = arith.constant 0 : index
    %267 = vector.load %arg13[%c0_96, %c0_97] : memref<2x128xf32, #tpu.memory_space<vmem>>, vector<2x128xf32>
    tpu.vector_store %arg13[%c0_96, %c0_97], %266 {strides = array<i32>} : memref<2x128xf32, #tpu.memory_space<vmem>>, vector<2x128xf32>,
    return
  }
}

</mosaic_0001>

<llo_original>
// kernel: few_shot_classifier_forward.1
$region0: #{few_shot_classifier_forward.1}
  #allocation0 [shape = 'u32[]', space=smem, size = 0x4, offset = 0x4, fixed_abs, tag = 'smem constant byte address 0x4 - core index']
  #allocation1 [shape = 'u32[144,128]{1,0:T(1,128)}', space=vmem, size = 0x12000, scoped, tag = 'internal scratch']
  #allocation2 [shape = 'bf16[64,1024]{1,0:T(8,128)(2,1)}', space=vmem, size = 0x20000, scoped, tag = 'scratch operand']
  #allocation3 [shape = 'bf16[1536,512]{1,0:T(8,128)(2,1)}', space=vmem, size = 0x180000, scoped, tag = 'scratch operand']
  #allocation4 [shape = 'bf16[768,256]{1,0:T(8,128)(2,1)}', space=vmem, size = 0x60000, scoped, tag = 'scratch operand']
  #allocation5 [shape = 'bf16[384,128]{1,0:T(8,128)(2,1)}', space=vmem, size = 0x18000, scoped, tag = 'scratch operand']
  #allocation6 [shape = 'bf16[20,512]{1,0:T(8,128)(2,1)}', space=vmem, size = 0x6000, scoped, tag = 'scratch operand']
  #allocation7 [shape = 'bf16[12,256]{1,0:T(8,128)(2,1)}', space=vmem, size = 0x2000, scoped, tag = 'scratch operand']
  #allocation8 [shape = 'bf16[8,128]{1,0:T(8,128)(2,1)}', space=vmem, size = 0x800, scoped, tag = 'scratch operand']
  #allocation9 [shape = 's32[4]{0}', space=sflag, size = 0x10, scoped, tag = 'scratch operand']
  #allocation12 [shape = 's32[]', space=sflag, size = 0x4, offset = 0, fixed_abs, tag = 'sflag constant byte address 0x0 - dummy sync flag']
  #allocation13 [shape = 's32[]', space=sflag, size = 0x4, offset = 0, fixed_abs, tag = 'sflag constant byte address 0x0 - dummy sync flag']
  #allocation14 [shape = 's32[]', space=sflag, size = 0x4, offset = 0, fixed_abs, tag = 'sflag constant byte address 0x0 - dummy sync flag']
  #allocation15 [shape = 's32[]', space=sflag, size = 0x4, offset = 0, fixed_abs, tag = 'sflag constant byte address 0x0 - dummy sync flag']
  %s0 = inlined_call_operand.vmem [shape: bf16[32,64], index: 0, kind: input, shape index: {}]
  %s1 = inlined_call_operand.vmem [shape: bf16[64,1024], index: 1, kind: input, shape index: {}]
  %s2 = inlined_call_operand.vmem [shape: bf16[1536,512], index: 2, kind: input, shape index: {}]
  %s3 = inlined_call_operand.vmem [shape: bf16[768,256], index: 3, kind: input, shape index: {}]
  %s4 = inlined_call_operand.vmem [shape: bf16[384,128], index: 4, kind: input, shape index: {}]
  %s5 = inlined_call_operand.vmem [shape: f32[4,64], index: 5, kind: input, shape index: {}]
  %s6 = inlined_call_operand.vmem [shape: f32[4,64], index: 6, kind: input, shape index: {}]
  %s7 = inlined_call_operand.vmem [shape: f32[32,32], index: 7, kind: input, shape index: {}]
  %s8 = inlined_call_operand.vmem [shape: f32[16,16], index: 8, kind: input, shape index: {}]
  %s9 = inlined_call_operand.vmem [shape: f32[8,8], index: 9, kind: input, shape index: {}]
  %s10 = inlined_call_operand.vmem [shape: f32[4,4], index: 10, kind: input, shape index: {}]
  %s11 = inlined_call_operand.vmem [shape: f32[64,128], index: 11, kind: input, shape index: {}]
  %s12 = inlined_call_operand.vmem [shape: f32[1,128], index: 12, kind: input, shape index: {}]
  %s13 = inlined_call_operand.hbm [shape: f32[2,128], index: 13, kind: output, shape index: {}]
  %s14 = sld [smem:[#allocation0]]
  $region182: #{few_shot_classifier_forward.1} parent=0
    _
  %s16 = ssub.s32 1, %s14
  %s17 = scalar_select 0, %s16, %s14
  $region1: #{few_shot_classifier_forward.1} parent=0
    #allocation10 [shape = 'u8[1024]{0}', space=vmem, size = 0x400, scoped, tag = 'output window, operand 0, single buffered']
    #allocation11 [shape = 's32[1]{0}', space=sflag, size = 0x4, scoped, tag = 'scoped memory for few_shot_classifier_forward.1']
    %18 = vsyncpa [#allocation11], 0
    // Predicated region
    $region2: #{few_shot_classifier_forward.1} parent=1 // pred_check
      _
    $region3: #{few_shot_classifier_forward.1} parent=1 // pred_check_branch
      %20 = sbr.rel (0) target = $region5
    $region4: #{few_shot_classifier_forward.1} parent=1 // pred_region
      _
    $region5: #{few_shot_classifier_forward.1} parent=1 // pred_fallthru
      _
    // Predicated region
    $region6: #{few_shot_classifier_forward.1} parent=1 // pred_check
      _
    $region7: #{few_shot_classifier_forward.1} parent=1 // pred_check_branch
      %22 = sbr.rel (0) target = $region9
    $region8: #{few_shot_classifier_forward.1} parent=1 // pred_region
      _
    $region9: #{few_shot_classifier_forward.1} parent=1 // pred_fallthru
      _
    // Predicated region
    $region10: #{few_shot_classifier_forward.1} parent=1 // pred_check
      _
    $region11: #{few_shot_classifier_forward.1} parent=1 // pred_check_branch
      %24 = sbr.rel (0) target = $region13
    $region12: #{few_shot_classifier_forward.1} parent=1 // pred_region
      _
    $region13: #{few_shot_classifier_forward.1} parent=1 // pred_fallthru
      _
    // Predicated region
    $region14: #{few_shot_classifier_forward.1} parent=1 // pred_check
      _
    $region15: #{few_shot_classifier_forward.1} parent=1 // pred_check_branch
      %26 = sbr.rel (0) target = $region17
    $region16: #{few_shot_classifier_forward.1} parent=1 // pred_region
      _
    $region17: #{few_shot_classifier_forward.1} parent=1 // pred_fallthru
      _
    // Predicated region
    $region18: #{few_shot_classifier_forward.1} parent=1 // pred_check
      _
    $region19: #{few_shot_classifier_forward.1} parent=1 // pred_check_branch
      %28 = sbr.rel (0) target = $region21
    $region20: #{few_shot_classifier_forward.1} parent=1 // pred_region
      _
    $region21: #{few_shot_classifier_forward.1} parent=1 // pred_fallthru
      _
    // Predicated region
    $region22: #{few_shot_classifier_forward.1} parent=1 // pred_check
      _
    $region23: #{few_shot_classifier_forward.1} parent=1 // pred_check_branch
      %30 = sbr.rel (0) target = $region25
    $region24: #{few_shot_classifier_forward.1} parent=1 // pred_region
      _
    $region25: #{few_shot_classifier_forward.1} parent=1 // pred_fallthru
      _
    // Predicated region
    $region26: #{few_shot_classifier_forward.1} parent=1 // pred_check
      _
    $region27: #{few_shot_classifier_forward.1} parent=1 // pred_check_branch
      %32 = sbr.rel (0) target = $region29
    $region28: #{few_shot_classifier_forward.1} parent=1 // pred_region
      _
    $region29: #{few_shot_classifier_forward.1} parent=1 // pred_fallthru
      _
    // Predicated region
    $region30: #{few_shot_classifier_forward.1} parent=1 // pred_check
      _
    $region31: #{few_shot_classifier_forward.1} parent=1 // pred_check_branch
      %34 = sbr.rel (0) target = $region33
    $region32: #{few_shot_classifier_forward.1} parent=1 // pred_region
      _
    $region33: #{few_shot_classifier_forward.1} parent=1 // pred_fallthru
      _
    // Predicated region
    $region34: #{few_shot_classifier_forward.1} parent=1 // pred_check
      _
    $region35: #{few_shot_classifier_forward.1} parent=1 // pred_check_branch
      %36 = sbr.rel (0) target = $region37
    $region36: #{few_shot_classifier_forward.1} parent=1 // pred_region
      _
    $region37: #{few_shot_classifier_forward.1} parent=1 // pred_fallthru
      _
    %p39 = scmp.lt.u32.totalorder 256, 8
    %p40 = pneg %p39
    // Predicated region
    $region38: #{few_shot_classifier_forward.1} parent=1 // pred_check
      _
    $region39: #{few_shot_classifier_forward.1} parent=1 // pred_check_branch
      %42 = sbr.rel (%p39) target = $region41
    $region40: #{few_shot_classifier_forward.1} parent=1 // pred_region
      %s58 = sand.u32 256, 7
      %p59 = scmp.eq.s32.totalorder %s58, 0
      // Predicated region
      $region53: #{few_shot_classifier_forward.1} parent=40 // pred_check
        %p60 = pneg %p59
      $region54: #{few_shot_classifier_forward.1} parent=40 // pred_check_branch
        %62 = sbr.rel (%p60) target = $region56
      $region55: #{few_shot_classifier_forward.1} parent=40 // pred_region
        loop: start=0, step=1, limit=1
        $region57: #{few_shot_classifier_forward.1} parent=55 // loop_pre_header
          _
        $region58: #{few_shot_classifier_forward.1} parent=55 // loop_header
          %s64 = sphi 0, %s68
          %p65 = scmp.ge.s32.totalorder %s64, 1
          %s69 = sphi %s1, %s1
          %s70 = sphi [#allocation2], [#allocation2]
        $region59: #{few_shot_classifier_forward.1} parent=55 // loop_header_branch
          %67 = sbr.rel (%p65) target = $region63
        $region60: #{few_shot_classifier_forward.1} parent=55 // loop_body
          %v71 = vld [vmem:[%s69] sm:$0xff]
          %72 = vst [vmem:[%s70] sm:$0xff] %v71
          %v73 = vld [vmem:[%s69 + $0x8] sm:$0xff]
          %74 = vst [vmem:[%s70 + $0x8] sm:$0xff] %v73
          %v75 = vld [vmem:[%s69 + $0x10] sm:$0xff]
          %76 = vst [vmem:[%s70 + $0x10] sm:$0xff] %v75
          %v77 = vld [vmem:[%s69 + $0x18] sm:$0xff]
          %78 = vst [vmem:[%s70 + $0x18] sm:$0xff] %v77
          %v79 = vld [vmem:[%s69 + $0x20] sm:$0xff]
          %80 = vst [vmem:[%s70 + $0x20] sm:$0xff] %v79
          %v81 = vld [vmem:[%s69 + $0x28] sm:$0xff]
          %82 = vst [vmem:[%s70 + $0x28] sm:$0xff] %v81
          %v83 = vld [vmem:[%s69 + $0x30] sm:$0xff]
          %84 = vst [vmem:[%s70 + $0x30] sm:$0xff] %v83
          %v85 = vld [vmem:[%s69 + $0x38] sm:$0xff]
          %86 = vst [vmem:[%s70 + $0x38] sm:$0xff] %v85
          %v87 = vld [vmem:[%s69 + $0x40] sm:$0xff]
          %88 = vst [vmem:[%s70 + $0x40] sm:$0xff] %v87
          %v89 = vld [vmem:[%s69 + $0x48] sm:$0xff]
          %90 = vst [vmem:[%s70 + $0x48] sm:$0xff] %v89
          %v91 = vld [vmem:[%s69 + $0x50] sm:$0xff]
          %92 = vst [vmem:[%s70 + $0x50] sm:$0xff] %v91
          %v93 = vld [vmem:[%s69 + $0x58] sm:$0xff]
          %94 = vst [vmem:[%s70 + $0x58] sm:$0xff] %v93
          %v95 = vld [vmem:[%s69 + $0x60] sm:$0xff]
          %96 = vst [vmem:[%s70 + $0x60] sm:$0xff] %v95
          %v97 = vld [vmem:[%s69 + $0x68] sm:$0xff]
          %98 = vst [vmem:[%s70 + $0x68] sm:$0xff] %v97
          %v99 = vld [vmem:[%s69 + $0x70] sm:$0xff]
          %100 = vst [vmem:[%s70 + $0x70] sm:$0xff] %v99
          %v101 = vld [vmem:[%s69 + $0x78] sm:$0xff]
          %102 = vst [vmem:[%s70 + $0x78] sm:$0xff] %v101
          %v103 = vld [vmem:[%s69 + $0x80] sm:$0xff]
          %104 = vst [vmem:[%s70 + $0x80] sm:$0xff] %v103
          %v105 = vld [vmem:[%s69 + $0x88] sm:$0xff]
          %106 = vst [vmem:[%s70 + $0x88] sm:$0xff] %v105
          %v107 = vld [vmem:[%s69 + $0x90] sm:$0xff]
          %108 = vst [vmem:[%s70 + $0x90] sm:$0xff] %v107
          %v109 = vld [vmem:[%s69 + $0x98] sm:$0xff]
          %110 = vst [vmem:[%s70 + $0x98] sm:$0xff] %v109
          %v111 = vld [vmem:[%s69 + $0xa0] sm:$0xff]
          %112 = vst [vmem:[%s70 + $0xa0] sm:$0xff] %v111
          %v113 = vld [vmem:[%s69 + $0xa8] sm:$0xff]
          %114 = vst [vmem:[%s70 + $0xa8] sm:$0xff] %v113
          %v115 = vld [vmem:[%s69 + $0xb0] sm:$0xff]
          %116 = vst [vmem:[%s70 + $0xb0] sm:$0xff] %v115
          %v117 = vld [vmem:[%s69 + $0xb8] sm:$0xff]
          %118 = vst [vmem:[%s70 + $0xb8] sm:$0xff] %v117
          %v119 = vld [vmem:[%s69 + $0xc0] sm:$0xff]
          %120 = vst [vmem:[%s70 + $0xc0] sm:$0xff] %v119
          %v121 = vld [vmem:[%s69 + $0xc8] sm:$0xff]
          %122 = vst [vmem:[%s70 + $0xc8] sm:$0xff] %v121
          %v123 = vld [vmem:[%s69 + $0xd0] sm:$0xff]
          %124 = vst [vmem:[%s70 + $0xd0] sm:$0xff] %v123
          %v125 = vld [vmem:[%s69 + $0xd8] sm:$0xff]
          %126 = vst [vmem:[%s70 + $0xd8] sm:$0xff] %v125
          %v127 = vld [vmem:[%s69 + $0xe0] sm:$0xff]
          %128 = vst [vmem:[%s70 + $0xe0] sm:$0xff] %v127
          %v129 = vld [vmem:[%s69 + $0xe8] sm:$0xff]
          %130 = vst [vmem:[%s70 + $0xe8] sm:$0xff] %v129
          %v131 = vld [vmem:[%s69 + $0xf0] sm:$0xff]
          %132 = vst [vmem:[%s70 + $0xf0] sm:$0xff] %v131
          %v133 = vld [vmem:[%s69 + $0xf8] sm:$0xff]
          %134 = vst [vmem:[%s70 + $0xf8] sm:$0xff] %v133
        $region61: #{few_shot_classifier_forward.1} parent=55 // loop_footer
          %s68 = sadd.s32 1, %s64
        $region62: #{few_shot_classifier_forward.1} parent=55 // loop_footer_branch
          %63 = sbr.rel target = $region58
        $region63: #{few_shot_classifier_forward.1} parent=55 // loop_exit
          _
      $region56: #{few_shot_classifier_forward.1} parent=40 // pred_fallthru
        _
      %p135 = pneg %p59
      // Predicated region
      $region64: #{few_shot_classifier_forward.1} parent=40 // pred_check
        _
      $region65: #{few_shot_classifier_forward.1} parent=40 // pred_check_branch
        %137 = sbr.rel (%p59) target = $region67
      $region66: #{few_shot_classifier_forward.1} parent=40 // pred_region
        %s138 = sand.u32 256, 7
      $region67: #{few_shot_classifier_forward.1} parent=40 // pred_fallthru
        _
    $region41: #{few_shot_classifier_forward.1} parent=1 // pred_fallthru
      _
    // Predicated region
    $region42: #{few_shot_classifier_forward.1} parent=1 // pred_check
      %p43 = pneg %p39
    $region43: #{few_shot_classifier_forward.1} parent=1 // pred_check_branch
      %45 = sbr.rel (%p43) target = $region45
    $region44: #{few_shot_classifier_forward.1} parent=1 // pred_region
      %s46 = sshll.u32 1, 256
      %s47 = ssub.s32 %s46, 1
      loop: start=0, step=1, limit=1
      $region46: #{few_shot_classifier_forward.1} parent=44 // loop_pre_header
        _
      $region47: #{few_shot_classifier_forward.1} parent=44 // loop_header
        %s49 = sphi 0, %s53
        %p50 = scmp.ge.s32.totalorder %s49, 1
        %s54 = sphi %s1, %s1
        %s55 = sphi [#allocation2], [#allocation2]
      $region48: #{few_shot_classifier_forward.1} parent=44 // loop_header_branch
        %52 = sbr.rel (%p50) target = $region52
      $region49: #{few_shot_classifier_forward.1} parent=44 // loop_body
        %v56 = vld [vmem:[%s54] sm:%s47]
        %57 = vst [vmem:[%s55] sm:%s47] %v56
      $region50: #{few_shot_classifier_forward.1} parent=44 // loop_footer
        %s53 = sadd.s32 1, %s49
      $region51: #{few_shot_classifier_forward.1} parent=44 // loop_footer_branch
        %48 = sbr.rel target = $region47
      $region52: #{few_shot_classifier_forward.1} parent=44 // loop_exit
        _
    $region45: #{few_shot_classifier_forward.1} parent=1 // pred_fallthru
      _
    // Predicated region
    $region68: #{few_shot_classifier_forward.1} parent=1 // pred_check
      _
    $region69: #{few_shot_classifier_forward.1} parent=1 // pred_check_branch
      %141 = sbr.rel (0) target = $region71
    $region70: #{few_shot_classifier_forward.1} parent=1 // pred_region
      %142 = vsyncadd [#allocation9], 4096
    $region71: #{few_shot_classifier_forward.1} parent=1 // pred_fallthru
      _
    %s143 = scalar_lea.sflag [#allocation9], 1
    %p145 = scmp.lt.u32.totalorder 3072, 8
    %p146 = pneg %p145
    // Predicated region
    $region72: #{few_shot_classifier_forward.1} parent=1 // pred_check
      _
    $region73: #{few_shot_classifier_forward.1} parent=1 // pred_check_branch
      %148 = sbr.rel (%p145) target = $region75
    $region74: #{few_shot_classifier_forward.1} parent=1 // pred_region
      %s164 = sand.u32 3072, 7
      %p165 = scmp.eq.s32.totalorder %s164, 0
      // Predicated region
      $region87: #{few_shot_classifier_forward.1} parent=74 // pred_check
        %p166 = pneg %p165
      $region88: #{few_shot_classifier_forward.1} parent=74 // pred_check_branch
        %168 = sbr.rel (%p166) target = $region90
      $region89: #{few_shot_classifier_forward.1} parent=74 // pred_region
        loop: start=0, step=1, limit=1
        $region91: #{few_shot_classifier_forward.1} parent=89 // loop_pre_header
          _
        $region92: #{few_shot_classifier_forward.1} parent=89 // loop_header
          %s170 = sphi 0, %s174
          %p171 = scmp.ge.s32.totalorder %s170, 1
          %s175 = sphi %s2, %s2
          %s176 = sphi [#allocation3], [#allocation3]
        $region93: #{few_shot_classifier_forward.1} parent=89 // loop_header_branch
          %173 = sbr.rel (%p171) target = $region97
        $region94: #{few_shot_classifier_forward.1} parent=89 // loop_body
          %v177 = vld [vmem:[%s175] sm:$0xff]
          %178 = vst [vmem:[%s176] sm:$0xff] %v177
          %v179 = vld [vmem:[%s175 + $0x8] sm:$0xff]
          %180 = vst [vmem:[%s176 + $0x8] sm:$0xff] %v179
          %v181 = vld [vmem:[%s175 + $0x10] sm:$0xff]
          %182 = vst [vmem:[%s176 + $0x10] sm:$0xff] %v181
          %v183 = vld [vmem:[%s175 + $0x18] sm:$0xff]
          %184 = vst [vmem:[%s176 + $0x18] sm:$0xff] %v183
          %v185 = vld [vmem:[%s175 + $0x20] sm:$0xff]
          %186 = vst [vmem:[%s176 + $0x20] sm:$0xff] %v185
          %v187 = vld [vmem:[%s175 + $0x28] sm:$0xff]
          %188 = vst [vmem:[%s176 + $0x28] sm:$0xff] %v187
          %v189 = vld [vmem:[%s175 + $0x30] sm:$0xff]
          %190 = vst [vmem:[%s176 + $0x30] sm:$0xff] %v189
          %v191 = vld [vmem:[%s175 + $0x38] sm:$0xff]
          %192 = vst [vmem:[%s176 + $0x38] sm:$0xff] %v191
          %v193 = vld [vmem:[%s175 + $0x40] sm:$0xff]
          %194 = vst [vmem:[%s176 + $0x40] sm:$0xff] %v193
          %v195 = vld [vmem:[%s175 + $0x48] sm:$0xff]
          %196 = vst [vmem:[%s176 + $0x48] sm:$0xff] %v195
          %v197 = vld [vmem:[%s175 + $0x50] sm:$0xff]
          %198 = vst [vmem:[%s176 + $0x50] sm:$0xff] %v197
          %v199 = vld [vmem:[%s175 + $0x58] sm:$0xff]
          %200 = vst [vmem:[%s176 + $0x58] sm:$0xff] %v199
          %v201 = vld [vmem:[%s175 + $0x60] sm:$0xff]
          %202 = vst [vmem:[%s176 + $0x60] sm:$0xff] %v201
          %v203 = vld [vmem:[%s175 + $0x68] sm:$0xff]
          %204 = vst [vmem:[%s176 + $0x68] sm:$0xff] %v203
          %v205 = vld [vmem:[%s175 + $0x70] sm:$0xff]
          %206 = vst [vmem:[%s176 + $0x70] sm:$0xff] %v205
          %v207 = vld [vmem:[%s175 + $0x78] sm:$0xff]
          %208 = vst [vmem:[%s176 + $0x78] sm:$0xff] %v207
          %v209 = vld [vmem:[%s175 + $0x80] sm:$0xff]
          %210 = vst [vmem:[%s176 + $0x80] sm:$0xff] %v209
          %v211 = vld [vmem:[%s175 + $0x88] sm:$0xff]
          %212 = vst [vmem:[%s176 + $0x88] sm:$0xff] %v211
          %v213 = vld [vmem:[%s175 + $0x90] sm:$0xff]
          %214 = vst [vmem:[%s176 + $0x90] sm:$0xff] %v213
          %v215 = vld [vmem:[%s175 + $0x98] sm:$0xff]
          %216 = vst [vmem:[%s176 + $0x98] sm:$0xff] %v215
          %v217 = vld [vmem:[%s175 + $0xa0] sm:$0xff]
          %218 = vst [vmem:[%s176 + $0xa0] sm:$0xff] %v217
          %v219 = vld [vmem:[%s175 + $0xa8] sm:$0xff]
          %220 = vst [vmem:[%s176 + $0xa8] sm:$0xff] %v219
          %v221 = vld [vmem:[%s175 + $0xb0] sm:$0xff]
          %222 = vst [vmem:[%s176 + $0xb0] sm:$0xff] %v221
          %v223 = vld [vmem:[%s175 + $0xb8] sm:$0xff]
          %224 = vst [vmem:[%s176 + $0xb8] sm:$0xff] %v223
          %v225 = vld [vmem:[%s175 + $0xc0] sm:$0xff]
          %226 = vst [vmem:[%s176 + $0xc0] sm:$0xff] %v225
          %v227 = vld [vmem:[%s175 + $0xc8] sm:$0xff]
          %228 = vst [vmem:[%s176 + $0xc8] sm:$0xff] %v227
          %v229 = vld [vmem:[%s175 + $0xd0] sm:$0xff]
          %230 = vst [vmem:[%s176 + $0xd0] sm:$0xff] %v229
          %v231 = vld [vmem:[%s175 + $0xd8] sm:$0xff]
          %232 = vst [vmem:[%s176 + $0xd8] sm:$0xff] %v231
          %v233 = vld [vmem:[%s175 + $0xe0] sm:$0xff]
          %234 = vst [vmem:[%s176 + $0xe0] sm:$0xff] %v233
          %v235 = vld [vmem:[%s175 + $0xe8] sm:$0xff]
          %236 = vst [vmem:[%s176 + $0xe8] sm:$0xff] %v235
          %v237 = vld [vmem:[%s175 + $0xf0] sm:$0xff]
          %238 = vst [vmem:[%s176 + $0xf0] sm:$0xff] %v237
          %v239 = vld [vmem:[%s175 + $0xf8] sm:$0xff]
          %240 = vst [vmem:[%s176 + $0xf8] sm:$0xff] %v239
          %v241 = vld [vmem:[%s175 + $0x100] sm:$0xff]
          %242 = vst [vmem:[%s176 + $0x100] sm:$0xff] %v241
          %v243 = vld [vmem:[%s175 + $0x108] sm:$0xff]
          %244 = vst [vmem:[%s176 + $0x108] sm:$0xff] %v243
          %v245 = vld [vmem:[%s175 + $0x110] sm:$0xff]
          %246 = vst [vmem:[%s176 + $0x110] sm:$0xff] %v245
          %v247 = vld [vmem:[%s175 + $0x118] sm:$0xff]
          %248 = vst [vmem:[%s176 + $0x118] sm:$0xff] %v247
          %v249 = vld [vmem:[%s175 + $0x120] sm:$0xff]
          %250 = vst [vmem:[%s176 + $0x120] sm:$0xff] %v249
          %v251 = vld [vmem:[%s175 + $0x128] sm:$0xff]
          %252 = vst [vmem:[%s176 + $0x128] sm:$0xff] %v251
          %v253 = vld [vmem:[%s175 + $0x130] sm:$0xff]
          %254 = vst [vmem:[%s176 + $0x130] sm:$0xff] %v253
          %v255 = vld [vmem:[%s175 + $0x138] sm:$0xff]
          %256 = vst [vmem:[%s176 + $0x138] sm:$0xff] %v255
          %v257 = vld [vmem:[%s175 + $0x140] sm:$0xff]
          %258 = vst [vmem:[%s176 + $0x140] sm:$0xff] %v257
          %v259 = vld [vmem:[%s175 + $0x148] sm:$0xff]
          %260 = vst [vmem:[%s176 + $0x148] sm:$0xff] %v259
          %v261 = vld [vmem:[%s175 + $0x150] sm:$0xff]
          %262 = vst [vmem:[%s176 + $0x150] sm:$0xff] %v261
          %v263 = vld [vmem:[%s175 + $0x158] sm:$0xff]
          %264 = vst [vmem:[%s176 + $0x158] sm:$0xff] %v263
          %v265 = vld [vmem:[%s175 + $0x160] sm:$0xff]
          %266 = vst [vmem:[%s176 + $0x160] sm:$0xff] %v265
          %v267 = vld [vmem:[%s175 + $0x168] sm:$0xff]
          %268 = vst [vmem:[%s176 + $0x168] sm:$0xff] %v267
          %v269 = vld [vmem:[%s175 + $0x170] sm:$0xff]
          %270 = vst [vmem:[%s176 + $0x170] sm:$0xff] %v269
          %v271 = vld [vmem:[%s175 + $0x178] sm:$0xff]
          %272 = vst [vmem:[%s176 + $0x178] sm:$0xff] %v271
          %v273 = vld [vmem:[%s175 + $0x180] sm:$0xff]
          %274 = vst [vmem:[%s176 + $0x180] sm:$0xff] %v273
          %v275 = vld [vmem:[%s175 + $0x188] sm:$0xff]
          %276 = vst [vmem:[%s176 + $0x188] sm:$0xff] %v275
          %v277 = vld [vmem:[%s175 + $0x190] sm:$0xff]
          %278 = vst [vmem:[%s176 + $0x190] sm:$0xff] %v277
          %v279 = vld [vmem:[%s175 + $0x198] sm:$0xff]
          %280 = vst [vmem:[%s176 + $0x198] sm:$0xff] %v279
          %v281 = vld [vmem:[%s175 + $0x1a0] sm:$0xff]
          %282 = vst [vmem:[%s176 + $0x1a0] sm:$0xff] %v281
          %v283 = vld [vmem:[%s175 + $0x1a8] sm:$0xff]
          %284 = vst [vmem:[%s176 + $0x1a8] sm:$0xff] %v283
          %v285 = vld [vmem:[%s175 + $0x1b0] sm:$0xff]
          %286 = vst [vmem:[%s176 + $0x1b0] sm:$0xff] %v285
          %v287 = vld [vmem:[%s175 + $0x1b8] sm:$0xff]
          %288 = vst [vmem:[%s176 + $0x1b8] sm:$0xff] %v287
          %v289 = vld [vmem:[%s175 + $0x1c0] sm:$0xff]
          %290 = vst [vmem:[%s176 + $0x1c0] sm:$0xff] %v289
          %v291 = vld [vmem:[%s175 + $0x1c8] sm:$0xff]
          %292 = vst [vmem:[%s176 + $0x1c8] sm:$0xff] %v291
          %v293 = vld [vmem:[%s175 + $0x1d0] sm:$0xff]
          %294 = vst [vmem:[%s176 + $0x1d0] sm:$0xff] %v293
          %v295 = vld [vmem:[%s175 + $0x1d8] sm:$0xff]
          %296 = vst [vmem:[%s176 + $0x1d8] sm:$0xff] %v295
          %v297 = vld [vmem:[%s175 + $0x1e0] sm:$0xff]
          %298 = vst [vmem:[%s176 + $0x1e0] sm:$0xff] %v297
          %v299 = vld [vmem:[%s175 + $0x1e8] sm:$0xff]
          %300 = vst [vmem:[%s176 + $0x1e8] sm:$0xff] %v299
          %v301 = vld [vmem:[%s175 + $0x1f0] sm:$0xff]
          %302 = vst [vmem:[%s176 + $0x1f0] sm:$0xff] %v301
          %v303 = vld [vmem:[%s175 + $0x1f8] sm:$0xff]
          %304 = vst [vmem:[%s176 + $0x1f8] sm:$0xff] %v303
          %v305 = vld [vmem:[%s175 + $0x200] sm:$0xff]
          %306 = vst [vmem:[%s176 + $0x200] sm:$0xff] %v305
          %v307 = vld [vmem:[%s175 + $0x208] sm:$0xff]
          %308 = vst [vmem:[%s176 + $0x208] sm:$0xff] %v307
          %v309 = vld [vmem:[%s175 + $0x210] sm:$0xff]
          %310 = vst [vmem:[%s176 + $0x210] sm:$0xff] %v309
          %v311 = vld [vmem:[%s175 + $0x218] sm:$0xff]
          %312 = vst [vmem:[%s176 + $0x218] sm:$0xff] %v311
          %v313 = vld [vmem:[%s175 + $0x220] sm:$0xff]
          %314 = vst [vmem:[%s176 + $0x220] sm:$0xff] %v313
          %v315 = vld [vmem:[%s175 + $0x228] sm:$0xff]
          %316 = vst [vmem:[%s176 + $0x228] sm:$0xff] %v315
          %v317 = vld [vmem:[%s175 + $0x230] sm:$0xff]
          %318 = vst [vmem:[%s176 + $0x230] sm:$0xff] %v317
          %v319 = vld [vmem:[%s175 + $0x238] sm:$0xff]
          %320 = vst [vmem:[%s176 + $0x238] sm:$0xff] %v319
          %v321 = vld [vmem:[%s175 + $0x240] sm:$0xff]
          %322 = vst [vmem:[%s176 + $0x240] sm:$0xff] %v321
          %v323 = vld [vmem:[%s175 + $0x248] sm:$0xff]
          %324 = vst [vmem:[%s176 + $0x248] sm:$0xff] %v323
          %v325 = vld [vmem:[%s175 + $0x250] sm:$0xff]
          %326 = vst [vmem:[%s176 + $0x250] sm:$0xff] %v325
          %v327 = vld [vmem:[%s175 + $0x258] sm:$0xff]
          %328 = vst [vmem:[%s176 + $0x258] sm:$0xff] %v327
          %v329 = vld [vmem:[%s175 + $0x260] sm:$0xff]
          %330 = vst [vmem:[%s176 + $0x260] sm:$0xff] %v329
          %v331 = vld [vmem:[%s175 + $0x268] sm:$0xff]
          %332 = vst [vmem:[%s176 + $0x268] sm:$0xff] %v331
          %v333 = vld [vmem:[%s175 + $0x270] sm:$0xff]
          %334 = vst [vmem:[%s176 + $0x270] sm:$0xff] %v333
          %v335 = vld [vmem:[%s175 + $0x278] sm:$0xff]
          %336 = vst [vmem:[%s176 + $0x278] sm:$0xff] %v335
          %v337 = vld [vmem:[%s175 + $0x280] sm:$0xff]
          %338 = vst [vmem:[%s176 + $0x280] sm:$0xff] %v337
          %v339 = vld [vmem:[%s175 + $0x288] sm:$0xff]
          %340 = vst [vmem:[%s176 + $0x288] sm:$0xff] %v339
          %v341 = vld [vmem:[%s175 + $0x290] sm:$0xff]
          %342 = vst [vmem:[%s176 + $0x290] sm:$0xff] %v341
          %v343 = vld [vmem:[%s175 + $0x298] sm:$0xff]
          %344 = vst [vmem:[%s176 + $0x298] sm:$0xff] %v343
          %v345 = vld [vmem:[%s175 + $0x2a0] sm:$0xff]
          %346 = vst [vmem:[%s176 + $0x2a0] sm:$0xff] %v345
          %v347 = vld [vmem:[%s175 + $0x2a8] sm:$0xff]
          %348 = vst [vmem:[%s176 + $0x2a8] sm:$0xff] %v347
          %v349 = vld [vmem:[%s175 + $0x2b0] sm:$0xff]
          %350 = vst [vmem:[%s176 + $0x2b0] sm:$0xff] %v349
          %v351 = vld [vmem:[%s175 + $0x2b8] sm:$0xff]
          %352 = vst [vmem:[%s176 + $0x2b8] sm:$0xff] %v351
          %v353 = vld [vmem:[%s175 + $0x2c0] sm:$0xff]
          %354 = vst [vmem:[%s176 + $0x2c0] sm:$0xff] %v353
          %v355 = vld [vmem:[%s175 + $0x2c8] sm:$0xff]
          %356 = vst [vmem:[%s176 + $0x2c8] sm:$0xff] %v355
          %v357 = vld [vmem:[%s175 + $0x2d0] sm:$0xff]
          %358 = vst [vmem:[%s176 + $0x2d0] sm:$0xff] %v357
          %v359 = vld [vmem:[%s175 + $0x2d8] sm:$0xff]
          %360 = vst [vmem:[%s176 + $0x2d8] sm:$0xff] %v359
          %v361 = vld [vmem:[%s175 + $0x2e0] sm:$0xff]
          %362 = vst [vmem:[%s176 + $0x2e0] sm:$0xff] %v361
          %v363 = vld [vmem:[%s175 + $0x2e8] sm:$0xff]
          %364 = vst [vmem:[%s176 + $0x2e8] sm:$0xff] %v363
          %v365 = vld [vmem:[%s175 + $0x2f0] sm:$0xff]
          %366 = vst [vmem:[%s176 + $0x2f0] sm:$0xff] %v365
          %v367 = vld [vmem:[%s175 + $0x2f8] sm:$0xff]
          %368 = vst [vmem:[%s176 + $0x2f8] sm:$0xff] %v367
          %v369 = vld [vmem:[%s175 + $0x300] sm:$0xff]
          %370 = vst [vmem:[%s176 + $0x300] sm:$0xff] %v369
          %v371 = vld [vmem:[%s175 + $0x308] sm:$0xff]
          %372 = vst [vmem:[%s176 + $0x308] sm:$0xff] %v371
          %v373 = vld [vmem:[%s175 + $0x310] sm:$0xff]
          %374 = vst [vmem:[%s176 + $0x310] sm:$0xff] %v373
          %v375 = vld [vmem:[%s175 + $0x318] sm:$0xff]
          %376 = vst [vmem:[%s176 + $0x318] sm:$0xff] %v375
          %v377 = vld [vmem:[%s175 + $0x320] sm:$0xff]
          %378 = vst [vmem:[%s176 + $0x320] sm:$0xff] %v377
          %v379 = vld [vmem:[%s175 + $0x328] sm:$0xff]
          %380 = vst [vmem:[%s176 + $0x328] sm:$0xff] %v379
          %v381 = vld [vmem:[%s175 + $0x330] sm:$0xff]
          %382 = vst [vmem:[%s176 + $0x330] sm:$0xff] %v381
          %v383 = vld [vmem:[%s175 + $0x338] sm:$0xff]
          %384 = vst [vmem:[%s176 + $0x338] sm:$0xff] %v383
          %v385 = vld [vmem:[%s175 + $0x340] sm:$0xff]
          %386 = vst [vmem:[%s176 + $0x340] sm:$0xff] %v385
          %v387 = vld [vmem:[%s175 + $0x348] sm:$0xff]
          %388 = vst [vmem:[%s176 + $0x348] sm:$0xff] %v387
          %v389 = vld [vmem:[%s175 + $0x350] sm:$0xff]
          %390 = vst [vmem:[%s176 + $0x350] sm:$0xff] %v389
          %v391 = vld [vmem:[%s175 + $0x358] sm:$0xff]
          %392 = vst [vmem:[%s176 + $0x358] sm:$0xff] %v391
          %v393 = vld [vmem:[%s175 + $0x360] sm:$0xff]
          %394 = vst [vmem:[%s176 + $0x360] sm:$0xff] %v393
          %v395 = vld [vmem:[%s175 + $0x368] sm:$0xff]
          %396 = vst [vmem:[%s176 + $0x368] sm:$0xff] %v395
          %v397 = vld [vmem:[%s175 + $0x370] sm:$0xff]
          %398 = vst [vmem:[%s176 + $0x370] sm:$0xff] %v397
          %v399 = vld [vmem:[%s175 + $0x378] sm:$0xff]
          %400 = vst [vmem:[%s176 + $0x378] sm:$0xff] %v399
          %v401 = vld [vmem:[%s175 + $0x380] sm:$0xff]
          %402 = vst [vmem:[%s176 + $0x380] sm:$0xff] %v401
          %v403 = vld [vmem:[%s175 + $0x388] sm:$0xff]
          %404 = vst [vmem:[%s176 + $0x388] sm:$0xff] %v403
          %v405 = vld [vmem:[%s175 + $0x390] sm:$0xff]
          %406 = vst [vmem:[%s176 + $0x390] sm:$0xff] %v405
          %v407 = vld [vmem:[%s175 + $0x398] sm:$0xff]
          %408 = vst [vmem:[%s176 + $0x398] sm:$0xff] %v407
          %v409 = vld [vmem:[%s175 + $0x3a0] sm:$0xff]
          %410 = vst [vmem:[%s176 + $0x3a0] sm:$0xff] %v409
          %v411 = vld [vmem:[%s175 + $0x3a8] sm:$0xff]
          %412 = vst [vmem:[%s176 + $0x3a8] sm:$0xff] %v411
          %v413 = vld [vmem:[%s175 + $0x3b0] sm:$0xff]
          %414 = vst [vmem:[%s176 + $0x3b0] sm:$0xff] %v413
          %v415 = vld [vmem:[%s175 + $0x3b8] sm:$0xff]
          %416 = vst [vmem:[%s176 + $0x3b8] sm:$0xff] %v415
          %v417 = vld [vmem:[%s175 + $0x3c0] sm:$0xff]
          %418 = vst [vmem:[%s176 + $0x3c0] sm:$0xff] %v417
          %v419 = vld [vmem:[%s175 + $0x3c8] sm:$0xff]
          %420 = vst [vmem:[%s176 + $0x3c8] sm:$0xff] %v419
          %v421 = vld [vmem:[%s175 + $0x3d0] sm:$0xff]
          %422 = vst [vmem:[%s176 + $0x3d0] sm:$0xff] %v421
          %v423 = vld [vmem:[%s175 + $0x3d8] sm:$0xff]
          %424 = vst [vmem:[%s176 + $0x3d8] sm:$0xff] %v423
          %v425 = vld [vmem:[%s175 + $0x3e0] sm:$0xff]
          %426 = vst [vmem:[%s176 + $0x3e0] sm:$0xff] %v425
          %v427 = vld [vmem:[%s175 + $0x3e8] sm:$0xff]
          %428 = vst [vmem:[%s176 + $0x3e8] sm:$0xff] %v427
          %v429 = vld [vmem:[%s175 + $0x3f0] sm:$0xff]
          %430 = vst [vmem:[%s176 + $0x3f0] sm:$0xff] %v429
          %v431 = vld [vmem:[%s175 + $0x3f8] sm:$0xff]
          %432 = vst [vmem:[%s176 + $0x3f8] sm:$0xff] %v431
          %v433 = vld [vmem:[%s175 + $0x400] sm:$0xff]
          %434 = vst [vmem:[%s176 + $0x400] sm:$0xff] %v433
          %v435 = vld [vmem:[%s175 + $0x408] sm:$0xff]
          %436 = vst [vmem:[%s176 + $0x408] sm:$0xff] %v435
          %v437 = vld [vmem:[%s175 + $0x410] sm:$0xff]
          %438 = vst [vmem:[%s176 + $0x410] sm:$0xff] %v437
          %v439 = vld [vmem:[%s175 + $0x418] sm:$0xff]
          %440 = vst [vmem:[%s176 + $0x418] sm:$0xff] %v439
          %v441 = vld [vmem:[%s175 + $0x420] sm:$0xff]
          %442 = vst [vmem:[%s176 + $0x420] sm:$0xff] %v441
          %v443 = vld [vmem:[%s175 + $0x428] sm:$0xff]
          %444 = vst [vmem:[%s176 + $0x428] sm:$0xff] %v443
          %v445 = vld [vmem:[%s175 + $0x430] sm:$0xff]
          %446 = vst [vmem:[%s176 + $0x430] sm:$0xff] %v445
          %v447 = vld [vmem:[%s175 + $0x438] sm:$0xff]
          %448 = vst [vmem:[%s176 + $0x438] sm:$0xff] %v447
          %v449 = vld [vmem:[%s175 + $0x440] sm:$0xff]
          %450 = vst [vmem:[%s176 + $0x440] sm:$0xff] %v449
          %v451 = vld [vmem:[%s175 + $0x448] sm:$0xff]
          %452 = vst [vmem:[%s176 + $0x448] sm:$0xff] %v451
          %v453 = vld [vmem:[%s175 + $0x450] sm:$0xff]
          %454 = vst [vmem:[%s176 + $0x450] sm:$0xff] %v453
          %v455 = vld [vmem:[%s175 + $0x458] sm:$0xff]
          %456 = vst [vmem:[%s176 + $0x458] sm:$0xff] %v455
          %v457 = vld [vmem:[%s175 + $0x460] sm:$0xff]
          %458 = vst [vmem:[%s176 + $0x460] sm:$0xff] %v457
          %v459 = vld [vmem:[%s175 + $0x468] sm:$0xff]
          %460 = vst [vmem:[%s176 + $0x468] sm:$0xff] %v459
          %v461 = vld [vmem:[%s175 + $0x470] sm:$0xff]
          %462 = vst [vmem:[%s176 + $0x470] sm:$0xff] %v461
          %v463 = vld [vmem:[%s175 + $0x478] sm:$0xff]
          %464 = vst [vmem:[%s176 + $0x478] sm:$0xff] %v463
          %v465 = vld [vmem:[%s175 + $0x480] sm:$0xff]
          %466 = vst [vmem:[%s176 + $0x480] sm:$0xff] %v465
          %v467 = vld [vmem:[%s175 + $0x488] sm:$0xff]
          %468 = vst [vmem:[%s176 + $0x488] sm:$0xff] %v467
          %v469 = vld [vmem:[%s175 + $0x490] sm:$0xff]
          %470 = vst [vmem:[%s176 + $0x490] sm:$0xff] %v469
          %v471 = vld [vmem:[%s175 + $0x498] sm:$0xff]
          %472 = vst [vmem:[%s176 + $0x498] sm:$0xff] %v471
          %v473 = vld [vmem:[%s175 + $0x4a0] sm:$0xff]
          %474 = vst [vmem:[%s176 + $0x4a0] sm:$0xff] %v473
          %v475 = vld [vmem:[%s175 + $0x4a8] sm:$0xff]
          %476 = vst [vmem:[%s176 + $0x4a8] sm:$0xff] %v475
          %v477 = vld [vmem:[%s175 + $0x4b0] sm:$0xff]
          %478 = vst [vmem:[%s176 + $0x4b0] sm:$0xff] %v477
          %v479 = vld [vmem:[%s175 + $0x4b8] sm:$0xff]
          %480 = vst [vmem:[%s176 + $0x4b8] sm:$0xff] %v479
          %v481 = vld [vmem:[%s175 + $0x4c0] sm:$0xff]
          %482 = vst [vmem:[%s176 + $0x4c0] sm:$0xff] %v481
          %v483 = vld [vmem:[%s175 + $0x4c8] sm:$0xff]
          %484 = vst [vmem:[%s176 + $0x4c8] sm:$0xff] %v483
          %v485 = vld [vmem:[%s175 + $0x4d0] sm:$0xff]
          %486 = vst [vmem:[%s176 + $0x4d0] sm:$0xff] %v485
          %v487 = vld [vmem:[%s175 + $0x4d8] sm:$0xff]
          %488 = vst [vmem:[%s176 + $0x4d8] sm:$0xff] %v487
          %v489 = vld [vmem:[%s175 + $0x4e0] sm:$0xff]
          %490 = vst [vmem:[%s176 + $0x4e0] sm:$0xff] %v489
          %v491 = vld [vmem:[%s175 + $0x4e8] sm:$0xff]
          %492 = vst [vmem:[%s176 + $0x4e8] sm:$0xff] %v491
          %v493 = vld [vmem:[%s175 + $0x4f0] sm:$0xff]
          %494 = vst [vmem:[%s176 + $0x4f0] sm:$0xff] %v493
          %v495 = vld [vmem:[%s175 + $0x4f8] sm:$0xff]
          %496 = vst [vmem:[%s176 + $0x4f8] sm:$0xff] %v495
          %v497 = vld [vmem:[%s175 + $0x500] sm:$0xff]
          %498 = vst [vmem:[%s176 + $0x500] sm:$0xff] %v497
          %v499 = vld [vmem:[%s175 + $0x508] sm:$0xff]
          %500 = vst [vmem:[%s176 + $0x508] sm:$0xff] %v499
          %v501 = vld [vmem:[%s175 + $0x510] sm:$0xff]
          %502 = vst [vmem:[%s176 + $0x510] sm:$0xff] %v501
          %v503 = vld [vmem:[%s175 + $0x518] sm:$0xff]
          %504 = vst [vmem:[%s176 + $0x518] sm:$0xff] %v503
          %v505 = vld [vmem:[%s175 + $0x520] sm:$0xff]
          %506 = vst [vmem:[%s176 + $0x520] sm:$0xff] %v505
          %v507 = vld [vmem:[%s175 + $0x528] sm:$0xff]
          %508 = vst [vmem:[%s176 + $0x528] sm:$0xff] %v507
          %v509 = vld [vmem:[%s175 + $0x530] sm:$0xff]
          %510 = vst [vmem:[%s176 + $0x530] sm:$0xff] %v509
          %v511 = vld [vmem:[%s175 + $0x538] sm:$0xff]
          %512 = vst [vmem:[%s176 + $0x538] sm:$0xff] %v511
          %v513 = vld [vmem:[%s175 + $0x540] sm:$0xff]
          %514 = vst [vmem:[%s176 + $0x540] sm:$0xff] %v513
          %v515 = vld [vmem:[%s175 + $0x548] sm:$0xff]
          %516 = vst [vmem:[%s176 + $0x548] sm:$0xff] %v515
          %v517 = vld [vmem:[%s175 + $0x550] sm:$0xff]
          %518 = vst [vmem:[%s176 + $0x550] sm:$0xff] %v517
          %v519 = vld [vmem:[%s175 + $0x558] sm:$0xff]
          %520 = vst [vmem:[%s176 + $0x558] sm:$0xff] %v519
          %v521 = vld [vmem:[%s175 + $0x560] sm:$0xff]
          %522 = vst [vmem:[%s176 + $0x560] sm:$0xff] %v521
          %v523 = vld [vmem:[%s175 + $0x568] sm:$0xff]
          %524 = vst [vmem:[%s176 + $0x568] sm:$0xff] %v523
          %v525 = vld [vmem:[%s175 + $0x570] sm:$0xff]
          %526 = vst [vmem:[%s176 + $0x570] sm:$0xff] %v525
          %v527 = vld [vmem:[%s175 + $0x578] sm:$0xff]
          %528 = vst [vmem:[%s176 + $0x578] sm:$0xff] %v527
          %v529 = vld [vmem:[%s175 + $0x580] sm:$0xff]
          %530 = vst [vmem:[%s176 + $0x580] sm:$0xff] %v529
          %v531 = vld [vmem:[%s175 + $0x588] sm:$0xff]
          %532 = vst [vmem:[%s176 + $0x588] sm:$0xff] %v531
          %v533 = vld [vmem:[%s175 + $0x590] sm:$0xff]
          %534 = vst [vmem:[%s176 + $0x590] sm:$0xff] %v533
          %v535 = vld [vmem:[%s175 + $0x598] sm:$0xff]
          %536 = vst [vmem:[%s176 + $0x598] sm:$0xff] %v535
          %v537 = vld [vmem:[%s175 + $0x5a0] sm:$0xff]
          %538 = vst [vmem:[%s176 + $0x5a0] sm:$0xff] %v537
          %v539 = vld [vmem:[%s175 + $0x5a8] sm:$0xff]
          %540 = vst [vmem:[%s176 + $0x5a8] sm:$0xff] %v539
          %v541 = vld [vmem:[%s175 + $0x5b0] sm:$0xff]
          %542 = vst [vmem:[%s176 + $0x5b0] sm:$0xff] %v541
          %v543 = vld [vmem:[%s175 + $0x5b8] sm:$0xff]
          %544 = vst [vmem:[%s176 + $0x5b8] sm:$0xff] %v543
          %v545 = vld [vmem:[%s175 + $0x5c0] sm:$0xff]
          %546 = vst [vmem:[%s176 + $0x5c0] sm:$0xff] %v545
          %v547 = vld [vmem:[%s175 + $0x5c8] sm:$0xff]
          %548 = vst [vmem:[%s176 + $0x5c8] sm:$0xff] %v547
          %v549 = vld [vmem:[%s175 + $0x5d0] sm:$0xff]
          %550 = vst [vmem:[%s176 + $0x5d0] sm:$0xff] %v549
          %v551 = vld [vmem:[%s175 + $0x5d8] sm:$0xff]
          %552 = vst [vmem:[%s176 + $0x5d8] sm:$0xff] %v551
          %v553 = vld [vmem:[%s175 + $0x5e0] sm:$0xff]
          %554 = vst [vmem:[%s176 + $0x5e0] sm:$0xff] %v553
          %v555 = vld [vmem:[%s175 + $0x5e8] sm:$0xff]
          %556 = vst [vmem:[%s176 + $0x5e8] sm:$0xff] %v555
          %v557 = vld [vmem:[%s175 + $0x5f0] sm:$0xff]
          %558 = vst [vmem:[%s176 + $0x5f0] sm:$0xff] %v557
          %v559 = vld [vmem:[%s175 + $0x5f8] sm:$0xff]
          %560 = vst [vmem:[%s176 + $0x5f8] sm:$0xff] %v559
          %v561 = vld [vmem:[%s175 + $0x600] sm:$0xff]
          %562 = vst [vmem:[%s176 + $0x600] sm:$0xff] %v561
          %v563 = vld [vmem:[%s175 + $0x608] sm:$0xff]
          %564 = vst [vmem:[%s176 + $0x608] sm:$0xff] %v563
          %v565 = vld [vmem:[%s175 + $0x610] sm:$0xff]
          %566 = vst [vmem:[%s176 + $0x610] sm:$0xff] %v565
          %v567 = vld [vmem:[%s175 + $0x618] sm:$0xff]
          %568 = vst [vmem:[%s176 + $0x618] sm:$0xff] %v567
          %v569 = vld [vmem:[%s175 + $0x620] sm:$0xff]
          %570 = vst [vmem:[%s176 + $0x620] sm:$0xff] %v569
          %v571 = vld [vmem:[%s175 + $0x628] sm:$0xff]
          %572 = vst [vmem:[%s176 + $0x628] sm:$0xff] %v571
          %v573 = vld [vmem:[%s175 + $0x630] sm:$0xff]
          %574 = vst [vmem:[%s176 + $0x630] sm:$0xff] %v573
          %v575 = vld [vmem:[%s175 + $0x638] sm:$0xff]
          %576 = vst [vmem:[%s176 + $0x638] sm:$0xff] %v575
          %v577 = vld [vmem:[%s175 + $0x640] sm:$0xff]
          %578 = vst [vmem:[%s176 + $0x640] sm:$0xff] %v577
          %v579 = vld [vmem:[%s175 + $0x648] sm:$0xff]
          %580 = vst [vmem:[%s176 + $0x648] sm:$0xff] %v579
          %v581 = vld [vmem:[%s175 + $0x650] sm:$0xff]
          %582 = vst [vmem:[%s176 + $0x650] sm:$0xff] %v581
          %v583 = vld [vmem:[%s175 + $0x658] sm:$0xff]
          %584 = vst [vmem:[%s176 + $0x658] sm:$0xff] %v583
          %v585 = vld [vmem:[%s175 + $0x660] sm:$0xff]
          %586 = vst [vmem:[%s176 + $0x660] sm:$0xff] %v585
          %v587 = vld [vmem:[%s175 + $0x668] sm:$0xff]
          %588 = vst [vmem:[%s176 + $0x668] sm:$0xff] %v587
          %v589 = vld [vmem:[%s175 + $0x670] sm:$0xff]
          %590 = vst [vmem:[%s176 + $0x670] sm:$0xff] %v589
          %v591 = vld [vmem:[%s175 + $0x678] sm:$0xff]
          %592 = vst [vmem:[%s176 + $0x678] sm:$0xff] %v591
          %v593 = vld [vmem:[%s175 + $0x680] sm:$0xff]
          %594 = vst [vmem:[%s176 + $0x680] sm:$0xff] %v593
          %v595 = vld [vmem:[%s175 + $0x688] sm:$0xff]
          %596 = vst [vmem:[%s176 + $0x688] sm:$0xff] %v595
          %v597 = vld [vmem:[%s175 + $0x690] sm:$0xff]
          %598 = vst [vmem:[%s176 + $0x690] sm:$0xff] %v597
          %v599 = vld [vmem:[%s175 + $0x698] sm:$0xff]
          %600 = vst [vmem:[%s176 + $0x698] sm:$0xff] %v599
          %v601 = vld [vmem:[%s175 + $0x6a0] sm:$0xff]
          %602 = vst [vmem:[%s176 + $0x6a0] sm:$0xff] %v601
          %v603 = vld [vmem:[%s175 + $0x6a8] sm:$0xff]
          %604 = vst [vmem:[%s176 + $0x6a8] sm:$0xff] %v603
          %v605 = vld [vmem:[%s175 + $0x6b0] sm:$0xff]
          %606 = vst [vmem:[%s176 + $0x6b0] sm:$0xff] %v605
          %v607 = vld [vmem:[%s175 + $0x6b8] sm:$0xff]
          %608 = vst [vmem:[%s176 + $0x6b8] sm:$0xff] %v607
          %v609 = vld [vmem:[%s175 + $0x6c0] sm:$0xff]
          %610 = vst [vmem:[%s176 + $0x6c0] sm:$0xff] %v609
          %v611 = vld [vmem:[%s175 + $0x6c8] sm:$0xff]
          %612 = vst [vmem:[%s176 + $0x6c8] sm:$0xff] %v611
          %v613 = vld [vmem:[%s175 + $0x6d0] sm:$0xff]
          %614 = vst [vmem:[%s176 + $0x6d0] sm:$0xff] %v613
          %v615 = vld [vmem:[%s175 + $0x6d8] sm:$0xff]
          %616 = vst [vmem:[%s176 + $0x6d8] sm:$0xff] %v615
          %v617 = vld [vmem:[%s175 + $0x6e0] sm:$0xff]
          %618 = vst [vmem:[%s176 + $0x6e0] sm:$0xff] %v617
          %v619 = vld [vmem:[%s175 + $0x6e8] sm:$0xff]
          %620 = vst [vmem:[%s176 + $0x6e8] sm:$0xff] %v619
          %v621 = vld [vmem:[%s175 + $0x6f0] sm:$0xff]
          %622 = vst [vmem:[%s176 + $0x6f0] sm:$0xff] %v621
          %v623 = vld [vmem:[%s175 + $0x6f8] sm:$0xff]
          %624 = vst [vmem:[%s176 + $0x6f8] sm:$0xff] %v623
          %v625 = vld [vmem:[%s175 + $0x700] sm:$0xff]
          %626 = vst [vmem:[%s176 + $0x700] sm:$0xff] %v625
          %v627 = vld [vmem:[%s175 + $0x708] sm:$0xff]
          %628 = vst [vmem:[%s176 + $0x708] sm:$0xff] %v627
          %v629 = vld [vmem:[%s175 + $0x710] sm:$0xff]
          %630 = vst [vmem:[%s176 + $0x710] sm:$0xff] %v629
          %v631 = vld [vmem:[%s175 + $0x718] sm:$0xff]
          %632 = vst [vmem:[%s176 + $0x718] sm:$0xff] %v631
          %v633 = vld [vmem:[%s175 + $0x720] sm:$0xff]
          %634 = vst [vmem:[%s176 + $0x720] sm:$0xff] %v633
          %v635 = vld [vmem:[%s175 + $0x728] sm:$0xff]
          %636 = vst [vmem:[%s176 + $0x728] sm:$0xff] %v635
          %v637 = vld [vmem:[%s175 + $0x730] sm:$0xff]
          %638 = vst [vmem:[%s176 + $0x730] sm:$0xff] %v637
          %v639 = vld [vmem:[%s175 + $0x738] sm:$0xff]
          %640 = vst [vmem:[%s176 + $0x738] sm:$0xff] %v639
          %v641 = vld [vmem:[%s175 + $0x740] sm:$0xff]
          %642 = vst [vmem:[%s176 + $0x740] sm:$0xff] %v641
          %v643 = vld [vmem:[%s175 + $0x748] sm:$0xff]
          %644 = vst [vmem:[%s176 + $0x748] sm:$0xff] %v643
          %v645 = vld [vmem:[%s175 + $0x750] sm:$0xff]
          %646 = vst [vmem:[%s176 + $0x750] sm:$0xff] %v645
          %v647 = vld [vmem:[%s175 + $0x758] sm:$0xff]
          %648 = vst [vmem:[%s176 + $0x758] sm:$0xff] %v647
          %v649 = vld [vmem:[%s175 + $0x760] sm:$0xff]
          %650 = vst [vmem:[%s176 + $0x760] sm:$0xff] %v649
          %v651 = vld [vmem:[%s175 + $0x768] sm:$0xff]
          %652 = vst [vmem:[%s176 + $0x768] sm:$0xff] %v651
          %v653 = vld [vmem:[%s175 + $0x770] sm:$0xff]
          %654 = vst [vmem:[%s176 + $0x770] sm:$0xff] %v653
          %v655 = vld [vmem:[%s175 + $0x778] sm:$0xff]
          %656 = vst [vmem:[%s176 + $0x778] sm:$0xff] %v655
          %v657 = vld [vmem:[%s175 + $0x780] sm:$0xff]
          %658 = vst [vmem:[%s176 + $0x780] sm:$0xff] %v657
          %v659 = vld [vmem:[%s175 + $0x788] sm:$0xff]
          %660 = vst [vmem:[%s176 + $0x788] sm:$0xff] %v659
          %v661 = vld [vmem:[%s175 + $0x790] sm:$0xff]
          %662 = vst [vmem:[%s176 + $0x790] sm:$0xff] %v661
          %v663 = vld [vmem:[%s175 + $0x798] sm:$0xff]
          %664 = vst [vmem:[%s176 + $0x798] sm:$0xff] %v663
          %v665 = vld [vmem:[%s175 + $0x7a0] sm:$0xff]
          %666 = vst [vmem:[%s176 + $0x7a0] sm:$0xff] %v665
          %v667 = vld [vmem:[%s175 + $0x7a8] sm:$0xff]
          %668 = vst [vmem:[%s176 + $0x7a8] sm:$0xff] %v667
          %v669 = vld [vmem:[%s175 + $0x7b0] sm:$0xff]
          %670 = vst [vmem:[%s176 + $0x7b0] sm:$0xff] %v669
          %v671 = vld [vmem:[%s175 + $0x7b8] sm:$0xff]
          %672 = vst [vmem:[%s176 + $0x7b8] sm:$0xff] %v671
          %v673 = vld [vmem:[%s175 + $0x7c0] sm:$0xff]
          %674 = vst [vmem:[%s176 + $0x7c0] sm:$0xff] %v673
          %v675 = vld [vmem:[%s175 + $0x7c8] sm:$0xff]
          %676 = vst [vmem:[%s176 + $0x7c8] sm:$0xff] %v675
          %v677 = vld [vmem:[%s175 + $0x7d0] sm:$0xff]
          %678 = vst [vmem:[%s176 + $0x7d0] sm:$0xff] %v677
          %v679 = vld [vmem:[%s175 + $0x7d8] sm:$0xff]
          %680 = vst [vmem:[%s176 + $0x7d8] sm:$0xff] %v679
          %v681 = vld [vmem:[%s175 + $0x7e0] sm:$0xff]
          %682 = vst [vmem:[%s176 + $0x7e0] sm:$0xff] %v681
          %v683 = vld [vmem:[%s175 + $0x7e8] sm:$0xff]
          %684 = vst [vmem:[%s176 + $0x7e8] sm:$0xff] %v683
          %v685 = vld [vmem:[%s175 + $0x7f0] sm:$0xff]
          %686 = vst [vmem:[%s176 + $0x7f0] sm:$0xff] %v685
          %v687 = vld [vmem:[%s175 + $0x7f8] sm:$0xff]
          %688 = vst [vmem:[%s176 + $0x7f8] sm:$0xff] %v687
          %v689 = vld [vmem:[%s175 + $0x800] sm:$0xff]
          %690 = vst [vmem:[%s176 + $0x800] sm:$0xff] %v689
          %v691 = vld [vmem:[%s175 + $0x808] sm:$0xff]
          %692 = vst [vmem:[%s176 + $0x808] sm:$0xff] %v691
          %v693 = vld [vmem:[%s175 + $0x810] sm:$0xff]
          %694 = vst [vmem:[%s176 + $0x810] sm:$0xff] %v693
          %v695 = vld [vmem:[%s175 + $0x818] sm:$0xff]
          %696 = vst [vmem:[%s176 + $0x818] sm:$0xff] %v695
          %v697 = vld [vmem:[%s175 + $0x820] sm:$0xff]
          %698 = vst [vmem:[%s176 + $0x820] sm:$0xff] %v697
          %v699 = vld [vmem:[%s175 + $0x828] sm:$0xff]
          %700 = vst [vmem:[%s176 + $0x828] sm:$0xff] %v699
          %v701 = vld [vmem:[%s175 + $0x830] sm:$0xff]
          %702 = vst [vmem:[%s176 + $0x830] sm:$0xff] %v701
          %v703 = vld [vmem:[%s175 + $0x838] sm:$0xff]
          %704 = vst [vmem:[%s176 + $0x838] sm:$0xff] %v703
          %v705 = vld [vmem:[%s175 + $0x840] sm:$0xff]
          %706 = vst [vmem:[%s176 + $0x840] sm:$0xff] %v705
          %v707 = vld [vmem:[%s175 + $0x848] sm:$0xff]
          %708 = vst [vmem:[%s176 + $0x848] sm:$0xff] %v707
          %v709 = vld [vmem:[%s175 + $0x850] sm:$0xff]
          %710 = vst [vmem:[%s176 + $0x850] sm:$0xff] %v709
          %v711 = vld [vmem:[%s175 + $0x858] sm:$0xff]
          %712 = vst [vmem:[%s176 + $0x858] sm:$0xff] %v711
          %v713 = vld [vmem:[%s175 + $0x860] sm:$0xff]
          %714 = vst [vmem:[%s176 + $0x860] sm:$0xff] %v713
          %v715 = vld [vmem:[%s175 + $0x868] sm:$0xff]
          %716 = vst [vmem:[%s176 + $0x868] sm:$0xff] %v715
          %v717 = vld [vmem:[%s175 + $0x870] sm:$0xff]
          %718 = vst [vmem:[%s176 + $0x870] sm:$0xff] %v717
          %v719 = vld [vmem:[%s175 + $0x878] sm:$0xff]
          %720 = vst [vmem:[%s176 + $0x878] sm:$0xff] %v719
          %v721 = vld [vmem:[%s175 + $0x880] sm:$0xff]
          %722 = vst [vmem:[%s176 + $0x880] sm:$0xff] %v721
          %v723 = vld [vmem:[%s175 + $0x888] sm:$0xff]
          %724 = vst [vmem:[%s176 + $0x888] sm:$0xff] %v723
          %v725 = vld [vmem:[%s175 + $0x890] sm:$0xff]
          %726 = vst [vmem:[%s176 + $0x890] sm:$0xff] %v725
          %v727 = vld [vmem:[%s175 + $0x898] sm:$0xff]
          %728 = vst [vmem:[%s176 + $0x898] sm:$0xff] %v727
          %v729 = vld [vmem:[%s175 + $0x8a0] sm:$0xff]
          %730 = vst [vmem:[%s176 + $0x8a0] sm:$0xff] %v729
          %v731 = vld [vmem:[%s175 + $0x8a8] sm:$0xff]
          %732 = vst [vmem:[%s176 + $0x8a8] sm:$0xff] %v731
          %v733 = vld [vmem:[%s175 + $0x8b0] sm:$0xff]
          %734 = vst [vmem:[%s176 + $0x8b0] sm:$0xff] %v733
          %v735 = vld [vmem:[%s175 + $0x8b8] sm:$0xff]
          %736 = vst [vmem:[%s176 + $0x8b8] sm:$0xff] %v735
          %v737 = vld [vmem:[%s175 + $0x8c0] sm:$0xff]
          %738 = vst [vmem:[%s176 + $0x8c0] sm:$0xff] %v737
          %v739 = vld [vmem:[%s175 + $0x8c8] sm:$0xff]
          %740 = vst [vmem:[%s176 + $0x8c8] sm:$0xff] %v739
          %v741 = vld [vmem:[%s175 + $0x8d0] sm:$0xff]
          %742 = vst [vmem:[%s176 + $0x8d0] sm:$0xff] %v741
          %v743 = vld [vmem:[%s175 + $0x8d8] sm:$0xff]
          %744 = vst [vmem:[%s176 + $0x8d8] sm:$0xff] %v743
          %v745 = vld [vmem:[%s175 + $0x8e0] sm:$0xff]
          %746 = vst [vmem:[%s176 + $0x8e0] sm:$0xff] %v745
          %v747 = vld [vmem:[%s175 + $0x8e8] sm:$0xff]
          %748 = vst [vmem:[%s176 + $0x8e8] sm:$0xff] %v747
          %v749 = vld [vmem:[%s175 + $0x8f0] sm:$0xff]
          %750 = vst [vmem:[%s176 + $0x8f0] sm:$0xff] %v749
          %v751 = vld [vmem:[%s175 + $0x8f8] sm:$0xff]
          %752 = vst [vmem:[%s176 + $0x8f8] sm:$0xff] %v751
          %v753 = vld [vmem:[%s175 + $0x900] sm:$0xff]
          %754 = vst [vmem:[%s176 + $0x900] sm:$0xff] %v753
          %v755 = vld [vmem:[%s175 + $0x908] sm:$0xff]
          %756 = vst [vmem:[%s176 + $0x908] sm:$0xff] %v755
          %v757 = vld [vmem:[%s175 + $0x910] sm:$0xff]
          %758 = vst [vmem:[%s176 + $0x910] sm:$0xff] %v757
          %v759 = vld [vmem:[%s175 + $0x918] sm:$0xff]
          %760 = vst [vmem:[%s176 + $0x918] sm:$0xff] %v759
          %v761 = vld [vmem:[%s175 + $0x920] sm:$0xff]
          %762 = vst [vmem:[%s176 + $0x920] sm:$0xff] %v761
          %v763 = vld [vmem:[%s175 + $0x928] sm:$0xff]
          %764 = vst [vmem:[%s176 + $0x928] sm:$0xff] %v763
          %v765 = vld [vmem:[%s175 + $0x930] sm:$0xff]
          %766 = vst [vmem:[%s176 + $0x930] sm:$0xff] %v765
          %v767 = vld [vmem:[%s175 + $0x938] sm:$0xff]
          %768 = vst [vmem:[%s176 + $0x938] sm:$0xff] %v767
          %v769 = vld [vmem:[%s175 + $0x940] sm:$0xff]
          %770 = vst [vmem:[%s176 + $0x940] sm:$0xff] %v769
          %v771 = vld [vmem:[%s175 + $0x948] sm:$0xff]
          %772 = vst [vmem:[%s176 + $0x948] sm:$0xff] %v771
          %v773 = vld [vmem:[%s175 + $0x950] sm:$0xff]
          %774 = vst [vmem:[%s176 + $0x950] sm:$0xff] %v773
          %v775 = vld [vmem:[%s175 + $0x958] sm:$0xff]
          %776 = vst [vmem:[%s176 + $0x958] sm:$0xff] %v775
          %v777 = vld [vmem:[%s175 + $0x960] sm:$0xff]
          %778 = vst [vmem:[%s176 + $0x960] sm:$0xff] %v777
          %v779 = vld [vmem:[%s175 + $0x968] sm:$0xff]
          %780 = vst [vmem:[%s176 + $0x968] sm:$0xff] %v779
          %v781 = vld [vmem:[%s175 + $0x970] sm:$0xff]
          %782 = vst [vmem:[%s176 + $0x970] sm:$0xff] %v781
          %v783 = vld [vmem:[%s175 + $0x978] sm:$0xff]
          %784 = vst [vmem:[%s176 + $0x978] sm:$0xff] %v783
          %v785 = vld [vmem:[%s175 + $0x980] sm:$0xff]
          %786 = vst [vmem:[%s176 + $0x980] sm:$0xff] %v785
          %v787 = vld [vmem:[%s175 + $0x988] sm:$0xff]
          %788 = vst [vmem:[%s176 + $0x988] sm:$0xff] %v787
          %v789 = vld [vmem:[%s175 + $0x990] sm:$0xff]
          %790 = vst [vmem:[%s176 + $0x990] sm:$0xff] %v789
          %v791 = vld [vmem:[%s175 + $0x998] sm:$0xff]
          %792 = vst [vmem:[%s176 + $0x998] sm:$0xff] %v791
          %v793 = vld [vmem:[%s175 + $0x9a0] sm:$0xff]
          %794 = vst [vmem:[%s176 + $0x9a0] sm:$0xff] %v793
          %v795 = vld [vmem:[%s175 + $0x9a8] sm:$0xff]
          %796 = vst [vmem:[%s176 + $0x9a8] sm:$0xff] %v795
          %v797 = vld [vmem:[%s175 + $0x9b0] sm:$0xff]
          %798 = vst [vmem:[%s176 + $0x9b0] sm:$0xff] %v797
          %v799 = vld [vmem:[%s175 + $0x9b8] sm:$0xff]
          %800 = vst [vmem:[%s176 + $0x9b8] sm:$0xff] %v799
          %v801 = vld [vmem:[%s175 + $0x9c0] sm:$0xff]
          %802 = vst [vmem:[%s176 + $0x9c0] sm:$0xff] %v801
          %v803 = vld [vmem:[%s175 + $0x9c8] sm:$0xff]
          %804 = vst [vmem:[%s176 + $0x9c8] sm:$0xff] %v803
          %v805 = vld [vmem:[%s175 + $0x9d0] sm:$0xff]
          %806 = vst [vmem:[%s176 + $0x9d0] sm:$0xff] %v805
          %v807 = vld [vmem:[%s175 + $0x9d8] sm:$0xff]
          %808 = vst [vmem:[%s176 + $0x9d8] sm:$0xff] %v807
          %v809 = vld [vmem:[%s175 + $0x9e0] sm:$0xff]
          %810 = vst [vmem:[%s176 + $0x9e0] sm:$0xff] %v809
          %v811 = vld [vmem:[%s175 + $0x9e8] sm:$0xff]
          %812 = vst [vmem:[%s176 + $0x9e8] sm:$0xff] %v811
          %v813 = vld [vmem:[%s175 + $0x9f0] sm:$0xff]
          %814 = vst [vmem:[%s176 + $0x9f0] sm:$0xff] %v813
          %v815 = vld [vmem:[%s175 + $0x9f8] sm:$0xff]
          %816 = vst [vmem:[%s176 + $0x9f8] sm:$0xff] %v815
          %v817 = vld [vmem:[%s175 + $0xa00] sm:$0xff]
          %818 = vst [vmem:[%s176 + $0xa00] sm:$0xff] %v817
          %v819 = vld [vmem:[%s175 + $0xa08] sm:$0xff]
          %820 = vst [vmem:[%s176 + $0xa08] sm:$0xff] %v819
          %v821 = vld [vmem:[%s175 + $0xa10] sm:$0xff]
          %822 = vst [vmem:[%s176 + $0xa10] sm:$0xff] %v821
          %v823 = vld [vmem:[%s175 + $0xa18] sm:$0xff]
          %824 = vst [vmem:[%s176 + $0xa18] sm:$0xff] %v823
          %v825 = vld [vmem:[%s175 + $0xa20] sm:$0xff]
          %826 = vst [vmem:[%s176 + $0xa20] sm:$0xff] %v825
          %v827 = vld [vmem:[%s175 + $0xa28] sm:$0xff]
          %828 = vst [vmem:[%s176 + $0xa28] sm:$0xff] %v827
          %v829 = vld [vmem:[%s175 + $0xa30] sm:$0xff]
          %830 = vst [vmem:[%s176 + $0xa30] sm:$0xff] %v829
          %v831 = vld [vmem:[%s175 + $0xa38] sm:$0xff]
          %832 = vst [vmem:[%s176 + $0xa38] sm:$0xff] %v831
          %v833 = vld [vmem:[%s175 + $0xa40] sm:$0xff]
          %834 = vst [vmem:[%s176 + $0xa40] sm:$0xff] %v833
          %v835 = vld [vmem:[%s175 + $0xa48] sm:$0xff]
          %836 = vst [vmem:[%s176 + $0xa48] sm:$0xff] %v835
          %v837 = vld [vmem:[%s175 + $0xa50] sm:$0xff]
          %838 = vst [vmem:[%s176 + $0xa50] sm:$0xff] %v837
          %v839 = vld [vmem:[%s175 + $0xa58] sm:$0xff]
          %840 = vst [vmem:[%s176 + $0xa58] sm:$0xff] %v839
          %v841 = vld [vmem:[%s175 + $0xa60] sm:$0xff]
          %842 = vst [vmem:[%s176 + $0xa60] sm:$0xff] %v841
          %v843 = vld [vmem:[%s175 + $0xa68] sm:$0xff]
          %844 = vst [vmem:[%s176 + $0xa68] sm:$0xff] %v843
          %v845 = vld [vmem:[%s175 + $0xa70] sm:$0xff]
          %846 = vst [vmem:[%s176 + $0xa70] sm:$0xff] %v845
          %v847 = vld [vmem:[%s175 + $0xa78] sm:$0xff]
          %848 = vst [vmem:[%s176 + $0xa78] sm:$0xff] %v847
          %v849 = vld [vmem:[%s175 + $0xa80] sm:$0xff]
          %850 = vst [vmem:[%s176 + $0xa80] sm:$0xff] %v849
          %v851 = vld [vmem:[%s175 + $0xa88] sm:$0xff]
          %852 = vst [vmem:[%s176 + $0xa88] sm:$0xff] %v851
          %v853 = vld [vmem:[%s175 + $0xa90] sm:$0xff]
          %854 = vst [vmem:[%s176 + $0xa90] sm:$0xff] %v853
          %v855 = vld [vmem:[%s175 + $0xa98] sm:$0xff]
          %856 = vst [vmem:[%s176 + $0xa98] sm:$0xff] %v855
          %v857 = vld [vmem:[%s175 + $0xaa0] sm:$0xff]
          %858 = vst [vmem:[%s176 + $0xaa0] sm:$0xff] %v857
          %v859 = vld [vmem:[%s175 + $0xaa8] sm:$0xff]
          %860 = vst [vmem:[%s176 + $0xaa8] sm:$0xff] %v859
          %v861 = vld [vmem:[%s175 + $0xab0] sm:$0xff]
          %862 = vst [vmem:[%s176 + $0xab0] sm:$0xff] %v861
          %v863 = vld [vmem:[%s175 + $0xab8] sm:$0xff]
          %864 = vst [vmem:[%s176 + $0xab8] sm:$0xff] %v863
          %v865 = vld [vmem:[%s175 + $0xac0] sm:$0xff]
          %866 = vst [vmem:[%s176 + $0xac0] sm:$0xff] %v865
          %v867 = vld [vmem:[%s175 + $0xac8] sm:$0xff]
          %868 = vst [vmem:[%s176 + $0xac8] sm:$0xff] %v867
          %v869 = vld [vmem:[%s175 + $0xad0] sm:$0xff]
          %870 = vst [vmem:[%s176 + $0xad0] sm:$0xff] %v869
          %v871 = vld [vmem:[%s175 + $0xad8] sm:$0xff]
          %872 = vst [vmem:[%s176 + $0xad8] sm:$0xff] %v871
          %v873 = vld [vmem:[%s175 + $0xae0] sm:$0xff]
          %874 = vst [vmem:[%s176 + $0xae0] sm:$0xff] %v873
          %v875 = vld [vmem:[%s175 + $0xae8] sm:$0xff]
          %876 = vst [vmem:[%s176 + $0xae8] sm:$0xff] %v875
          %v877 = vld [vmem:[%s175 + $0xaf0] sm:$0xff]
          %878 = vst [vmem:[%s176 + $0xaf0] sm:$0xff] %v877
          %v879 = vld [vmem:[%s175 + $0xaf8] sm:$0xff]
          %880 = vst [vmem:[%s176 + $0xaf8] sm:$0xff] %v879
          %v881 = vld [vmem:[%s175 + $0xb00] sm:$0xff]
          %882 = vst [vmem:[%s176 + $0xb00] sm:$0xff] %v881
          %v883 = vld [vmem:[%s175 + $0xb08] sm:$0xff]
          %884 = vst [vmem:[%s176 + $0xb08] sm:$0xff] %v883
          %v885 = vld [vmem:[%s175 + $0xb10] sm:$0xff]
          %886 = vst [vmem:[%s176 + $0xb10] sm:$0xff] %v885
          %v887 = vld [vmem:[%s175 + $0xb18] sm:$0xff]
          %888 = vst [vmem:[%s176 + $0xb18] sm:$0xff] %v887
          %v889 = vld [vmem:[%s175 + $0xb20] sm:$0xff]
          %890 = vst [vmem:[%s176 + $0xb20] sm:$0xff] %v889
          %v891 = vld [vmem:[%s175 + $0xb28] sm:$0xff]
          %892 = vst [vmem:[%s176 + $0xb28] sm:$0xff] %v891
          %v893 = vld [vmem:[%s175 + $0xb30] sm:$0xff]
          %894 = vst [vmem:[%s176 + $0xb30] sm:$0xff] %v893
          %v895 = vld [vmem:[%s175 + $0xb38] sm:$0xff]
          %896 = vst [vmem:[%s176 + $0xb38] sm:$0xff] %v895
          %v897 = vld [vmem:[%s175 + $0xb40] sm:$0xff]
          %898 = vst [vmem:[%s176 + $0xb40] sm:$0xff] %v897
          %v899 = vld [vmem:[%s175 + $0xb48] sm:$0xff]
          %900 = vst [vmem:[%s176 + $0xb48] sm:$0xff] %v899
          %v901 = vld [vmem:[%s175 + $0xb50] sm:$0xff]
          %902 = vst [vmem:[%s176 + $0xb50] sm:$0xff] %v901
          %v903 = vld [vmem:[%s175 + $0xb58] sm:$0xff]
          %904 = vst [vmem:[%s176 + $0xb58] sm:$0xff] %v903
          %v905 = vld [vmem:[%s175 + $0xb60] sm:$0xff]
          %906 = vst [vmem:[%s176 + $0xb60] sm:$0xff] %v905
          %v907 = vld [vmem:[%s175 + $0xb68] sm:$0xff]
          %908 = vst [vmem:[%s176 + $0xb68] sm:$0xff] %v907
          %v909 = vld [vmem:[%s175 + $0xb70] sm:$0xff]
          %910 = vst [vmem:[%s176 + $0xb70] sm:$0xff] %v909
          %v911 = vld [vmem:[%s175 + $0xb78] sm:$0xff]
          %912 = vst [vmem:[%s176 + $0xb78] sm:$0xff] %v911
          %v913 = vld [vmem:[%s175 + $0xb80] sm:$0xff]
          %914 = vst [vmem:[%s176 + $0xb80] sm:$0xff] %v913
          %v915 = vld [vmem:[%s175 + $0xb88] sm:$0xff]
          %916 = vst [vmem:[%s176 + $0xb88] sm:$0xff] %v915
          %v917 = vld [vmem:[%s175 + $0xb90] sm:$0xff]
          %918 = vst [vmem:[%s176 + $0xb90] sm:$0xff] %v917
          %v919 = vld [vmem:[%s175 + $0xb98] sm:$0xff]
          %920 = vst [vmem:[%s176 + $0xb98] sm:$0xff] %v919
          %v921 = vld [vmem:[%s175 + $0xba0] sm:$0xff]
          %922 = vst [vmem:[%s176 + $0xba0] sm:$0xff] %v921
          %v923 = vld [vmem:[%s175 + $0xba8] sm:$0xff]
          %924 = vst [vmem:[%s176 + $0xba8] sm:$0xff] %v923
          %v925 = vld [vmem:[%s175 + $0xbb0] sm:$0xff]
          %926 = vst [vmem:[%s176 + $0xbb0] sm:$0xff] %v925
          %v927 = vld [vmem:[%s175 + $0xbb8] sm:$0xff]
          %928 = vst [vmem:[%s176 + $0xbb8] sm:$0xff] %v927
          %v929 = vld [vmem:[%s175 + $0xbc0] sm:$0xff]
          %930 = vst [vmem:[%s176 + $0xbc0] sm:$0xff] %v929
          %v931 = vld [vmem:[%s175 + $0xbc8] sm:$0xff]
          %932 = vst [vmem:[%s176 + $0xbc8] sm:$0xff] %v931
          %v933 = vld [vmem:[%s175 + $0xbd0] sm:$0xff]
          %934 = vst [vmem:[%s176 + $0xbd0] sm:$0xff] %v933
          %v935 = vld [vmem:[%s175 + $0xbd8] sm:$0xff]
          %936 = vst [vmem:[%s176 + $0xbd8] sm:$0xff] %v935
          %v937 = vld [vmem:[%s175 + $0xbe0] sm:$0xff]
          %938 = vst [vmem:[%s176 + $0xbe0] sm:$0xff] %v937
          %v939 = vld [vmem:[%s175 + $0xbe8] sm:$0xff]
          %940 = vst [vmem:[%s176 + $0xbe8] sm:$0xff] %v939
          %v941 = vld [vmem:[%s175 + $0xbf0] sm:$0xff]
          %942 = vst [vmem:[%s176 + $0xbf0] sm:$0xff] %v941
          %v943 = vld [vmem:[%s175 + $0xbf8] sm:$0xff]
          %944 = vst [vmem:[%s176 + $0xbf8] sm:$0xff] %v943
        $region95: #{few_shot_classifier_forward.1} parent=89 // loop_footer
          %s174 = sadd.s32 1, %s170
        $region96: #{few_shot_classifier_forward.1} parent=89 // loop_footer_branch
          %169 = sbr.rel target = $region92
        $region97: #{few_shot_classifier_forward.1} parent=89 // loop_exit
          _
      $region90: #{few_shot_classifier_forward.1} parent=74 // pred_fallthru
        _
      %p945 = pneg %p165
      // Predicated region
      $region98: #{few_shot_classifier_forward.1} parent=74 // pred_check
        _
      $region99: #{few_shot_classifier_forward.1} parent=74 // pred_check_branch
        %947 = sbr.rel (%p165) target = $region101
      $region100: #{few_shot_classifier_forward.1} parent=74 // pred_region
        %s948 = sand.u32 3072, 7
      $region101: #{few_shot_classifier_forward.1} parent=74 // pred_fallthru
        _
    $region75: #{few_shot_classifier_forward.1} parent=1 // pred_fallthru
      _
    // Predicated region
    $region76: #{few_shot_classifier_forward.1} parent=1 // pred_check
      %p149 = pneg %p145
    $region77: #{few_shot_classifier_forward.1} parent=1 // pred_check_branch
      %151 = sbr.rel (%p149) target = $region79
    $region78: #{few_shot_classifier_forward.1} parent=1 // pred_region
      %s152 = sshll.u32 1, 3072
      %s153 = ssub.s32 %s152, 1
      loop: start=0, step=1, limit=1
      $region80: #{few_shot_classifier_forward.1} parent=78 // loop_pre_header
        _
      $region81: #{few_shot_classifier_forward.1} parent=78 // loop_header
        %s155 = sphi 0, %s159
        %p156 = scmp.ge.s32.totalorder %s155, 1
        %s160 = sphi %s2, %s2
        %s161 = sphi [#allocation3], [#allocation3]
      $region82: #{few_shot_classifier_forward.1} parent=78 // loop_header_branch
        %158 = sbr.rel (%p156) target = $region86
      $region83: #{few_shot_classifier_forward.1} parent=78 // loop_body
        %v162 = vld [vmem:[%s160] sm:%s153]
        %163 = vst [vmem:[%s161] sm:%s153] %v162
      $region84: #{few_shot_classifier_forward.1} parent=78 // loop_footer
        %s159 = sadd.s32 1, %s155
      $region85: #{few_shot_classifier_forward.1} parent=78 // loop_footer_branch
        %154 = sbr.rel target = $region81
      $region86: #{few_shot_classifier_forward.1} parent=78 // loop_exit
        _
    $region79: #{few_shot_classifier_forward.1} parent=1 // pred_fallthru
      _
    // Predicated region
    $region102: #{few_shot_classifier_forward.1} parent=1 // pred_check
      _
    $region103: #{few_shot_classifier_forward.1} parent=1 // pred_check_branch
      %951 = sbr.rel (0) target = $region105
    $region104: #{few_shot_classifier_forward.1} parent=1 // pred_region
      %952 = vsyncadd %s143, 49152
    $region105: #{few_shot_classifier_forward.1} parent=1 // pred_fallthru
      _
    %s953 = scalar_lea.sflag [#allocation9], 2
    %p955 = scmp.lt.u32.totalorder 768, 8
    %p956 = pneg %p955
    // Predicated region
    $region106: #{few_shot_classifier_forward.1} parent=1 // pred_check
      _
    $region107: #{few_shot_classifier_forward.1} parent=1 // pred_check_branch
      %958 = sbr.rel (%p955) target = $region109
    $region108: #{few_shot_classifier_forward.1} parent=1 // pred_region
      %s974 = sand.u32 768, 7
      %p975 = scmp.eq.s32.totalorder %s974, 0
      // Predicated region
      $region121: #{few_shot_classifier_forward.1} parent=108 // pred_check
        %p976 = pneg %p975
      $region122: #{few_shot_classifier_forward.1} parent=108 // pred_check_branch
        %978 = sbr.rel (%p976) target = $region124
      $region123: #{few_shot_classifier_forward.1} parent=108 // pred_region
        loop: start=0, step=1, limit=1
        $region125: #{few_shot_classifier_forward.1} parent=123 // loop_pre_header
          _
        $region126: #{few_shot_classifier_forward.1} parent=123 // loop_header
          %s980 = sphi 0, %s984
          %p981 = scmp.ge.s32.totalorder %s980, 1
          %s985 = sphi %s3, %s3
          %s986 = sphi [#allocation4], [#allocation4]
        $region127: #{few_shot_classifier_forward.1} parent=123 // loop_header_branch
          %983 = sbr.rel (%p981) target = $region131
        $region128: #{few_shot_classifier_forward.1} parent=123 // loop_body
          %v987 = vld [vmem:[%s985] sm:$0xff]
          %988 = vst [vmem:[%s986] sm:$0xff] %v987
          %v989 = vld [vmem:[%s985 + $0x8] sm:$0xff]
          %990 = vst [vmem:[%s986 + $0x8] sm:$0xff] %v989
          %v991 = vld [vmem:[%s985 + $0x10] sm:$0xff]
          %992 = vst [vmem:[%s986 + $0x10] sm:$0xff] %v991
          %v993 = vld [vmem:[%s985 + $0x18] sm:$0xff]
          %994 = vst [vmem:[%s986 + $0x18] sm:$0xff] %v993
          %v995 = vld [vmem:[%s985 + $0x20] sm:$0xff]
          %996 = vst [vmem:[%s986 + $0x20] sm:$0xff] %v995
          %v997 = vld [vmem:[%s985 + $0x28] sm:$0xff]
          %998 = vst [vmem:[%s986 + $0x28] sm:$0xff] %v997
          %v999 = vld [vmem:[%s985 + $0x30] sm:$0xff]
          %1000 = vst [vmem:[%s986 + $0x30] sm:$0xff] %v999
          %v1001 = vld [vmem:[%s985 + $0x38] sm:$0xff]
          %1002 = vst [vmem:[%s986 + $0x38] sm:$0xff] %v1001
          %v1003 = vld [vmem:[%s985 + $0x40] sm:$0xff]
          %1004 = vst [vmem:[%s986 + $0x40] sm:$0xff] %v1003
          %v1005 = vld [vmem:[%s985 + $0x48] sm:$0xff]
          %1006 = vst [vmem:[%s986 + $0x48] sm:$0xff] %v1005
          %v1007 = vld [vmem:[%s985 + $0x50] sm:$0xff]
          %1008 = vst [vmem:[%s986 + $0x50] sm:$0xff] %v1007
          %v1009 = vld [vmem:[%s985 + $0x58] sm:$0xff]
          %1010 = vst [vmem:[%s986 + $0x58] sm:$0xff] %v1009
          %v1011 = vld [vmem:[%s985 + $0x60] sm:$0xff]
          %1012 = vst [vmem:[%s986 + $0x60] sm:$0xff] %v1011
          %v1013 = vld [vmem:[%s985 + $0x68] sm:$0xff]
          %1014 = vst [vmem:[%s986 + $0x68] sm:$0xff] %v1013
          %v1015 = vld [vmem:[%s985 + $0x70] sm:$0xff]
          %1016 = vst [vmem:[%s986 + $0x70] sm:$0xff] %v1015
          %v1017 = vld [vmem:[%s985 + $0x78] sm:$0xff]
          %1018 = vst [vmem:[%s986 + $0x78] sm:$0xff] %v1017
          %v1019 = vld [vmem:[%s985 + $0x80] sm:$0xff]
          %1020 = vst [vmem:[%s986 + $0x80] sm:$0xff] %v1019
          %v1021 = vld [vmem:[%s985 + $0x88] sm:$0xff]
          %1022 = vst [vmem:[%s986 + $0x88] sm:$0xff] %v1021
          %v1023 = vld [vmem:[%s985 + $0x90] sm:$0xff]
          %1024 = vst [vmem:[%s986 + $0x90] sm:$0xff] %v1023
          %v1025 = vld [vmem:[%s985 + $0x98] sm:$0xff]
          %1026 = vst [vmem:[%s986 + $0x98] sm:$0xff] %v1025
          %v1027 = vld [vmem:[%s985 + $0xa0] sm:$0xff]
          %1028 = vst [vmem:[%s986 + $0xa0] sm:$0xff] %v1027
          %v1029 = vld [vmem:[%s985 + $0xa8] sm:$0xff]
          %1030 = vst [vmem:[%s986 + $0xa8] sm:$0xff] %v1029
          %v1031 = vld [vmem:[%s985 + $0xb0] sm:$0xff]
          %1032 = vst [vmem:[%s986 + $0xb0] sm:$0xff] %v1031
          %v1033 = vld [vmem:[%s985 + $0xb8] sm:$0xff]
          %1034 = vst [vmem:[%s986 + $0xb8] sm:$0xff] %v1033
          %v1035 = vld [vmem:[%s985 + $0xc0] sm:$0xff]
          %1036 = vst [vmem:[%s986 + $0xc0] sm:$0xff] %v1035
          %v1037 = vld [vmem:[%s985 + $0xc8] sm:$0xff]
          %1038 = vst [vmem:[%s986 + $0xc8] sm:$0xff] %v1037
          %v1039 = vld [vmem:[%s985 + $0xd0] sm:$0xff]
          %1040 = vst [vmem:[%s986 + $0xd0] sm:$0xff] %v1039
          %v1041 = vld [vmem:[%s985 + $0xd8] sm:$0xff]
          %1042 = vst [vmem:[%s986 + $0xd8] sm:$0xff] %v1041
          %v1043 = vld [vmem:[%s985 + $0xe0] sm:$0xff]
          %1044 = vst [vmem:[%s986 + $0xe0] sm:$0xff] %v1043
          %v1045 = vld [vmem:[%s985 + $0xe8] sm:$0xff]
          %1046 = vst [vmem:[%s986 + $0xe8] sm:$0xff] %v1045
          %v1047 = vld [vmem:[%s985 + $0xf0] sm:$0xff]
          %1048 = vst [vmem:[%s986 + $0xf0] sm:$0xff] %v1047
          %v1049 = vld [vmem:[%s985 + $0xf8] sm:$0xff]
          %1050 = vst [vmem:[%s986 + $0xf8] sm:$0xff] %v1049
          %v1051 = vld [vmem:[%s985 + $0x100] sm:$0xff]
          %1052 = vst [vmem:[%s986 + $0x100] sm:$0xff] %v1051
          %v1053 = vld [vmem:[%s985 + $0x108] sm:$0xff]
          %1054 = vst [vmem:[%s986 + $0x108] sm:$0xff] %v1053
          %v1055 = vld [vmem:[%s985 + $0x110] sm:$0xff]
          %1056 = vst [vmem:[%s986 + $0x110] sm:$0xff] %v1055
          %v1057 = vld [vmem:[%s985 + $0x118] sm:$0xff]
          %1058 = vst [vmem:[%s986 + $0x118] sm:$0xff] %v1057
          %v1059 = vld [vmem:[%s985 + $0x120] sm:$0xff]
          %1060 = vst [vmem:[%s986 + $0x120] sm:$0xff] %v1059
          %v1061 = vld [vmem:[%s985 + $0x128] sm:$0xff]
          %1062 = vst [vmem:[%s986 + $0x128] sm:$0xff] %v1061
          %v1063 = vld [vmem:[%s985 + $0x130] sm:$0xff]
          %1064 = vst [vmem:[%s986 + $0x130] sm:$0xff] %v1063
          %v1065 = vld [vmem:[%s985 + $0x138] sm:$0xff]
          %1066 = vst [vmem:[%s986 + $0x138] sm:$0xff] %v1065
          %v1067 = vld [vmem:[%s985 + $0x140] sm:$0xff]
          %1068 = vst [vmem:[%s986 + $0x140] sm:$0xff] %v1067
          %v1069 = vld [vmem:[%s985 + $0x148] sm:$0xff]
          %1070 = vst [vmem:[%s986 + $0x148] sm:$0xff] %v1069
          %v1071 = vld [vmem:[%s985 + $0x150] sm:$0xff]
          %1072 = vst [vmem:[%s986 + $0x150] sm:$0xff] %v1071
          %v1073 = vld [vmem:[%s985 + $0x158] sm:$0xff]
          %1074 = vst [vmem:[%s986 + $0x158] sm:$0xff] %v1073
          %v1075 = vld [vmem:[%s985 + $0x160] sm:$0xff]
          %1076 = vst [vmem:[%s986 + $0x160] sm:$0xff] %v1075
          %v1077 = vld [vmem:[%s985 + $0x168] sm:$0xff]
          %1078 = vst [vmem:[%s986 + $0x168] sm:$0xff] %v1077
          %v1079 = vld [vmem:[%s985 + $0x170] sm:$0xff]
          %1080 = vst [vmem:[%s986 + $0x170] sm:$0xff] %v1079
          %v1081 = vld [vmem:[%s985 + $0x178] sm:$0xff]
          %1082 = vst [vmem:[%s986 + $0x178] sm:$0xff] %v1081
          %v1083 = vld [vmem:[%s985 + $0x180] sm:$0xff]
          %1084 = vst [vmem:[%s986 + $0x180] sm:$0xff] %v1083
          %v1085 = vld [vmem:[%s985 + $0x188] sm:$0xff]
          %1086 = vst [vmem:[%s986 + $0x188] sm:$0xff] %v1085
          %v1087 = vld [vmem:[%s985 + $0x190] sm:$0xff]
          %1088 = vst [vmem:[%s986 + $0x190] sm:$0xff] %v1087
          %v1089 = vld [vmem:[%s985 + $0x198] sm:$0xff]
          %1090 = vst [vmem:[%s986 + $0x198] sm:$0xff] %v1089
          %v1091 = vld [vmem:[%s985 + $0x1a0] sm:$0xff]
          %1092 = vst [vmem:[%s986 + $0x1a0] sm:$0xff] %v1091
          %v1093 = vld [vmem:[%s985 + $0x1a8] sm:$0xff]
          %1094 = vst [vmem:[%s986 + $0x1a8] sm:$0xff] %v1093
          %v1095 = vld [vmem:[%s985 + $0x1b0] sm:$0xff]
          %1096 = vst [vmem:[%s986 + $0x1b0] sm:$0xff] %v1095
          %v1097 = vld [vmem:[%s985 + $0x1b8] sm:$0xff]
          %1098 = vst [vmem:[%s986 + $0x1b8] sm:$0xff] %v1097
          %v1099 = vld [vmem:[%s985 + $0x1c0] sm:$0xff]
          %1100 = vst [vmem:[%s986 + $0x1c0] sm:$0xff] %v1099
          %v1101 = vld [vmem:[%s985 + $0x1c8] sm:$0xff]
          %1102 = vst [vmem:[%s986 + $0x1c8] sm:$0xff] %v1101
          %v1103 = vld [vmem:[%s985 + $0x1d0] sm:$0xff]
          %1104 = vst [vmem:[%s986 + $0x1d0] sm:$0xff] %v1103
          %v1105 = vld [vmem:[%s985 + $0x1d8] sm:$0xff]
          %1106 = vst [vmem:[%s986 + $0x1d8] sm:$0xff] %v1105
          %v1107 = vld [vmem:[%s985 + $0x1e0] sm:$0xff]
          %1108 = vst [vmem:[%s986 + $0x1e0] sm:$0xff] %v1107
          %v1109 = vld [vmem:[%s985 + $0x1e8] sm:$0xff]
          %1110 = vst [vmem:[%s986 + $0x1e8] sm:$0xff] %v1109
          %v1111 = vld [vmem:[%s985 + $0x1f0] sm:$0xff]
          %1112 = vst [vmem:[%s986 + $0x1f0] sm:$0xff] %v1111
          %v1113 = vld [vmem:[%s985 + $0x1f8] sm:$0xff]
          %1114 = vst [vmem:[%s986 + $0x1f8] sm:$0xff] %v1113
          %v1115 = vld [vmem:[%s985 + $0x200] sm:$0xff]
          %1116 = vst [vmem:[%s986 + $0x200] sm:$0xff] %v1115
          %v1117 = vld [vmem:[%s985 + $0x208] sm:$0xff]
          %1118 = vst [vmem:[%s986 + $0x208] sm:$0xff] %v1117
          %v1119 = vld [vmem:[%s985 + $0x210] sm:$0xff]
          %1120 = vst [vmem:[%s986 + $0x210] sm:$0xff] %v1119
          %v1121 = vld [vmem:[%s985 + $0x218] sm:$0xff]
          %1122 = vst [vmem:[%s986 + $0x218] sm:$0xff] %v1121
          %v1123 = vld [vmem:[%s985 + $0x220] sm:$0xff]
          %1124 = vst [vmem:[%s986 + $0x220] sm:$0xff] %v1123
          %v1125 = vld [vmem:[%s985 + $0x228] sm:$0xff]
          %1126 = vst [vmem:[%s986 + $0x228] sm:$0xff] %v1125
          %v1127 = vld [vmem:[%s985 + $0x230] sm:$0xff]
          %1128 = vst [vmem:[%s986 + $0x230] sm:$0xff] %v1127
          %v1129 = vld [vmem:[%s985 + $0x238] sm:$0xff]
          %1130 = vst [vmem:[%s986 + $0x238] sm:$0xff] %v1129
          %v1131 = vld [vmem:[%s985 + $0x240] sm:$0xff]
          %1132 = vst [vmem:[%s986 + $0x240] sm:$0xff] %v1131
          %v1133 = vld [vmem:[%s985 + $0x248] sm:$0xff]
          %1134 = vst [vmem:[%s986 + $0x248] sm:$0xff] %v1133
          %v1135 = vld [vmem:[%s985 + $0x250] sm:$0xff]
          %1136 = vst [vmem:[%s986 + $0x250] sm:$0xff] %v1135
          %v1137 = vld [vmem:[%s985 + $0x258] sm:$0xff]
          %1138 = vst [vmem:[%s986 + $0x258] sm:$0xff] %v1137
          %v1139 = vld [vmem:[%s985 + $0x260] sm:$0xff]
          %1140 = vst [vmem:[%s986 + $0x260] sm:$0xff] %v1139
          %v1141 = vld [vmem:[%s985 + $0x268] sm:$0xff]
          %1142 = vst [vmem:[%s986 + $0x268] sm:$0xff] %v1141
          %v1143 = vld [vmem:[%s985 + $0x270] sm:$0xff]
          %1144 = vst [vmem:[%s986 + $0x270] sm:$0xff] %v1143
          %v1145 = vld [vmem:[%s985 + $0x278] sm:$0xff]
          %1146 = vst [vmem:[%s986 + $0x278] sm:$0xff] %v1145
          %v1147 = vld [vmem:[%s985 + $0x280] sm:$0xff]
          %1148 = vst [vmem:[%s986 + $0x280] sm:$0xff] %v1147
          %v1149 = vld [vmem:[%s985 + $0x288] sm:$0xff]
          %1150 = vst [vmem:[%s986 + $0x288] sm:$0xff] %v1149
          %v1151 = vld [vmem:[%s985 + $0x290] sm:$0xff]
          %1152 = vst [vmem:[%s986 + $0x290] sm:$0xff] %v1151
          %v1153 = vld [vmem:[%s985 + $0x298] sm:$0xff]
          %1154 = vst [vmem:[%s986 + $0x298] sm:$0xff] %v1153
          %v1155 = vld [vmem:[%s985 + $0x2a0] sm:$0xff]
          %1156 = vst [vmem:[%s986 + $0x2a0] sm:$0xff] %v1155
          %v1157 = vld [vmem:[%s985 + $0x2a8] sm:$0xff]
          %1158 = vst [vmem:[%s986 + $0x2a8] sm:$0xff] %v1157
          %v1159 = vld [vmem:[%s985 + $0x2b0] sm:$0xff]
          %1160 = vst [vmem:[%s986 + $0x2b0] sm:$0xff] %v1159
          %v1161 = vld [vmem:[%s985 + $0x2b8] sm:$0xff]
          %1162 = vst [vmem:[%s986 + $0x2b8] sm:$0xff] %v1161
          %v1163 = vld [vmem:[%s985 + $0x2c0] sm:$0xff]
          %1164 = vst [vmem:[%s986 + $0x2c0] sm:$0xff] %v1163
          %v1165 = vld [vmem:[%s985 + $0x2c8] sm:$0xff]
          %1166 = vst [vmem:[%s986 + $0x2c8] sm:$0xff] %v1165
          %v1167 = vld [vmem:[%s985 + $0x2d0] sm:$0xff]
          %1168 = vst [vmem:[%s986 + $0x2d0] sm:$0xff] %v1167
          %v1169 = vld [vmem:[%s985 + $0x2d8] sm:$0xff]
          %1170 = vst [vmem:[%s986 + $0x2d8] sm:$0xff] %v1169
          %v1171 = vld [vmem:[%s985 + $0x2e0] sm:$0xff]
          %1172 = vst [vmem:[%s986 + $0x2e0] sm:$0xff] %v1171
          %v1173 = vld [vmem:[%s985 + $0x2e8] sm:$0xff]
          %1174 = vst [vmem:[%s986 + $0x2e8] sm:$0xff] %v1173
          %v1175 = vld [vmem:[%s985 + $0x2f0] sm:$0xff]
          %1176 = vst [vmem:[%s986 + $0x2f0] sm:$0xff] %v1175
          %v1177 = vld [vmem:[%s985 + $0x2f8] sm:$0xff]
          %1178 = vst [vmem:[%s986 + $0x2f8] sm:$0xff] %v1177
        $region129: #{few_shot_classifier_forward.1} parent=123 // loop_footer
          %s984 = sadd.s32 1, %s980
        $region130: #{few_shot_classifier_forward.1} parent=123 // loop_footer_branch
          %979 = sbr.rel target = $region126
        $region131: #{few_shot_classifier_forward.1} parent=123 // loop_exit
          _
      $region124: #{few_shot_classifier_forward.1} parent=108 // pred_fallthru
        _
      %p1179 = pneg %p975
      // Predicated region
      $region132: #{few_shot_classifier_forward.1} parent=108 // pred_check
        _
      $region133: #{few_shot_classifier_forward.1} parent=108 // pred_check_branch
        %1181 = sbr.rel (%p975) target = $region135
      $region134: #{few_shot_classifier_forward.1} parent=108 // pred_region
        %s1182 = sand.u32 768, 7
      $region135: #{few_shot_classifier_forward.1} parent=108 // pred_fallthru
        _
    $region109: #{few_shot_classifier_forward.1} parent=1 // pred_fallthru
      _
    // Predicated region
    $region110: #{few_shot_classifier_forward.1} parent=1 // pred_check
      %p959 = pneg %p955
    $region111: #{few_shot_classifier_forward.1} parent=1 // pred_check_branch
      %961 = sbr.rel (%p959) target = $region113
    $region112: #{few_shot_classifier_forward.1} parent=1 // pred_region
      %s962 = sshll.u32 1, 768
      %s963 = ssub.s32 %s962, 1
      loop: start=0, step=1, limit=1
      $region114: #{few_shot_classifier_forward.1} parent=112 // loop_pre_header
        _
      $region115: #{few_shot_classifier_forward.1} parent=112 // loop_header
        %s965 = sphi 0, %s969
        %p966 = scmp.ge.s32.totalorder %s965, 1
        %s970 = sphi %s3, %s3
        %s971 = sphi [#allocation4], [#allocation4]
      $region116: #{few_shot_classifier_forward.1} parent=112 // loop_header_branch
        %968 = sbr.rel (%p966) target = $region120
      $region117: #{few_shot_classifier_forward.1} parent=112 // loop_body
        %v972 = vld [vmem:[%s970] sm:%s963]
        %973 = vst [vmem:[%s971] sm:%s963] %v972
      $region118: #{few_shot_classifier_forward.1} parent=112 // loop_footer
        %s969 = sadd.s32 1, %s965
      $region119: #{few_shot_classifier_forward.1} parent=112 // loop_footer_branch
        %964 = sbr.rel target = $region115
      $region120: #{few_shot_classifier_forward.1} parent=112 // loop_exit
        _
    $region113: #{few_shot_classifier_forward.1} parent=1 // pred_fallthru
      _
    // Predicated region
    $region136: #{few_shot_classifier_forward.1} parent=1 // pred_check
      _
    $region137: #{few_shot_classifier_forward.1} parent=1 // pred_check_branch
      %1185 = sbr.rel (0) target = $region139
    $region138: #{few_shot_classifier_forward.1} parent=1 // pred_region
      %1186 = vsyncadd %s953, 12288
    $region139: #{few_shot_classifier_forward.1} parent=1 // pred_fallthru
      _
    %s1187 = scalar_lea.sflag [#allocation9], 3
    %p1189 = scmp.lt.u32.totalorder 192, 8
    %p1190 = pneg %p1189
    // Predicated region
    $region140: #{few_shot_classifier_forward.1} parent=1 // pred_check
      _
    $region141: #{few_shot_classifier_forward.1} parent=1 // pred_check_branch
      %1192 = sbr.rel (%p1189) target = $region143
    $region142: #{few_shot_classifier_forward.1} parent=1 // pred_region
      %s1208 = sand.u32 192, 7
      %p1209 = scmp.eq.s32.totalorder %s1208, 0
      // Predicated region
      $region155: #{few_shot_classifier_forward.1} parent=142 // pred_check
        %p1210 = pneg %p1209
      $region156: #{few_shot_classifier_forward.1} parent=142 // pred_check_branch
        %1212 = sbr.rel (%p1210) target = $region158
      $region157: #{few_shot_classifier_forward.1} parent=142 // pred_region
        loop: start=0, step=1, limit=1
        $region159: #{few_shot_classifier_forward.1} parent=157 // loop_pre_header
          _
        $region160: #{few_shot_classifier_forward.1} parent=157 // loop_header
          %s1214 = sphi 0, %s1218
          %p1215 = scmp.ge.s32.totalorder %s1214, 1
          %s1219 = sphi %s4, %s4
          %s1220 = sphi [#allocation5], [#allocation5]
        $region161: #{few_shot_classifier_forward.1} parent=157 // loop_header_branch
          %1217 = sbr.rel (%p1215) target = $region165
        $region162: #{few_shot_classifier_forward.1} parent=157 // loop_body
          %v1221 = vld [vmem:[%s1219] sm:$0xff]
          %1222 = vst [vmem:[%s1220] sm:$0xff] %v1221
          %v1223 = vld [vmem:[%s1219 + $0x8] sm:$0xff]
          %1224 = vst [vmem:[%s1220 + $0x8] sm:$0xff] %v1223
          %v1225 = vld [vmem:[%s1219 + $0x10] sm:$0xff]
          %1226 = vst [vmem:[%s1220 + $0x10] sm:$0xff] %v1225
          %v1227 = vld [vmem:[%s1219 + $0x18] sm:$0xff]
          %1228 = vst [vmem:[%s1220 + $0x18] sm:$0xff] %v1227
          %v1229 = vld [vmem:[%s1219 + $0x20] sm:$0xff]
          %1230 = vst [vmem:[%s1220 + $0x20] sm:$0xff] %v1229
          %v1231 = vld [vmem:[%s1219 + $0x28] sm:$0xff]
          %1232 = vst [vmem:[%s1220 + $0x28] sm:$0xff] %v1231
          %v1233 = vld [vmem:[%s1219 + $0x30] sm:$0xff]
          %1234 = vst [vmem:[%s1220 + $0x30] sm:$0xff] %v1233
          %v1235 = vld [vmem:[%s1219 + $0x38] sm:$0xff]
          %1236 = vst [vmem:[%s1220 + $0x38] sm:$0xff] %v1235
          %v1237 = vld [vmem:[%s1219 + $0x40] sm:$0xff]
          %1238 = vst [vmem:[%s1220 + $0x40] sm:$0xff] %v1237
          %v1239 = vld [vmem:[%s1219 + $0x48] sm:$0xff]
          %1240 = vst [vmem:[%s1220 + $0x48] sm:$0xff] %v1239
          %v1241 = vld [vmem:[%s1219 + $0x50] sm:$0xff]
          %1242 = vst [vmem:[%s1220 + $0x50] sm:$0xff] %v1241
          %v1243 = vld [vmem:[%s1219 + $0x58] sm:$0xff]
          %1244 = vst [vmem:[%s1220 + $0x58] sm:$0xff] %v1243
          %v1245 = vld [vmem:[%s1219 + $0x60] sm:$0xff]
          %1246 = vst [vmem:[%s1220 + $0x60] sm:$0xff] %v1245
          %v1247 = vld [vmem:[%s1219 + $0x68] sm:$0xff]
          %1248 = vst [vmem:[%s1220 + $0x68] sm:$0xff] %v1247
          %v1249 = vld [vmem:[%s1219 + $0x70] sm:$0xff]
          %1250 = vst [vmem:[%s1220 + $0x70] sm:$0xff] %v1249
          %v1251 = vld [vmem:[%s1219 + $0x78] sm:$0xff]
          %1252 = vst [vmem:[%s1220 + $0x78] sm:$0xff] %v1251
          %v1253 = vld [vmem:[%s1219 + $0x80] sm:$0xff]
          %1254 = vst [vmem:[%s1220 + $0x80] sm:$0xff] %v1253
          %v1255 = vld [vmem:[%s1219 + $0x88] sm:$0xff]
          %1256 = vst [vmem:[%s1220 + $0x88] sm:$0xff] %v1255
          %v1257 = vld [vmem:[%s1219 + $0x90] sm:$0xff]
          %1258 = vst [vmem:[%s1220 + $0x90] sm:$0xff] %v1257
          %v1259 = vld [vmem:[%s1219 + $0x98] sm:$0xff]
          %1260 = vst [vmem:[%s1220 + $0x98] sm:$0xff] %v1259
          %v1261 = vld [vmem:[%s1219 + $0xa0] sm:$0xff]
          %1262 = vst [vmem:[%s1220 + $0xa0] sm:$0xff] %v1261
          %v1263 = vld [vmem:[%s1219 + $0xa8] sm:$0xff]
          %1264 = vst [vmem:[%s1220 + $0xa8] sm:$0xff] %v1263
          %v1265 = vld [vmem:[%s1219 + $0xb0] sm:$0xff]
          %1266 = vst [vmem:[%s1220 + $0xb0] sm:$0xff] %v1265
          %v1267 = vld [vmem:[%s1219 + $0xb8] sm:$0xff]
          %1268 = vst [vmem:[%s1220 + $0xb8] sm:$0xff] %v1267
        $region163: #{few_shot_classifier_forward.1} parent=157 // loop_footer
          %s1218 = sadd.s32 1, %s1214
        $region164: #{few_shot_classifier_forward.1} parent=157 // loop_footer_branch
          %1213 = sbr.rel target = $region160
        $region165: #{few_shot_classifier_forward.1} parent=157 // loop_exit
          _
      $region158: #{few_shot_classifier_forward.1} parent=142 // pred_fallthru
        _
      %p1269 = pneg %p1209
      // Predicated region
      $region166: #{few_shot_classifier_forward.1} parent=142 // pred_check
        _
      $region167: #{few_shot_classifier_forward.1} parent=142 // pred_check_branch
        %1271 = sbr.rel (%p1209) target = $region169
      $region168: #{few_shot_classifier_forward.1} parent=142 // pred_region
        %s1272 = sand.u32 192, 7
      $region169: #{few_shot_classifier_forward.1} parent=142 // pred_fallthru
        _
    $region143: #{few_shot_classifier_forward.1} parent=1 // pred_fallthru
      _
    // Predicated region
    $region144: #{few_shot_classifier_forward.1} parent=1 // pred_check
      %p1193 = pneg %p1189
    $region145: #{few_shot_classifier_forward.1} parent=1 // pred_check_branch
      %1195 = sbr.rel (%p1193) target = $region147
    $region146: #{few_shot_classifier_forward.1} parent=1 // pred_region
      %s1196 = sshll.u32 1, 192
      %s1197 = ssub.s32 %s1196, 1
      loop: start=0, step=1, limit=1
      $region148: #{few_shot_classifier_forward.1} parent=146 // loop_pre_header
        _
      $region149: #{few_shot_classifier_forward.1} parent=146 // loop_header
        %s1199 = sphi 0, %s1203
        %p1200 = scmp.ge.s32.totalorder %s1199, 1
        %s1204 = sphi %s4, %s4
        %s1205 = sphi [#allocation5], [#allocation5]
      $region150: #{few_shot_classifier_forward.1} parent=146 // loop_header_branch
        %1202 = sbr.rel (%p1200) target = $region154
      $region151: #{few_shot_classifier_forward.1} parent=146 // loop_body
        %v1206 = vld [vmem:[%s1204] sm:%s1197]
        %1207 = vst [vmem:[%s1205] sm:%s1197] %v1206
      $region152: #{few_shot_classifier_forward.1} parent=146 // loop_footer
        %s1203 = sadd.s32 1, %s1199
      $region153: #{few_shot_classifier_forward.1} parent=146 // loop_footer_branch
        %1198 = sbr.rel target = $region149
      $region154: #{few_shot_classifier_forward.1} parent=146 // loop_exit
        _
    $region147: #{few_shot_classifier_forward.1} parent=1 // pred_fallthru
      _
    // Predicated region
    $region170: #{few_shot_classifier_forward.1} parent=1 // pred_check
      _
    $region171: #{few_shot_classifier_forward.1} parent=1 // pred_check_branch
      %1275 = sbr.rel (0) target = $region173
    $region172: #{few_shot_classifier_forward.1} parent=1 // pred_region
      %1276 = vsyncadd %s1187, 3072
    $region173: #{few_shot_classifier_forward.1} parent=1 // pred_fallthru
      _
    %v1277 = vld [vmem:[%s0] sm:$0xf]
    %v1278 = vld [vmem:[%s0 + $0x4] sm:$0xf]
    %v1279 = vld [vmem:[%s0 + $0x8] sm:$0xf]
    %v1280 = vld [vmem:[%s0 + $0xc] sm:$0xf]
    %s1281 = smul.u32 4, 8
    %s1282 = smul.u32 %s1281, 8
    %s1283 = sshll.u32 %s1282, 4
    %1284 = dma.done [#allocation9], %s1283
    %v1285 = vld [vmem:[#allocation2] sm:$0xff]
    %v1286 = vld [vmem:[#allocation2 + $0x8] sm:$0xff]
    %v1287 = vld [vmem:[#allocation2 + $0x10] sm:$0xff]
    %v1288 = vld [vmem:[#allocation2 + $0x18] sm:$0xff]
    %v1289 = vld [vmem:[#allocation2 + $0x20] sm:$0xff]
    %v1290 = vld [vmem:[#allocation2 + $0x28] sm:$0xff]
    %v1291 = vld [vmem:[#allocation2 + $0x30] sm:$0xff]
    %v1292 = vld [vmem:[#allocation2 + $0x38] sm:$0xff]
    %v1293 = vld [vmem:[#allocation2 + $0x40] sm:$0xff]
    %v1294 = vld [vmem:[#allocation2 + $0x48] sm:$0xff]
    %v1295 = vld [vmem:[#allocation2 + $0x50] sm:$0xff]
    %v1296 = vld [vmem:[#allocation2 + $0x58] sm:$0xff]
    %v1297 = vld [vmem:[#allocation2 + $0x60] sm:$0xff]
    %v1298 = vld [vmem:[#allocation2 + $0x68] sm:$0xff]
    %v1299 = vld [vmem:[#allocation2 + $0x70] sm:$0xff]
    %v1300 = vld [vmem:[#allocation2 + $0x78] sm:$0xff]
    %v1301 = vld [vmem:[#allocation2 + $0x80] sm:$0xff]
    %v1302 = vld [vmem:[#allocation2 + $0x88] sm:$0xff]
    %v1303 = vld [vmem:[#allocation2 + $0x90] sm:$0xff]
    %v1304 = vld [vmem:[#allocation2 + $0x98] sm:$0xff]
    %v1305 = vld [vmem:[#allocation2 + $0xa0] sm:$0xff]
    %v1306 = vld [vmem:[#allocation2 + $0xa8] sm:$0xff]
    %v1307 = vld [vmem:[#allocation2 + $0xb0] sm:$0xff]
    %v1308 = vld [vmem:[#allocation2 + $0xb8] sm:$0xff]
    %v1309 = vld [vmem:[#allocation2 + $0xc0] sm:$0xff]
    %v1310 = vld [vmem:[#allocation2 + $0xc8] sm:$0xff]
    %v1311 = vld [vmem:[#allocation2 + $0xd0] sm:$0xff]
    %v1312 = vld [vmem:[#allocation2 + $0xd8] sm:$0xff]
    %v1313 = vld [vmem:[#allocation2 + $0xe0] sm:$0xff]
    %v1314 = vld [vmem:[#allocation2 + $0xe8] sm:$0xff]
    %v1315 = vld [vmem:[#allocation2 + $0xf0] sm:$0xff]
    %v1316 = vld [vmem:[#allocation2 + $0xf8] sm:$0xff]
    %v1321 = vunpack.c.l.b16 %v1277
    %v1322 = vunpack.c.l.b16 %v1278
    %v1323 = vunpack.c.l.b16 %v1279
    %v1324 = vunpack.c.l.b16 %v1280
    %v1325 = vpack.c.b16 %v1322, %v1321
    %v1326 = vpack.c.b16 %v1324, %v1323
    %v1359 = vunpack.c.l.b16 %v1285
    %v1360 = vunpack.c.h.b16 %v1285
    %v1361 = vunpack.c.l.b16 %v1286
    %v1362 = vunpack.c.h.b16 %v1286
    %v1363 = vunpack.c.l.b16 %v1287
    %v1364 = vunpack.c.h.b16 %v1287
    %v1365 = vunpack.c.l.b16 %v1288
    %v1366 = vunpack.c.h.b16 %v1288
    %v1367 = vunpack.c.l.b16 %v1289
    %v1368 = vunpack.c.h.b16 %v1289
    %v1369 = vunpack.c.l.b16 %v1290
    %v1370 = vunpack.c.h.b16 %v1290
    %v1371 = vunpack.c.l.b16 %v1291
    %v1372 = vunpack.c.h.b16 %v1291
    %v1373 = vunpack.c.l.b16 %v1292
    %v1374 = vunpack.c.h.b16 %v1292
    %v1375 = vunpack.c.l.b16 %v1293
    %v1376 = vunpack.c.h.b16 %v1293
    %v1377 = vunpack.c.l.b16 %v1294
    %v1378 = vunpack.c.h.b16 %v1294
    %v1379 = vunpack.c.l.b16 %v1295
    %v1380 = vunpack.c.h.b16 %v1295
    %v1381 = vunpack.c.l.b16 %v1296
    %v1382 = vunpack.c.h.b16 %v1296
    %v1383 = vunpack.c.l.b16 %v1297
    %v1384 = vunpack.c.h.b16 %v1297
    %v1385 = vunpack.c.l.b16 %v1298
    %v1386 = vunpack.c.h.b16 %v1298
    %v1387 = vunpack.c.l.b16 %v1299
    %v1388 = vunpack.c.h.b16 %v1299
    %v1389 = vunpack.c.l.b16 %v1300
    %v1390 = vunpack.c.h.b16 %v1300
    %v1391 = vunpack.c.l.b16 %v1301
    %v1392 = vunpack.c.h.b16 %v1301
    %v1393 = vunpack.c.l.b16 %v1302
    %v1394 = vunpack.c.h.b16 %v1302
    %v1395 = vunpack.c.l.b16 %v1303
    %v1396 = vunpack.c.h.b16 %v1303
    %v1397 = vunpack.c.l.b16 %v1304
    %v1398 = vunpack.c.h.b16 %v1304
    %v1399 = vunpack.c.l.b16 %v1305
    %v1400 = vunpack.c.h.b16 %v1305
    %v1401 = vunpack.c.l.b16 %v1306
    %v1402 = vunpack.c.h.b16 %v1306
    %v1403 = vunpack.c.l.b16 %v1307
    %v1404 = vunpack.c.h.b16 %v1307
    %v1405 = vunpack.c.l.b16 %v1308
    %v1406 = vunpack.c.h.b16 %v1308
    %v1407 = vunpack.c.l.b16 %v1309
    %v1408 = vunpack.c.h.b16 %v1309
    %v1409 = vunpack.c.l.b16 %v1310
    %v1410 = vunpack.c.h.b16 %v1310
    %v1411 = vunpack.c.l.b16 %v1311
    %v1412 = vunpack.c.h.b16 %v1311
    %v1413 = vunpack.c.l.b16 %v1312
    %v1414 = vunpack.c.h.b16 %v1312
    %v1415 = vunpack.c.l.b16 %v1313
    %v1416 = vunpack.c.h.b16 %v1313
    %v1417 = vunpack.c.l.b16 %v1314
    %v1418 = vunpack.c.h.b16 %v1314
    %v1419 = vunpack.c.l.b16 %v1315
    %v1420 = vunpack.c.h.b16 %v1315
    %v1421 = vunpack.c.l.b16 %v1316
    %v1422 = vunpack.c.h.b16 %v1316
    %v1423 = vpack.c.b16 %v1367, %v1359
    %v1424 = vpack.c.b16 %v1368, %v1360
    %v1425 = vpack.c.b16 %v1369, %v1361
    %v1426 = vpack.c.b16 %v1370, %v1362
    %v1427 = vpack.c.b16 %v1371, %v1363
    %v1428 = vpack.c.b16 %v1372, %v1364
    %v1429 = vpack.c.b16 %v1373, %v1365
    %v1430 = vpack.c.b16 %v1374, %v1366
    %v1431 = vpack.c.b16 %v1383, %v1375
    %v1432 = vpack.c.b16 %v1384, %v1376
    %v1433 = vpack.c.b16 %v1385, %v1377
    %v1434 = vpack.c.b16 %v1386, %v1378
    %v1435 = vpack.c.b16 %v1387, %v1379
    %v1436 = vpack.c.b16 %v1388, %v1380
    %v1437 = vpack.c.b16 %v1389, %v1381
    %v1438 = vpack.c.b16 %v1390, %v1382
    %v1439 = vpack.c.b16 %v1399, %v1391
    %v1440 = vpack.c.b16 %v1400, %v1392
    %v1441 = vpack.c.b16 %v1401, %v1393
    %v1442 = vpack.c.b16 %v1402, %v1394
    %v1443 = vpack.c.b16 %v1403, %v1395
    %v1444 = vpack.c.b16 %v1404, %v1396
    %v1445 = vpack.c.b16 %v1405, %v1397
    %v1446 = vpack.c.b16 %v1406, %v1398
    %v1447 = vpack.c.b16 %v1415, %v1407
    %v1448 = vpack.c.b16 %v1416, %v1408
    %v1449 = vpack.c.b16 %v1417, %v1409
    %v1450 = vpack.c.b16 %v1418, %v1410
    %v1451 = vpack.c.b16 %v1419, %v1411
    %v1452 = vpack.c.b16 %v1420, %v1412
    %v1453 = vpack.c.b16 %v1421, %v1413
    %v1454 = vpack.c.b16 %v1422, %v1414
    %vm1487 = vcmask 523264
    %v1489 = vsel %vm1487, %v1325, 0
    %v1492 = vsel %vm1487, %v1326, 0
    %1494 = vmatprep.subr.bf16.mxu0 0
    %1495 = vmatpush1.bf16.msra.mxu0 0
    %1496 = vmatprep.subr.bf16.mxu0 0
    %1497 = vmatpush1.bf16.msra.mxu0 0
    %1498 = vmatprep.subr.bf16.mxu0 0
    %1499 = vmatpush1.bf16.msra.mxu0 0
    %1500 = vmatprep.subr.bf16.mxu0 0
    %1501 = vmatpush1.bf16.msra.mxu0 0
    %1502 = vmatprep.subr.bf16.mxu0 %v1448
    %1503 = vmatpush1.bf16.msra.mxu0 %v1447
    %1504 = vmatprep.subr.bf16.mxu0 %v1440
    %1505 = vmatpush1.bf16.msra.mxu0 %v1439
    %1506 = vmatprep.subr.bf16.mxu0 %v1432
    %1507 = vmatpush1.bf16.msra.mxu0 %v1431
    %1508 = vmatprep.subr.bf16.mxu0 %v1424
    %1509 = vmatpush1.bf16.msra.mxu0 %v1423
    %1510 = vmatprep.subr.bf16.mxu0 0
    %1511 = vmatpush2.bf16.msra.mxu0 0
    %1512 = vmatprep.subr.bf16.mxu0 0
    %1513 = vmatpush2.bf16.msra.mxu0 0
    %1514 = vmatprep.subr.bf16.mxu0 0
    %1515 = vmatpush2.bf16.msra.mxu0 0
    %1516 = vmatprep.subr.bf16.mxu0 0
    %1517 = vmatpush2.bf16.msra.mxu0 0
    %1518 = vmatprep.subr.bf16.mxu0 0
    %1519 = vmatpush2.bf16.msra.mxu0 0
    %1520 = vmatprep.subr.bf16.mxu0 0
    %1521 = vmatpush2.bf16.msra.mxu0 0
    %1522 = vmatprep.subr.bf16.mxu0 0
    %1523 = vmatpush2.bf16.msra.mxu0 0
    %1524 = vmatprep.subr.bf16.mxu0 0
    %1525 = vmatpush2.bf16.msra.mxu0 0
    %1526 = vmatprep.mubr.bf16.mxu0 0
    %1527 = vmatmul.mubr.bf16.gmra.mxu0 %v1489
    %v1528 = vpop.f32.mrf.mxu0
    %v1529 = vadd.f32 0.0, %v1528
    %v1530 = vpop.f32.mrf.mxu0
    %v1531 = vadd.f32 0.0, %v1530
    %v1532 = vpop.f32.mrf.mxu0
    %v1533 = vadd.f32 0.0, %v1532
    %v1534 = vpop.f32.mrf.mxu0
    %v1535 = vadd.f32 0.0, %v1534
    %1536 = vmatprep.mubr.bf16.mxu0 0
    %1537 = vmatmul.mubr.bf16.gmra.mxu0 %v1492
    %v1538 = vpop.f32.mrf.mxu0
    %v1539 = vadd.f32 0.0, %v1538
    %v1540 = vpop.f32.mrf.mxu0
    %v1541 = vadd.f32 0.0, %v1540
    %v1542 = vpop.f32.mrf.mxu0
    %v1543 = vadd.f32 0.0, %v1542
    %v1544 = vpop.f32.mrf.mxu0
    %v1545 = vadd.f32 0.0, %v1544
    %1546 = vdwg.mxu0
    %1547 = vmatprep.subr.bf16.mxu0 0
    %1548 = vmatpush1.bf16.msra.mxu0 0
    %1549 = vmatprep.subr.bf16.mxu0 0
    %1550 = vmatpush1.bf16.msra.mxu0 0
    %1551 = vmatprep.subr.bf16.mxu0 0
    %1552 = vmatpush1.bf16.msra.mxu0 0
    %1553 = vmatprep.subr.bf16.mxu0 0
    %1554 = vmatpush1.bf16.msra.mxu0 0
    %1555 = vmatprep.subr.bf16.mxu0 %v1450
    %1556 = vmatpush1.bf16.msra.mxu0 %v1449
    %1557 = vmatprep.subr.bf16.mxu0 %v1442
    %1558 = vmatpush1.bf16.msra.mxu0 %v1441
    %1559 = vmatprep.subr.bf16.mxu0 %v1434
    %1560 = vmatpush1.bf16.msra.mxu0 %v1433
    %1561 = vmatprep.subr.bf16.mxu0 %v1426
    %1562 = vmatpush1.bf16.msra.mxu0 %v1425
    %1563 = vmatprep.subr.bf16.mxu0 0
    %1564 = vmatpush2.bf16.msra.mxu0 0
    %1565 = vmatprep.subr.bf16.mxu0 0
    %1566 = vmatpush2.bf16.msra.mxu0 0
    %1567 = vmatprep.subr.bf16.mxu0 0
    %1568 = vmatpush2.bf16.msra.mxu0 0
    %1569 = vmatprep.subr.bf16.mxu0 0
    %1570 = vmatpush2.bf16.msra.mxu0 0
    %1571 = vmatprep.subr.bf16.mxu0 0
    %1572 = vmatpush2.bf16.msra.mxu0 0
    %1573 = vmatprep.subr.bf16.mxu0 0
    %1574 = vmatpush2.bf16.msra.mxu0 0
    %1575 = vmatprep.subr.bf16.mxu0 0
    %1576 = vmatpush2.bf16.msra.mxu0 0
    %1577 = vmatprep.subr.bf16.mxu0 0
    %1578 = vmatpush2.bf16.msra.mxu0 0
    %1579 = vmatprep.mubr.bf16.mxu0 0
    %1580 = vmatmul.mubr.bf16.gmra.mxu0 %v1489
    %v1581 = vpop.f32.mrf.mxu0
    %v1582 = vadd.f32 0.0, %v1581
    %v1583 = vpop.f32.mrf.mxu0
    %v1584 = vadd.f32 0.0, %v1583
    %v1585 = vpop.f32.mrf.mxu0
    %v1586 = vadd.f32 0.0, %v1585
    %v1587 = vpop.f32.mrf.mxu0
    %v1588 = vadd.f32 0.0, %v1587
    %1589 = vmatprep.mubr.bf16.mxu0 0
    %1590 = vmatmul.mubr.bf16.gmra.mxu0 %v1492
    %v1591 = vpop.f32.mrf.mxu0
    %v1592 = vadd.f32 0.0, %v1591
    %v1593 = vpop.f32.mrf.mxu0
    %v1594 = vadd.f32 0.0, %v1593
    %v1595 = vpop.f32.mrf.mxu0
    %v1596 = vadd.f32 0.0, %v1595
    %v1597 = vpop.f32.mrf.mxu0
    %v1598 = vadd.f32 0.0, %v1597
    %1599 = vdwg.mxu0
    %1600 = vmatprep.subr.bf16.mxu0 0
    %1601 = vmatpush1.bf16.msra.mxu0 0
    %1602 = vmatprep.subr.bf16.mxu0 0
    %1603 = vmatpush1.bf16.msra.mxu0 0
    %1604 = vmatprep.subr.bf16.mxu0 0
    %1605 = vmatpush1.bf16.msra.mxu0 0
    %1606 = vmatprep.subr.bf16.mxu0 0
    %1607 = vmatpush1.bf16.msra.mxu0 0
    %1608 = vmatprep.subr.bf16.mxu0 %v1452
    %1609 = vmatpush1.bf16.msra.mxu0 %v1451
    %1610 = vmatprep.subr.bf16.mxu0 %v1444
    %1611 = vmatpush1.bf16.msra.mxu0 %v1443
    %1612 = vmatprep.subr.bf16.mxu0 %v1436
    %1613 = vmatpush1.bf16.msra.mxu0 %v1435
    %1614 = vmatprep.subr.bf16.mxu0 %v1428
    %1615 = vmatpush1.bf16.msra.mxu0 %v1427
    %1616 = vmatprep.subr.bf16.mxu0 0
    %1617 = vmatpush2.bf16.msra.mxu0 0
    %1618 = vmatprep.subr.bf16.mxu0 0
    %1619 = vmatpush2.bf16.msra.mxu0 0
    %1620 = vmatprep.subr.bf16.mxu0 0
    %1621 = vmatpush2.bf16.msra.mxu0 0
    %1622 = vmatprep.subr.bf16.mxu0 0
    %1623 = vmatpush2.bf16.msra.mxu0 0
    %1624 = vmatprep.subr.bf16.mxu0 0
    %1625 = vmatpush2.bf16.msra.mxu0 0
    %1626 = vmatprep.subr.bf16.mxu0 0
    %1627 = vmatpush2.bf16.msra.mxu0 0
    %1628 = vmatprep.subr.bf16.mxu0 0
    %1629 = vmatpush2.bf16.msra.mxu0 0
    %1630 = vmatprep.subr.bf16.mxu0 0
    %1631 = vmatpush2.bf16.msra.mxu0 0
    %1632 = vmatprep.mubr.bf16.mxu0 0
    %1633 = vmatmul.mubr.bf16.gmra.mxu0 %v1489
    %v1634 = vpop.f32.mrf.mxu0
    %v1635 = vadd.f32 0.0, %v1634
    %v1636 = vpop.f32.mrf.mxu0
    %v1637 = vadd.f32 0.0, %v1636
    %v1638 = vpop.f32.mrf.mxu0
    %v1639 = vadd.f32 0.0, %v1638
    %v1640 = vpop.f32.mrf.mxu0
    %v1641 = vadd.f32 0.0, %v1640
    %1642 = vmatprep.mubr.bf16.mxu0 0
    %1643 = vmatmul.mubr.bf16.gmra.mxu0 %v1492
    %v1644 = vpop.f32.mrf.mxu0
    %v1645 = vadd.f32 0.0, %v1644
    %v1646 = vpop.f32.mrf.mxu0
    %v1647 = vadd.f32 0.0, %v1646
    %v1648 = vpop.f32.mrf.mxu0
    %v1649 = vadd.f32 0.0, %v1648
    %v1650 = vpop.f32.mrf.mxu0
    %v1651 = vadd.f32 0.0, %v1650
    %1652 = vdwg.mxu0
    %1653 = vmatprep.subr.bf16.mxu0 0
    %1654 = vmatpush1.bf16.msra.mxu0 0
    %1655 = vmatprep.subr.bf16.mxu0 0
    %1656 = vmatpush1.bf16.msra.mxu0 0
    %1657 = vmatprep.subr.bf16.mxu0 0
    %1658 = vmatpush1.bf16.msra.mxu0 0
    %1659 = vmatprep.subr.bf16.mxu0 0
    %1660 = vmatpush1.bf16.msra.mxu0 0
    %1661 = vmatprep.subr.bf16.mxu0 %v1454
    %1662 = vmatpush1.bf16.msra.mxu0 %v1453
    %1663 = vmatprep.subr.bf16.mxu0 %v1446
    %1664 = vmatpush1.bf16.msra.mxu0 %v1445
    %1665 = vmatprep.subr.bf16.mxu0 %v1438
    %1666 = vmatpush1.bf16.msra.mxu0 %v1437
    %1667 = vmatprep.subr.bf16.mxu0 %v1430
    %1668 = vmatpush1.bf16.msra.mxu0 %v1429
    %1669 = vmatprep.subr.bf16.mxu0 0
    %1670 = vmatpush2.bf16.msra.mxu0 0
    %1671 = vmatprep.subr.bf16.mxu0 0
    %1672 = vmatpush2.bf16.msra.mxu0 0
    %1673 = vmatprep.subr.bf16.mxu0 0
    %1674 = vmatpush2.bf16.msra.mxu0 0
    %1675 = vmatprep.subr.bf16.mxu0 0
    %1676 = vmatpush2.bf16.msra.mxu0 0
    %1677 = vmatprep.subr.bf16.mxu0 0
    %1678 = vmatpush2.bf16.msra.mxu0 0
    %1679 = vmatprep.subr.bf16.mxu0 0
    %1680 = vmatpush2.bf16.msra.mxu0 0
    %1681 = vmatprep.subr.bf16.mxu0 0
    %1682 = vmatpush2.bf16.msra.mxu0 0
    %1683 = vmatprep.subr.bf16.mxu0 0
    %1684 = vmatpush2.bf16.msra.mxu0 0
    %1685 = vmatprep.mubr.bf16.mxu0 0
    %1686 = vmatmul.mubr.bf16.gmra.mxu0 %v1489
    %v1687 = vpop.f32.mrf.mxu0
    %v1688 = vadd.f32 0.0, %v1687
    %v1689 = vpop.f32.mrf.mxu0
    %v1690 = vadd.f32 0.0, %v1689
    %v1691 = vpop.f32.mrf.mxu0
    %v1692 = vadd.f32 0.0, %v1691
    %v1693 = vpop.f32.mrf.mxu0
    %v1694 = vadd.f32 0.0, %v1693
    %1695 = vmatprep.mubr.bf16.mxu0 0
    %1696 = vmatmul.mubr.bf16.gmra.mxu0 %v1492
    %v1697 = vpop.f32.mrf.mxu0
    %v1698 = vadd.f32 0.0, %v1697
    %v1699 = vpop.f32.mrf.mxu0
    %v1700 = vadd.f32 0.0, %v1699
    %v1701 = vpop.f32.mrf.mxu0
    %v1702 = vadd.f32 0.0, %v1701
    %v1703 = vpop.f32.mrf.mxu0
    %v1704 = vadd.f32 0.0, %v1703
    %1705 = vdwg.mxu0
    %v1706 = vadd.f32 %v1529, %v1533
    %v1707 = vadd.f32 %v1706, %v1539
    %v1708 = vadd.f32 %v1707, %v1543
    %v1709 = vrot.slane %v1708, 4
    %v1710 = vadd.f32 %v1708, %v1709
    %v1711 = vrot.slane %v1710, 2
    %v1712 = vadd.f32 %v1710, %v1711
    %v1713 = vrot.slane %v1712, 1
    %v1714 = vadd.f32 %v1712, %v1713
    %v1715 = vadd.f32 %v1531, %v1535
    %v1716 = vadd.f32 %v1715, %v1541
    %v1717 = vadd.f32 %v1716, %v1545
    %v1718 = vrot.slane %v1717, 4
    %v1719 = vadd.f32 %v1717, %v1718
    %v1720 = vrot.slane %v1719, 2
    %v1721 = vadd.f32 %v1719, %v1720
    %v1722 = vrot.slane %v1721, 1
    %v1723 = vadd.f32 %v1721, %v1722
    %v1724 = vadd.f32 %v1582, %v1586
    %v1725 = vadd.f32 %v1724, %v1592
    %v1726 = vadd.f32 %v1725, %v1596
    %v1727 = vrot.slane %v1726, 4
    %v1728 = vadd.f32 %v1726, %v1727
    %v1729 = vrot.slane %v1728, 2
    %v1730 = vadd.f32 %v1728, %v1729
    %v1731 = vrot.slane %v1730, 1
    %v1732 = vadd.f32 %v1730, %v1731
    %v1733 = vadd.f32 %v1584, %v1588
    %v1734 = vadd.f32 %v1733, %v1594
    %v1735 = vadd.f32 %v1734, %v1598
    %v1736 = vrot.slane %v1735, 4
    %v1737 = vadd.f32 %v1735, %v1736
    %v1738 = vrot.slane %v1737, 2
    %v1739 = vadd.f32 %v1737, %v1738
    %v1740 = vrot.slane %v1739, 1
    %v1741 = vadd.f32 %v1739, %v1740
    %v1742 = vadd.f32 %v1635, %v1639
    %v1743 = vadd.f32 %v1742, %v1645
    %v1744 = vadd.f32 %v1743, %v1649
    %v1745 = vrot.slane %v1744, 4
    %v1746 = vadd.f32 %v1744, %v1745
    %v1747 = vrot.slane %v1746, 2
    %v1748 = vadd.f32 %v1746, %v1747
    %v1749 = vrot.slane %v1748, 1
    %v1750 = vadd.f32 %v1748, %v1749
    %v1751 = vadd.f32 %v1637, %v1641
    %v1752 = vadd.f32 %v1751, %v1647
    %v1753 = vadd.f32 %v1752, %v1651
    %v1754 = vrot.slane %v1753, 4
    %v1755 = vadd.f32 %v1753, %v1754
    %v1756 = vrot.slane %v1755, 2
    %v1757 = vadd.f32 %v1755, %v1756
    %v1758 = vrot.slane %v1757, 1
    %v1759 = vadd.f32 %v1757, %v1758
    %v1760 = vadd.f32 %v1688, %v1692
    %v1761 = vadd.f32 %v1760, %v1698
    %v1762 = vadd.f32 %v1761, %v1702
    %v1763 = vrot.slane %v1762, 4
    %v1764 = vadd.f32 %v1762, %v1763
    %v1765 = vrot.slane %v1764, 2
    %v1766 = vadd.f32 %v1764, %v1765
    %v1767 = vrot.slane %v1766, 1
    %v1768 = vadd.f32 %v1766, %v1767
    %v1769 = vadd.f32 %v1690, %v1694
    %v1770 = vadd.f32 %v1769, %v1700
    %v1771 = vadd.f32 %v1770, %v1704
    %v1772 = vrot.slane %v1771, 4
    %v1773 = vadd.f32 %v1771, %v1772
    %v1774 = vrot.slane %v1773, 2
    %v1775 = vadd.f32 %v1773, %v1774
    %v1776 = vrot.slane %v1775, 1
    %v1777 = vadd.f32 %v1775, %v1776
    %v1778 = vadd.f32 %v1714, %v1750
    %v1779 = vadd.f32 %v1723, %v1759
    %v1780 = vadd.f32 %v1732, %v1768
    %v1781 = vadd.f32 %v1741, %v1777
    %v1782 = vadd.f32 %v1778, %v1780
    %v1783 = vadd.f32 %v1779, %v1781
    %v1784 = vadd.f32 %v1782, %v1783
    %1786 = vrot.lane.b32.xlu0 %v1784, 64
    %v1787 = vpop.permute.xlu0 %1786
    %v1789 = vadd.f32 %v1784, %v1787
    %v1790 = vmul.f32 %v1789, 0.001953125
    %1792 = vrot.lane.b32.xlu0 %v1790, 64
    %v1793 = vpop.permute.xlu0 %1792
    %v1795 = vsel %vm1487, %v1790, %v1793
    %v1796 = vlaneseq
    %v1797 = vshrl.u32 %v1796, 7
    %v1798 = vsub.s32 0, %v1797
    %v1799 = vrot.slane %v1795, %v1798
    %v1800 = vsub.f32 %v1529, %v1799
    %v1801 = vsub.f32 %v1531, %v1799
    %v1802 = vsub.f32 %v1582, %v1799
    %v1803 = vsub.f32 %v1584, %v1799
    %v1804 = vsub.f32 %v1635, %v1799
    %v1805 = vsub.f32 %v1637, %v1799
    %v1806 = vsub.f32 %v1688, %v1799
    %v1807 = vsub.f32 %v1690, %v1799
    %v1808 = vsub.f32 %v1533, %v1799
    %v1809 = vsub.f32 %v1535, %v1799
    %v1810 = vsub.f32 %v1586, %v1799
    %v1811 = vsub.f32 %v1588, %v1799
    %v1812 = vsub.f32 %v1639, %v1799
    %v1813 = vsub.f32 %v1641, %v1799
    %v1814 = vsub.f32 %v1692, %v1799
    %v1815 = vsub.f32 %v1694, %v1799
    %v1816 = vsub.f32 %v1539, %v1799
    %v1817 = vsub.f32 %v1541, %v1799
    %v1818 = vsub.f32 %v1592, %v1799
    %v1819 = vsub.f32 %v1594, %v1799
    %v1820 = vsub.f32 %v1645, %v1799
    %v1821 = vsub.f32 %v1647, %v1799
    %v1822 = vsub.f32 %v1698, %v1799
    %v1823 = vsub.f32 %v1700, %v1799
    %v1824 = vsub.f32 %v1543, %v1799
    %v1825 = vsub.f32 %v1545, %v1799
    %v1826 = vsub.f32 %v1596, %v1799
    %v1827 = vsub.f32 %v1598, %v1799
    %v1828 = vsub.f32 %v1649, %v1799
    %v1829 = vsub.f32 %v1651, %v1799
    %v1830 = vsub.f32 %v1702, %v1799
    %v1831 = vsub.f32 %v1704, %v1799
    %v1832 = vmul.f32 %v1800, %v1800
    %v1833 = vmul.f32 %v1801, %v1801
    %v1834 = vmul.f32 %v1802, %v1802
    %v1835 = vmul.f32 %v1803, %v1803
    %v1836 = vmul.f32 %v1804, %v1804
    %v1837 = vmul.f32 %v1805, %v1805
    %v1838 = vmul.f32 %v1806, %v1806
    %v1839 = vmul.f32 %v1807, %v1807
    %v1840 = vmul.f32 %v1808, %v1808
    %v1841 = vmul.f32 %v1809, %v1809
    %v1842 = vmul.f32 %v1810, %v1810
    %v1843 = vmul.f32 %v1811, %v1811
    %v1844 = vmul.f32 %v1812, %v1812
    %v1845 = vmul.f32 %v1813, %v1813
    %v1846 = vmul.f32 %v1814, %v1814
    %v1847 = vmul.f32 %v1815, %v1815
    %v1848 = vmul.f32 %v1816, %v1816
    %v1849 = vmul.f32 %v1817, %v1817
    %v1850 = vmul.f32 %v1818, %v1818
    %v1851 = vmul.f32 %v1819, %v1819
    %v1852 = vmul.f32 %v1820, %v1820
    %v1853 = vmul.f32 %v1821, %v1821
    %v1854 = vmul.f32 %v1822, %v1822
    %v1855 = vmul.f32 %v1823, %v1823
    %v1856 = vmul.f32 %v1824, %v1824
    %v1857 = vmul.f32 %v1825, %v1825
    %v1858 = vmul.f32 %v1826, %v1826
    %v1859 = vmul.f32 %v1827, %v1827
    %v1860 = vmul.f32 %v1828, %v1828
    %v1861 = vmul.f32 %v1829, %v1829
    %v1862 = vmul.f32 %v1830, %v1830
    %v1863 = vmul.f32 %v1831, %v1831
    %v1864 = vadd.f32 %v1832, %v1840
    %v1865 = vadd.f32 %v1864, %v1848
    %v1866 = vadd.f32 %v1865, %v1856
    %v1867 = vrot.slane %v1866, 4
    %v1868 = vadd.f32 %v1866, %v1867
    %v1869 = vrot.slane %v1868, 2
    %v1870 = vadd.f32 %v1868, %v1869
    %v1871 = vrot.slane %v1870, 1
    %v1872 = vadd.f32 %v1870, %v1871
    %v1873 = vadd.f32 %v1833, %v1841
    %v1874 = vadd.f32 %v1873, %v1849
    %v1875 = vadd.f32 %v1874, %v1857
    %v1876 = vrot.slane %v1875, 4
    %v1877 = vadd.f32 %v1875, %v1876
    %v1878 = vrot.slane %v1877, 2
    %v1879 = vadd.f32 %v1877, %v1878
    %v1880 = vrot.slane %v1879, 1
    %v1881 = vadd.f32 %v1879, %v1880
    %v1882 = vadd.f32 %v1834, %v1842
    %v1883 = vadd.f32 %v1882, %v1850
    %v1884 = vadd.f32 %v1883, %v1858
    %v1885 = vrot.slane %v1884, 4
    %v1886 = vadd.f32 %v1884, %v1885
    %v1887 = vrot.slane %v1886, 2
    %v1888 = vadd.f32 %v1886, %v1887
    %v1889 = vrot.slane %v1888, 1
    %v1890 = vadd.f32 %v1888, %v1889
    %v1891 = vadd.f32 %v1835, %v1843
    %v1892 = vadd.f32 %v1891, %v1851
    %v1893 = vadd.f32 %v1892, %v1859
    %v1894 = vrot.slane %v1893, 4
    %v1895 = vadd.f32 %v1893, %v1894
    %v1896 = vrot.slane %v1895, 2
    %v1897 = vadd.f32 %v1895, %v1896
    %v1898 = vrot.slane %v1897, 1
    %v1899 = vadd.f32 %v1897, %v1898
    %v1900 = vadd.f32 %v1836, %v1844
    %v1901 = vadd.f32 %v1900, %v1852
    %v1902 = vadd.f32 %v1901, %v1860
    %v1903 = vrot.slane %v1902, 4
    %v1904 = vadd.f32 %v1902, %v1903
    %v1905 = vrot.slane %v1904, 2
    %v1906 = vadd.f32 %v1904, %v1905
    %v1907 = vrot.slane %v1906, 1
    %v1908 = vadd.f32 %v1906, %v1907
    %v1909 = vadd.f32 %v1837, %v1845
    %v1910 = vadd.f32 %v1909, %v1853
    %v1911 = vadd.f32 %v1910, %v1861
    %v1912 = vrot.slane %v1911, 4
    %v1913 = vadd.f32 %v1911, %v1912
    %v1914 = vrot.slane %v1913, 2
    %v1915 = vadd.f32 %v1913, %v1914
    %v1916 = vrot.slane %v1915, 1
    %v1917 = vadd.f32 %v1915, %v1916
    %v1918 = vadd.f32 %v1838, %v1846
    %v1919 = vadd.f32 %v1918, %v1854
    %v1920 = vadd.f32 %v1919, %v1862
    %v1921 = vrot.slane %v1920, 4
    %v1922 = vadd.f32 %v1920, %v1921
    %v1923 = vrot.slane %v1922, 2
    %v1924 = vadd.f32 %v1922, %v1923
    %v1925 = vrot.slane %v1924, 1
    %v1926 = vadd.f32 %v1924, %v1925
    %v1927 = vadd.f32 %v1839, %v1847
    %v1928 = vadd.f32 %v1927, %v1855
    %v1929 = vadd.f32 %v1928, %v1863
    %v1930 = vrot.slane %v1929, 4
    %v1931 = vadd.f32 %v1929, %v1930
    %v1932 = vrot.slane %v1931, 2
    %v1933 = vadd.f32 %v1931, %v1932
    %v1934 = vrot.slane %v1933, 1
    %v1935 = vadd.f32 %v1933, %v1934
    %v1936 = vadd.f32 %v1872, %v1908
    %v1937 = vadd.f32 %v1881, %v1917
    %v1938 = vadd.f32 %v1890, %v1926
    %v1939 = vadd.f32 %v1899, %v1935
    %v1940 = vadd.f32 %v1936, %v1938
    %v1941 = vadd.f32 %v1937, %v1939
    %v1942 = vadd.f32 %v1940, %v1941
    %1944 = vrot.lane.b32.xlu0 %v1942, 64
    %v1945 = vpop.permute.xlu0 %1944
    %v1947 = vadd.f32 %v1942, %v1945
    %v1948 = vmul.f32 %v1947, 0.001953125
    %v1949 = vld [vmem:[%s5] sm:$0x1]
    %v1950 = vadd.f32 %v1948, 1e-05
    %v1951 = vrsqrt.pop %v1950
    %v1952 = vmul.f32 %v1949, %v1951
    %1954 = vrot.lane.b32.xlu0 %v1952, 64
    %v1955 = vpop.permute.xlu0 %1954
    %v1957 = vsel %vm1487, %v1952, %v1955
    %v1958 = vld [vmem:[%s6] sm:$0x1]
    %1960 = vrot.lane.b32.xlu0 %v1958, 64
    %v1961 = vpop.permute.xlu0 %1960
    %v1963 = vsel %vm1487, %v1958, %v1961
    %v1964 = vlaneseq
    %v1965 = vshrl.u32 %v1964, 7
    %v1966 = vsub.s32 0, %v1965
    %v1967 = vrot.slane %v1957, %v1966
    %v1968 = vmul.f32 %v1800, %v1967
    %v1969 = vmul.f32 %v1801, %v1967
    %v1970 = vmul.f32 %v1802, %v1967
    %v1971 = vmul.f32 %v1803, %v1967
    %v1972 = vmul.f32 %v1804, %v1967
    %v1973 = vmul.f32 %v1805, %v1967
    %v1974 = vmul.f32 %v1806, %v1967
    %v1975 = vmul.f32 %v1807, %v1967
    %v1976 = vmul.f32 %v1808, %v1967
    %v1977 = vmul.f32 %v1809, %v1967
    %v1978 = vmul.f32 %v1810, %v1967
    %v1979 = vmul.f32 %v1811, %v1967
    %v1980 = vmul.f32 %v1812, %v1967
    %v1981 = vmul.f32 %v1813, %v1967
    %v1982 = vmul.f32 %v1814, %v1967
    %v1983 = vmul.f32 %v1815, %v1967
    %v1984 = vmul.f32 %v1816, %v1967
    %v1985 = vmul.f32 %v1817, %v1967
    %v1986 = vmul.f32 %v1818, %v1967
    %v1987 = vmul.f32 %v1819, %v1967
    %v1988 = vmul.f32 %v1820, %v1967
    %v1989 = vmul.f32 %v1821, %v1967
    %v1990 = vmul.f32 %v1822, %v1967
    %v1991 = vmul.f32 %v1823, %v1967
    %v1992 = vmul.f32 %v1824, %v1967
    %v1993 = vmul.f32 %v1825, %v1967
    %v1994 = vmul.f32 %v1826, %v1967
    %v1995 = vmul.f32 %v1827, %v1967
    %v1996 = vmul.f32 %v1828, %v1967
    %v1997 = vmul.f32 %v1829, %v1967
    %v1998 = vmul.f32 %v1830, %v1967
    %v1999 = vmul.f32 %v1831, %v1967
    %v2000 = vlaneseq
    %v2001 = vshrl.u32 %v2000, 7
    %v2002 = vsub.s32 0, %v2001
    %v2003 = vrot.slane %v1963, %v2002
    %v2004 = vadd.f32 %v1968, %v2003
    %v2005 = vadd.f32 %v1969, %v2003
    %v2006 = vadd.f32 %v1970, %v2003
    %v2007 = vadd.f32 %v1971, %v2003
    %v2008 = vadd.f32 %v1972, %v2003
    %v2009 = vadd.f32 %v1973, %v2003
    %v2010 = vadd.f32 %v1974, %v2003
    %v2011 = vadd.f32 %v1975, %v2003
    %v2012 = vadd.f32 %v1976, %v2003
    %v2013 = vadd.f32 %v1977, %v2003
    %v2014 = vadd.f32 %v1978, %v2003
    %v2015 = vadd.f32 %v1979, %v2003
    %v2016 = vadd.f32 %v1980, %v2003
    %v2017 = vadd.f32 %v1981, %v2003
    %v2018 = vadd.f32 %v1982, %v2003
    %v2019 = vadd.f32 %v1983, %v2003
    %v2020 = vadd.f32 %v1984, %v2003
    %v2021 = vadd.f32 %v1985, %v2003
    %v2022 = vadd.f32 %v1986, %v2003
    %v2023 = vadd.f32 %v1987, %v2003
    %v2024 = vadd.f32 %v1988, %v2003
    %v2025 = vadd.f32 %v1989, %v2003
    %v2026 = vadd.f32 %v1990, %v2003
    %v2027 = vadd.f32 %v1991, %v2003
    %v2028 = vadd.f32 %v1992, %v2003
    %v2029 = vadd.f32 %v1993, %v2003
    %v2030 = vadd.f32 %v1994, %v2003
    %v2031 = vadd.f32 %v1995, %v2003
    %v2032 = vadd.f32 %v1996, %v2003
    %v2033 = vadd.f32 %v1997, %v2003
    %v2034 = vadd.f32 %v1998, %v2003
    %v2035 = vadd.f32 %v1999, %v2003
    %v2036 = vmax.f32 %v2004, 0.0
    %v2037 = vmax.f32 %v2005, 0.0
    %v2038 = vmax.f32 %v2006, 0.0
    %v2039 = vmax.f32 %v2007, 0.0
    %v2040 = vmax.f32 %v2008, 0.0
    %v2041 = vmax.f32 %v2009, 0.0
    %v2042 = vmax.f32 %v2010, 0.0
    %v2043 = vmax.f32 %v2011, 0.0
    %v2044 = vmax.f32 %v2012, 0.0
    %v2045 = vmax.f32 %v2013, 0.0
    %v2046 = vmax.f32 %v2014, 0.0
    %v2047 = vmax.f32 %v2015, 0.0
    %v2048 = vmax.f32 %v2016, 0.0
    %v2049 = vmax.f32 %v2017, 0.0
    %v2050 = vmax.f32 %v2018, 0.0
    %v2051 = vmax.f32 %v2019, 0.0
    %v2052 = vmax.f32 %v2020, 0.0
    %v2053 = vmax.f32 %v2021, 0.0
    %v2054 = vmax.f32 %v2022, 0.0
    %v2055 = vmax.f32 %v2023, 0.0
    %v2056 = vmax.f32 %v2024, 0.0
    %v2057 = vmax.f32 %v2025, 0.0
    %v2058 = vmax.f32 %v2026, 0.0
    %v2059 = vmax.f32 %v2027, 0.0
    %v2060 = vmax.f32 %v2028, 0.0
    %v2061 = vmax.f32 %v2029, 0.0
    %v2062 = vmax.f32 %v2030, 0.0
    %v2063 = vmax.f32 %v2031, 0.0
    %v2064 = vmax.f32 %v2032, 0.0
    %v2065 = vmax.f32 %v2033, 0.0
    %v2066 = vmax.f32 %v2034, 0.0
    %v2067 = vmax.f32 %v2035, 0.0
    %2100 = vrot.lane.b32.xlu0 %v2036, 64
    %v2101 = vpop.permute.xlu0 %2100
    %2102 = vrot.lane.b32.xlu0 %v2037, 64
    %v2103 = vpop.permute.xlu0 %2102
    %2104 = vrot.lane.b32.xlu0 %v2038, 64
    %v2105 = vpop.permute.xlu0 %2104
    %2106 = vrot.lane.b32.xlu0 %v2039, 64
    %v2107 = vpop.permute.xlu0 %2106
    %2108 = vrot.lane.b32.xlu0 %v2040, 64
    %v2109 = vpop.permute.xlu0 %2108
    %2110 = vrot.lane.b32.xlu0 %v2041, 64
    %v2111 = vpop.permute.xlu0 %2110
    %2112 = vrot.lane.b32.xlu0 %v2042, 64
    %v2113 = vpop.permute.xlu0 %2112
    %2114 = vrot.lane.b32.xlu0 %v2043, 64
    %v2115 = vpop.permute.xlu0 %2114
    %2116 = vrot.lane.b32.xlu0 %v2044, 64
    %v2117 = vpop.permute.xlu0 %2116
    %2118 = vrot.lane.b32.xlu0 %v2045, 64
    %v2119 = vpop.permute.xlu0 %2118
    %2120 = vrot.lane.b32.xlu0 %v2046, 64
    %v2121 = vpop.permute.xlu0 %2120
    %2122 = vrot.lane.b32.xlu0 %v2047, 64
    %v2123 = vpop.permute.xlu0 %2122
    %2124 = vrot.lane.b32.xlu0 %v2048, 64
    %v2125 = vpop.permute.xlu0 %2124
    %2126 = vrot.lane.b32.xlu0 %v2049, 64
    %v2127 = vpop.permute.xlu0 %2126
    %2128 = vrot.lane.b32.xlu0 %v2050, 64
    %v2129 = vpop.permute.xlu0 %2128
    %2130 = vrot.lane.b32.xlu0 %v2051, 64
    %v2131 = vpop.permute.xlu0 %2130
    %2132 = vrot.lane.b32.xlu0 %v2052, 64
    %v2133 = vpop.permute.xlu0 %2132
    %2134 = vrot.lane.b32.xlu0 %v2053, 64
    %v2135 = vpop.permute.xlu0 %2134
    %2136 = vrot.lane.b32.xlu0 %v2054, 64
    %v2137 = vpop.permute.xlu0 %2136
    %2138 = vrot.lane.b32.xlu0 %v2055, 64
    %v2139 = vpop.permute.xlu0 %2138
    %2140 = vrot.lane.b32.xlu0 %v2056, 64
    %v2141 = vpop.permute.xlu0 %2140
    %2142 = vrot.lane.b32.xlu0 %v2057, 64
    %v2143 = vpop.permute.xlu0 %2142
    %2144 = vrot.lane.b32.xlu0 %v2058, 64
    %v2145 = vpop.permute.xlu0 %2144
    %2146 = vrot.lane.b32.xlu0 %v2059, 64
    %v2147 = vpop.permute.xlu0 %2146
    %2148 = vrot.lane.b32.xlu0 %v2060, 64
    %v2149 = vpop.permute.xlu0 %2148
    %2150 = vrot.lane.b32.xlu0 %v2061, 64
    %v2151 = vpop.permute.xlu0 %2150
    %2152 = vrot.lane.b32.xlu0 %v2062, 64
    %v2153 = vpop.permute.xlu0 %2152
    %2154 = vrot.lane.b32.xlu0 %v2063, 64
    %v2155 = vpop.permute.xlu0 %2154
    %2156 = vrot.lane.b32.xlu0 %v2064, 64
    %v2157 = vpop.permute.xlu0 %2156
    %2158 = vrot.lane.b32.xlu0 %v2065, 64
    %v2159 = vpop.permute.xlu0 %2158
    %2160 = vrot.lane.b32.xlu0 %v2066, 64
    %v2161 = vpop.permute.xlu0 %2160
    %2162 = vrot.lane.b32.xlu0 %v2067, 64
    %v2163 = vpop.permute.xlu0 %2162
    %v2164 = vsel %vm1487, %v2101, %v2103
    %v2165 = vsel %vm1487, %v2103, %v2105
    %v2166 = vsel %vm1487, %v2105, %v2107
    %v2167 = vsel %vm1487, %v2107, %v2109
    %v2168 = vsel %vm1487, %v2109, %v2111
    %v2169 = vsel %vm1487, %v2111, %v2113
    %v2170 = vsel %vm1487, %v2113, %v2115
    %v2171 = vsel %vm1487, %v2117, %v2119
    %v2172 = vsel %vm1487, %v2119, %v2121
    %v2173 = vsel %vm1487, %v2121, %v2123
    %v2174 = vsel %vm1487, %v2123, %v2125
    %v2175 = vsel %vm1487, %v2125, %v2127
    %v2176 = vsel %vm1487, %v2127, %v2129
    %v2177 = vsel %vm1487, %v2129, %v2131
    %v2178 = vsel %vm1487, %v2133, %v2135
    %v2179 = vsel %vm1487, %v2135, %v2137
    %v2180 = vsel %vm1487, %v2137, %v2139
    %v2181 = vsel %vm1487, %v2139, %v2141
    %v2182 = vsel %vm1487, %v2141, %v2143
    %v2183 = vsel %vm1487, %v2143, %v2145
    %v2184 = vsel %vm1487, %v2145, %v2147
    %v2185 = vsel %vm1487, %v2149, %v2151
    %v2186 = vsel %vm1487, %v2151, %v2153
    %v2187 = vsel %vm1487, %v2153, %v2155
    %v2188 = vsel %vm1487, %v2155, %v2157
    %v2189 = vsel %vm1487, %v2157, %v2159
    %v2190 = vsel %vm1487, %v2159, %v2161
    %v2191 = vsel %vm1487, %v2161, %v2163
    %v2224 = vmax.f32 %v2036, %v2164
    %v2225 = vmax.f32 %v2037, %v2165
    %v2226 = vmax.f32 %v2038, %v2166
    %v2227 = vmax.f32 %v2039, %v2167
    %v2228 = vmax.f32 %v2040, %v2168
    %v2229 = vmax.f32 %v2041, %v2169
    %v2230 = vmax.f32 %v2042, %v2170
    %v2231 = vmax.f32 %v2043, %v2115
    %v2232 = vmax.f32 %v2044, %v2171
    %v2233 = vmax.f32 %v2045, %v2172
    %v2234 = vmax.f32 %v2046, %v2173
    %v2235 = vmax.f32 %v2047, %v2174
    %v2236 = vmax.f32 %v2048, %v2175
    %v2237 = vmax.f32 %v2049, %v2176
    %v2238 = vmax.f32 %v2050, %v2177
    %v2239 = vmax.f32 %v2051, %v2131
    %v2240 = vmax.f32 %v2052, %v2178
    %v2241 = vmax.f32 %v2053, %v2179
    %v2242 = vmax.f32 %v2054, %v2180
    %v2243 = vmax.f32 %v2055, %v2181
    %v2244 = vmax.f32 %v2056, %v2182
    %v2245 = vmax.f32 %v2057, %v2183
    %v2246 = vmax.f32 %v2058, %v2184
    %v2247 = vmax.f32 %v2059, %v2147
    %v2248 = vmax.f32 %v2060, %v2185
    %v2249 = vmax.f32 %v2061, %v2186
    %v2250 = vmax.f32 %v2062, %v2187
    %v2251 = vmax.f32 %v2063, %v2188
    %v2252 = vmax.f32 %v2064, %v2189
    %v2253 = vmax.f32 %v2065, %v2190
    %v2254 = vmax.f32 %v2066, %v2191
    %v2255 = vmax.f32 %v2067, %v2163
    %2260 = vrot.lane.b32.xlu0 %v2225, 64
    %v2261 = vpop.permute.xlu0 %2260
    %2262 = vrot.lane.b32.xlu0 %v2233, 64
    %v2263 = vpop.permute.xlu0 %2262
    %2264 = vrot.lane.b32.xlu0 %v2241, 64
    %v2265 = vpop.permute.xlu0 %2264
    %2266 = vrot.lane.b32.xlu0 %v2249, 64
    %v2267 = vpop.permute.xlu0 %2266
    %2276 = vrot.lane.b32.xlu0 %v2227, 64
    %v2277 = vpop.permute.xlu0 %2276
    %2278 = vrot.lane.b32.xlu0 %v2235, 64
    %v2279 = vpop.permute.xlu0 %2278
    %2280 = vrot.lane.b32.xlu0 %v2243, 64
    %v2281 = vpop.permute.xlu0 %2280
    %2282 = vrot.lane.b32.xlu0 %v2251, 64
    %v2283 = vpop.permute.xlu0 %2282
    %2292 = vrot.lane.b32.xlu0 %v2229, 64
    %v2293 = vpop.permute.xlu0 %2292
    %2294 = vrot.lane.b32.xlu0 %v2237, 64
    %v2295 = vpop.permute.xlu0 %2294
    %2296 = vrot.lane.b32.xlu0 %v2245, 64
    %v2297 = vpop.permute.xlu0 %2296
    %2298 = vrot.lane.b32.xlu0 %v2253, 64
    %v2299 = vpop.permute.xlu0 %2298
    %2308 = vrot.lane.b32.xlu0 %v2231, 64
    %v2309 = vpop.permute.xlu0 %2308
    %2310 = vrot.lane.b32.xlu0 %v2239, 64
    %v2311 = vpop.permute.xlu0 %2310
    %2312 = vrot.lane.b32.xlu0 %v2247, 64
    %v2313 = vpop.permute.xlu0 %2312
    %2314 = vrot.lane.b32.xlu0 %v2255, 64
    %v2315 = vpop.permute.xlu0 %2314
    %v2320 = vsel %vm1487, %v2224, %v2261
    %v2321 = vsel %vm1487, %v2232, %v2263
    %v2322 = vsel %vm1487, %v2240, %v2265
    %v2323 = vsel %vm1487, %v2248, %v2267
    %v2324 = vsel %vm1487, %v2226, %v2277
    %v2325 = vsel %vm1487, %v2234, %v2279
    %v2326 = vsel %vm1487, %v2242, %v2281
    %v2327 = vsel %vm1487, %v2250, %v2283
    %v2328 = vsel %vm1487, %v2228, %v2293
    %v2329 = vsel %vm1487, %v2236, %v2295
    %v2330 = vsel %vm1487, %v2244, %v2297
    %v2331 = vsel %vm1487, %v2252, %v2299
    %v2332 = vsel %vm1487, %v2230, %v2309
    %v2333 = vsel %vm1487, %v2238, %v2311
    %v2334 = vsel %vm1487, %v2246, %v2313
    %v2335 = vsel %vm1487, %v2254, %v2315
    %v2336 = vld [vmem:[%s7] sm:$0xff]
    %v2337 = vld [vmem:[%s7 + $0x8] sm:$0xff]
    %v2338 = vld [vmem:[%s7 + $0x10] sm:$0xff]
    %v2339 = vld [vmem:[%s7 + $0x18] sm:$0xff]
    %vm2340 = vcmask 261120
    %v2342 = vsel %vm2340, %v2336, 0
    %v2345 = vsel %vm2340, %v2337, 0
    %v2348 = vsel %vm2340, %v2338, 0
    %v2351 = vsel %vm2340, %v2339, 0
    %2353 = vmatprep.subr.mxu0 0.0
    %2354 = vmatpush1.msra.mxu0 0.0
    %2355 = vmatprep.subr.mxu0 0.0
    %2356 = vmatpush1.msra.mxu0 0.0
    %2357 = vmatprep.subr.mxu0 0.0
    %2358 = vmatpush1.msra.mxu0 0.0
    %2359 = vmatprep.subr.mxu0 0.0
    %2360 = vmatpush1.msra.mxu0 0.0
    %2361 = vmatprep.subr.mxu0 0.0
    %2362 = vmatpush1.msra.mxu0 0.0
    %2363 = vmatprep.subr.mxu0 0.0
    %2364 = vmatpush1.msra.mxu0 0.0
    %2365 = vmatprep.subr.mxu0 0.0
    %2366 = vmatpush1.msra.mxu0 0.0
    %2367 = vmatprep.subr.mxu0 0.0
    %2368 = vmatpush1.msra.mxu0 0.0
    %2369 = vmatprep.subr.mxu0 0.0
    %2370 = vmatpush1.msra.mxu0 0.0
    %2371 = vmatprep.subr.mxu0 0.0
    %2372 = vmatpush1.msra.mxu0 0.0
    %2373 = vmatprep.subr.mxu0 0.0
    %2374 = vmatpush1.msra.mxu0 0.0
    %2375 = vmatprep.subr.mxu0 0.0
    %2376 = vmatpush1.msra.mxu0 0.0
    %2377 = vmatprep.subr.mxu0 %v2327
    %2378 = vmatpush1.msra.mxu0 %v2323
    %2379 = vmatprep.subr.mxu0 %v2326
    %2380 = vmatpush1.msra.mxu0 %v2322
    %2381 = vmatprep.subr.mxu0 %v2325
    %2382 = vmatpush1.msra.mxu0 %v2321
    %2383 = vmatprep.subr.mxu0 %v2324
    %2384 = vmatpush1.msra.mxu0 %v2320
    %2385 = vmatprep.subr.mxu0 0.0
    %2386 = vmatpush2.msra.mxu0 0.0
    %2387 = vmatprep.subr.mxu0 0.0
    %2388 = vmatpush2.msra.mxu0 0.0
    %2389 = vmatprep.subr.mxu0 0.0
    %2390 = vmatpush2.msra.mxu0 0.0
    %2391 = vmatprep.subr.mxu0 0.0
    %2392 = vmatpush2.msra.mxu0 0.0
    %2393 = vmatprep.subr.mxu0 0.0
    %2394 = vmatpush2.msra.mxu0 0.0
    %2395 = vmatprep.subr.mxu0 0.0
    %2396 = vmatpush2.msra.mxu0 0.0
    %2397 = vmatprep.subr.mxu0 0.0
    %2398 = vmatpush2.msra.mxu0 0.0
    %2399 = vmatprep.subr.mxu0 0.0
    %2400 = vmatpush2.msra.mxu0 0.0
    %2401 = vmatprep.subr.mxu0 0.0
    %2402 = vmatpush2.msra.mxu0 0.0
    %2403 = vmatprep.subr.mxu0 0.0
    %2404 = vmatpush2.msra.mxu0 0.0
    %2405 = vmatprep.subr.mxu0 0.0
    %2406 = vmatpush2.msra.mxu0 0.0
    %2407 = vmatprep.subr.mxu0 0.0
    %2408 = vmatpush2.msra.mxu0 0.0
    %2409 = vmatprep.subr.mxu0 0.0
    %2410 = vmatpush2.msra.mxu0 0.0
    %2411 = vmatprep.subr.mxu0 0.0
    %2412 = vmatpush2.msra.mxu0 0.0
    %2413 = vmatprep.subr.mxu0 0.0
    %2414 = vmatpush2.msra.mxu0 0.0
    %2415 = vmatprep.subr.mxu0 0.0
    %2416 = vmatpush2.msra.mxu0 0.0
    %2417 = vmatprep.mubr.f32.mxu0 0.0
    %2418 = vmatmul.mubr.f32.gmra.mxu0 %v2342
    %v2419 = vpop.f32.mrf.mxu0
    %v2420 = vadd.f32 0.0, %v2419
    %v2421 = vpop.f32.mrf.mxu0
    %v2422 = vadd.f32 0.0, %v2421
    %2423 = vmatprep.mubr.f32.mxu0 0.0
    %2424 = vmatmul.mubr.f32.gmra.mxu0 %v2345
    %v2425 = vpop.f32.mrf.mxu0
    %v2426 = vadd.f32 0.0, %v2425
    %v2427 = vpop.f32.mrf.mxu0
    %v2428 = vadd.f32 0.0, %v2427
    %2429 = vmatprep.mubr.f32.mxu0 0.0
    %2430 = vmatmul.mubr.f32.gmra.mxu0 %v2348
    %v2431 = vpop.f32.mrf.mxu0
    %v2432 = vadd.f32 0.0, %v2431
    %v2433 = vpop.f32.mrf.mxu0
    %v2434 = vadd.f32 0.0, %v2433
    %2435 = vmatprep.mubr.f32.mxu0 0.0
    %2436 = vmatmul.mubr.f32.gmra.mxu0 %v2351
    %v2437 = vpop.f32.mrf.mxu0
    %v2438 = vadd.f32 0.0, %v2437
    %v2439 = vpop.f32.mrf.mxu0
    %v2440 = vadd.f32 0.0, %v2439
    %2441 = vdwg.mxu0
    %2442 = vmatprep.subr.mxu0 0.0
    %2443 = vmatpush1.msra.mxu0 0.0
    %2444 = vmatprep.subr.mxu0 0.0
    %2445 = vmatpush1.msra.mxu0 0.0
    %2446 = vmatprep.subr.mxu0 0.0
    %2447 = vmatpush1.msra.mxu0 0.0
    %2448 = vmatprep.subr.mxu0 0.0
    %2449 = vmatpush1.msra.mxu0 0.0
    %2450 = vmatprep.subr.mxu0 0.0
    %2451 = vmatpush1.msra.mxu0 0.0
    %2452 = vmatprep.subr.mxu0 0.0
    %2453 = vmatpush1.msra.mxu0 0.0
    %2454 = vmatprep.subr.mxu0 0.0
    %2455 = vmatpush1.msra.mxu0 0.0
    %2456 = vmatprep.subr.mxu0 0.0
    %2457 = vmatpush1.msra.mxu0 0.0
    %2458 = vmatprep.subr.mxu0 0.0
    %2459 = vmatpush1.msra.mxu0 0.0
    %2460 = vmatprep.subr.mxu0 0.0
    %2461 = vmatpush1.msra.mxu0 0.0
    %2462 = vmatprep.subr.mxu0 0.0
    %2463 = vmatpush1.msra.mxu0 0.0
    %2464 = vmatprep.subr.mxu0 0.0
    %2465 = vmatpush1.msra.mxu0 0.0
    %2466 = vmatprep.subr.mxu0 %v2335
    %2467 = vmatpush1.msra.mxu0 %v2331
    %2468 = vmatprep.subr.mxu0 %v2334
    %2469 = vmatpush1.msra.mxu0 %v2330
    %2470 = vmatprep.subr.mxu0 %v2333
    %2471 = vmatpush1.msra.mxu0 %v2329
    %2472 = vmatprep.subr.mxu0 %v2332
    %2473 = vmatpush1.msra.mxu0 %v2328
    %2474 = vmatprep.subr.mxu0 0.0
    %2475 = vmatpush2.msra.mxu0 0.0
    %2476 = vmatprep.subr.mxu0 0.0
    %2477 = vmatpush2.msra.mxu0 0.0
    %2478 = vmatprep.subr.mxu0 0.0
    %2479 = vmatpush2.msra.mxu0 0.0
    %2480 = vmatprep.subr.mxu0 0.0
    %2481 = vmatpush2.msra.mxu0 0.0
    %2482 = vmatprep.subr.mxu0 0.0
    %2483 = vmatpush2.msra.mxu0 0.0
    %2484 = vmatprep.subr.mxu0 0.0
    %2485 = vmatpush2.msra.mxu0 0.0
    %2486 = vmatprep.subr.mxu0 0.0
    %2487 = vmatpush2.msra.mxu0 0.0
    %2488 = vmatprep.subr.mxu0 0.0
    %2489 = vmatpush2.msra.mxu0 0.0
    %2490 = vmatprep.subr.mxu0 0.0
    %2491 = vmatpush2.msra.mxu0 0.0
    %2492 = vmatprep.subr.mxu0 0.0
    %2493 = vmatpush2.msra.mxu0 0.0
    %2494 = vmatprep.subr.mxu0 0.0
    %2495 = vmatpush2.msra.mxu0 0.0
    %2496 = vmatprep.subr.mxu0 0.0
    %2497 = vmatpush2.msra.mxu0 0.0
    %2498 = vmatprep.subr.mxu0 0.0
    %2499 = vmatpush2.msra.mxu0 0.0
    %2500 = vmatprep.subr.mxu0 0.0
    %2501 = vmatpush2.msra.mxu0 0.0
    %2502 = vmatprep.subr.mxu0 0.0
    %2503 = vmatpush2.msra.mxu0 0.0
    %2504 = vmatprep.subr.mxu0 0.0
    %2505 = vmatpush2.msra.mxu0 0.0
    %2506 = vmatprep.mubr.f32.mxu0 0.0
    %2507 = vmatmul.mubr.f32.gmra.mxu0 %v2342
    %v2508 = vpop.f32.mrf.mxu0
    %v2509 = vadd.f32 0.0, %v2508
    %v2510 = vpop.f32.mrf.mxu0
    %v2511 = vadd.f32 0.0, %v2510
    %2512 = vmatprep.mubr.f32.mxu0 0.0
    %2513 = vmatmul.mubr.f32.gmra.mxu0 %v2345
    %v2514 = vpop.f32.mrf.mxu0
    %v2515 = vadd.f32 0.0, %v2514
    %v2516 = vpop.f32.mrf.mxu0
    %v2517 = vadd.f32 0.0, %v2516
    %2518 = vmatprep.mubr.f32.mxu0 0.0
    %2519 = vmatmul.mubr.f32.gmra.mxu0 %v2348
    %v2520 = vpop.f32.mrf.mxu0
    %v2521 = vadd.f32 0.0, %v2520
    %v2522 = vpop.f32.mrf.mxu0
    %v2523 = vadd.f32 0.0, %v2522
    %2524 = vmatprep.mubr.f32.mxu0 0.0
    %2525 = vmatmul.mubr.f32.gmra.mxu0 %v2351
    %v2526 = vpop.f32.mrf.mxu0
    %v2527 = vadd.f32 0.0, %v2526
    %v2528 = vpop.f32.mrf.mxu0
    %v2529 = vadd.f32 0.0, %v2528
    %2530 = vdwg.mxu0
    %v2531 = vmax.f32 %v2420, %v2432
    %v2532 = vmax.f32 %v2422, %v2434
    %v2533 = vmax.f32 %v2509, %v2521
    %v2534 = vmax.f32 %v2511, %v2523
    %v2535 = vmax.f32 %v2426, %v2438
    %v2536 = vmax.f32 %v2428, %v2440
    %v2537 = vmax.f32 %v2515, %v2527
    %v2538 = vmax.f32 %v2517, %v2529
    %v2539 = vpack.c.bf16 %v2535, %v2531
    %v2540 = vpack.c.bf16 %v2536, %v2532
    %v2541 = vpack.c.bf16 %v2537, %v2533
    %v2542 = vpack.c.bf16 %v2538, %v2534
    %v2547 = vrot.slane %v2539, 7
    %v2548 = vrot.slane %v2540, 7
    %v2549 = vrot.slane %v2541, 7
    %v2550 = vrot.slane %v2542, 7
    %vm2551 = vcmask 1040384
    %v2554 = vsel %vm2551, 0, %v2547
    %v2556 = vsel %vm2551, 0, %v2548
    %v2558 = vsel %vm2551, 0, %v2549
    %v2560 = vsel %vm2551, 0, %v2550
    %v2561 = vsel %vm2551, %v2547, 0
    %v2562 = vsel %vm2551, %v2548, 0
    %v2563 = vsel %vm2551, %v2549, 0
    %v2564 = vsel %vm2551, %v2550, 0
    %v2573 = vunpack.c.l.b16 %v2554
    %v2574 = vunpack.c.l.b16 %v2556
    %v2575 = vunpack.c.l.b16 %v2558
    %v2576 = vunpack.c.l.b16 %v2560
    %v2577 = vunpack.c.h.b16 %v2554
    %v2578 = vunpack.c.h.b16 %v2556
    %v2579 = vunpack.c.h.b16 %v2558
    %v2580 = vunpack.c.h.b16 %v2560
    %v2581 = vunpack.c.l.b16 %v2561
    %v2582 = vunpack.c.l.b16 %v2562
    %v2583 = vunpack.c.l.b16 %v2563
    %v2584 = vunpack.c.l.b16 %v2564
    %v2585 = vpack.c.b16 %v2574, %v2573
    %v2586 = vpack.c.b16 %v2576, %v2575
    %v2587 = vpack.c.b16 %v2578, %v2577
    %v2588 = vpack.c.b16 %v2580, %v2579
    %v2589 = vpack.c.b16 %v2582, %v2581
    %v2590 = vpack.c.b16 %v2584, %v2583
    %2597 = vst [vmem:[#allocation6] sm:$0xff] %v2585
    %2598 = vst [vmem:[#allocation6 + $0x8] sm:$0xff] %v2586
    %2599 = vst [vmem:[#allocation6 + $0x10] sm:$0xff] %v2587
    %2600 = vst [vmem:[#allocation6 + $0x18] sm:$0xff] %v2588
    %2601 = vst [vmem:[#allocation6 + $0x20] sm:$0x33] %v2589
    %2602 = vst [vmem:[#allocation6 + $0x28] sm:$0x33] %v2590
    %v2603 = vld [vmem:[#allocation6] sm:$0xff]
    %v2604 = vld [vmem:[#allocation6 + $0x8] sm:$0xff]
    %v2605 = vld [vmem:[#allocation6 + $0x10] sm:$0xff]
    %v2606 = vld [vmem:[#allocation6 + $0x18] sm:$0xff]
    %v2607 = vld [vmem:[#allocation6] sm:$0xee]
    %v2608 = vld [vmem:[#allocation6 + $0x8] sm:$0xee]
    %v2609 = vld [vmem:[#allocation6 + $0x20] sm:$0x11]
    %v2610 = vld [vmem:[#allocation6 + $0x28] sm:$0x11]
    %v2611 = vld [vmem:[#allocation6] sm:$0xcc]
    %v2612 = vld [vmem:[#allocation6 + $0x8] sm:$0xcc]
    %v2613 = vld [vmem:[#allocation6 + $0x20] sm:$0x33]
    %v2614 = vld [vmem:[#allocation6 + $0x28] sm:$0x33]
    %v2619 = vunpack.c.l.b16 %v2603
    %v2620 = vunpack.c.h.b16 %v2603
    %v2621 = vunpack.c.l.b16 %v2604
    %v2622 = vunpack.c.h.b16 %v2604
    %v2623 = vunpack.c.l.b16 %v2605
    %v2624 = vunpack.c.h.b16 %v2605
    %v2625 = vunpack.c.l.b16 %v2606
    %v2626 = vunpack.c.h.b16 %v2606
    %v2627 = vpack.c.b16 %v2623, %v2619
    %v2628 = vpack.c.b16 %v2624, %v2620
    %v2629 = vpack.c.b16 %v2625, %v2621
    %v2630 = vpack.c.b16 %v2626, %v2622
    %v2639 = vunpack.c.l.b16 %v2607
    %v2640 = vunpack.c.h.b16 %v2607
    %v2641 = vunpack.c.l.b16 %v2608
    %v2642 = vunpack.c.h.b16 %v2608
    %v2643 = vunpack.c.l.b16 %v2609
    %v2644 = vunpack.c.h.b16 %v2609
    %v2645 = vunpack.c.l.b16 %v2610
    %v2646 = vunpack.c.h.b16 %v2610
    %v2647 = vpack.c.b16 %v2623, %v2639
    %v2648 = vpack.c.b16 %v2624, %v2640
    %v2649 = vpack.c.b16 %v2625, %v2641
    %v2650 = vpack.c.b16 %v2626, %v2642
    %v2651 = vpack.c.b16 %v2643, %v2643
    %v2652 = vpack.c.b16 %v2644, %v2644
    %v2653 = vpack.c.b16 %v2645, %v2645
    %v2654 = vpack.c.b16 %v2646, %v2646
    %vm2655 = vcmask 1046528
    %v2656 = vrot.slane %v2647, 1
    %v2657 = vrot.slane %v2651, 1
    %v2658 = vsel %vm2655, %v2656, %v2657
    %v2659 = vrot.slane %v2648, 1
    %v2660 = vrot.slane %v2652, 1
    %v2661 = vsel %vm2655, %v2659, %v2660
    %v2662 = vrot.slane %v2649, 1
    %v2663 = vrot.slane %v2653, 1
    %v2664 = vsel %vm2655, %v2662, %v2663
    %v2665 = vrot.slane %v2650, 1
    %v2666 = vrot.slane %v2654, 1
    %v2667 = vsel %vm2655, %v2665, %v2666
    %v2676 = vunpack.c.l.b16 %v2611
    %v2677 = vunpack.c.h.b16 %v2611
    %v2678 = vunpack.c.l.b16 %v2612
    %v2679 = vunpack.c.h.b16 %v2612
    %v2680 = vunpack.c.l.b16 %v2613
    %v2681 = vunpack.c.h.b16 %v2613
    %v2682 = vunpack.c.l.b16 %v2614
    %v2683 = vunpack.c.h.b16 %v2614
    %v2684 = vpack.c.b16 %v2623, %v2676
    %v2685 = vpack.c.b16 %v2624, %v2677
    %v2686 = vpack.c.b16 %v2625, %v2678
    %v2687 = vpack.c.b16 %v2626, %v2679
    %v2688 = vpack.c.b16 %v2680, %v2680
    %v2689 = vpack.c.b16 %v2681, %v2681
    %v2690 = vpack.c.b16 %v2682, %v2682
    %v2691 = vpack.c.b16 %v2683, %v2683
    %vm2692 = vcmask 1045504
    %v2693 = vrot.slane %v2684, 2
    %v2694 = vrot.slane %v2688, 2
    %v2695 = vsel %vm2692, %v2693, %v2694
    %v2696 = vrot.slane %v2685, 2
    %v2697 = vrot.slane %v2689, 2
    %v2698 = vsel %vm2692, %v2696, %v2697
    %v2699 = vrot.slane %v2686, 2
    %v2700 = vrot.slane %v2690, 2
    %v2701 = vsel %vm2692, %v2699, %v2700
    %v2702 = vrot.slane %v2687, 2
    %v2703 = vrot.slane %v2691, 2
    %v2704 = vsel %vm2692, %v2702, %v2703
    %s2709 = smul.u32 4, 192
    %s2710 = smul.u32 %s2709, 4
    %s2711 = sshll.u32 %s2710, 4
    %2712 = dma.done %s143, %s2711
    %v2713 = vld [vmem:[#allocation3] sm:$0xff]
    %v2714 = vld [vmem:[#allocation3 + $0x8] sm:$0xff]
    %v2715 = vld [vmem:[#allocation3 + $0x10] sm:$0xff]
    %v2716 = vld [vmem:[#allocation3 + $0x18] sm:$0xff]
    %v2717 = vld [vmem:[#allocation3 + $0x20] sm:$0xff]
    %v2718 = vld [vmem:[#allocation3 + $0x28] sm:$0xff]
    %v2719 = vld [vmem:[#allocation3 + $0x30] sm:$0xff]
    %v2720 = vld [vmem:[#allocation3 + $0x38] sm:$0xff]
    %v2721 = vld [vmem:[#allocation3 + $0x40] sm:$0xff]
    %v2722 = vld [vmem:[#allocation3 + $0x48] sm:$0xff]
    %v2723 = vld [vmem:[#allocation3 + $0x50] sm:$0xff]
    %v2724 = vld [vmem:[#allocation3 + $0x58] sm:$0xff]
    %v2725 = vld [vmem:[#allocation3 + $0x60] sm:$0xff]
    %v2726 = vld [vmem:[#allocation3 + $0x68] sm:$0xff]
    %v2727 = vld [vmem:[#allocation3 + $0x70] sm:$0xff]
    %v2728 = vld [vmem:[#allocation3 + $0x78] sm:$0xff]
    %v2729 = vld [vmem:[#allocation3 + $0x80] sm:$0xff]
    %v2730 = vld [vmem:[#allocation3 + $0x88] sm:$0xff]
    %v2731 = vld [vmem:[#allocation3 + $0x90] sm:$0xff]
    %v2732 = vld [vmem:[#allocation3 + $0x98] sm:$0xff]
    %v2733 = vld [vmem:[#allocation3 + $0xa0] sm:$0xff]
    %v2734 = vld [vmem:[#allocation3 + $0xa8] sm:$0xff]
    %v2735 = vld [vmem:[#allocation3 + $0xb0] sm:$0xff]
    %v2736 = vld [vmem:[#allocation3 + $0xb8] sm:$0xff]
    %v2737 = vld [vmem:[#allocation3 + $0xc0] sm:$0xff]
    %v2738 = vld [vmem:[#allocation3 + $0xc8] sm:$0xff]
    %v2739 = vld [vmem:[#allocation3 + $0xd0] sm:$0xff]
    %v2740 = vld [vmem:[#allocation3 + $0xd8] sm:$0xff]
    %v2741 = vld [vmem:[#allocation3 + $0xe0] sm:$0xff]
    %v2742 = vld [vmem:[#allocation3 + $0xe8] sm:$0xff]
    %v2743 = vld [vmem:[#allocation3 + $0xf0] sm:$0xff]
    %v2744 = vld [vmem:[#allocation3 + $0xf8] sm:$0xff]
    %v2745 = vld [vmem:[#allocation3 + $0x100] sm:$0xff]
    %v2746 = vld [vmem:[#allocation3 + $0x108] sm:$0xff]
    %v2747 = vld [vmem:[#allocation3 + $0x110] sm:$0xff]
    %v2748 = vld [vmem:[#allocation3 + $0x118] sm:$0xff]
    %v2749 = vld [vmem:[#allocation3 + $0x120] sm:$0xff]
    %v2750 = vld [vmem:[#allocation3 + $0x128] sm:$0xff]
    %v2751 = vld [vmem:[#allocation3 + $0x130] sm:$0xff]
    %v2752 = vld [vmem:[#allocation3 + $0x138] sm:$0xff]
    %v2753 = vld [vmem:[#allocation3 + $0x140] sm:$0xff]
    %v2754 = vld [vmem:[#allocation3 + $0x148] sm:$0xff]
    %v2755 = vld [vmem:[#allocation3 + $0x150] sm:$0xff]
    %v2756 = vld [vmem:[#allocation3 + $0x158] sm:$0xff]
    %v2757 = vld [vmem:[#allocation3 + $0x160] sm:$0xff]
    %v2758 = vld [vmem:[#allocation3 + $0x168] sm:$0xff]
    %v2759 = vld [vmem:[#allocation3 + $0x170] sm:$0xff]
    %v2760 = vld [vmem:[#allocation3 + $0x178] sm:$0xff]
    %v2761 = vld [vmem:[#allocation3 + $0x180] sm:$0xff]
    %v2762 = vld [vmem:[#allocation3 + $0x188] sm:$0xff]
    %v2763 = vld [vmem:[#allocation3 + $0x190] sm:$0xff]
    %v2764 = vld [vmem:[#allocation3 + $0x198] sm:$0xff]
    %v2765 = vld [vmem:[#allocation3 + $0x1a0] sm:$0xff]
    %v2766 = vld [vmem:[#allocation3 + $0x1a8] sm:$0xff]
    %v2767 = vld [vmem:[#allocation3 + $0x1b0] sm:$0xff]
    %v2768 = vld [vmem:[#allocation3 + $0x1b8] sm:$0xff]
    %v2769 = vld [vmem:[#allocation3 + $0x1c0] sm:$0xff]
    %v2770 = vld [vmem:[#allocation3 + $0x1c8] sm:$0xff]
    %v2771 = vld [vmem:[#allocation3 + $0x1d0] sm:$0xff]
    %v2772 = vld [vmem:[#allocation3 + $0x1d8] sm:$0xff]
    %v2773 = vld [vmem:[#allocation3 + $0x1e0] sm:$0xff]
    %v2774 = vld [vmem:[#allocation3 + $0x1e8] sm:$0xff]
    %v2775 = vld [vmem:[#allocation3 + $0x1f0] sm:$0xff]
    %v2776 = vld [vmem:[#allocation3 + $0x1f8] sm:$0xff]
    %v2777 = vld [vmem:[#allocation3 + $0x200] sm:$0xff]
    %v2778 = vld [vmem:[#allocation3 + $0x208] sm:$0xff]
    %v2779 = vld [vmem:[#allocation3 + $0x210] sm:$0xff]
    %v2780 = vld [vmem:[#allocation3 + $0x218] sm:$0xff]
    %v2781 = vld [vmem:[#allocation3 + $0x220] sm:$0xff]
    %v2782 = vld [vmem:[#allocation3 + $0x228] sm:$0xff]
    %v2783 = vld [vmem:[#allocation3 + $0x230] sm:$0xff]
    %v2784 = vld [vmem:[#allocation3 + $0x238] sm:$0xff]
    %v2785 = vld [vmem:[#allocation3 + $0x240] sm:$0xff]
    %v2786 = vld [vmem:[#allocation3 + $0x248] sm:$0xff]
    %v2787 = vld [vmem:[#allocation3 + $0x250] sm:$0xff]
    %v2788 = vld [vmem:[#allocation3 + $0x258] sm:$0xff]
    %v2789 = vld [vmem:[#allocation3 + $0x260] sm:$0xff]
    %v2790 = vld [vmem:[#allocation3 + $0x268] sm:$0xff]
    %v2791 = vld [vmem:[#allocation3 + $0x270] sm:$0xff]
    %v2792 = vld [vmem:[#allocation3 + $0x278] sm:$0xff]
    %v2793 = vld [vmem:[#allocation3 + $0x280] sm:$0xff]
    %v2794 = vld [vmem:[#allocation3 + $0x288] sm:$0xff]
    %v2795 = vld [vmem:[#allocation3 + $0x290] sm:$0xff]
    %v2796 = vld [vmem:[#allocation3 + $0x298] sm:$0xff]
    %v2797 = vld [vmem:[#allocation3 + $0x2a0] sm:$0xff]
    %v2798 = vld [vmem:[#allocation3 + $0x2a8] sm:$0xff]
    %v2799 = vld [vmem:[#allocation3 + $0x2b0] sm:$0xff]
    %v2800 = vld [vmem:[#allocation3 + $0x2b8] sm:$0xff]
    %v2801 = vld [vmem:[#allocation3 + $0x2c0] sm:$0xff]
    %v2802 = vld [vmem:[#allocation3 + $0x2c8] sm:$0xff]
    %v2803 = vld [vmem:[#allocation3 + $0x2d0] sm:$0xff]
    %v2804 = vld [vmem:[#allocation3 + $0x2d8] sm:$0xff]
    %v2805 = vld [vmem:[#allocation3 + $0x2e0] sm:$0xff]
    %v2806 = vld [vmem:[#allocation3 + $0x2e8] sm:$0xff]
    %v2807 = vld [vmem:[#allocation3 + $0x2f0] sm:$0xff]
    %v2808 = vld [vmem:[#allocation3 + $0x2f8] sm:$0xff]
    %v2809 = vld [vmem:[#allocation3 + $0x300] sm:$0xff]
    %v2810 = vld [vmem:[#allocation3 + $0x308] sm:$0xff]
    %v2811 = vld [vmem:[#allocation3 + $0x310] sm:$0xff]
    %v2812 = vld [vmem:[#allocation3 + $0x318] sm:$0xff]
    %v2813 = vld [vmem:[#allocation3 + $0x320] sm:$0xff]
    %v2814 = vld [vmem:[#allocation3 + $0x328] sm:$0xff]
    %v2815 = vld [vmem:[#allocation3 + $0x330] sm:$0xff]
    %v2816 = vld [vmem:[#allocation3 + $0x338] sm:$0xff]
    %v2817 = vld [vmem:[#allocation3 + $0x340] sm:$0xff]
    %v2818 = vld [vmem:[#allocation3 + $0x348] sm:$0xff]
    %v2819 = vld [vmem:[#allocation3 + $0x350] sm:$0xff]
    %v2820 = vld [vmem:[#allocation3 + $0x358] sm:$0xff]
    %v2821 = vld [vmem:[#allocation3 + $0x360] sm:$0xff]
    %v2822 = vld [vmem:[#allocation3 + $0x368] sm:$0xff]
    %v2823 = vld [vmem:[#allocation3 + $0x370] sm:$0xff]
    %v2824 = vld [vmem:[#allocation3 + $0x378] sm:$0xff]
    %v2825 = vld [vmem:[#allocation3 + $0x380] sm:$0xff]
    %v2826 = vld [vmem:[#allocation3 + $0x388] sm:$0xff]
    %v2827 = vld [vmem:[#allocation3 + $0x390] sm:$0xff]
    %v2828 = vld [vmem:[#allocation3 + $0x398] sm:$0xff]
    %v2829 = vld [vmem:[#allocation3 + $0x3a0] sm:$0xff]
    %v2830 = vld [vmem:[#allocation3 + $0x3a8] sm:$0xff]
    %v2831 = vld [vmem:[#allocation3 + $0x3b0] sm:$0xff]
    %v2832 = vld [vmem:[#allocation3 + $0x3b8] sm:$0xff]
    %v2833 = vld [vmem:[#allocation3 + $0x3c0] sm:$0xff]
    %v2834 = vld [vmem:[#allocation3 + $0x3c8] sm:$0xff]
    %v2835 = vld [vmem:[#allocation3 + $0x3d0] sm:$0xff]
    %v2836 = vld [vmem:[#allocation3 + $0x3d8] sm:$0xff]
    %v2837 = vld [vmem:[#allocation3 + $0x3e0] sm:$0xff]
    %v2838 = vld [vmem:[#allocation3 + $0x3e8] sm:$0xff]
    %v2839 = vld [vmem:[#allocation3 + $0x3f0] sm:$0xff]
    %v2840 = vld [vmem:[#allocation3 + $0x3f8] sm:$0xff]
    %v2841 = vld [vmem:[#allocation3 + $0x400] sm:$0xff]
    %v2842 = vld [vmem:[#allocation3 + $0x408] sm:$0xff]
    %v2843 = vld [vmem:[#allocation3 + $0x410] sm:$0xff]
    %v2844 = vld [vmem:[#allocation3 + $0x418] sm:$0xff]
    %v2845 = vld [vmem:[#allocation3 + $0x420] sm:$0xff]
    %v2846 = vld [vmem:[#allocation3 + $0x428] sm:$0xff]
    %v2847 = vld [vmem:[#allocation3 + $0x430] sm:$0xff]
    %v2848 = vld [vmem:[#allocation3 + $0x438] sm:$0xff]
    %v2849 = vld [vmem:[#allocation3 + $0x440] sm:$0xff]
    %v2850 = vld [vmem:[#allocation3 + $0x448] sm:$0xff]
    %v2851 = vld [vmem:[#allocation3 + $0x450] sm:$0xff]
    %v2852 = vld [vmem:[#allocation3 + $0x458] sm:$0xff]
    %v2853 = vld [vmem:[#allocation3 + $0x460] sm:$0xff]
    %v2854 = vld [vmem:[#allocation3 + $0x468] sm:$0xff]
    %v2855 = vld [vmem:[#allocation3 + $0x470] sm:$0xff]
    %v2856 = vld [vmem:[#allocation3 + $0x478] sm:$0xff]
    %v2857 = vld [vmem:[#allocation3 + $0x480] sm:$0xff]
    %v2858 = vld [vmem:[#allocation3 + $0x488] sm:$0xff]
    %v2859 = vld [vmem:[#allocation3 + $0x490] sm:$0xff]
    %v2860 = vld [vmem:[#allocation3 + $0x498] sm:$0xff]
    %v2861 = vld [vmem:[#allocation3 + $0x4a0] sm:$0xff]
    %v2862 = vld [vmem:[#allocation3 + $0x4a8] sm:$0xff]
    %v2863 = vld [vmem:[#allocation3 + $0x4b0] sm:$0xff]
    %v2864 = vld [vmem:[#allocation3 + $0x4b8] sm:$0xff]
    %v2865 = vld [vmem:[#allocation3 + $0x4c0] sm:$0xff]
    %v2866 = vld [vmem:[#allocation3 + $0x4c8] sm:$0xff]
    %v2867 = vld [vmem:[#allocation3 + $0x4d0] sm:$0xff]
    %v2868 = vld [vmem:[#allocation3 + $0x4d8] sm:$0xff]
    %v2869 = vld [vmem:[#allocation3 + $0x4e0] sm:$0xff]
    %v2870 = vld [vmem:[#allocation3 + $0x4e8] sm:$0xff]
    %v2871 = vld [vmem:[#allocation3 + $0x4f0] sm:$0xff]
    %v2872 = vld [vmem:[#allocation3 + $0x4f8] sm:$0xff]
    %v2873 = vld [vmem:[#allocation3 + $0x500] sm:$0xff]
    %v2874 = vld [vmem:[#allocation3 + $0x508] sm:$0xff]
    %v2875 = vld [vmem:[#allocation3 + $0x510] sm:$0xff]
    %v2876 = vld [vmem:[#allocation3 + $0x518] sm:$0xff]
    %v2877 = vld [vmem:[#allocation3 + $0x520] sm:$0xff]
    %v2878 = vld [vmem:[#allocation3 + $0x528] sm:$0xff]
    %v2879 = vld [vmem:[#allocation3 + $0x530] sm:$0xff]
    %v2880 = vld [vmem:[#allocation3 + $0x538] sm:$0xff]
    %v2881 = vld [vmem:[#allocation3 + $0x540] sm:$0xff]
    %v2882 = vld [vmem:[#allocation3 + $0x548] sm:$0xff]
    %v2883 = vld [vmem:[#allocation3 + $0x550] sm:$0xff]
    %v2884 = vld [vmem:[#allocation3 + $0x558] sm:$0xff]
    %v2885 = vld [vmem:[#allocation3 + $0x560] sm:$0xff]
    %v2886 = vld [vmem:[#allocation3 + $0x568] sm:$0xff]
    %v2887 = vld [vmem:[#allocation3 + $0x570] sm:$0xff]
    %v2888 = vld [vmem:[#allocation3 + $0x578] sm:$0xff]
    %v2889 = vld [vmem:[#allocation3 + $0x580] sm:$0xff]
    %v2890 = vld [vmem:[#allocation3 + $0x588] sm:$0xff]
    %v2891 = vld [vmem:[#allocation3 + $0x590] sm:$0xff]
    %v2892 = vld [vmem:[#allocation3 + $0x598] sm:$0xff]
    %v2893 = vld [vmem:[#allocation3 + $0x5a0] sm:$0xff]
    %v2894 = vld [vmem:[#allocation3 + $0x5a8] sm:$0xff]
    %v2895 = vld [vmem:[#allocation3 + $0x5b0] sm:$0xff]
    %v2896 = vld [vmem:[#allocation3 + $0x5b8] sm:$0xff]
    %v2897 = vld [vmem:[#allocation3 + $0x5c0] sm:$0xff]
    %v2898 = vld [vmem:[#allocation3 + $0x5c8] sm:$0xff]
    %v2899 = vld [vmem:[#allocation3 + $0x5d0] sm:$0xff]
    %v2900 = vld [vmem:[#allocation3 + $0x5d8] sm:$0xff]
    %v2901 = vld [vmem:[#allocation3 + $0x5e0] sm:$0xff]
    %v2902 = vld [vmem:[#allocation3 + $0x5e8] sm:$0xff]
    %v2903 = vld [vmem:[#allocation3 + $0x5f0] sm:$0xff]
    %v2904 = vld [vmem:[#allocation3 + $0x5f8] sm:$0xff]
    %v2905 = vld [vmem:[#allocation3 + $0x600] sm:$0xff]
    %v2906 = vld [vmem:[#allocation3 + $0x608] sm:$0xff]
    %v2907 = vld [vmem:[#allocation3 + $0x610] sm:$0xff]
    %v2908 = vld [vmem:[#allocation3 + $0x618] sm:$0xff]
    %v2909 = vld [vmem:[#allocation3 + $0x620] sm:$0xff]
    %v2910 = vld [vmem:[#allocation3 + $0x628] sm:$0xff]
    %v2911 = vld [vmem:[#allocation3 + $0x630] sm:$0xff]
    %v2912 = vld [vmem:[#allocation3 + $0x638] sm:$0xff]
    %v2913 = vld [vmem:[#allocation3 + $0x640] sm:$0xff]
    %v2914 = vld [vmem:[#allocation3 + $0x648] sm:$0xff]
    %v2915 = vld [vmem:[#allocation3 + $0x650] sm:$0xff]
    %v2916 = vld [vmem:[#allocation3 + $0x658] sm:$0xff]
    %v2917 = vld [vmem:[#allocation3 + $0x660] sm:$0xff]
    %v2918 = vld [vmem:[#allocation3 + $0x668] sm:$0xff]
    %v2919 = vld [vmem:[#allocation3 + $0x670] sm:$0xff]
    %v2920 = vld [vmem:[#allocation3 + $0x678] sm:$0xff]
    %v2921 = vld [vmem:[#allocation3 + $0x680] sm:$0xff]
    %v2922 = vld [vmem:[#allocation3 + $0x688] sm:$0xff]
    %v2923 = vld [vmem:[#allocation3 + $0x690] sm:$0xff]
    %v2924 = vld [vmem:[#allocation3 + $0x698] sm:$0xff]
    %v2925 = vld [vmem:[#allocation3 + $0x6a0] sm:$0xff]
    %v2926 = vld [vmem:[#allocation3 + $0x6a8] sm:$0xff]
    %v2927 = vld [vmem:[#allocation3 + $0x6b0] sm:$0xff]
    %v2928 = vld [vmem:[#allocation3 + $0x6b8] sm:$0xff]
    %v2929 = vld [vmem:[#allocation3 + $0x6c0] sm:$0xff]
    %v2930 = vld [vmem:[#allocation3 + $0x6c8] sm:$0xff]
    %v2931 = vld [vmem:[#allocation3 + $0x6d0] sm:$0xff]
    %v2932 = vld [vmem:[#allocation3 + $0x6d8] sm:$0xff]
    %v2933 = vld [vmem:[#allocation3 + $0x6e0] sm:$0xff]
    %v2934 = vld [vmem:[#allocation3 + $0x6e8] sm:$0xff]
    %v2935 = vld [vmem:[#allocation3 + $0x6f0] sm:$0xff]
    %v2936 = vld [vmem:[#allocation3 + $0x6f8] sm:$0xff]
    %v2937 = vld [vmem:[#allocation3 + $0x700] sm:$0xff]
    %v2938 = vld [vmem:[#allocation3 + $0x708] sm:$0xff]
    %v2939 = vld [vmem:[#allocation3 + $0x710] sm:$0xff]
    %v2940 = vld [vmem:[#allocation3 + $0x718] sm:$0xff]
    %v2941 = vld [vmem:[#allocation3 + $0x720] sm:$0xff]
    %v2942 = vld [vmem:[#allocation3 + $0x728] sm:$0xff]
    %v2943 = vld [vmem:[#allocation3 + $0x730] sm:$0xff]
    %v2944 = vld [vmem:[#allocation3 + $0x738] sm:$0xff]
    %v2945 = vld [vmem:[#allocation3 + $0x740] sm:$0xff]
    %v2946 = vld [vmem:[#allocation3 + $0x748] sm:$0xff]
    %v2947 = vld [vmem:[#allocation3 + $0x750] sm:$0xff]
    %v2948 = vld [vmem:[#allocation3 + $0x758] sm:$0xff]
    %v2949 = vld [vmem:[#allocation3 + $0x760] sm:$0xff]
    %v2950 = vld [vmem:[#allocation3 + $0x768] sm:$0xff]
    %v2951 = vld [vmem:[#allocation3 + $0x770] sm:$0xff]
    %v2952 = vld [vmem:[#allocation3 + $0x778] sm:$0xff]
    %v2953 = vld [vmem:[#allocation3 + $0x780] sm:$0xff]
    %v2954 = vld [vmem:[#allocation3 + $0x788] sm:$0xff]
    %v2955 = vld [vmem:[#allocation3 + $0x790] sm:$0xff]
    %v2956 = vld [vmem:[#allocation3 + $0x798] sm:$0xff]
    %v2957 = vld [vmem:[#allocation3 + $0x7a0] sm:$0xff]
    %v2958 = vld [vmem:[#allocation3 + $0x7a8] sm:$0xff]
    %v2959 = vld [vmem:[#allocation3 + $0x7b0] sm:$0xff]
    %v2960 = vld [vmem:[#allocation3 + $0x7b8] sm:$0xff]
    %v2961 = vld [vmem:[#allocation3 + $0x7c0] sm:$0xff]
    %v2962 = vld [vmem:[#allocation3 + $0x7c8] sm:$0xff]
    %v2963 = vld [vmem:[#allocation3 + $0x7d0] sm:$0xff]
    %v2964 = vld [vmem:[#allocation3 + $0x7d8] sm:$0xff]
    %v2965 = vld [vmem:[#allocation3 + $0x7e0] sm:$0xff]
    %v2966 = vld [vmem:[#allocation3 + $0x7e8] sm:$0xff]
    %v2967 = vld [vmem:[#allocation3 + $0x7f0] sm:$0xff]
    %v2968 = vld [vmem:[#allocation3 + $0x7f8] sm:$0xff]
    %v2969 = vld [vmem:[#allocation3 + $0x800] sm:$0xff]
    %v2970 = vld [vmem:[#allocation3 + $0x808] sm:$0xff]
    %v2971 = vld [vmem:[#allocation3 + $0x810] sm:$0xff]
    %v2972 = vld [vmem:[#allocation3 + $0x818] sm:$0xff]
    %v2973 = vld [vmem:[#allocation3 + $0x820] sm:$0xff]
    %v2974 = vld [vmem:[#allocation3 + $0x828] sm:$0xff]
    %v2975 = vld [vmem:[#allocation3 + $0x830] sm:$0xff]
    %v2976 = vld [vmem:[#allocation3 + $0x838] sm:$0xff]
    %v2977 = vld [vmem:[#allocation3 + $0x840] sm:$0xff]
    %v2978 = vld [vmem:[#allocation3 + $0x848] sm:$0xff]
    %v2979 = vld [vmem:[#allocation3 + $0x850] sm:$0xff]
    %v2980 = vld [vmem:[#allocation3 + $0x858] sm:$0xff]
    %v2981 = vld [vmem:[#allocation3 + $0x860] sm:$0xff]
    %v2982 = vld [vmem:[#allocation3 + $0x868] sm:$0xff]
    %v2983 = vld [vmem:[#allocation3 + $0x870] sm:$0xff]
    %v2984 = vld [vmem:[#allocation3 + $0x878] sm:$0xff]
    %v2985 = vld [vmem:[#allocation3 + $0x880] sm:$0xff]
    %v2986 = vld [vmem:[#allocation3 + $0x888] sm:$0xff]
    %v2987 = vld [vmem:[#allocation3 + $0x890] sm:$0xff]
    %v2988 = vld [vmem:[#allocation3 + $0x898] sm:$0xff]
    %v2989 = vld [vmem:[#allocation3 + $0x8a0] sm:$0xff]
    %v2990 = vld [vmem:[#allocation3 + $0x8a8] sm:$0xff]
    %v2991 = vld [vmem:[#allocation3 + $0x8b0] sm:$0xff]
    %v2992 = vld [vmem:[#allocation3 + $0x8b8] sm:$0xff]
    %v2993 = vld [vmem:[#allocation3 + $0x8c0] sm:$0xff]
    %v2994 = vld [vmem:[#allocation3 + $0x8c8] sm:$0xff]
    %v2995 = vld [vmem:[#allocation3 + $0x8d0] sm:$0xff]
    %v2996 = vld [vmem:[#allocation3 + $0x8d8] sm:$0xff]
    %v2997 = vld [vmem:[#allocation3 + $0x8e0] sm:$0xff]
    %v2998 = vld [vmem:[#allocation3 + $0x8e8] sm:$0xff]
    %v2999 = vld [vmem:[#allocation3 + $0x8f0] sm:$0xff]
    %v3000 = vld [vmem:[#allocation3 + $0x8f8] sm:$0xff]
    %v3001 = vld [vmem:[#allocation3 + $0x900] sm:$0xff]
    %v3002 = vld [vmem:[#allocation3 + $0x908] sm:$0xff]
    %v3003 = vld [vmem:[#allocation3 + $0x910] sm:$0xff]
    %v3004 = vld [vmem:[#allocation3 + $0x918] sm:$0xff]
    %v3005 = vld [vmem:[#allocation3 + $0x920] sm:$0xff]
    %v3006 = vld [vmem:[#allocation3 + $0x928] sm:$0xff]
    %v3007 = vld [vmem:[#allocation3 + $0x930] sm:$0xff]
    %v3008 = vld [vmem:[#allocation3 + $0x938] sm:$0xff]
    %v3009 = vld [vmem:[#allocation3 + $0x940] sm:$0xff]
    %v3010 = vld [vmem:[#allocation3 + $0x948] sm:$0xff]
    %v3011 = vld [vmem:[#allocation3 + $0x950] sm:$0xff]
    %v3012 = vld [vmem:[#allocation3 + $0x958] sm:$0xff]
    %v3013 = vld [vmem:[#allocation3 + $0x960] sm:$0xff]
    %v3014 = vld [vmem:[#allocation3 + $0x968] sm:$0xff]
    %v3015 = vld [vmem:[#allocation3 + $0x970] sm:$0xff]
    %v3016 = vld [vmem:[#allocation3 + $0x978] sm:$0xff]
    %v3017 = vld [vmem:[#allocation3 + $0x980] sm:$0xff]
    %v3018 = vld [vmem:[#allocation3 + $0x988] sm:$0xff]
    %v3019 = vld [vmem:[#allocation3 + $0x990] sm:$0xff]
    %v3020 = vld [vmem:[#allocation3 + $0x998] sm:$0xff]
    %v3021 = vld [vmem:[#allocation3 + $0x9a0] sm:$0xff]
    %v3022 = vld [vmem:[#allocation3 + $0x9a8] sm:$0xff]
    %v3023 = vld [vmem:[#allocation3 + $0x9b0] sm:$0xff]
    %v3024 = vld [vmem:[#allocation3 + $0x9b8] sm:$0xff]
    %v3025 = vld [vmem:[#allocation3 + $0x9c0] sm:$0xff]
    %v3026 = vld [vmem:[#allocation3 + $0x9c8] sm:$0xff]
    %v3027 = vld [vmem:[#allocation3 + $0x9d0] sm:$0xff]
    %v3028 = vld [vmem:[#allocation3 + $0x9d8] sm:$0xff]
    %v3029 = vld [vmem:[#allocation3 + $0x9e0] sm:$0xff]
    %v3030 = vld [vmem:[#allocation3 + $0x9e8] sm:$0xff]
    %v3031 = vld [vmem:[#allocation3 + $0x9f0] sm:$0xff]
    %v3032 = vld [vmem:[#allocation3 + $0x9f8] sm:$0xff]
    %v3033 = vld [vmem:[#allocation3 + $0xa00] sm:$0xff]
    %v3034 = vld [vmem:[#allocation3 + $0xa08] sm:$0xff]
    %v3035 = vld [vmem:[#allocation3 + $0xa10] sm:$0xff]
    %v3036 = vld [vmem:[#allocation3 + $0xa18] sm:$0xff]
    %v3037 = vld [vmem:[#allocation3 + $0xa20] sm:$0xff]
    %v3038 = vld [vmem:[#allocation3 + $0xa28] sm:$0xff]
    %v3039 = vld [vmem:[#allocation3 + $0xa30] sm:$0xff]
    %v3040 = vld [vmem:[#allocation3 + $0xa38] sm:$0xff]
    %v3041 = vld [vmem:[#allocation3 + $0xa40] sm:$0xff]
    %v3042 = vld [vmem:[#allocation3 + $0xa48] sm:$0xff]
    %v3043 = vld [vmem:[#allocation3 + $0xa50] sm:$0xff]
    %v3044 = vld [vmem:[#allocation3 + $0xa58] sm:$0xff]
    %v3045 = vld [vmem:[#allocation3 + $0xa60] sm:$0xff]
    %v3046 = vld [vmem:[#allocation3 + $0xa68] sm:$0xff]
    %v3047 = vld [vmem:[#allocation3 + $0xa70] sm:$0xff]
    %v3048 = vld [vmem:[#allocation3 + $0xa78] sm:$0xff]
    %v3049 = vld [vmem:[#allocation3 + $0xa80] sm:$0xff]
    %v3050 = vld [vmem:[#allocation3 + $0xa88] sm:$0xff]
    %v3051 = vld [vmem:[#allocation3 + $0xa90] sm:$0xff]
    %v3052 = vld [vmem:[#allocation3 + $0xa98] sm:$0xff]
    %v3053 = vld [vmem:[#allocation3 + $0xaa0] sm:$0xff]
    %v3054 = vld [vmem:[#allocation3 + $0xaa8] sm:$0xff]
    %v3055 = vld [vmem:[#allocation3 + $0xab0] sm:$0xff]
    %v3056 = vld [vmem:[#allocation3 + $0xab8] sm:$0xff]
    %v3057 = vld [vmem:[#allocation3 + $0xac0] sm:$0xff]
    %v3058 = vld [vmem:[#allocation3 + $0xac8] sm:$0xff]
    %v3059 = vld [vmem:[#allocation3 + $0xad0] sm:$0xff]
    %v3060 = vld [vmem:[#allocation3 + $0xad8] sm:$0xff]
    %v3061 = vld [vmem:[#allocation3 + $0xae0] sm:$0xff]
    %v3062 = vld [vmem:[#allocation3 + $0xae8] sm:$0xff]
    %v3063 = vld [vmem:[#allocation3 + $0xaf0] sm:$0xff]
    %v3064 = vld [vmem:[#allocation3 + $0xaf8] sm:$0xff]
    %v3065 = vld [vmem:[#allocation3 + $0xb00] sm:$0xff]
    %v3066 = vld [vmem:[#allocation3 + $0xb08] sm:$0xff]
    %v3067 = vld [vmem:[#allocation3 + $0xb10] sm:$0xff]
    %v3068 = vld [vmem:[#allocation3 + $0xb18] sm:$0xff]
    %v3069 = vld [vmem:[#allocation3 + $0xb20] sm:$0xff]
    %v3070 = vld [vmem:[#allocation3 + $0xb28] sm:$0xff]
    %v3071 = vld [vmem:[#allocation3 + $0xb30] sm:$0xff]
    %v3072 = vld [vmem:[#allocation3 + $0xb38] sm:$0xff]
    %v3073 = vld [vmem:[#allocation3 + $0xb40] sm:$0xff]
    %v3074 = vld [vmem:[#allocation3 + $0xb48] sm:$0xff]
    %v3075 = vld [vmem:[#allocation3 + $0xb50] sm:$0xff]
    %v3076 = vld [vmem:[#allocation3 + $0xb58] sm:$0xff]
    %v3077 = vld [vmem:[#allocation3 + $0xb60] sm:$0xff]
    %v3078 = vld [vmem:[#allocation3 + $0xb68] sm:$0xff]
    %v3079 = vld [vmem:[#allocation3 + $0xb70] sm:$0xff]
    %v3080 = vld [vmem:[#allocation3 + $0xb78] sm:$0xff]
    %v3081 = vld [vmem:[#allocation3 + $0xb80] sm:$0xff]
    %v3082 = vld [vmem:[#allocation3 + $0xb88] sm:$0xff]
    %v3083 = vld [vmem:[#allocation3 + $0xb90] sm:$0xff]
    %v3084 = vld [vmem:[#allocation3 + $0xb98] sm:$0xff]
    %v3085 = vld [vmem:[#allocation3 + $0xba0] sm:$0xff]
    %v3086 = vld [vmem:[#allocation3 + $0xba8] sm:$0xff]
    %v3087 = vld [vmem:[#allocation3 + $0xbb0] sm:$0xff]
    %v3088 = vld [vmem:[#allocation3 + $0xbb8] sm:$0xff]
    %v3089 = vld [vmem:[#allocation3 + $0xbc0] sm:$0xff]
    %v3090 = vld [vmem:[#allocation3 + $0xbc8] sm:$0xff]
    %v3091 = vld [vmem:[#allocation3 + $0xbd0] sm:$0xff]
    %v3092 = vld [vmem:[#allocation3 + $0xbd8] sm:$0xff]
    %v3093 = vld [vmem:[#allocation3 + $0xbe0] sm:$0xff]
    %v3094 = vld [vmem:[#allocation3 + $0xbe8] sm:$0xff]
    %v3095 = vld [vmem:[#allocation3 + $0xbf0] sm:$0xff]
    %v3096 = vld [vmem:[#allocation3 + $0xbf8] sm:$0xff]
    %v3481 = vunpack.c.l.b16 %v2713
    %v3482 = vunpack.c.h.b16 %v2713
    %v3483 = vunpack.c.l.b16 %v2714
    %v3484 = vunpack.c.h.b16 %v2714
    %v3485 = vunpack.c.l.b16 %v2715
    %v3486 = vunpack.c.h.b16 %v2715
    %v3487 = vunpack.c.l.b16 %v2716
    %v3488 = vunpack.c.h.b16 %v2716
    %v3489 = vunpack.c.l.b16 %v2717
    %v3490 = vunpack.c.h.b16 %v2717
    %v3491 = vunpack.c.l.b16 %v2718
    %v3492 = vunpack.c.h.b16 %v2718
    %v3493 = vunpack.c.l.b16 %v2719
    %v3494 = vunpack.c.h.b16 %v2719
    %v3495 = vunpack.c.l.b16 %v2720
    %v3496 = vunpack.c.h.b16 %v2720
    %v3497 = vunpack.c.l.b16 %v2721
    %v3498 = vunpack.c.h.b16 %v2721
    %v3499 = vunpack.c.l.b16 %v2722
    %v3500 = vunpack.c.h.b16 %v2722
    %v3501 = vunpack.c.l.b16 %v2723
    %v3502 = vunpack.c.h.b16 %v2723
    %v3503 = vunpack.c.l.b16 %v2724
    %v3504 = vunpack.c.h.b16 %v2724
    %v3505 = vunpack.c.l.b16 %v2725
    %v3506 = vunpack.c.h.b16 %v2725
    %v3507 = vunpack.c.l.b16 %v2726
    %v3508 = vunpack.c.h.b16 %v2726
    %v3509 = vunpack.c.l.b16 %v2727
    %v3510 = vunpack.c.h.b16 %v2727
    %v3511 = vunpack.c.l.b16 %v2728
    %v3512 = vunpack.c.h.b16 %v2728
    %v3513 = vunpack.c.l.b16 %v2729
    %v3514 = vunpack.c.h.b16 %v2729
    %v3515 = vunpack.c.l.b16 %v2730
    %v3516 = vunpack.c.h.b16 %v2730
    %v3517 = vunpack.c.l.b16 %v2731
    %v3518 = vunpack.c.h.b16 %v2731
    %v3519 = vunpack.c.l.b16 %v2732
    %v3520 = vunpack.c.h.b16 %v2732
    %v3521 = vunpack.c.l.b16 %v2733
    %v3522 = vunpack.c.h.b16 %v2733
    %v3523 = vunpack.c.l.b16 %v2734
    %v3524 = vunpack.c.h.b16 %v2734
    %v3525 = vunpack.c.l.b16 %v2735
    %v3526 = vunpack.c.h.b16 %v2735
    %v3527 = vunpack.c.l.b16 %v2736
    %v3528 = vunpack.c.h.b16 %v2736
    %v3529 = vunpack.c.l.b16 %v2737
    %v3530 = vunpack.c.h.b16 %v2737
    %v3531 = vunpack.c.l.b16 %v2738
    %v3532 = vunpack.c.h.b16 %v2738
    %v3533 = vunpack.c.l.b16 %v2739
    %v3534 = vunpack.c.h.b16 %v2739
    %v3535 = vunpack.c.l.b16 %v2740
    %v3536 = vunpack.c.h.b16 %v2740
    %v3537 = vunpack.c.l.b16 %v2741
    %v3538 = vunpack.c.h.b16 %v2741
    %v3539 = vunpack.c.l.b16 %v2742
    %v3540 = vunpack.c.h.b16 %v2742
    %v3541 = vunpack.c.l.b16 %v2743
    %v3542 = vunpack.c.h.b16 %v2743
    %v3543 = vunpack.c.l.b16 %v2744
    %v3544 = vunpack.c.h.b16 %v2744
    %v3545 = vunpack.c.l.b16 %v2745
    %v3546 = vunpack.c.h.b16 %v2745
    %v3547 = vunpack.c.l.b16 %v2746
    %v3548 = vunpack.c.h.b16 %v2746
    %v3549 = vunpack.c.l.b16 %v2747
    %v3550 = vunpack.c.h.b16 %v2747
    %v3551 = vunpack.c.l.b16 %v2748
    %v3552 = vunpack.c.h.b16 %v2748
    %v3553 = vunpack.c.l.b16 %v2749
    %v3554 = vunpack.c.h.b16 %v2749
    %v3555 = vunpack.c.l.b16 %v2750
    %v3556 = vunpack.c.h.b16 %v2750
    %v3557 = vunpack.c.l.b16 %v2751
    %v3558 = vunpack.c.h.b16 %v2751
    %v3559 = vunpack.c.l.b16 %v2752
    %v3560 = vunpack.c.h.b16 %v2752
    %v3561 = vunpack.c.l.b16 %v2753
    %v3562 = vunpack.c.h.b16 %v2753
    %v3563 = vunpack.c.l.b16 %v2754
    %v3564 = vunpack.c.h.b16 %v2754
    %v3565 = vunpack.c.l.b16 %v2755
    %v3566 = vunpack.c.h.b16 %v2755
    %v3567 = vunpack.c.l.b16 %v2756
    %v3568 = vunpack.c.h.b16 %v2756
    %v3569 = vunpack.c.l.b16 %v2757
    %v3570 = vunpack.c.h.b16 %v2757
    %v3571 = vunpack.c.l.b16 %v2758
    %v3572 = vunpack.c.h.b16 %v2758
    %v3573 = vunpack.c.l.b16 %v2759
    %v3574 = vunpack.c.h.b16 %v2759
    %v3575 = vunpack.c.l.b16 %v2760
    %v3576 = vunpack.c.h.b16 %v2760
    %v3577 = vunpack.c.l.b16 %v2761
    %v3578 = vunpack.c.h.b16 %v2761
    %v3579 = vunpack.c.l.b16 %v2762
    %v3580 = vunpack.c.h.b16 %v2762
    %v3581 = vunpack.c.l.b16 %v2763
    %v3582 = vunpack.c.h.b16 %v2763
    %v3583 = vunpack.c.l.b16 %v2764
    %v3584 = vunpack.c.h.b16 %v2764
    %v3585 = vunpack.c.l.b16 %v2765
    %v3586 = vunpack.c.h.b16 %v2765
    %v3587 = vunpack.c.l.b16 %v2766
    %v3588 = vunpack.c.h.b16 %v2766
    %v3589 = vunpack.c.l.b16 %v2767
    %v3590 = vunpack.c.h.b16 %v2767
    %v3591 = vunpack.c.l.b16 %v2768
    %v3592 = vunpack.c.h.b16 %v2768
    %v3593 = vunpack.c.l.b16 %v2769
    %v3594 = vunpack.c.h.b16 %v2769
    %v3595 = vunpack.c.l.b16 %v2770
    %v3596 = vunpack.c.h.b16 %v2770
    %v3597 = vunpack.c.l.b16 %v2771
    %v3598 = vunpack.c.h.b16 %v2771
    %v3599 = vunpack.c.l.b16 %v2772
    %v3600 = vunpack.c.h.b16 %v2772
    %v3601 = vunpack.c.l.b16 %v2773
    %v3602 = vunpack.c.h.b16 %v2773
    %v3603 = vunpack.c.l.b16 %v2774
    %v3604 = vunpack.c.h.b16 %v2774
    %v3605 = vunpack.c.l.b16 %v2775
    %v3606 = vunpack.c.h.b16 %v2775
    %v3607 = vunpack.c.l.b16 %v2776
    %v3608 = vunpack.c.h.b16 %v2776
    %v3609 = vunpack.c.l.b16 %v2777
    %v3610 = vunpack.c.h.b16 %v2777
    %v3611 = vunpack.c.l.b16 %v2778
    %v3612 = vunpack.c.h.b16 %v2778
    %v3613 = vunpack.c.l.b16 %v2779
    %v3614 = vunpack.c.h.b16 %v2779
    %v3615 = vunpack.c.l.b16 %v2780
    %v3616 = vunpack.c.h.b16 %v2780
    %v3617 = vunpack.c.l.b16 %v2781
    %v3618 = vunpack.c.h.b16 %v2781
    %v3619 = vunpack.c.l.b16 %v2782
    %v3620 = vunpack.c.h.b16 %v2782
    %v3621 = vunpack.c.l.b16 %v2783
    %v3622 = vunpack.c.h.b16 %v2783
    %v3623 = vunpack.c.l.b16 %v2784
    %v3624 = vunpack.c.h.b16 %v2784
    %v3625 = vunpack.c.l.b16 %v2785
    %v3626 = vunpack.c.h.b16 %v2785
    %v3627 = vunpack.c.l.b16 %v2786
    %v3628 = vunpack.c.h.b16 %v2786
    %v3629 = vunpack.c.l.b16 %v2787
    %v3630 = vunpack.c.h.b16 %v2787
    %v3631 = vunpack.c.l.b16 %v2788
    %v3632 = vunpack.c.h.b16 %v2788
    %v3633 = vunpack.c.l.b16 %v2789
    %v3634 = vunpack.c.h.b16 %v2789
    %v3635 = vunpack.c.l.b16 %v2790
    %v3636 = vunpack.c.h.b16 %v2790
    %v3637 = vunpack.c.l.b16 %v2791
    %v3638 = vunpack.c.h.b16 %v2791
    %v3639 = vunpack.c.l.b16 %v2792
    %v3640 = vunpack.c.h.b16 %v2792
    %v3641 = vunpack.c.l.b16 %v2793
    %v3642 = vunpack.c.h.b16 %v2793
    %v3643 = vunpack.c.l.b16 %v2794
    %v3644 = vunpack.c.h.b16 %v2794
    %v3645 = vunpack.c.l.b16 %v2795
    %v3646 = vunpack.c.h.b16 %v2795
    %v3647 = vunpack.c.l.b16 %v2796
    %v3648 = vunpack.c.h.b16 %v2796
    %v3649 = vunpack.c.l.b16 %v2797
    %v3650 = vunpack.c.h.b16 %v2797
    %v3651 = vunpack.c.l.b16 %v2798
    %v3652 = vunpack.c.h.b16 %v2798
    %v3653 = vunpack.c.l.b16 %v2799
    %v3654 = vunpack.c.h.b16 %v2799
    %v3655 = vunpack.c.l.b16 %v2800
    %v3656 = vunpack.c.h.b16 %v2800
    %v3657 = vunpack.c.l.b16 %v2801
    %v3658 = vunpack.c.h.b16 %v2801
    %v3659 = vunpack.c.l.b16 %v2802
    %v3660 = vunpack.c.h.b16 %v2802
    %v3661 = vunpack.c.l.b16 %v2803
    %v3662 = vunpack.c.h.b16 %v2803
    %v3663 = vunpack.c.l.b16 %v2804
    %v3664 = vunpack.c.h.b16 %v2804
    %v3665 = vunpack.c.l.b16 %v2805
    %v3666 = vunpack.c.h.b16 %v2805
    %v3667 = vunpack.c.l.b16 %v2806
    %v3668 = vunpack.c.h.b16 %v2806
    %v3669 = vunpack.c.l.b16 %v2807
    %v3670 = vunpack.c.h.b16 %v2807
    %v3671 = vunpack.c.l.b16 %v2808
    %v3672 = vunpack.c.h.b16 %v2808
    %v3673 = vunpack.c.l.b16 %v2809
    %v3674 = vunpack.c.h.b16 %v2809
    %v3675 = vunpack.c.l.b16 %v2810
    %v3676 = vunpack.c.h.b16 %v2810
    %v3677 = vunpack.c.l.b16 %v2811
    %v3678 = vunpack.c.h.b16 %v2811
    %v3679 = vunpack.c.l.b16 %v2812
    %v3680 = vunpack.c.h.b16 %v2812
    %v3681 = vunpack.c.l.b16 %v2813
    %v3682 = vunpack.c.h.b16 %v2813
    %v3683 = vunpack.c.l.b16 %v2814
    %v3684 = vunpack.c.h.b16 %v2814
    %v3685 = vunpack.c.l.b16 %v2815
    %v3686 = vunpack.c.h.b16 %v2815
    %v3687 = vunpack.c.l.b16 %v2816
    %v3688 = vunpack.c.h.b16 %v2816
    %v3689 = vunpack.c.l.b16 %v2817
    %v3690 = vunpack.c.h.b16 %v2817
    %v3691 = vunpack.c.l.b16 %v2818
    %v3692 = vunpack.c.h.b16 %v2818
    %v3693 = vunpack.c.l.b16 %v2819
    %v3694 = vunpack.c.h.b16 %v2819
    %v3695 = vunpack.c.l.b16 %v2820
    %v3696 = vunpack.c.h.b16 %v2820
    %v3697 = vunpack.c.l.b16 %v2821
    %v3698 = vunpack.c.h.b16 %v2821
    %v3699 = vunpack.c.l.b16 %v2822
    %v3700 = vunpack.c.h.b16 %v2822
    %v3701 = vunpack.c.l.b16 %v2823
    %v3702 = vunpack.c.h.b16 %v2823
    %v3703 = vunpack.c.l.b16 %v2824
    %v3704 = vunpack.c.h.b16 %v2824
    %v3705 = vunpack.c.l.b16 %v2825
    %v3706 = vunpack.c.h.b16 %v2825
    %v3707 = vunpack.c.l.b16 %v2826
    %v3708 = vunpack.c.h.b16 %v2826
    %v3709 = vunpack.c.l.b16 %v2827
    %v3710 = vunpack.c.h.b16 %v2827
    %v3711 = vunpack.c.l.b16 %v2828
    %v3712 = vunpack.c.h.b16 %v2828
    %v3713 = vunpack.c.l.b16 %v2829
    %v3714 = vunpack.c.h.b16 %v2829
    %v3715 = vunpack.c.l.b16 %v2830
    %v3716 = vunpack.c.h.b16 %v2830
    %v3717 = vunpack.c.l.b16 %v2831
    %v3718 = vunpack.c.h.b16 %v2831
    %v3719 = vunpack.c.l.b16 %v2832
    %v3720 = vunpack.c.h.b16 %v2832
    %v3721 = vunpack.c.l.b16 %v2833
    %v3722 = vunpack.c.h.b16 %v2833
    %v3723 = vunpack.c.l.b16 %v2834
    %v3724 = vunpack.c.h.b16 %v2834
    %v3725 = vunpack.c.l.b16 %v2835
    %v3726 = vunpack.c.h.b16 %v2835
    %v3727 = vunpack.c.l.b16 %v2836
    %v3728 = vunpack.c.h.b16 %v2836
    %v3729 = vunpack.c.l.b16 %v2837
    %v3730 = vunpack.c.h.b16 %v2837
    %v3731 = vunpack.c.l.b16 %v2838
    %v3732 = vunpack.c.h.b16 %v2838
    %v3733 = vunpack.c.l.b16 %v2839
    %v3734 = vunpack.c.h.b16 %v2839
    %v3735 = vunpack.c.l.b16 %v2840
    %v3736 = vunpack.c.h.b16 %v2840
    %v3737 = vunpack.c.l.b16 %v2841
    %v3738 = vunpack.c.h.b16 %v2841
    %v3739 = vunpack.c.l.b16 %v2842
    %v3740 = vunpack.c.h.b16 %v2842
    %v3741 = vunpack.c.l.b16 %v2843
    %v3742 = vunpack.c.h.b16 %v2843
    %v3743 = vunpack.c.l.b16 %v2844
    %v3744 = vunpack.c.h.b16 %v2844
    %v3745 = vunpack.c.l.b16 %v2845
    %v3746 = vunpack.c.h.b16 %v2845
    %v3747 = vunpack.c.l.b16 %v2846
    %v3748 = vunpack.c.h.b16 %v2846
    %v3749 = vunpack.c.l.b16 %v2847
    %v3750 = vunpack.c.h.b16 %v2847
    %v3751 = vunpack.c.l.b16 %v2848
    %v3752 = vunpack.c.h.b16 %v2848
    %v3753 = vunpack.c.l.b16 %v2849
    %v3754 = vunpack.c.h.b16 %v2849
    %v3755 = vunpack.c.l.b16 %v2850
    %v3756 = vunpack.c.h.b16 %v2850
    %v3757 = vunpack.c.l.b16 %v2851
    %v3758 = vunpack.c.h.b16 %v2851
    %v3759 = vunpack.c.l.b16 %v2852
    %v3760 = vunpack.c.h.b16 %v2852
    %v3761 = vunpack.c.l.b16 %v2853
    %v3762 = vunpack.c.h.b16 %v2853
    %v3763 = vunpack.c.l.b16 %v2854
    %v3764 = vunpack.c.h.b16 %v2854
    %v3765 = vunpack.c.l.b16 %v2855
    %v3766 = vunpack.c.h.b16 %v2855
    %v3767 = vunpack.c.l.b16 %v2856
    %v3768 = vunpack.c.h.b16 %v2856
    %v3769 = vunpack.c.l.b16 %v2857
    %v3770 = vunpack.c.h.b16 %v2857
    %v3771 = vunpack.c.l.b16 %v2858
    %v3772 = vunpack.c.h.b16 %v2858
    %v3773 = vunpack.c.l.b16 %v2859
    %v3774 = vunpack.c.h.b16 %v2859
    %v3775 = vunpack.c.l.b16 %v2860
    %v3776 = vunpack.c.h.b16 %v2860
    %v3777 = vunpack.c.l.b16 %v2861
    %v3778 = vunpack.c.h.b16 %v2861
    %v3779 = vunpack.c.l.b16 %v2862
    %v3780 = vunpack.c.h.b16 %v2862
    %v3781 = vunpack.c.l.b16 %v2863
    %v3782 = vunpack.c.h.b16 %v2863
    %v3783 = vunpack.c.l.b16 %v2864
    %v3784 = vunpack.c.h.b16 %v2864
    %v3785 = vunpack.c.l.b16 %v2865
    %v3786 = vunpack.c.h.b16 %v2865
    %v3787 = vunpack.c.l.b16 %v2866
    %v3788 = vunpack.c.h.b16 %v2866
    %v3789 = vunpack.c.l.b16 %v2867
    %v3790 = vunpack.c.h.b16 %v2867
    %v3791 = vunpack.c.l.b16 %v2868
    %v3792 = vunpack.c.h.b16 %v2868
    %v3793 = vunpack.c.l.b16 %v2869
    %v3794 = vunpack.c.h.b16 %v2869
    %v3795 = vunpack.c.l.b16 %v2870
    %v3796 = vunpack.c.h.b16 %v2870
    %v3797 = vunpack.c.l.b16 %v2871
    %v3798 = vunpack.c.h.b16 %v2871
    %v3799 = vunpack.c.l.b16 %v2872
    %v3800 = vunpack.c.h.b16 %v2872
    %v3801 = vunpack.c.l.b16 %v2873
    %v3802 = vunpack.c.h.b16 %v2873
    %v3803 = vunpack.c.l.b16 %v2874
    %v3804 = vunpack.c.h.b16 %v2874
    %v3805 = vunpack.c.l.b16 %v2875
    %v3806 = vunpack.c.h.b16 %v2875
    %v3807 = vunpack.c.l.b16 %v2876
    %v3808 = vunpack.c.h.b16 %v2876
    %v3809 = vunpack.c.l.b16 %v2877
    %v3810 = vunpack.c.h.b16 %v2877
    %v3811 = vunpack.c.l.b16 %v2878
    %v3812 = vunpack.c.h.b16 %v2878
    %v3813 = vunpack.c.l.b16 %v2879
    %v3814 = vunpack.c.h.b16 %v2879
    %v3815 = vunpack.c.l.b16 %v2880
    %v3816 = vunpack.c.h.b16 %v2880
    %v3817 = vunpack.c.l.b16 %v2881
    %v3818 = vunpack.c.h.b16 %v2881
    %v3819 = vunpack.c.l.b16 %v2882
    %v3820 = vunpack.c.h.b16 %v2882
    %v3821 = vunpack.c.l.b16 %v2883
    %v3822 = vunpack.c.h.b16 %v2883
    %v3823 = vunpack.c.l.b16 %v2884
    %v3824 = vunpack.c.h.b16 %v2884
    %v3825 = vunpack.c.l.b16 %v2885
    %v3826 = vunpack.c.h.b16 %v2885
    %v3827 = vunpack.c.l.b16 %v2886
    %v3828 = vunpack.c.h.b16 %v2886
    %v3829 = vunpack.c.l.b16 %v2887
    %v3830 = vunpack.c.h.b16 %v2887
    %v3831 = vunpack.c.l.b16 %v2888
    %v3832 = vunpack.c.h.b16 %v2888
    %v3833 = vunpack.c.l.b16 %v2889
    %v3834 = vunpack.c.h.b16 %v2889
    %v3835 = vunpack.c.l.b16 %v2890
    %v3836 = vunpack.c.h.b16 %v2890
    %v3837 = vunpack.c.l.b16 %v2891
    %v3838 = vunpack.c.h.b16 %v2891
    %v3839 = vunpack.c.l.b16 %v2892
    %v3840 = vunpack.c.h.b16 %v2892
    %v3841 = vunpack.c.l.b16 %v2893
    %v3842 = vunpack.c.h.b16 %v2893
    %v3843 = vunpack.c.l.b16 %v2894
    %v3844 = vunpack.c.h.b16 %v2894
    %v3845 = vunpack.c.l.b16 %v2895
    %v3846 = vunpack.c.h.b16 %v2895
    %v3847 = vunpack.c.l.b16 %v2896
    %v3848 = vunpack.c.h.b16 %v2896
    %v3849 = vunpack.c.l.b16 %v2897
    %v3850 = vunpack.c.h.b16 %v2897
    %v3851 = vunpack.c.l.b16 %v2898
    %v3852 = vunpack.c.h.b16 %v2898
    %v3853 = vunpack.c.l.b16 %v2899
    %v3854 = vunpack.c.h.b16 %v2899
    %v3855 = vunpack.c.l.b16 %v2900
    %v3856 = vunpack.c.h.b16 %v2900
    %v3857 = vunpack.c.l.b16 %v2901
    %v3858 = vunpack.c.h.b16 %v2901
    %v3859 = vunpack.c.l.b16 %v2902
    %v3860 = vunpack.c.h.b16 %v2902
    %v3861 = vunpack.c.l.b16 %v2903
    %v3862 = vunpack.c.h.b16 %v2903
    %v3863 = vunpack.c.l.b16 %v2904
    %v3864 = vunpack.c.h.b16 %v2904
    %v3865 = vunpack.c.l.b16 %v2905
    %v3866 = vunpack.c.h.b16 %v2905
    %v3867 = vunpack.c.l.b16 %v2906
    %v3868 = vunpack.c.h.b16 %v2906
    %v3869 = vunpack.c.l.b16 %v2907
    %v3870 = vunpack.c.h.b16 %v2907
    %v3871 = vunpack.c.l.b16 %v2908
    %v3872 = vunpack.c.h.b16 %v2908
    %v3873 = vunpack.c.l.b16 %v2909
    %v3874 = vunpack.c.h.b16 %v2909
    %v3875 = vunpack.c.l.b16 %v2910
    %v3876 = vunpack.c.h.b16 %v2910
    %v3877 = vunpack.c.l.b16 %v2911
    %v3878 = vunpack.c.h.b16 %v2911
    %v3879 = vunpack.c.l.b16 %v2912
    %v3880 = vunpack.c.h.b16 %v2912
    %v3881 = vunpack.c.l.b16 %v2913
    %v3882 = vunpack.c.h.b16 %v2913
    %v3883 = vunpack.c.l.b16 %v2914
    %v3884 = vunpack.c.h.b16 %v2914
    %v3885 = vunpack.c.l.b16 %v2915
    %v3886 = vunpack.c.h.b16 %v2915
    %v3887 = vunpack.c.l.b16 %v2916
    %v3888 = vunpack.c.h.b16 %v2916
    %v3889 = vunpack.c.l.b16 %v2917
    %v3890 = vunpack.c.h.b16 %v2917
    %v3891 = vunpack.c.l.b16 %v2918
    %v3892 = vunpack.c.h.b16 %v2918
    %v3893 = vunpack.c.l.b16 %v2919
    %v3894 = vunpack.c.h.b16 %v2919
    %v3895 = vunpack.c.l.b16 %v2920
    %v3896 = vunpack.c.h.b16 %v2920
    %v3897 = vunpack.c.l.b16 %v2921
    %v3898 = vunpack.c.h.b16 %v2921
    %v3899 = vunpack.c.l.b16 %v2922
    %v3900 = vunpack.c.h.b16 %v2922
    %v3901 = vunpack.c.l.b16 %v2923
    %v3902 = vunpack.c.h.b16 %v2923
    %v3903 = vunpack.c.l.b16 %v2924
    %v3904 = vunpack.c.h.b16 %v2924
    %v3905 = vunpack.c.l.b16 %v2925
    %v3906 = vunpack.c.h.b16 %v2925
    %v3907 = vunpack.c.l.b16 %v2926
    %v3908 = vunpack.c.h.b16 %v2926
    %v3909 = vunpack.c.l.b16 %v2927
    %v3910 = vunpack.c.h.b16 %v2927
    %v3911 = vunpack.c.l.b16 %v2928
    %v3912 = vunpack.c.h.b16 %v2928
    %v3913 = vunpack.c.l.b16 %v2929
    %v3914 = vunpack.c.h.b16 %v2929
    %v3915 = vunpack.c.l.b16 %v2930
    %v3916 = vunpack.c.h.b16 %v2930
    %v3917 = vunpack.c.l.b16 %v2931
    %v3918 = vunpack.c.h.b16 %v2931
    %v3919 = vunpack.c.l.b16 %v2932
    %v3920 = vunpack.c.h.b16 %v2932
    %v3921 = vunpack.c.l.b16 %v2933
    %v3922 = vunpack.c.h.b16 %v2933
    %v3923 = vunpack.c.l.b16 %v2934
    %v3924 = vunpack.c.h.b16 %v2934
    %v3925 = vunpack.c.l.b16 %v2935
    %v3926 = vunpack.c.h.b16 %v2935
    %v3927 = vunpack.c.l.b16 %v2936
    %v3928 = vunpack.c.h.b16 %v2936
    %v3929 = vunpack.c.l.b16 %v2937
    %v3930 = vunpack.c.h.b16 %v2937
    %v3931 = vunpack.c.l.b16 %v2938
    %v3932 = vunpack.c.h.b16 %v2938
    %v3933 = vunpack.c.l.b16 %v2939
    %v3934 = vunpack.c.h.b16 %v2939
    %v3935 = vunpack.c.l.b16 %v2940
    %v3936 = vunpack.c.h.b16 %v2940
    %v3937 = vunpack.c.l.b16 %v2941
    %v3938 = vunpack.c.h.b16 %v2941
    %v3939 = vunpack.c.l.b16 %v2942
    %v3940 = vunpack.c.h.b16 %v2942
    %v3941 = vunpack.c.l.b16 %v2943
    %v3942 = vunpack.c.h.b16 %v2943
    %v3943 = vunpack.c.l.b16 %v2944
    %v3944 = vunpack.c.h.b16 %v2944
    %v3945 = vunpack.c.l.b16 %v2945
    %v3946 = vunpack.c.h.b16 %v2945
    %v3947 = vunpack.c.l.b16 %v2946
    %v3948 = vunpack.c.h.b16 %v2946
    %v3949 = vunpack.c.l.b16 %v2947
    %v3950 = vunpack.c.h.b16 %v2947
    %v3951 = vunpack.c.l.b16 %v2948
    %v3952 = vunpack.c.h.b16 %v2948
    %v3953 = vunpack.c.l.b16 %v2949
    %v3954 = vunpack.c.h.b16 %v2949
    %v3955 = vunpack.c.l.b16 %v2950
    %v3956 = vunpack.c.h.b16 %v2950
    %v3957 = vunpack.c.l.b16 %v2951
    %v3958 = vunpack.c.h.b16 %v2951
    %v3959 = vunpack.c.l.b16 %v2952
    %v3960 = vunpack.c.h.b16 %v2952
    %v3961 = vunpack.c.l.b16 %v2953
    %v3962 = vunpack.c.h.b16 %v2953
    %v3963 = vunpack.c.l.b16 %v2954
    %v3964 = vunpack.c.h.b16 %v2954
    %v3965 = vunpack.c.l.b16 %v2955
    %v3966 = vunpack.c.h.b16 %v2955
    %v3967 = vunpack.c.l.b16 %v2956
    %v3968 = vunpack.c.h.b16 %v2956
    %v3969 = vunpack.c.l.b16 %v2957
    %v3970 = vunpack.c.h.b16 %v2957
    %v3971 = vunpack.c.l.b16 %v2958
    %v3972 = vunpack.c.h.b16 %v2958
    %v3973 = vunpack.c.l.b16 %v2959
    %v3974 = vunpack.c.h.b16 %v2959
    %v3975 = vunpack.c.l.b16 %v2960
    %v3976 = vunpack.c.h.b16 %v2960
    %v3977 = vunpack.c.l.b16 %v2961
    %v3978 = vunpack.c.h.b16 %v2961
    %v3979 = vunpack.c.l.b16 %v2962
    %v3980 = vunpack.c.h.b16 %v2962
    %v3981 = vunpack.c.l.b16 %v2963
    %v3982 = vunpack.c.h.b16 %v2963
    %v3983 = vunpack.c.l.b16 %v2964
    %v3984 = vunpack.c.h.b16 %v2964
    %v3985 = vunpack.c.l.b16 %v2965
    %v3986 = vunpack.c.h.b16 %v2965
    %v3987 = vunpack.c.l.b16 %v2966
    %v3988 = vunpack.c.h.b16 %v2966
    %v3989 = vunpack.c.l.b16 %v2967
    %v3990 = vunpack.c.h.b16 %v2967
    %v3991 = vunpack.c.l.b16 %v2968
    %v3992 = vunpack.c.h.b16 %v2968
    %v3993 = vunpack.c.l.b16 %v2969
    %v3994 = vunpack.c.h.b16 %v2969
    %v3995 = vunpack.c.l.b16 %v2970
    %v3996 = vunpack.c.h.b16 %v2970
    %v3997 = vunpack.c.l.b16 %v2971
    %v3998 = vunpack.c.h.b16 %v2971
    %v3999 = vunpack.c.l.b16 %v2972
    %v4000 = vunpack.c.h.b16 %v2972
    %v4001 = vunpack.c.l.b16 %v2973
    %v4002 = vunpack.c.h.b16 %v2973
    %v4003 = vunpack.c.l.b16 %v2974
    %v4004 = vunpack.c.h.b16 %v2974
    %v4005 = vunpack.c.l.b16 %v2975
    %v4006 = vunpack.c.h.b16 %v2975
    %v4007 = vunpack.c.l.b16 %v2976
    %v4008 = vunpack.c.h.b16 %v2976
    %v4009 = vunpack.c.l.b16 %v2977
    %v4010 = vunpack.c.h.b16 %v2977
    %v4011 = vunpack.c.l.b16 %v2978
    %v4012 = vunpack.c.h.b16 %v2978
    %v4013 = vunpack.c.l.b16 %v2979
    %v4014 = vunpack.c.h.b16 %v2979
    %v4015 = vunpack.c.l.b16 %v2980
    %v4016 = vunpack.c.h.b16 %v2980
    %v4017 = vunpack.c.l.b16 %v2981
    %v4018 = vunpack.c.h.b16 %v2981
    %v4019 = vunpack.c.l.b16 %v2982
    %v4020 = vunpack.c.h.b16 %v2982
    %v4021 = vunpack.c.l.b16 %v2983
    %v4022 = vunpack.c.h.b16 %v2983
    %v4023 = vunpack.c.l.b16 %v2984
    %v4024 = vunpack.c.h.b16 %v2984
    %v4025 = vunpack.c.l.b16 %v2985
    %v4026 = vunpack.c.h.b16 %v2985
    %v4027 = vunpack.c.l.b16 %v2986
    %v4028 = vunpack.c.h.b16 %v2986
    %v4029 = vunpack.c.l.b16 %v2987
    %v4030 = vunpack.c.h.b16 %v2987
    %v4031 = vunpack.c.l.b16 %v2988
    %v4032 = vunpack.c.h.b16 %v2988
    %v4033 = vunpack.c.l.b16 %v2989
    %v4034 = vunpack.c.h.b16 %v2989
    %v4035 = vunpack.c.l.b16 %v2990
    %v4036 = vunpack.c.h.b16 %v2990
    %v4037 = vunpack.c.l.b16 %v2991
    %v4038 = vunpack.c.h.b16 %v2991
    %v4039 = vunpack.c.l.b16 %v2992
    %v4040 = vunpack.c.h.b16 %v2992
    %v4041 = vunpack.c.l.b16 %v2993
    %v4042 = vunpack.c.h.b16 %v2993
    %v4043 = vunpack.c.l.b16 %v2994
    %v4044 = vunpack.c.h.b16 %v2994
    %v4045 = vunpack.c.l.b16 %v2995
    %v4046 = vunpack.c.h.b16 %v2995
    %v4047 = vunpack.c.l.b16 %v2996
    %v4048 = vunpack.c.h.b16 %v2996
    %v4049 = vunpack.c.l.b16 %v2997
    %v4050 = vunpack.c.h.b16 %v2997
    %v4051 = vunpack.c.l.b16 %v2998
    %v4052 = vunpack.c.h.b16 %v2998
    %v4053 = vunpack.c.l.b16 %v2999
    %v4054 = vunpack.c.h.b16 %v2999
    %v4055 = vunpack.c.l.b16 %v3000
    %v4056 = vunpack.c.h.b16 %v3000
    %v4057 = vunpack.c.l.b16 %v3001
    %v4058 = vunpack.c.h.b16 %v3001
    %v4059 = vunpack.c.l.b16 %v3002
    %v4060 = vunpack.c.h.b16 %v3002
    %v4061 = vunpack.c.l.b16 %v3003
    %v4062 = vunpack.c.h.b16 %v3003
    %v4063 = vunpack.c.l.b16 %v3004
    %v4064 = vunpack.c.h.b16 %v3004
    %v4065 = vunpack.c.l.b16 %v3005
    %v4066 = vunpack.c.h.b16 %v3005
    %v4067 = vunpack.c.l.b16 %v3006
    %v4068 = vunpack.c.h.b16 %v3006
    %v4069 = vunpack.c.l.b16 %v3007
    %v4070 = vunpack.c.h.b16 %v3007
    %v4071 = vunpack.c.l.b16 %v3008
    %v4072 = vunpack.c.h.b16 %v3008
    %v4073 = vunpack.c.l.b16 %v3009
    %v4074 = vunpack.c.h.b16 %v3009
    %v4075 = vunpack.c.l.b16 %v3010
    %v4076 = vunpack.c.h.b16 %v3010
    %v4077 = vunpack.c.l.b16 %v3011
    %v4078 = vunpack.c.h.b16 %v3011
    %v4079 = vunpack.c.l.b16 %v3012
    %v4080 = vunpack.c.h.b16 %v3012
    %v4081 = vunpack.c.l.b16 %v3013
    %v4082 = vunpack.c.h.b16 %v3013
    %v4083 = vunpack.c.l.b16 %v3014
    %v4084 = vunpack.c.h.b16 %v3014
    %v4085 = vunpack.c.l.b16 %v3015
    %v4086 = vunpack.c.h.b16 %v3015
    %v4087 = vunpack.c.l.b16 %v3016
    %v4088 = vunpack.c.h.b16 %v3016
    %v4089 = vunpack.c.l.b16 %v3017
    %v4090 = vunpack.c.h.b16 %v3017
    %v4091 = vunpack.c.l.b16 %v3018
    %v4092 = vunpack.c.h.b16 %v3018
    %v4093 = vunpack.c.l.b16 %v3019
    %v4094 = vunpack.c.h.b16 %v3019
    %v4095 = vunpack.c.l.b16 %v3020
    %v4096 = vunpack.c.h.b16 %v3020
    %v4097 = vunpack.c.l.b16 %v3021
    %v4098 = vunpack.c.h.b16 %v3021
    %v4099 = vunpack.c.l.b16 %v3022
    %v4100 = vunpack.c.h.b16 %v3022
    %v4101 = vunpack.c.l.b16 %v3023
    %v4102 = vunpack.c.h.b16 %v3023
    %v4103 = vunpack.c.l.b16 %v3024
    %v4104 = vunpack.c.h.b16 %v3024
    %v4105 = vunpack.c.l.b16 %v3025
    %v4106 = vunpack.c.h.b16 %v3025
    %v4107 = vunpack.c.l.b16 %v3026
    %v4108 = vunpack.c.h.b16 %v3026
    %v4109 = vunpack.c.l.b16 %v3027
    %v4110 = vunpack.c.h.b16 %v3027
    %v4111 = vunpack.c.l.b16 %v3028
    %v4112 = vunpack.c.h.b16 %v3028
    %v4113 = vunpack.c.l.b16 %v3029
    %v4114 = vunpack.c.h.b16 %v3029
    %v4115 = vunpack.c.l.b16 %v3030
    %v4116 = vunpack.c.h.b16 %v3030
    %v4117 = vunpack.c.l.b16 %v3031
    %v4118 = vunpack.c.h.b16 %v3031
    %v4119 = vunpack.c.l.b16 %v3032
    %v4120 = vunpack.c.h.b16 %v3032
    %v4121 = vunpack.c.l.b16 %v3033
    %v4122 = vunpack.c.h.b16 %v3033
    %v4123 = vunpack.c.l.b16 %v3034
    %v4124 = vunpack.c.h.b16 %v3034
    %v4125 = vunpack.c.l.b16 %v3035
    %v4126 = vunpack.c.h.b16 %v3035
    %v4127 = vunpack.c.l.b16 %v3036
    %v4128 = vunpack.c.h.b16 %v3036
    %v4129 = vunpack.c.l.b16 %v3037
    %v4130 = vunpack.c.h.b16 %v3037
    %v4131 = vunpack.c.l.b16 %v3038
    %v4132 = vunpack.c.h.b16 %v3038
    %v4133 = vunpack.c.l.b16 %v3039
    %v4134 = vunpack.c.h.b16 %v3039
    %v4135 = vunpack.c.l.b16 %v3040
    %v4136 = vunpack.c.h.b16 %v3040
    %v4137 = vunpack.c.l.b16 %v3041
    %v4138 = vunpack.c.h.b16 %v3041
    %v4139 = vunpack.c.l.b16 %v3042
    %v4140 = vunpack.c.h.b16 %v3042
    %v4141 = vunpack.c.l.b16 %v3043
    %v4142 = vunpack.c.h.b16 %v3043
    %v4143 = vunpack.c.l.b16 %v3044
    %v4144 = vunpack.c.h.b16 %v3044
    %v4145 = vunpack.c.l.b16 %v3045
    %v4146 = vunpack.c.h.b16 %v3045
    %v4147 = vunpack.c.l.b16 %v3046
    %v4148 = vunpack.c.h.b16 %v3046
    %v4149 = vunpack.c.l.b16 %v3047
    %v4150 = vunpack.c.h.b16 %v3047
    %v4151 = vunpack.c.l.b16 %v3048
    %v4152 = vunpack.c.h.b16 %v3048
    %v4153 = vunpack.c.l.b16 %v3049
    %v4154 = vunpack.c.h.b16 %v3049
    %v4155 = vunpack.c.l.b16 %v3050
    %v4156 = vunpack.c.h.b16 %v3050
    %v4157 = vunpack.c.l.b16 %v3051
    %v4158 = vunpack.c.h.b16 %v3051
    %v4159 = vunpack.c.l.b16 %v3052
    %v4160 = vunpack.c.h.b16 %v3052
    %v4161 = vunpack.c.l.b16 %v3053
    %v4162 = vunpack.c.h.b16 %v3053
    %v4163 = vunpack.c.l.b16 %v3054
    %v4164 = vunpack.c.h.b16 %v3054
    %v4165 = vunpack.c.l.b16 %v3055
    %v4166 = vunpack.c.h.b16 %v3055
    %v4167 = vunpack.c.l.b16 %v3056
    %v4168 = vunpack.c.h.b16 %v3056
    %v4169 = vunpack.c.l.b16 %v3057
    %v4170 = vunpack.c.h.b16 %v3057
    %v4171 = vunpack.c.l.b16 %v3058
    %v4172 = vunpack.c.h.b16 %v3058
    %v4173 = vunpack.c.l.b16 %v3059
    %v4174 = vunpack.c.h.b16 %v3059
    %v4175 = vunpack.c.l.b16 %v3060
    %v4176 = vunpack.c.h.b16 %v3060
    %v4177 = vunpack.c.l.b16 %v3061
    %v4178 = vunpack.c.h.b16 %v3061
    %v4179 = vunpack.c.l.b16 %v3062
    %v4180 = vunpack.c.h.b16 %v3062
    %v4181 = vunpack.c.l.b16 %v3063
    %v4182 = vunpack.c.h.b16 %v3063
    %v4183 = vunpack.c.l.b16 %v3064
    %v4184 = vunpack.c.h.b16 %v3064
    %v4185 = vunpack.c.l.b16 %v3065
    %v4186 = vunpack.c.h.b16 %v3065
    %v4187 = vunpack.c.l.b16 %v3066
    %v4188 = vunpack.c.h.b16 %v3066
    %v4189 = vunpack.c.l.b16 %v3067
    %v4190 = vunpack.c.h.b16 %v3067
    %v4191 = vunpack.c.l.b16 %v3068
    %v4192 = vunpack.c.h.b16 %v3068
    %v4193 = vunpack.c.l.b16 %v3069
    %v4194 = vunpack.c.h.b16 %v3069
    %v4195 = vunpack.c.l.b16 %v3070
    %v4196 = vunpack.c.h.b16 %v3070
    %v4197 = vunpack.c.l.b16 %v3071
    %v4198 = vunpack.c.h.b16 %v3071
    %v4199 = vunpack.c.l.b16 %v3072
    %v4200 = vunpack.c.h.b16 %v3072
    %v4201 = vunpack.c.l.b16 %v3073
    %v4202 = vunpack.c.h.b16 %v3073
    %v4203 = vunpack.c.l.b16 %v3074
    %v4204 = vunpack.c.h.b16 %v3074
    %v4205 = vunpack.c.l.b16 %v3075
    %v4206 = vunpack.c.h.b16 %v3075
    %v4207 = vunpack.c.l.b16 %v3076
    %v4208 = vunpack.c.h.b16 %v3076
    %v4209 = vunpack.c.l.b16 %v3077
    %v4210 = vunpack.c.h.b16 %v3077
    %v4211 = vunpack.c.l.b16 %v3078
    %v4212 = vunpack.c.h.b16 %v3078
    %v4213 = vunpack.c.l.b16 %v3079
    %v4214 = vunpack.c.h.b16 %v3079
    %v4215 = vunpack.c.l.b16 %v3080
    %v4216 = vunpack.c.h.b16 %v3080
    %v4217 = vunpack.c.l.b16 %v3081
    %v4218 = vunpack.c.h.b16 %v3081
    %v4219 = vunpack.c.l.b16 %v3082
    %v4220 = vunpack.c.h.b16 %v3082
    %v4221 = vunpack.c.l.b16 %v3083
    %v4222 = vunpack.c.h.b16 %v3083
    %v4223 = vunpack.c.l.b16 %v3084
    %v4224 = vunpack.c.h.b16 %v3084
    %v4225 = vunpack.c.l.b16 %v3085
    %v4226 = vunpack.c.h.b16 %v3085
    %v4227 = vunpack.c.l.b16 %v3086
    %v4228 = vunpack.c.h.b16 %v3086
    %v4229 = vunpack.c.l.b16 %v3087
    %v4230 = vunpack.c.h.b16 %v3087
    %v4231 = vunpack.c.l.b16 %v3088
    %v4232 = vunpack.c.h.b16 %v3088
    %v4233 = vunpack.c.l.b16 %v3089
    %v4234 = vunpack.c.h.b16 %v3089
    %v4235 = vunpack.c.l.b16 %v3090
    %v4236 = vunpack.c.h.b16 %v3090
    %v4237 = vunpack.c.l.b16 %v3091
    %v4238 = vunpack.c.h.b16 %v3091
    %v4239 = vunpack.c.l.b16 %v3092
    %v4240 = vunpack.c.h.b16 %v3092
    %v4241 = vunpack.c.l.b16 %v3093
    %v4242 = vunpack.c.h.b16 %v3093
    %v4243 = vunpack.c.l.b16 %v3094
    %v4244 = vunpack.c.h.b16 %v3094
    %v4245 = vunpack.c.l.b16 %v3095
    %v4246 = vunpack.c.h.b16 %v3095
    %v4247 = vunpack.c.l.b16 %v3096
    %v4248 = vunpack.c.h.b16 %v3096
    %v4249 = vpack.c.b16 %v3485, %v3481
    %v4250 = vpack.c.b16 %v3486, %v3482
    %v4251 = vpack.c.b16 %v3487, %v3483
    %v4252 = vpack.c.b16 %v3488, %v3484
    %v4253 = vpack.c.b16 %v3493, %v3489
    %v4254 = vpack.c.b16 %v3494, %v3490
    %v4255 = vpack.c.b16 %v3495, %v3491
    %v4256 = vpack.c.b16 %v3496, %v3492
    %v4257 = vpack.c.b16 %v3501, %v3497
    %v4258 = vpack.c.b16 %v3502, %v3498
    %v4259 = vpack.c.b16 %v3503, %v3499
    %v4260 = vpack.c.b16 %v3504, %v3500
    %v4261 = vpack.c.b16 %v3509, %v3505
    %v4262 = vpack.c.b16 %v3510, %v3506
    %v4263 = vpack.c.b16 %v3511, %v3507
    %v4264 = vpack.c.b16 %v3512, %v3508
    %v4265 = vpack.c.b16 %v3517, %v3513
    %v4266 = vpack.c.b16 %v3518, %v3514
    %v4267 = vpack.c.b16 %v3519, %v3515
    %v4268 = vpack.c.b16 %v3520, %v3516
    %v4269 = vpack.c.b16 %v3525, %v3521
    %v4270 = vpack.c.b16 %v3526, %v3522
    %v4271 = vpack.c.b16 %v3527, %v3523
    %v4272 = vpack.c.b16 %v3528, %v3524
    %v4273 = vpack.c.b16 %v3533, %v3529
    %v4274 = vpack.c.b16 %v3534, %v3530
    %v4275 = vpack.c.b16 %v3535, %v3531
    %v4276 = vpack.c.b16 %v3536, %v3532
    %v4277 = vpack.c.b16 %v3541, %v3537
    %v4278 = vpack.c.b16 %v3542, %v3538
    %v4279 = vpack.c.b16 %v3543, %v3539
    %v4280 = vpack.c.b16 %v3544, %v3540
    %v4281 = vpack.c.b16 %v3549, %v3545
    %v4282 = vpack.c.b16 %v3550, %v3546
    %v4283 = vpack.c.b16 %v3551, %v3547
    %v4284 = vpack.c.b16 %v3552, %v3548
    %v4285 = vpack.c.b16 %v3557, %v3553
    %v4286 = vpack.c.b16 %v3558, %v3554
    %v4287 = vpack.c.b16 %v3559, %v3555
    %v4288 = vpack.c.b16 %v3560, %v3556
    %v4289 = vpack.c.b16 %v3565, %v3561
    %v4290 = vpack.c.b16 %v3566, %v3562
    %v4291 = vpack.c.b16 %v3567, %v3563
    %v4292 = vpack.c.b16 %v3568, %v3564
    %v4293 = vpack.c.b16 %v3573, %v3569
    %v4294 = vpack.c.b16 %v3574, %v3570
    %v4295 = vpack.c.b16 %v3575, %v3571
    %v4296 = vpack.c.b16 %v3576, %v3572
    %v4297 = vpack.c.b16 %v3581, %v3577
    %v4298 = vpack.c.b16 %v3582, %v3578
    %v4299 = vpack.c.b16 %v3583, %v3579
    %v4300 = vpack.c.b16 %v3584, %v3580
    %v4301 = vpack.c.b16 %v3589, %v3585
    %v4302 = vpack.c.b16 %v3590, %v3586
    %v4303 = vpack.c.b16 %v3591, %v3587
    %v4304 = vpack.c.b16 %v3592, %v3588
    %v4305 = vpack.c.b16 %v3597, %v3593
    %v4306 = vpack.c.b16 %v3598, %v3594
    %v4307 = vpack.c.b16 %v3599, %v3595
    %v4308 = vpack.c.b16 %v3600, %v3596
    %v4309 = vpack.c.b16 %v3605, %v3601
    %v4310 = vpack.c.b16 %v3606, %v3602
    %v4311 = vpack.c.b16 %v3607, %v3603
    %v4312 = vpack.c.b16 %v3608, %v3604
    %v4313 = vpack.c.b16 %v3613, %v3609
    %v4314 = vpack.c.b16 %v3614, %v3610
    %v4315 = vpack.c.b16 %v3615, %v3611
    %v4316 = vpack.c.b16 %v3616, %v3612
    %v4317 = vpack.c.b16 %v3621, %v3617
    %v4318 = vpack.c.b16 %v3622, %v3618
    %v4319 = vpack.c.b16 %v3623, %v3619
    %v4320 = vpack.c.b16 %v3624, %v3620
    %v4321 = vpack.c.b16 %v3629, %v3625
    %v4322 = vpack.c.b16 %v3630, %v3626
    %v4323 = vpack.c.b16 %v3631, %v3627
    %v4324 = vpack.c.b16 %v3632, %v3628
    %v4325 = vpack.c.b16 %v3637, %v3633
    %v4326 = vpack.c.b16 %v3638, %v3634
    %v4327 = vpack.c.b16 %v3639, %v3635
    %v4328 = vpack.c.b16 %v3640, %v3636
    %v4329 = vpack.c.b16 %v3645, %v3641
    %v4330 = vpack.c.b16 %v3646, %v3642
    %v4331 = vpack.c.b16 %v3647, %v3643
    %v4332 = vpack.c.b16 %v3648, %v3644
    %v4333 = vpack.c.b16 %v3653, %v3649
    %v4334 = vpack.c.b16 %v3654, %v3650
    %v4335 = vpack.c.b16 %v3655, %v3651
    %v4336 = vpack.c.b16 %v3656, %v3652
    %v4337 = vpack.c.b16 %v3661, %v3657
    %v4338 = vpack.c.b16 %v3662, %v3658
    %v4339 = vpack.c.b16 %v3663, %v3659
    %v4340 = vpack.c.b16 %v3664, %v3660
    %v4341 = vpack.c.b16 %v3669, %v3665
    %v4342 = vpack.c.b16 %v3670, %v3666
    %v4343 = vpack.c.b16 %v3671, %v3667
    %v4344 = vpack.c.b16 %v3672, %v3668
    %v4345 = vpack.c.b16 %v3677, %v3673
    %v4346 = vpack.c.b16 %v3678, %v3674
    %v4347 = vpack.c.b16 %v3679, %v3675
    %v4348 = vpack.c.b16 %v3680, %v3676
    %v4349 = vpack.c.b16 %v3685, %v3681
    %v4350 = vpack.c.b16 %v3686, %v3682
    %v4351 = vpack.c.b16 %v3687, %v3683
    %v4352 = vpack.c.b16 %v3688, %v3684
    %v4353 = vpack.c.b16 %v3693, %v3689
    %v4354 = vpack.c.b16 %v3694, %v3690
    %v4355 = vpack.c.b16 %v3695, %v3691
    %v4356 = vpack.c.b16 %v3696, %v3692
    %v4357 = vpack.c.b16 %v3701, %v3697
    %v4358 = vpack.c.b16 %v3702, %v3698
    %v4359 = vpack.c.b16 %v3703, %v3699
    %v4360 = vpack.c.b16 %v3704, %v3700
    %v4361 = vpack.c.b16 %v3709, %v3705
    %v4362 = vpack.c.b16 %v3710, %v3706
    %v4363 = vpack.c.b16 %v3711, %v3707
    %v4364 = vpack.c.b16 %v3712, %v3708
    %v4365 = vpack.c.b16 %v3717, %v3713
    %v4366 = vpack.c.b16 %v3718, %v3714
    %v4367 = vpack.c.b16 %v3719, %v3715
    %v4368 = vpack.c.b16 %v3720, %v3716
    %v4369 = vpack.c.b16 %v3725, %v3721
    %v4370 = vpack.c.b16 %v3726, %v3722
    %v4371 = vpack.c.b16 %v3727, %v3723
    %v4372 = vpack.c.b16 %v3728, %v3724
    %v4373 = vpack.c.b16 %v3733, %v3729
    %v4374 = vpack.c.b16 %v3734, %v3730
    %v4375 = vpack.c.b16 %v3735, %v3731
    %v4376 = vpack.c.b16 %v3736, %v3732
    %v4377 = vpack.c.b16 %v3741, %v3737
    %v4378 = vpack.c.b16 %v3742, %v3738
    %v4379 = vpack.c.b16 %v3743, %v3739
    %v4380 = vpack.c.b16 %v3744, %v3740
    %v4381 = vpack.c.b16 %v3749, %v3745
    %v4382 = vpack.c.b16 %v3750, %v3746
    %v4383 = vpack.c.b16 %v3751, %v3747
    %v4384 = vpack.c.b16 %v3752, %v3748
    %v4385 = vpack.c.b16 %v3757, %v3753
    %v4386 = vpack.c.b16 %v3758, %v3754
    %v4387 = vpack.c.b16 %v3759, %v3755
    %v4388 = vpack.c.b16 %v3760, %v3756
    %v4389 = vpack.c.b16 %v3765, %v3761
    %v4390 = vpack.c.b16 %v3766, %v3762
    %v4391 = vpack.c.b16 %v3767, %v3763
    %v4392 = vpack.c.b16 %v3768, %v3764
    %v4393 = vpack.c.b16 %v3773, %v3769
    %v4394 = vpack.c.b16 %v3774, %v3770
    %v4395 = vpack.c.b16 %v3775, %v3771
    %v4396 = vpack.c.b16 %v3776, %v3772
    %v4397 = vpack.c.b16 %v3781, %v3777
    %v4398 = vpack.c.b16 %v3782, %v3778
    %v4399 = vpack.c.b16 %v3783, %v3779
    %v4400 = vpack.c.b16 %v3784, %v3780
    %v4401 = vpack.c.b16 %v3789, %v3785
    %v4402 = vpack.c.b16 %v3790, %v3786
    %v4403 = vpack.c.b16 %v3791, %v3787
    %v4404 = vpack.c.b16 %v3792, %v3788
    %v4405 = vpack.c.b16 %v3797, %v3793
    %v4406 = vpack.c.b16 %v3798, %v3794
    %v4407 = vpack.c.b16 %v3799, %v3795
    %v4408 = vpack.c.b16 %v3800, %v3796
    %v4409 = vpack.c.b16 %v3805, %v3801
    %v4410 = vpack.c.b16 %v3806, %v3802
    %v4411 = vpack.c.b16 %v3807, %v3803
    %v4412 = vpack.c.b16 %v3808, %v3804
    %v4413 = vpack.c.b16 %v3813, %v3809
    %v4414 = vpack.c.b16 %v3814, %v3810
    %v4415 = vpack.c.b16 %v3815, %v3811
    %v4416 = vpack.c.b16 %v3816, %v3812
    %v4417 = vpack.c.b16 %v3821, %v3817
    %v4418 = vpack.c.b16 %v3822, %v3818
    %v4419 = vpack.c.b16 %v3823, %v3819
    %v4420 = vpack.c.b16 %v3824, %v3820
    %v4421 = vpack.c.b16 %v3829, %v3825
    %v4422 = vpack.c.b16 %v3830, %v3826
    %v4423 = vpack.c.b16 %v3831, %v3827
    %v4424 = vpack.c.b16 %v3832, %v3828
    %v4425 = vpack.c.b16 %v3837, %v3833
    %v4426 = vpack.c.b16 %v3838, %v3834
    %v4427 = vpack.c.b16 %v3839, %v3835
    %v4428 = vpack.c.b16 %v3840, %v3836
    %v4429 = vpack.c.b16 %v3845, %v3841
    %v4430 = vpack.c.b16 %v3846, %v3842
    %v4431 = vpack.c.b16 %v3847, %v3843
    %v4432 = vpack.c.b16 %v3848, %v3844
    %v4433 = vpack.c.b16 %v3853, %v3849
    %v4434 = vpack.c.b16 %v3854, %v3850
    %v4435 = vpack.c.b16 %v3855, %v3851
    %v4436 = vpack.c.b16 %v3856, %v3852
    %v4437 = vpack.c.b16 %v3861, %v3857
    %v4438 = vpack.c.b16 %v3862, %v3858
    %v4439 = vpack.c.b16 %v3863, %v3859
    %v4440 = vpack.c.b16 %v3864, %v3860
    %v4441 = vpack.c.b16 %v3869, %v3865
    %v4442 = vpack.c.b16 %v3870, %v3866
    %v4443 = vpack.c.b16 %v3871, %v3867
    %v4444 = vpack.c.b16 %v3872, %v3868
    %v4445 = vpack.c.b16 %v3877, %v3873
    %v4446 = vpack.c.b16 %v3878, %v3874
    %v4447 = vpack.c.b16 %v3879, %v3875
    %v4448 = vpack.c.b16 %v3880, %v3876
    %v4449 = vpack.c.b16 %v3885, %v3881
    %v4450 = vpack.c.b16 %v3886, %v3882
    %v4451 = vpack.c.b16 %v3887, %v3883
    %v4452 = vpack.c.b16 %v3888, %v3884
    %v4453 = vpack.c.b16 %v3893, %v3889
    %v4454 = vpack.c.b16 %v3894, %v3890
    %v4455 = vpack.c.b16 %v3895, %v3891
    %v4456 = vpack.c.b16 %v3896, %v3892
    %v4457 = vpack.c.b16 %v3901, %v3897
    %v4458 = vpack.c.b16 %v3902, %v3898
    %v4459 = vpack.c.b16 %v3903, %v3899
    %v4460 = vpack.c.b16 %v3904, %v3900
    %v4461 = vpack.c.b16 %v3909, %v3905
    %v4462 = vpack.c.b16 %v3910, %v3906
    %v4463 = vpack.c.b16 %v3911, %v3907
    %v4464 = vpack.c.b16 %v3912, %v3908
    %v4465 = vpack.c.b16 %v3917, %v3913
    %v4466 = vpack.c.b16 %v3918, %v3914
    %v4467 = vpack.c.b16 %v3919, %v3915
    %v4468 = vpack.c.b16 %v3920, %v3916
    %v4469 = vpack.c.b16 %v3925, %v3921
    %v4470 = vpack.c.b16 %v3926, %v3922
    %v4471 = vpack.c.b16 %v3927, %v3923
    %v4472 = vpack.c.b16 %v3928, %v3924
    %v4473 = vpack.c.b16 %v3933, %v3929
    %v4474 = vpack.c.b16 %v3934, %v3930
    %v4475 = vpack.c.b16 %v3935, %v3931
    %v4476 = vpack.c.b16 %v3936, %v3932
    %v4477 = vpack.c.b16 %v3941, %v3937
    %v4478 = vpack.c.b16 %v3942, %v3938
    %v4479 = vpack.c.b16 %v3943, %v3939
    %v4480 = vpack.c.b16 %v3944, %v3940
    %v4481 = vpack.c.b16 %v3949, %v3945
    %v4482 = vpack.c.b16 %v3950, %v3946
    %v4483 = vpack.c.b16 %v3951, %v3947
    %v4484 = vpack.c.b16 %v3952, %v3948
    %v4485 = vpack.c.b16 %v3957, %v3953
    %v4486 = vpack.c.b16 %v3958, %v3954
    %v4487 = vpack.c.b16 %v3959, %v3955
    %v4488 = vpack.c.b16 %v3960, %v3956
    %v4489 = vpack.c.b16 %v3965, %v3961
    %v4490 = vpack.c.b16 %v3966, %v3962
    %v4491 = vpack.c.b16 %v3967, %v3963
    %v4492 = vpack.c.b16 %v3968, %v3964
    %v4493 = vpack.c.b16 %v3973, %v3969
    %v4494 = vpack.c.b16 %v3974, %v3970
    %v4495 = vpack.c.b16 %v3975, %v3971
    %v4496 = vpack.c.b16 %v3976, %v3972
    %v4497 = vpack.c.b16 %v3981, %v3977
    %v4498 = vpack.c.b16 %v3982, %v3978
    %v4499 = vpack.c.b16 %v3983, %v3979
    %v4500 = vpack.c.b16 %v3984, %v3980
    %v4501 = vpack.c.b16 %v3989, %v3985
    %v4502 = vpack.c.b16 %v3990, %v3986
    %v4503 = vpack.c.b16 %v3991, %v3987
    %v4504 = vpack.c.b16 %v3992, %v3988
    %v4505 = vpack.c.b16 %v3997, %v3993
    %v4506 = vpack.c.b16 %v3998, %v3994
    %v4507 = vpack.c.b16 %v3999, %v3995
    %v4508 = vpack.c.b16 %v4000, %v3996
    %v4509 = vpack.c.b16 %v4005, %v4001
    %v4510 = vpack.c.b16 %v4006, %v4002
    %v4511 = vpack.c.b16 %v4007, %v4003
    %v4512 = vpack.c.b16 %v4008, %v4004
    %v4513 = vpack.c.b16 %v4013, %v4009
    %v4514 = vpack.c.b16 %v4014, %v4010
    %v4515 = vpack.c.b16 %v4015, %v4011
    %v4516 = vpack.c.b16 %v4016, %v4012
    %v4517 = vpack.c.b16 %v4021, %v4017
    %v4518 = vpack.c.b16 %v4022, %v4018
    %v4519 = vpack.c.b16 %v4023, %v4019
    %v4520 = vpack.c.b16 %v4024, %v4020
    %v4521 = vpack.c.b16 %v4029, %v4025
    %v4522 = vpack.c.b16 %v4030, %v4026
    %v4523 = vpack.c.b16 %v4031, %v4027
    %v4524 = vpack.c.b16 %v4032, %v4028
    %v4525 = vpack.c.b16 %v4037, %v4033
    %v4526 = vpack.c.b16 %v4038, %v4034
    %v4527 = vpack.c.b16 %v4039, %v4035
    %v4528 = vpack.c.b16 %v4040, %v4036
    %v4529 = vpack.c.b16 %v4045, %v4041
    %v4530 = vpack.c.b16 %v4046, %v4042
    %v4531 = vpack.c.b16 %v4047, %v4043
    %v4532 = vpack.c.b16 %v4048, %v4044
    %v4533 = vpack.c.b16 %v4053, %v4049
    %v4534 = vpack.c.b16 %v4054, %v4050
    %v4535 = vpack.c.b16 %v4055, %v4051
    %v4536 = vpack.c.b16 %v4056, %v4052
    %v4537 = vpack.c.b16 %v4061, %v4057
    %v4538 = vpack.c.b16 %v4062, %v4058
    %v4539 = vpack.c.b16 %v4063, %v4059
    %v4540 = vpack.c.b16 %v4064, %v4060
    %v4541 = vpack.c.b16 %v4069, %v4065
    %v4542 = vpack.c.b16 %v4070, %v4066
    %v4543 = vpack.c.b16 %v4071, %v4067
    %v4544 = vpack.c.b16 %v4072, %v4068
    %v4545 = vpack.c.b16 %v4077, %v4073
    %v4546 = vpack.c.b16 %v4078, %v4074
    %v4547 = vpack.c.b16 %v4079, %v4075
    %v4548 = vpack.c.b16 %v4080, %v4076
    %v4549 = vpack.c.b16 %v4085, %v4081
    %v4550 = vpack.c.b16 %v4086, %v4082
    %v4551 = vpack.c.b16 %v4087, %v4083
    %v4552 = vpack.c.b16 %v4088, %v4084
    %v4553 = vpack.c.b16 %v4093, %v4089
    %v4554 = vpack.c.b16 %v4094, %v4090
    %v4555 = vpack.c.b16 %v4095, %v4091
    %v4556 = vpack.c.b16 %v4096, %v4092
    %v4557 = vpack.c.b16 %v4101, %v4097
    %v4558 = vpack.c.b16 %v4102, %v4098
    %v4559 = vpack.c.b16 %v4103, %v4099
    %v4560 = vpack.c.b16 %v4104, %v4100
    %v4561 = vpack.c.b16 %v4109, %v4105
    %v4562 = vpack.c.b16 %v4110, %v4106
    %v4563 = vpack.c.b16 %v4111, %v4107
    %v4564 = vpack.c.b16 %v4112, %v4108
    %v4565 = vpack.c.b16 %v4117, %v4113
    %v4566 = vpack.c.b16 %v4118, %v4114
    %v4567 = vpack.c.b16 %v4119, %v4115
    %v4568 = vpack.c.b16 %v4120, %v4116
    %v4569 = vpack.c.b16 %v4125, %v4121
    %v4570 = vpack.c.b16 %v4126, %v4122
    %v4571 = vpack.c.b16 %v4127, %v4123
    %v4572 = vpack.c.b16 %v4128, %v4124
    %v4573 = vpack.c.b16 %v4133, %v4129
    %v4574 = vpack.c.b16 %v4134, %v4130
    %v4575 = vpack.c.b16 %v4135, %v4131
    %v4576 = vpack.c.b16 %v4136, %v4132
    %v4577 = vpack.c.b16 %v4141, %v4137
    %v4578 = vpack.c.b16 %v4142, %v4138
    %v4579 = vpack.c.b16 %v4143, %v4139
    %v4580 = vpack.c.b16 %v4144, %v4140
    %v4581 = vpack.c.b16 %v4149, %v4145
    %v4582 = vpack.c.b16 %v4150, %v4146
    %v4583 = vpack.c.b16 %v4151, %v4147
    %v4584 = vpack.c.b16 %v4152, %v4148
    %v4585 = vpack.c.b16 %v4157, %v4153
    %v4586 = vpack.c.b16 %v4158, %v4154
    %v4587 = vpack.c.b16 %v4159, %v4155
    %v4588 = vpack.c.b16 %v4160, %v4156
    %v4589 = vpack.c.b16 %v4165, %v4161
    %v4590 = vpack.c.b16 %v4166, %v4162
    %v4591 = vpack.c.b16 %v4167, %v4163
    %v4592 = vpack.c.b16 %v4168, %v4164
    %v4593 = vpack.c.b16 %v4173, %v4169
    %v4594 = vpack.c.b16 %v4174, %v4170
    %v4595 = vpack.c.b16 %v4175, %v4171
    %v4596 = vpack.c.b16 %v4176, %v4172
    %v4597 = vpack.c.b16 %v4181, %v4177
    %v4598 = vpack.c.b16 %v4182, %v4178
    %v4599 = vpack.c.b16 %v4183, %v4179
    %v4600 = vpack.c.b16 %v4184, %v4180
    %v4601 = vpack.c.b16 %v4189, %v4185
    %v4602 = vpack.c.b16 %v4190, %v4186
    %v4603 = vpack.c.b16 %v4191, %v4187
    %v4604 = vpack.c.b16 %v4192, %v4188
    %v4605 = vpack.c.b16 %v4197, %v4193
    %v4606 = vpack.c.b16 %v4198, %v4194
    %v4607 = vpack.c.b16 %v4199, %v4195
    %v4608 = vpack.c.b16 %v4200, %v4196
    %v4609 = vpack.c.b16 %v4205, %v4201
    %v4610 = vpack.c.b16 %v4206, %v4202
    %v4611 = vpack.c.b16 %v4207, %v4203
    %v4612 = vpack.c.b16 %v4208, %v4204
    %v4613 = vpack.c.b16 %v4213, %v4209
    %v4614 = vpack.c.b16 %v4214, %v4210
    %v4615 = vpack.c.b16 %v4215, %v4211
    %v4616 = vpack.c.b16 %v4216, %v4212
    %v4617 = vpack.c.b16 %v4221, %v4217
    %v4618 = vpack.c.b16 %v4222, %v4218
    %v4619 = vpack.c.b16 %v4223, %v4219
    %v4620 = vpack.c.b16 %v4224, %v4220
    %v4621 = vpack.c.b16 %v4229, %v4225
    %v4622 = vpack.c.b16 %v4230, %v4226
    %v4623 = vpack.c.b16 %v4231, %v4227
    %v4624 = vpack.c.b16 %v4232, %v4228
    %v4625 = vpack.c.b16 %v4237, %v4233
    %v4626 = vpack.c.b16 %v4238, %v4234
    %v4627 = vpack.c.b16 %v4239, %v4235
    %v4628 = vpack.c.b16 %v4240, %v4236
    %v4629 = vpack.c.b16 %v4245, %v4241
    %v4630 = vpack.c.b16 %v4246, %v4242
    %v4631 = vpack.c.b16 %v4247, %v4243
    %v4632 = vpack.c.b16 %v4248, %v4244
    %5017 = vmatprep.subr.bf16.mxu0 %v4278
    %5018 = vmatpush1.bf16.msra.mxu0 %v4277
    %5019 = vmatprep.subr.bf16.mxu0 %v4274
    %5020 = vmatpush1.bf16.msra.mxu0 %v4273
    %5021 = vmatprep.subr.bf16.mxu0 %v4270
    %5022 = vmatpush1.bf16.msra.mxu0 %v4269
    %5023 = vmatprep.subr.bf16.mxu0 %v4266
    %5024 = vmatpush1.bf16.msra.mxu0 %v4265
    %5025 = vmatprep.subr.bf16.mxu0 %v4262
    %5026 = vmatpush1.bf16.msra.mxu0 %v4261
    %5027 = vmatprep.subr.bf16.mxu0 %v4258
    %5028 = vmatpush1.bf16.msra.mxu0 %v4257
    %5029 = vmatprep.subr.bf16.mxu0 %v4254
    %5030 = vmatpush1.bf16.msra.mxu0 %v4253
    %5031 = vmatprep.subr.bf16.mxu0 %v4250
    %5032 = vmatpush1.bf16.msra.mxu0 %v4249
    %5033 = vmatprep.subr.bf16.mxu0 %v4310
    %5034 = vmatpush2.bf16.msra.mxu0 %v4309
    %5035 = vmatprep.subr.bf16.mxu0 %v4306
    %5036 = vmatpush2.bf16.msra.mxu0 %v4305
    %5037 = vmatprep.subr.bf16.mxu0 %v4302
    %5038 = vmatpush2.bf16.msra.mxu0 %v4301
    %5039 = vmatprep.subr.bf16.mxu0 %v4298
    %5040 = vmatpush2.bf16.msra.mxu0 %v4297
    %5041 = vmatprep.subr.bf16.mxu0 %v4294
    %5042 = vmatpush2.bf16.msra.mxu0 %v4293
    %5043 = vmatprep.subr.bf16.mxu0 %v4290
    %5044 = vmatpush2.bf16.msra.mxu0 %v4289
    %5045 = vmatprep.subr.bf16.mxu0 %v4286
    %5046 = vmatpush2.bf16.msra.mxu0 %v4285
    %5047 = vmatprep.subr.bf16.mxu0 %v4282
    %5048 = vmatpush2.bf16.msra.mxu0 %v4281
    %5049 = vmatprep.mubr.bf16.mxu0 %v2628
    %5050 = vmatmul.mubr.bf16.gmra.mxu0 %v2627
    %v5051 = vpop.f32.mrf.mxu0
    %v5052 = vadd.f32 0.0, %v5051
    %v5053 = vpop.f32.mrf.mxu0
    %v5054 = vadd.f32 0.0, %v5053
    %v5055 = vpop.f32.mrf.mxu0
    %v5056 = vadd.f32 0.0, %v5055
    %v5057 = vpop.f32.mrf.mxu0
    %v5058 = vadd.f32 0.0, %v5057
    %5059 = vdwg.mxu0
    %5060 = vmatprep.subr.bf16.mxu0 %v4342
    %5061 = vmatpush1.bf16.msra.mxu0 %v4341
    %5062 = vmatprep.subr.bf16.mxu0 %v4338
    %5063 = vmatpush1.bf16.msra.mxu0 %v4337
    %5064 = vmatprep.subr.bf16.mxu0 %v4334
    %5065 = vmatpush1.bf16.msra.mxu0 %v4333
    %5066 = vmatprep.subr.bf16.mxu0 %v4330
    %5067 = vmatpush1.bf16.msra.mxu0 %v4329
    %5068 = vmatprep.subr.bf16.mxu0 %v4326
    %5069 = vmatpush1.bf16.msra.mxu0 %v4325
    %5070 = vmatprep.subr.bf16.mxu0 %v4322
    %5071 = vmatpush1.bf16.msra.mxu0 %v4321
    %5072 = vmatprep.subr.bf16.mxu0 %v4318
    %5073 = vmatpush1.bf16.msra.mxu0 %v4317
    %5074 = vmatprep.subr.bf16.mxu0 %v4314
    %5075 = vmatpush1.bf16.msra.mxu0 %v4313
    %5076 = vmatprep.subr.bf16.mxu0 %v4374
    %5077 = vmatpush2.bf16.msra.mxu0 %v4373
    %5078 = vmatprep.subr.bf16.mxu0 %v4370
    %5079 = vmatpush2.bf16.msra.mxu0 %v4369
    %5080 = vmatprep.subr.bf16.mxu0 %v4366
    %5081 = vmatpush2.bf16.msra.mxu0 %v4365
    %5082 = vmatprep.subr.bf16.mxu0 %v4362
    %5083 = vmatpush2.bf16.msra.mxu0 %v4361
    %5084 = vmatprep.subr.bf16.mxu0 %v4358
    %5085 = vmatpush2.bf16.msra.mxu0 %v4357
    %5086 = vmatprep.subr.bf16.mxu0 %v4354
    %5087 = vmatpush2.bf16.msra.mxu0 %v4353
    %5088 = vmatprep.subr.bf16.mxu0 %v4350
    %5089 = vmatpush2.bf16.msra.mxu0 %v4349
    %5090 = vmatprep.subr.bf16.mxu0 %v4346
    %5091 = vmatpush2.bf16.msra.mxu0 %v4345
    %5092 = vmatprep.mubr.bf16.mxu0 %v2630
    %5093 = vmatmul.mubr.bf16.gmra.mxu0 %v2629
    %v5094 = vpop.f32.mrf.mxu0
    %v5095 = vadd.f32 %v5052, %v5094
    %v5096 = vpop.f32.mrf.mxu0
    %v5097 = vadd.f32 %v5054, %v5096
    %v5098 = vpop.f32.mrf.mxu0
    %v5099 = vadd.f32 %v5056, %v5098
    %v5100 = vpop.f32.mrf.mxu0
    %v5101 = vadd.f32 %v5058, %v5100
    %5102 = vdwg.mxu0
    %5103 = vmatprep.subr.bf16.mxu0 %v4406
    %5104 = vmatpush1.bf16.msra.mxu0 %v4405
    %5105 = vmatprep.subr.bf16.mxu0 %v4402
    %5106 = vmatpush1.bf16.msra.mxu0 %v4401
    %5107 = vmatprep.subr.bf16.mxu0 %v4398
    %5108 = vmatpush1.bf16.msra.mxu0 %v4397
    %5109 = vmatprep.subr.bf16.mxu0 %v4394
    %5110 = vmatpush1.bf16.msra.mxu0 %v4393
    %5111 = vmatprep.subr.bf16.mxu0 %v4390
    %5112 = vmatpush1.bf16.msra.mxu0 %v4389
    %5113 = vmatprep.subr.bf16.mxu0 %v4386
    %5114 = vmatpush1.bf16.msra.mxu0 %v4385
    %5115 = vmatprep.subr.bf16.mxu0 %v4382
    %5116 = vmatpush1.bf16.msra.mxu0 %v4381
    %5117 = vmatprep.subr.bf16.mxu0 %v4378
    %5118 = vmatpush1.bf16.msra.mxu0 %v4377
    %5119 = vmatprep.subr.bf16.mxu0 %v4438
    %5120 = vmatpush2.bf16.msra.mxu0 %v4437
    %5121 = vmatprep.subr.bf16.mxu0 %v4434
    %5122 = vmatpush2.bf16.msra.mxu0 %v4433
    %5123 = vmatprep.subr.bf16.mxu0 %v4430
    %5124 = vmatpush2.bf16.msra.mxu0 %v4429
    %5125 = vmatprep.subr.bf16.mxu0 %v4426
    %5126 = vmatpush2.bf16.msra.mxu0 %v4425
    %5127 = vmatprep.subr.bf16.mxu0 %v4422
    %5128 = vmatpush2.bf16.msra.mxu0 %v4421
    %5129 = vmatprep.subr.bf16.mxu0 %v4418
    %5130 = vmatpush2.bf16.msra.mxu0 %v4417
    %5131 = vmatprep.subr.bf16.mxu0 %v4414
    %5132 = vmatpush2.bf16.msra.mxu0 %v4413
    %5133 = vmatprep.subr.bf16.mxu0 %v4410
    %5134 = vmatpush2.bf16.msra.mxu0 %v4409
    %5135 = vmatprep.mubr.bf16.mxu0 %v2661
    %5136 = vmatmul.mubr.bf16.gmra.mxu0 %v2658
    %v5137 = vpop.f32.mrf.mxu0
    %v5138 = vadd.f32 %v5095, %v5137
    %v5139 = vpop.f32.mrf.mxu0
    %v5140 = vadd.f32 %v5097, %v5139
    %v5141 = vpop.f32.mrf.mxu0
    %v5142 = vadd.f32 %v5099, %v5141
    %v5143 = vpop.f32.mrf.mxu0
    %v5144 = vadd.f32 %v5101, %v5143
    %5145 = vdwg.mxu0
    %5146 = vmatprep.subr.bf16.mxu0 %v4470
    %5147 = vmatpush1.bf16.msra.mxu0 %v4469
    %5148 = vmatprep.subr.bf16.mxu0 %v4466
    %5149 = vmatpush1.bf16.msra.mxu0 %v4465
    %5150 = vmatprep.subr.bf16.mxu0 %v4462
    %5151 = vmatpush1.bf16.msra.mxu0 %v4461
    %5152 = vmatprep.subr.bf16.mxu0 %v4458
    %5153 = vmatpush1.bf16.msra.mxu0 %v4457
    %5154 = vmatprep.subr.bf16.mxu0 %v4454
    %5155 = vmatpush1.bf16.msra.mxu0 %v4453
    %5156 = vmatprep.subr.bf16.mxu0 %v4450
    %5157 = vmatpush1.bf16.msra.mxu0 %v4449
    %5158 = vmatprep.subr.bf16.mxu0 %v4446
    %5159 = vmatpush1.bf16.msra.mxu0 %v4445
    %5160 = vmatprep.subr.bf16.mxu0 %v4442
    %5161 = vmatpush1.bf16.msra.mxu0 %v4441
    %5162 = vmatprep.subr.bf16.mxu0 %v4502
    %5163 = vmatpush2.bf16.msra.mxu0 %v4501
    %5164 = vmatprep.subr.bf16.mxu0 %v4498
    %5165 = vmatpush2.bf16.msra.mxu0 %v4497
    %5166 = vmatprep.subr.bf16.mxu0 %v4494
    %5167 = vmatpush2.bf16.msra.mxu0 %v4493
    %5168 = vmatprep.subr.bf16.mxu0 %v4490
    %5169 = vmatpush2.bf16.msra.mxu0 %v4489
    %5170 = vmatprep.subr.bf16.mxu0 %v4486
    %5171 = vmatpush2.bf16.msra.mxu0 %v4485
    %5172 = vmatprep.subr.bf16.mxu0 %v4482
    %5173 = vmatpush2.bf16.msra.mxu0 %v4481
    %5174 = vmatprep.subr.bf16.mxu0 %v4478
    %5175 = vmatpush2.bf16.msra.mxu0 %v4477
    %5176 = vmatprep.subr.bf16.mxu0 %v4474
    %5177 = vmatpush2.bf16.msra.mxu0 %v4473
    %5178 = vmatprep.mubr.bf16.mxu0 %v2667
    %5179 = vmatmul.mubr.bf16.gmra.mxu0 %v2664
    %v5180 = vpop.f32.mrf.mxu0
    %v5181 = vadd.f32 %v5138, %v5180
    %v5182 = vpop.f32.mrf.mxu0
    %v5183 = vadd.f32 %v5140, %v5182
    %v5184 = vpop.f32.mrf.mxu0
    %v5185 = vadd.f32 %v5142, %v5184
    %v5186 = vpop.f32.mrf.mxu0
    %v5187 = vadd.f32 %v5144, %v5186
    %5188 = vdwg.mxu0
    %5189 = vmatprep.subr.bf16.mxu0 %v4534
    %5190 = vmatpush1.bf16.msra.mxu0 %v4533
    %5191 = vmatprep.subr.bf16.mxu0 %v4530
    %5192 = vmatpush1.bf16.msra.mxu0 %v4529
    %5193 = vmatprep.subr.bf16.mxu0 %v4526
    %5194 = vmatpush1.bf16.msra.mxu0 %v4525
    %5195 = vmatprep.subr.bf16.mxu0 %v4522
    %5196 = vmatpush1.bf16.msra.mxu0 %v4521
    %5197 = vmatprep.subr.bf16.mxu0 %v4518
    %5198 = vmatpush1.bf16.msra.mxu0 %v4517
    %5199 = vmatprep.subr.bf16.mxu0 %v4514
    %5200 = vmatpush1.bf16.msra.mxu0 %v4513
    %5201 = vmatprep.subr.bf16.mxu0 %v4510
    %5202 = vmatpush1.bf16.msra.mxu0 %v4509
    %5203 = vmatprep.subr.bf16.mxu0 %v4506
    %5204 = vmatpush1.bf16.msra.mxu0 %v4505
    %5205 = vmatprep.subr.bf16.mxu0 %v4566
    %5206 = vmatpush2.bf16.msra.mxu0 %v4565
    %5207 = vmatprep.subr.bf16.mxu0 %v4562
    %5208 = vmatpush2.bf16.msra.mxu0 %v4561
    %5209 = vmatprep.subr.bf16.mxu0 %v4558
    %5210 = vmatpush2.bf16.msra.mxu0 %v4557
    %5211 = vmatprep.subr.bf16.mxu0 %v4554
    %5212 = vmatpush2.bf16.msra.mxu0 %v4553
    %5213 = vmatprep.subr.bf16.mxu0 %v4550
    %5214 = vmatpush2.bf16.msra.mxu0 %v4549
    %5215 = vmatprep.subr.bf16.mxu0 %v4546
    %5216 = vmatpush2.bf16.msra.mxu0 %v4545
    %5217 = vmatprep.subr.bf16.mxu0 %v4542
    %5218 = vmatpush2.bf16.msra.mxu0 %v4541
    %5219 = vmatprep.subr.bf16.mxu0 %v4538
    %5220 = vmatpush2.bf16.msra.mxu0 %v4537
    %5221 = vmatprep.mubr.bf16.mxu0 %v2698
    %5222 = vmatmul.mubr.bf16.gmra.mxu0 %v2695
    %v5223 = vpop.f32.mrf.mxu0
    %v5224 = vadd.f32 %v5181, %v5223
    %v5225 = vpop.f32.mrf.mxu0
    %v5226 = vadd.f32 %v5183, %v5225
    %v5227 = vpop.f32.mrf.mxu0
    %v5228 = vadd.f32 %v5185, %v5227
    %v5229 = vpop.f32.mrf.mxu0
    %v5230 = vadd.f32 %v5187, %v5229
    %5231 = vdwg.mxu0
    %5232 = vmatprep.subr.bf16.mxu0 %v4598
    %5233 = vmatpush1.bf16.msra.mxu0 %v4597
    %5234 = vmatprep.subr.bf16.mxu0 %v4594
    %5235 = vmatpush1.bf16.msra.mxu0 %v4593
    %5236 = vmatprep.subr.bf16.mxu0 %v4590
    %5237 = vmatpush1.bf16.msra.mxu0 %v4589
    %5238 = vmatprep.subr.bf16.mxu0 %v4586
    %5239 = vmatpush1.bf16.msra.mxu0 %v4585
    %5240 = vmatprep.subr.bf16.mxu0 %v4582
    %5241 = vmatpush1.bf16.msra.mxu0 %v4581
    %5242 = vmatprep.subr.bf16.mxu0 %v4578
    %5243 = vmatpush1.bf16.msra.mxu0 %v4577
    %5244 = vmatprep.subr.bf16.mxu0 %v4574
    %5245 = vmatpush1.bf16.msra.mxu0 %v4573
    %5246 = vmatprep.subr.bf16.mxu0 %v4570
    %5247 = vmatpush1.bf16.msra.mxu0 %v4569
    %5248 = vmatprep.subr.bf16.mxu0 %v4630
    %5249 = vmatpush2.bf16.msra.mxu0 %v4629
    %5250 = vmatprep.subr.bf16.mxu0 %v4626
    %5251 = vmatpush2.bf16.msra.mxu0 %v4625
    %5252 = vmatprep.subr.bf16.mxu0 %v4622
    %5253 = vmatpush2.bf16.msra.mxu0 %v4621
    %5254 = vmatprep.subr.bf16.mxu0 %v4618
    %5255 = vmatpush2.bf16.msra.mxu0 %v4617
    %5256 = vmatprep.subr.bf16.mxu0 %v4614
    %5257 = vmatpush2.bf16.msra.mxu0 %v4613
    %5258 = vmatprep.subr.bf16.mxu0 %v4610
    %5259 = vmatpush2.bf16.msra.mxu0 %v4609
    %5260 = vmatprep.subr.bf16.mxu0 %v4606
    %5261 = vmatpush2.bf16.msra.mxu0 %v4605
    %5262 = vmatprep.subr.bf16.mxu0 %v4602
    %5263 = vmatpush2.bf16.msra.mxu0 %v4601
    %5264 = vmatprep.mubr.bf16.mxu0 %v2704
    %5265 = vmatmul.mubr.bf16.gmra.mxu0 %v2701
    %v5266 = vpop.f32.mrf.mxu0
    %v5267 = vadd.f32 %v5224, %v5266
    %v5268 = vpop.f32.mrf.mxu0
    %v5269 = vadd.f32 %v5226, %v5268
    %v5270 = vpop.f32.mrf.mxu0
    %v5271 = vadd.f32 %v5228, %v5270
    %v5272 = vpop.f32.mrf.mxu0
    %v5273 = vadd.f32 %v5230, %v5272
    %5274 = vdwg.mxu0
    %5275 = vmatprep.subr.bf16.mxu0 %v4280
    %5276 = vmatpush1.bf16.msra.mxu0 %v4279
    %5277 = vmatprep.subr.bf16.mxu0 %v4276
    %5278 = vmatpush1.bf16.msra.mxu0 %v4275
    %5279 = vmatprep.subr.bf16.mxu0 %v4272
    %5280 = vmatpush1.bf16.msra.mxu0 %v4271
    %5281 = vmatprep.subr.bf16.mxu0 %v4268
    %5282 = vmatpush1.bf16.msra.mxu0 %v4267
    %5283 = vmatprep.subr.bf16.mxu0 %v4264
    %5284 = vmatpush1.bf16.msra.mxu0 %v4263
    %5285 = vmatprep.subr.bf16.mxu0 %v4260
    %5286 = vmatpush1.bf16.msra.mxu0 %v4259
    %5287 = vmatprep.subr.bf16.mxu0 %v4256
    %5288 = vmatpush1.bf16.msra.mxu0 %v4255
    %5289 = vmatprep.subr.bf16.mxu0 %v4252
    %5290 = vmatpush1.bf16.msra.mxu0 %v4251
    %5291 = vmatprep.subr.bf16.mxu0 %v4312
    %5292 = vmatpush2.bf16.msra.mxu0 %v4311
    %5293 = vmatprep.subr.bf16.mxu0 %v4308
    %5294 = vmatpush2.bf16.msra.mxu0 %v4307
    %5295 = vmatprep.subr.bf16.mxu0 %v4304
    %5296 = vmatpush2.bf16.msra.mxu0 %v4303
    %5297 = vmatprep.subr.bf16.mxu0 %v4300
    %5298 = vmatpush2.bf16.msra.mxu0 %v4299
    %5299 = vmatprep.subr.bf16.mxu0 %v4296
    %5300 = vmatpush2.bf16.msra.mxu0 %v4295
    %5301 = vmatprep.subr.bf16.mxu0 %v4292
    %5302 = vmatpush2.bf16.msra.mxu0 %v4291
    %5303 = vmatprep.subr.bf16.mxu0 %v4288
    %5304 = vmatpush2.bf16.msra.mxu0 %v4287
    %5305 = vmatprep.subr.bf16.mxu0 %v4284
    %5306 = vmatpush2.bf16.msra.mxu0 %v4283
    %5307 = vmatprep.mubr.bf16.mxu0 %v2628
    %5308 = vmatmul.mubr.bf16.gmra.mxu0 %v2627
    %v5309 = vpop.f32.mrf.mxu0
    %v5310 = vadd.f32 0.0, %v5309
    %v5311 = vpop.f32.mrf.mxu0
    %v5312 = vadd.f32 0.0, %v5311
    %v5313 = vpop.f32.mrf.mxu0
    %v5314 = vadd.f32 0.0, %v5313
    %v5315 = vpop.f32.mrf.mxu0
    %v5316 = vadd.f32 0.0, %v5315
    %5317 = vdwg.mxu0
    %5318 = vmatprep.subr.bf16.mxu0 %v4344
    %5319 = vmatpush1.bf16.msra.mxu0 %v4343
    %5320 = vmatprep.subr.bf16.mxu0 %v4340
    %5321 = vmatpush1.bf16.msra.mxu0 %v4339
    %5322 = vmatprep.subr.bf16.mxu0 %v4336
    %5323 = vmatpush1.bf16.msra.mxu0 %v4335
    %5324 = vmatprep.subr.bf16.mxu0 %v4332
    %5325 = vmatpush1.bf16.msra.mxu0 %v4331
    %5326 = vmatprep.subr.bf16.mxu0 %v4328
    %5327 = vmatpush1.bf16.msra.mxu0 %v4327
    %5328 = vmatprep.subr.bf16.mxu0 %v4324
    %5329 = vmatpush1.bf16.msra.mxu0 %v4323
    %5330 = vmatprep.subr.bf16.mxu0 %v4320
    %5331 = vmatpush1.bf16.msra.mxu0 %v4319
    %5332 = vmatprep.subr.bf16.mxu0 %v4316
    %5333 = vmatpush1.bf16.msra.mxu0 %v4315
    %5334 = vmatprep.subr.bf16.mxu0 %v4376
    %5335 = vmatpush2.bf16.msra.mxu0 %v4375
    %5336 = vmatprep.subr.bf16.mxu0 %v4372
    %5337 = vmatpush2.bf16.msra.mxu0 %v4371
    %5338 = vmatprep.subr.bf16.mxu0 %v4368
    %5339 = vmatpush2.bf16.msra.mxu0 %v4367
    %5340 = vmatprep.subr.bf16.mxu0 %v4364
    %5341 = vmatpush2.bf16.msra.mxu0 %v4363
    %5342 = vmatprep.subr.bf16.mxu0 %v4360
    %5343 = vmatpush2.bf16.msra.mxu0 %v4359
    %5344 = vmatprep.subr.bf16.mxu0 %v4356
    %5345 = vmatpush2.bf16.msra.mxu0 %v4355
    %5346 = vmatprep.subr.bf16.mxu0 %v4352
    %5347 = vmatpush2.bf16.msra.mxu0 %v4351
    %5348 = vmatprep.subr.bf16.mxu0 %v4348
    %5349 = vmatpush2.bf16.msra.mxu0 %v4347
    %5350 = vmatprep.mubr.bf16.mxu0 %v2630
    %5351 = vmatmul.mubr.bf16.gmra.mxu0 %v2629
    %v5352 = vpop.f32.mrf.mxu0
    %v5353 = vadd.f32 %v5310, %v5352
    %v5354 = vpop.f32.mrf.mxu0
    %v5355 = vadd.f32 %v5312, %v5354
    %v5356 = vpop.f32.mrf.mxu0
    %v5357 = vadd.f32 %v5314, %v5356
    %v5358 = vpop.f32.mrf.mxu0
    %v5359 = vadd.f32 %v5316, %v5358
    %5360 = vdwg.mxu0
    %5361 = vmatprep.subr.bf16.mxu0 %v4408
    %5362 = vmatpush1.bf16.msra.mxu0 %v4407
    %5363 = vmatprep.subr.bf16.mxu0 %v4404
    %5364 = vmatpush1.bf16.msra.mxu0 %v4403
    %5365 = vmatprep.subr.bf16.mxu0 %v4400
    %5366 = vmatpush1.bf16.msra.mxu0 %v4399
    %5367 = vmatprep.subr.bf16.mxu0 %v4396
    %5368 = vmatpush1.bf16.msra.mxu0 %v4395
    %5369 = vmatprep.subr.bf16.mxu0 %v4392
    %5370 = vmatpush1.bf16.msra.mxu0 %v4391
    %5371 = vmatprep.subr.bf16.mxu0 %v4388
    %5372 = vmatpush1.bf16.msra.mxu0 %v4387
    %5373 = vmatprep.subr.bf16.mxu0 %v4384
    %5374 = vmatpush1.bf16.msra.mxu0 %v4383
    %5375 = vmatprep.subr.bf16.mxu0 %v4380
    %5376 = vmatpush1.bf16.msra.mxu0 %v4379
    %5377 = vmatprep.subr.bf16.mxu0 %v4440
    %5378 = vmatpush2.bf16.msra.mxu0 %v4439
    %5379 = vmatprep.subr.bf16.mxu0 %v4436
    %5380 = vmatpush2.bf16.msra.mxu0 %v4435
    %5381 = vmatprep.subr.bf16.mxu0 %v4432
    %5382 = vmatpush2.bf16.msra.mxu0 %v4431
    %5383 = vmatprep.subr.bf16.mxu0 %v4428
    %5384 = vmatpush2.bf16.msra.mxu0 %v4427
    %5385 = vmatprep.subr.bf16.mxu0 %v4424
    %5386 = vmatpush2.bf16.msra.mxu0 %v4423
    %5387 = vmatprep.subr.bf16.mxu0 %v4420
    %5388 = vmatpush2.bf16.msra.mxu0 %v4419
    %5389 = vmatprep.subr.bf16.mxu0 %v4416
    %5390 = vmatpush2.bf16.msra.mxu0 %v4415
    %5391 = vmatprep.subr.bf16.mxu0 %v4412
    %5392 = vmatpush2.bf16.msra.mxu0 %v4411
    %5393 = vmatprep.mubr.bf16.mxu0 %v2661
    %5394 = vmatmul.mubr.bf16.gmra.mxu0 %v2658
    %v5395 = vpop.f32.mrf.mxu0
    %v5396 = vadd.f32 %v5353, %v5395
    %v5397 = vpop.f32.mrf.mxu0
    %v5398 = vadd.f32 %v5355, %v5397
    %v5399 = vpop.f32.mrf.mxu0
    %v5400 = vadd.f32 %v5357, %v5399
    %v5401 = vpop.f32.mrf.mxu0
    %v5402 = vadd.f32 %v5359, %v5401
    %5403 = vdwg.mxu0
    %5404 = vmatprep.subr.bf16.mxu0 %v4472
    %5405 = vmatpush1.bf16.msra.mxu0 %v4471
    %5406 = vmatprep.subr.bf16.mxu0 %v4468
    %5407 = vmatpush1.bf16.msra.mxu0 %v4467
    %5408 = vmatprep.subr.bf16.mxu0 %v4464
    %5409 = vmatpush1.bf16.msra.mxu0 %v4463
    %5410 = vmatprep.subr.bf16.mxu0 %v4460
    %5411 = vmatpush1.bf16.msra.mxu0 %v4459
    %5412 = vmatprep.subr.bf16.mxu0 %v4456
    %5413 = vmatpush1.bf16.msra.mxu0 %v4455
    %5414 = vmatprep.subr.bf16.mxu0 %v4452
    %5415 = vmatpush1.bf16.msra.mxu0 %v4451
    %5416 = vmatprep.subr.bf16.mxu0 %v4448
    %5417 = vmatpush1.bf16.msra.mxu0 %v4447
    %5418 = vmatprep.subr.bf16.mxu0 %v4444
    %5419 = vmatpush1.bf16.msra.mxu0 %v4443
    %5420 = vmatprep.subr.bf16.mxu0 %v4504
    %5421 = vmatpush2.bf16.msra.mxu0 %v4503
    %5422 = vmatprep.subr.bf16.mxu0 %v4500
    %5423 = vmatpush2.bf16.msra.mxu0 %v4499
    %5424 = vmatprep.subr.bf16.mxu0 %v4496
    %5425 = vmatpush2.bf16.msra.mxu0 %v4495
    %5426 = vmatprep.subr.bf16.mxu0 %v4492
    %5427 = vmatpush2.bf16.msra.mxu0 %v4491
    %5428 = vmatprep.subr.bf16.mxu0 %v4488
    %5429 = vmatpush2.bf16.msra.mxu0 %v4487
    %5430 = vmatprep.subr.bf16.mxu0 %v4484
    %5431 = vmatpush2.bf16.msra.mxu0 %v4483
    %5432 = vmatprep.subr.bf16.mxu0 %v4480
    %5433 = vmatpush2.bf16.msra.mxu0 %v4479
    %5434 = vmatprep.subr.bf16.mxu0 %v4476
    %5435 = vmatpush2.bf16.msra.mxu0 %v4475
    %5436 = vmatprep.mubr.bf16.mxu0 %v2667
    %5437 = vmatmul.mubr.bf16.gmra.mxu0 %v2664
    %v5438 = vpop.f32.mrf.mxu0
    %v5439 = vadd.f32 %v5396, %v5438
    %v5440 = vpop.f32.mrf.mxu0
    %v5441 = vadd.f32 %v5398, %v5440
    %v5442 = vpop.f32.mrf.mxu0
    %v5443 = vadd.f32 %v5400, %v5442
    %v5444 = vpop.f32.mrf.mxu0
    %v5445 = vadd.f32 %v5402, %v5444
    %5446 = vdwg.mxu0
    %5447 = vmatprep.subr.bf16.mxu0 %v4536
    %5448 = vmatpush1.bf16.msra.mxu0 %v4535
    %5449 = vmatprep.subr.bf16.mxu0 %v4532
    %5450 = vmatpush1.bf16.msra.mxu0 %v4531
    %5451 = vmatprep.subr.bf16.mxu0 %v4528
    %5452 = vmatpush1.bf16.msra.mxu0 %v4527
    %5453 = vmatprep.subr.bf16.mxu0 %v4524
    %5454 = vmatpush1.bf16.msra.mxu0 %v4523
    %5455 = vmatprep.subr.bf16.mxu0 %v4520
    %5456 = vmatpush1.bf16.msra.mxu0 %v4519
    %5457 = vmatprep.subr.bf16.mxu0 %v4516
    %5458 = vmatpush1.bf16.msra.mxu0 %v4515
    %5459 = vmatprep.subr.bf16.mxu0 %v4512
    %5460 = vmatpush1.bf16.msra.mxu0 %v4511
    %5461 = vmatprep.subr.bf16.mxu0 %v4508
    %5462 = vmatpush1.bf16.msra.mxu0 %v4507
    %5463 = vmatprep.subr.bf16.mxu0 %v4568
    %5464 = vmatpush2.bf16.msra.mxu0 %v4567
    %5465 = vmatprep.subr.bf16.mxu0 %v4564
    %5466 = vmatpush2.bf16.msra.mxu0 %v4563
    %5467 = vmatprep.subr.bf16.mxu0 %v4560
    %5468 = vmatpush2.bf16.msra.mxu0 %v4559
    %5469 = vmatprep.subr.bf16.mxu0 %v4556
    %5470 = vmatpush2.bf16.msra.mxu0 %v4555
    %5471 = vmatprep.subr.bf16.mxu0 %v4552
    %5472 = vmatpush2.bf16.msra.mxu0 %v4551
    %5473 = vmatprep.subr.bf16.mxu0 %v4548
    %5474 = vmatpush2.bf16.msra.mxu0 %v4547
    %5475 = vmatprep.subr.bf16.mxu0 %v4544
    %5476 = vmatpush2.bf16.msra.mxu0 %v4543
    %5477 = vmatprep.subr.bf16.mxu0 %v4540
    %5478 = vmatpush2.bf16.msra.mxu0 %v4539
    %5479 = vmatprep.mubr.bf16.mxu0 %v2698
    %5480 = vmatmul.mubr.bf16.gmra.mxu0 %v2695
    %v5481 = vpop.f32.mrf.mxu0
    %v5482 = vadd.f32 %v5439, %v5481
    %v5483 = vpop.f32.mrf.mxu0
    %v5484 = vadd.f32 %v5441, %v5483
    %v5485 = vpop.f32.mrf.mxu0
    %v5486 = vadd.f32 %v5443, %v5485
    %v5487 = vpop.f32.mrf.mxu0
    %v5488 = vadd.f32 %v5445, %v5487
    %5489 = vdwg.mxu0
    %5490 = vmatprep.subr.bf16.mxu0 %v4600
    %5491 = vmatpush1.bf16.msra.mxu0 %v4599
    %5492 = vmatprep.subr.bf16.mxu0 %v4596
    %5493 = vmatpush1.bf16.msra.mxu0 %v4595
    %5494 = vmatprep.subr.bf16.mxu0 %v4592
    %5495 = vmatpush1.bf16.msra.mxu0 %v4591
    %5496 = vmatprep.subr.bf16.mxu0 %v4588
    %5497 = vmatpush1.bf16.msra.mxu0 %v4587
    %5498 = vmatprep.subr.bf16.mxu0 %v4584
    %5499 = vmatpush1.bf16.msra.mxu0 %v4583
    %5500 = vmatprep.subr.bf16.mxu0 %v4580
    %5501 = vmatpush1.bf16.msra.mxu0 %v4579
    %5502 = vmatprep.subr.bf16.mxu0 %v4576
    %5503 = vmatpush1.bf16.msra.mxu0 %v4575
    %5504 = vmatprep.subr.bf16.mxu0 %v4572
    %5505 = vmatpush1.bf16.msra.mxu0 %v4571
    %5506 = vmatprep.subr.bf16.mxu0 %v4632
    %5507 = vmatpush2.bf16.msra.mxu0 %v4631
    %5508 = vmatprep.subr.bf16.mxu0 %v4628
    %5509 = vmatpush2.bf16.msra.mxu0 %v4627
    %5510 = vmatprep.subr.bf16.mxu0 %v4624
    %5511 = vmatpush2.bf16.msra.mxu0 %v4623
    %5512 = vmatprep.subr.bf16.mxu0 %v4620
    %5513 = vmatpush2.bf16.msra.mxu0 %v4619
    %5514 = vmatprep.subr.bf16.mxu0 %v4616
    %5515 = vmatpush2.bf16.msra.mxu0 %v4615
    %5516 = vmatprep.subr.bf16.mxu0 %v4612
    %5517 = vmatpush2.bf16.msra.mxu0 %v4611
    %5518 = vmatprep.subr.bf16.mxu0 %v4608
    %5519 = vmatpush2.bf16.msra.mxu0 %v4607
    %5520 = vmatprep.subr.bf16.mxu0 %v4604
    %5521 = vmatpush2.bf16.msra.mxu0 %v4603
    %5522 = vmatprep.mubr.bf16.mxu0 %v2704
    %5523 = vmatmul.mubr.bf16.gmra.mxu0 %v2701
    %v5524 = vpop.f32.mrf.mxu0
    %v5525 = vadd.f32 %v5482, %v5524
    %v5526 = vpop.f32.mrf.mxu0
    %v5527 = vadd.f32 %v5484, %v5526
    %v5528 = vpop.f32.mrf.mxu0
    %v5529 = vadd.f32 %v5486, %v5528
    %v5530 = vpop.f32.mrf.mxu0
    %v5531 = vadd.f32 %v5488, %v5530
    %5532 = vdwg.mxu0
    %v5533 = vadd.f32 %v5267, %v5271
    %v5534 = vrot.slane %v5533, 4
    %v5535 = vadd.f32 %v5533, %v5534
    %v5536 = vrot.slane %v5535, 2
    %v5537 = vadd.f32 %v5535, %v5536
    %v5538 = vrot.slane %v5537, 1
    %v5539 = vadd.f32 %v5537, %v5538
    %v5540 = vadd.f32 %v5269, %v5273
    %v5541 = vrot.slane %v5540, 4
    %v5542 = vadd.f32 %v5540, %v5541
    %v5543 = vrot.slane %v5542, 2
    %v5544 = vadd.f32 %v5542, %v5543
    %v5545 = vrot.slane %v5544, 1
    %v5546 = vadd.f32 %v5544, %v5545
    %v5547 = vadd.f32 %v5525, %v5529
    %v5548 = vrot.slane %v5547, 4
    %v5549 = vadd.f32 %v5547, %v5548
    %v5550 = vrot.slane %v5549, 2
    %v5551 = vadd.f32 %v5549, %v5550
    %v5552 = vrot.slane %v5551, 1
    %v5553 = vadd.f32 %v5551, %v5552
    %v5554 = vadd.f32 %v5527, %v5531
    %v5555 = vrot.slane %v5554, 4
    %v5556 = vadd.f32 %v5554, %v5555
    %v5557 = vrot.slane %v5556, 2
    %v5558 = vadd.f32 %v5556, %v5557
    %v5559 = vrot.slane %v5558, 1
    %v5560 = vadd.f32 %v5558, %v5559
    %v5561 = vadd.f32 %v5539, %v5553
    %v5562 = vadd.f32 %v5546, %v5560
    %v5563 = vadd.f32 %v5561, %v5562
    %5565 = vrot.lane.b32.xlu0 %v5563, 64
    %v5566 = vpop.permute.xlu0 %5565
    %v5568 = vadd.f32 %v5563, %v5566
    %v5569 = vmul.f32 %v5568, 0.0078125
    %5571 = vrot.lane.b32.xlu0 %v5569, 64
    %v5572 = vpop.permute.xlu0 %5571
    %v5574 = vsel %vm1487, %v5569, %v5572
    %v5575 = vlaneseq
    %v5576 = vshrl.u32 %v5575, 7
    %v5577 = vsub.s32 0, %v5576
    %v5578 = vrot.slane %v5574, %v5577
    %v5579 = vsub.f32 %v5267, %v5578
    %v5580 = vsub.f32 %v5269, %v5578
    %v5581 = vsub.f32 %v5525, %v5578
    %v5582 = vsub.f32 %v5527, %v5578
    %v5583 = vsub.f32 %v5271, %v5578
    %v5584 = vsub.f32 %v5273, %v5578
    %v5585 = vsub.f32 %v5529, %v5578
    %v5586 = vsub.f32 %v5531, %v5578
    %v5587 = vmul.f32 %v5579, %v5579
    %v5588 = vmul.f32 %v5580, %v5580
    %v5589 = vmul.f32 %v5581, %v5581
    %v5590 = vmul.f32 %v5582, %v5582
    %v5591 = vmul.f32 %v5583, %v5583
    %v5592 = vmul.f32 %v5584, %v5584
    %v5593 = vmul.f32 %v5585, %v5585
    %v5594 = vmul.f32 %v5586, %v5586
    %v5595 = vadd.f32 %v5587, %v5591
    %v5596 = vrot.slane %v5595, 4
    %v5597 = vadd.f32 %v5595, %v5596
    %v5598 = vrot.slane %v5597, 2
    %v5599 = vadd.f32 %v5597, %v5598
    %v5600 = vrot.slane %v5599, 1
    %v5601 = vadd.f32 %v5599, %v5600
    %v5602 = vadd.f32 %v5588, %v5592
    %v5603 = vrot.slane %v5602, 4
    %v5604 = vadd.f32 %v5602, %v5603
    %v5605 = vrot.slane %v5604, 2
    %v5606 = vadd.f32 %v5604, %v5605
    %v5607 = vrot.slane %v5606, 1
    %v5608 = vadd.f32 %v5606, %v5607
    %v5609 = vadd.f32 %v5589, %v5593
    %v5610 = vrot.slane %v5609, 4
    %v5611 = vadd.f32 %v5609, %v5610
    %v5612 = vrot.slane %v5611, 2
    %v5613 = vadd.f32 %v5611, %v5612
    %v5614 = vrot.slane %v5613, 1
    %v5615 = vadd.f32 %v5613, %v5614
    %v5616 = vadd.f32 %v5590, %v5594
    %v5617 = vrot.slane %v5616, 4
    %v5618 = vadd.f32 %v5616, %v5617
    %v5619 = vrot.slane %v5618, 2
    %v5620 = vadd.f32 %v5618, %v5619
    %v5621 = vrot.slane %v5620, 1
    %v5622 = vadd.f32 %v5620, %v5621
    %v5623 = vadd.f32 %v5601, %v5615
    %v5624 = vadd.f32 %v5608, %v5622
    %v5625 = vadd.f32 %v5623, %v5624
    %5627 = vrot.lane.b32.xlu0 %v5625, 64
    %v5628 = vpop.permute.xlu0 %5627
    %v5630 = vadd.f32 %v5625, %v5628
    %v5631 = vmul.f32 %v5630, 0.0078125
    %v5632 = vld [vmem:[%s5 + $0x1] sm:$0x1]
    %v5633 = vadd.f32 %v5631, 1e-05
    %v5634 = vrsqrt.pop %v5633
    %v5635 = vmul.f32 %v5632, %v5634
    %5637 = vrot.lane.b32.xlu0 %v5635, 64
    %v5638 = vpop.permute.xlu0 %5637
    %v5640 = vsel %vm1487, %v5635, %v5638
    %v5641 = vld [vmem:[%s6 + $0x1] sm:$0x1]
    %5643 = vrot.lane.b32.xlu0 %v5641, 64
    %v5644 = vpop.permute.xlu0 %5643
    %v5646 = vsel %vm1487, %v5641, %v5644
    %v5647 = vlaneseq
    %v5648 = vshrl.u32 %v5647, 7
    %v5649 = vsub.s32 0, %v5648
    %v5650 = vrot.slane %v5640, %v5649
    %v5651 = vmul.f32 %v5579, %v5650
    %v5652 = vmul.f32 %v5580, %v5650
    %v5653 = vmul.f32 %v5581, %v5650
    %v5654 = vmul.f32 %v5582, %v5650
    %v5655 = vmul.f32 %v5583, %v5650
    %v5656 = vmul.f32 %v5584, %v5650
    %v5657 = vmul.f32 %v5585, %v5650
    %v5658 = vmul.f32 %v5586, %v5650
    %v5659 = vlaneseq
    %v5660 = vshrl.u32 %v5659, 7
    %v5661 = vsub.s32 0, %v5660
    %v5662 = vrot.slane %v5646, %v5661
    %v5663 = vadd.f32 %v5651, %v5662
    %v5664 = vadd.f32 %v5652, %v5662
    %v5665 = vadd.f32 %v5653, %v5662
    %v5666 = vadd.f32 %v5654, %v5662
    %v5667 = vadd.f32 %v5655, %v5662
    %v5668 = vadd.f32 %v5656, %v5662
    %v5669 = vadd.f32 %v5657, %v5662
    %v5670 = vadd.f32 %v5658, %v5662
    %v5671 = vmax.f32 %v5663, 0.0
    %v5672 = vmax.f32 %v5664, 0.0
    %v5673 = vmax.f32 %v5665, 0.0
    %v5674 = vmax.f32 %v5666, 0.0
    %v5675 = vmax.f32 %v5667, 0.0
    %v5676 = vmax.f32 %v5668, 0.0
    %v5677 = vmax.f32 %v5669, 0.0
    %v5678 = vmax.f32 %v5670, 0.0
    %5687 = vrot.lane.b32.xlu0 %v5671, 64
    %v5688 = vpop.permute.xlu0 %5687
    %5689 = vrot.lane.b32.xlu0 %v5672, 64
    %v5690 = vpop.permute.xlu0 %5689
    %5691 = vrot.lane.b32.xlu0 %v5673, 64
    %v5692 = vpop.permute.xlu0 %5691
    %5693 = vrot.lane.b32.xlu0 %v5674, 64
    %v5694 = vpop.permute.xlu0 %5693
    %5695 = vrot.lane.b32.xlu0 %v5675, 64
    %v5696 = vpop.permute.xlu0 %5695
    %5697 = vrot.lane.b32.xlu0 %v5676, 64
    %v5698 = vpop.permute.xlu0 %5697
    %5699 = vrot.lane.b32.xlu0 %v5677, 64
    %v5700 = vpop.permute.xlu0 %5699
    %5701 = vrot.lane.b32.xlu0 %v5678, 64
    %v5702 = vpop.permute.xlu0 %5701
    %v5703 = vsel %vm1487, %v5688, %v5690
    %v5704 = vsel %vm1487, %v5690, %v5692
    %v5705 = vsel %vm1487, %v5692, %v5694
    %v5706 = vsel %vm1487, %v5696, %v5698
    %v5707 = vsel %vm1487, %v5698, %v5700
    %v5708 = vsel %vm1487, %v5700, %v5702
    %v5717 = vmax.f32 %v5671, %v5703
    %v5718 = vmax.f32 %v5672, %v5704
    %v5719 = vmax.f32 %v5673, %v5705
    %v5720 = vmax.f32 %v5674, %v5694
    %v5721 = vmax.f32 %v5675, %v5706
    %v5722 = vmax.f32 %v5676, %v5707
    %v5723 = vmax.f32 %v5677, %v5708
    %v5724 = vmax.f32 %v5678, %v5702
    %5727 = vrot.lane.b32.xlu0 %v5718, 64
    %v5728 = vpop.permute.xlu0 %5727
    %5729 = vrot.lane.b32.xlu0 %v5722, 64
    %v5730 = vpop.permute.xlu0 %5729
    %5735 = vrot.lane.b32.xlu0 %v5720, 64
    %v5736 = vpop.permute.xlu0 %5735
    %5737 = vrot.lane.b32.xlu0 %v5724, 64
    %v5738 = vpop.permute.xlu0 %5737
    %v5741 = vsel %vm1487, %v5717, %v5728
    %v5742 = vsel %vm1487, %v5721, %v5730
    %v5743 = vsel %vm1487, %v5719, %v5736
    %v5744 = vsel %vm1487, %v5723, %v5738
    %v5745 = vld [vmem:[%s8] sm:$0xff]
    %v5746 = vld [vmem:[%s8 + $0x8] sm:$0xff]
    %vm5747 = vcmask 130048
    %v5749 = vsel %vm5747, %v5745, 0
    %v5752 = vsel %vm5747, %v5746, 0
    %5754 = vmatprep.subr.mxu0 0.0
    %5755 = vmatpush1.msra.mxu0 0.0
    %5756 = vmatprep.subr.mxu0 0.0
    %5757 = vmatpush1.msra.mxu0 0.0
    %5758 = vmatprep.subr.mxu0 0.0
    %5759 = vmatpush1.msra.mxu0 0.0
    %5760 = vmatprep.subr.mxu0 0.0
    %5761 = vmatpush1.msra.mxu0 0.0
    %5762 = vmatprep.subr.mxu0 0.0
    %5763 = vmatpush1.msra.mxu0 0.0
    %5764 = vmatprep.subr.mxu0 0.0
    %5765 = vmatpush1.msra.mxu0 0.0
    %5766 = vmatprep.subr.mxu0 0.0
    %5767 = vmatpush1.msra.mxu0 0.0
    %5768 = vmatprep.subr.mxu0 0.0
    %5769 = vmatpush1.msra.mxu0 0.0
    %5770 = vmatprep.subr.mxu0 0.0
    %5771 = vmatpush1.msra.mxu0 0.0
    %5772 = vmatprep.subr.mxu0 0.0
    %5773 = vmatpush1.msra.mxu0 0.0
    %5774 = vmatprep.subr.mxu0 0.0
    %5775 = vmatpush1.msra.mxu0 0.0
    %5776 = vmatprep.subr.mxu0 0.0
    %5777 = vmatpush1.msra.mxu0 0.0
    %5778 = vmatprep.subr.mxu0 0.0
    %5779 = vmatpush1.msra.mxu0 0.0
    %5780 = vmatprep.subr.mxu0 0.0
    %5781 = vmatpush1.msra.mxu0 0.0
    %5782 = vmatprep.subr.mxu0 %v5744
    %5783 = vmatpush1.msra.mxu0 %v5742
    %5784 = vmatprep.subr.mxu0 %v5743
    %5785 = vmatpush1.msra.mxu0 %v5741
    %5786 = vmatprep.subr.mxu0 0.0
    %5787 = vmatpush2.msra.mxu0 0.0
    %5788 = vmatprep.subr.mxu0 0.0
    %5789 = vmatpush2.msra.mxu0 0.0
    %5790 = vmatprep.subr.mxu0 0.0
    %5791 = vmatpush2.msra.mxu0 0.0
    %5792 = vmatprep.subr.mxu0 0.0
    %5793 = vmatpush2.msra.mxu0 0.0
    %5794 = vmatprep.subr.mxu0 0.0
    %5795 = vmatpush2.msra.mxu0 0.0
    %5796 = vmatprep.subr.mxu0 0.0
    %5797 = vmatpush2.msra.mxu0 0.0
    %5798 = vmatprep.subr.mxu0 0.0
    %5799 = vmatpush2.msra.mxu0 0.0
    %5800 = vmatprep.subr.mxu0 0.0
    %5801 = vmatpush2.msra.mxu0 0.0
    %5802 = vmatprep.subr.mxu0 0.0
    %5803 = vmatpush2.msra.mxu0 0.0
    %5804 = vmatprep.subr.mxu0 0.0
    %5805 = vmatpush2.msra.mxu0 0.0
    %5806 = vmatprep.subr.mxu0 0.0
    %5807 = vmatpush2.msra.mxu0 0.0
    %5808 = vmatprep.subr.mxu0 0.0
    %5809 = vmatpush2.msra.mxu0 0.0
    %5810 = vmatprep.subr.mxu0 0.0
    %5811 = vmatpush2.msra.mxu0 0.0
    %5812 = vmatprep.subr.mxu0 0.0
    %5813 = vmatpush2.msra.mxu0 0.0
    %5814 = vmatprep.subr.mxu0 0.0
    %5815 = vmatpush2.msra.mxu0 0.0
    %5816 = vmatprep.subr.mxu0 0.0
    %5817 = vmatpush2.msra.mxu0 0.0
    %5818 = vmatprep.mubr.f32.mxu0 0.0
    %5819 = vmatmul.mubr.f32.gmra.mxu0 %v5749
    %v5820 = vpop.f32.mrf.mxu0
    %v5821 = vadd.f32 0.0, %v5820
    %v5822 = vpop.f32.mrf.mxu0
    %v5823 = vadd.f32 0.0, %v5822
    %5824 = vmatprep.mubr.f32.mxu0 0.0
    %5825 = vmatmul.mubr.f32.gmra.mxu0 %v5752
    %v5826 = vpop.f32.mrf.mxu0
    %v5827 = vadd.f32 0.0, %v5826
    %v5828 = vpop.f32.mrf.mxu0
    %v5829 = vadd.f32 0.0, %v5828
    %5830 = vdwg.mxu0
    %v5831 = vmax.f32 %v5821, %v5827
    %v5832 = vmax.f32 %v5823, %v5829
    %v5833 = vpack.c.bf16 %v5831, %v5831
    %v5834 = vpack.c.bf16 %v5832, %v5832
    %v5837 = vrot.slane %v5833, 7
    %v5838 = vrot.slane %v5834, 7
    %v5840 = vsel %vm2551, 0, %v5837
    %v5842 = vsel %vm2551, 0, %v5838
    %vm5843 = vcmask 1044480
    %v5844 = vsel %vm5843, %v5840, 0
    %v5845 = vsel %vm5843, %v5842, 0
    %v5848 = vunpack.c.l.b16 %v5844
    %v5849 = vunpack.c.l.b16 %v5845
    %v5850 = vunpack.c.h.b16 %v5844
    %v5851 = vunpack.c.h.b16 %v5845
    %v5852 = vpack.c.b16 %v5849, %v5848
    %v5853 = vpack.c.b16 %v5851, %v5850
    %5856 = vst [vmem:[#allocation7] sm:$0xff] %v5852
    %5857 = vst [vmem:[#allocation7 + $0x8] sm:$0x33] %v5853
    %v5858 = vld [vmem:[#allocation7] sm:$0xff]
    %v5859 = vld [vmem:[#allocation7] sm:$0xee]
    %v5860 = vld [vmem:[#allocation7 + $0x8] sm:$0x11]
    %v5861 = vld [vmem:[#allocation7] sm:$0xcc]
    %v5862 = vld [vmem:[#allocation7 + $0x8] sm:$0x33]
    %v5864 = vunpack.c.l.b16 %v5858
    %v5865 = vunpack.c.h.b16 %v5858
    %v5866 = vpack.c.b16 %v5864, %v5864
    %v5867 = vpack.c.b16 %v5865, %v5865
    %v5872 = vunpack.c.l.b16 %v5859
    %v5873 = vunpack.c.h.b16 %v5859
    %v5874 = vunpack.c.l.b16 %v5860
    %v5875 = vunpack.c.h.b16 %v5860
    %v5876 = vpack.c.b16 %v5874, %v5872
    %v5877 = vpack.c.b16 %v5875, %v5873
    %v5878 = vrot.slane %v5876, 1
    %v5879 = vrot.slane %v5877, 1
    %v5884 = vunpack.c.l.b16 %v5861
    %v5885 = vunpack.c.h.b16 %v5861
    %v5886 = vunpack.c.l.b16 %v5862
    %v5887 = vunpack.c.h.b16 %v5862
    %v5888 = vpack.c.b16 %v5886, %v5884
    %v5889 = vpack.c.b16 %v5887, %v5885
    %v5890 = vrot.slane %v5888, 2
    %v5891 = vrot.slane %v5889, 2
    %s5894 = smul.u32 4, 96
    %s5895 = smul.u32 %s5894, 2
    %s5896 = sshll.u32 %s5895, 4
    %5897 = dma.done %s953, %s5896
    %v5898 = vld [vmem:[#allocation4] sm:$0xff]
    %v5899 = vld [vmem:[#allocation4 + $0x8] sm:$0xff]
    %v5900 = vld [vmem:[#allocation4 + $0x10] sm:$0xff]
    %v5901 = vld [vmem:[#allocation4 + $0x18] sm:$0xff]
    %v5902 = vld [vmem:[#allocation4 + $0x20] sm:$0xff]
    %v5903 = vld [vmem:[#allocation4 + $0x28] sm:$0xff]
    %v5904 = vld [vmem:[#allocation4 + $0x30] sm:$0xff]
    %v5905 = vld [vmem:[#allocation4 + $0x38] sm:$0xff]
    %v5906 = vld [vmem:[#allocation4 + $0x40] sm:$0xff]
    %v5907 = vld [vmem:[#allocation4 + $0x48] sm:$0xff]
    %v5908 = vld [vmem:[#allocation4 + $0x50] sm:$0xff]
    %v5909 = vld [vmem:[#allocation4 + $0x58] sm:$0xff]
    %v5910 = vld [vmem:[#allocation4 + $0x60] sm:$0xff]
    %v5911 = vld [vmem:[#allocation4 + $0x68] sm:$0xff]
    %v5912 = vld [vmem:[#allocation4 + $0x70] sm:$0xff]
    %v5913 = vld [vmem:[#allocation4 + $0x78] sm:$0xff]
    %v5914 = vld [vmem:[#allocation4 + $0x80] sm:$0xff]
    %v5915 = vld [vmem:[#allocation4 + $0x88] sm:$0xff]
    %v5916 = vld [vmem:[#allocation4 + $0x90] sm:$0xff]
    %v5917 = vld [vmem:[#allocation4 + $0x98] sm:$0xff]
    %v5918 = vld [vmem:[#allocation4 + $0xa0] sm:$0xff]
    %v5919 = vld [vmem:[#allocation4 + $0xa8] sm:$0xff]
    %v5920 = vld [vmem:[#allocation4 + $0xb0] sm:$0xff]
    %v5921 = vld [vmem:[#allocation4 + $0xb8] sm:$0xff]
    %v5922 = vld [vmem:[#allocation4 + $0xc0] sm:$0xff]
    %v5923 = vld [vmem:[#allocation4 + $0xc8] sm:$0xff]
    %v5924 = vld [vmem:[#allocation4 + $0xd0] sm:$0xff]
    %v5925 = vld [vmem:[#allocation4 + $0xd8] sm:$0xff]
    %v5926 = vld [vmem:[#allocation4 + $0xe0] sm:$0xff]
    %v5927 = vld [vmem:[#allocation4 + $0xe8] sm:$0xff]
    %v5928 = vld [vmem:[#allocation4 + $0xf0] sm:$0xff]
    %v5929 = vld [vmem:[#allocation4 + $0xf8] sm:$0xff]
    %v5930 = vld [vmem:[#allocation4 + $0x100] sm:$0xff]
    %v5931 = vld [vmem:[#allocation4 + $0x108] sm:$0xff]
    %v5932 = vld [vmem:[#allocation4 + $0x110] sm:$0xff]
    %v5933 = vld [vmem:[#allocation4 + $0x118] sm:$0xff]
    %v5934 = vld [vmem:[#allocation4 + $0x120] sm:$0xff]
    %v5935 = vld [vmem:[#allocation4 + $0x128] sm:$0xff]
    %v5936 = vld [vmem:[#allocation4 + $0x130] sm:$0xff]
    %v5937 = vld [vmem:[#allocation4 + $0x138] sm:$0xff]
    %v5938 = vld [vmem:[#allocation4 + $0x140] sm:$0xff]
    %v5939 = vld [vmem:[#allocation4 + $0x148] sm:$0xff]
    %v5940 = vld [vmem:[#allocation4 + $0x150] sm:$0xff]
    %v5941 = vld [vmem:[#allocation4 + $0x158] sm:$0xff]
    %v5942 = vld [vmem:[#allocation4 + $0x160] sm:$0xff]
    %v5943 = vld [vmem:[#allocation4 + $0x168] sm:$0xff]
    %v5944 = vld [vmem:[#allocation4 + $0x170] sm:$0xff]
    %v5945 = vld [vmem:[#allocation4 + $0x178] sm:$0xff]
    %v5946 = vld [vmem:[#allocation4 + $0x180] sm:$0xff]
    %v5947 = vld [vmem:[#allocation4 + $0x188] sm:$0xff]
    %v5948 = vld [vmem:[#allocation4 + $0x190] sm:$0xff]
    %v5949 = vld [vmem:[#allocation4 + $0x198] sm:$0xff]
    %v5950 = vld [vmem:[#allocation4 + $0x1a0] sm:$0xff]
    %v5951 = vld [vmem:[#allocation4 + $0x1a8] sm:$0xff]
    %v5952 = vld [vmem:[#allocation4 + $0x1b0] sm:$0xff]
    %v5953 = vld [vmem:[#allocation4 + $0x1b8] sm:$0xff]
    %v5954 = vld [vmem:[#allocation4 + $0x1c0] sm:$0xff]
    %v5955 = vld [vmem:[#allocation4 + $0x1c8] sm:$0xff]
    %v5956 = vld [vmem:[#allocation4 + $0x1d0] sm:$0xff]
    %v5957 = vld [vmem:[#allocation4 + $0x1d8] sm:$0xff]
    %v5958 = vld [vmem:[#allocation4 + $0x1e0] sm:$0xff]
    %v5959 = vld [vmem:[#allocation4 + $0x1e8] sm:$0xff]
    %v5960 = vld [vmem:[#allocation4 + $0x1f0] sm:$0xff]
    %v5961 = vld [vmem:[#allocation4 + $0x1f8] sm:$0xff]
    %v5962 = vld [vmem:[#allocation4 + $0x200] sm:$0xff]
    %v5963 = vld [vmem:[#allocation4 + $0x208] sm:$0xff]
    %v5964 = vld [vmem:[#allocation4 + $0x210] sm:$0xff]
    %v5965 = vld [vmem:[#allocation4 + $0x218] sm:$0xff]
    %v5966 = vld [vmem:[#allocation4 + $0x220] sm:$0xff]
    %v5967 = vld [vmem:[#allocation4 + $0x228] sm:$0xff]
    %v5968 = vld [vmem:[#allocation4 + $0x230] sm:$0xff]
    %v5969 = vld [vmem:[#allocation4 + $0x238] sm:$0xff]
    %v5970 = vld [vmem:[#allocation4 + $0x240] sm:$0xff]
    %v5971 = vld [vmem:[#allocation4 + $0x248] sm:$0xff]
    %v5972 = vld [vmem:[#allocation4 + $0x250] sm:$0xff]
    %v5973 = vld [vmem:[#allocation4 + $0x258] sm:$0xff]
    %v5974 = vld [vmem:[#allocation4 + $0x260] sm:$0xff]
    %v5975 = vld [vmem:[#allocation4 + $0x268] sm:$0xff]
    %v5976 = vld [vmem:[#allocation4 + $0x270] sm:$0xff]
    %v5977 = vld [vmem:[#allocation4 + $0x278] sm:$0xff]
    %v5978 = vld [vmem:[#allocation4 + $0x280] sm:$0xff]
    %v5979 = vld [vmem:[#allocation4 + $0x288] sm:$0xff]
    %v5980 = vld [vmem:[#allocation4 + $0x290] sm:$0xff]
    %v5981 = vld [vmem:[#allocation4 + $0x298] sm:$0xff]
    %v5982 = vld [vmem:[#allocation4 + $0x2a0] sm:$0xff]
    %v5983 = vld [vmem:[#allocation4 + $0x2a8] sm:$0xff]
    %v5984 = vld [vmem:[#allocation4 + $0x2b0] sm:$0xff]
    %v5985 = vld [vmem:[#allocation4 + $0x2b8] sm:$0xff]
    %v5986 = vld [vmem:[#allocation4 + $0x2c0] sm:$0xff]
    %v5987 = vld [vmem:[#allocation4 + $0x2c8] sm:$0xff]
    %v5988 = vld [vmem:[#allocation4 + $0x2d0] sm:$0xff]
    %v5989 = vld [vmem:[#allocation4 + $0x2d8] sm:$0xff]
    %v5990 = vld [vmem:[#allocation4 + $0x2e0] sm:$0xff]
    %v5991 = vld [vmem:[#allocation4 + $0x2e8] sm:$0xff]
    %v5992 = vld [vmem:[#allocation4 + $0x2f0] sm:$0xff]
    %v5993 = vld [vmem:[#allocation4 + $0x2f8] sm:$0xff]
    %v6090 = vunpack.c.l.b16 %v5898
    %v6091 = vunpack.c.h.b16 %v5898
    %v6092 = vunpack.c.l.b16 %v5899
    %v6093 = vunpack.c.h.b16 %v5899
    %v6094 = vunpack.c.l.b16 %v5900
    %v6095 = vunpack.c.h.b16 %v5900
    %v6096 = vunpack.c.l.b16 %v5901
    %v6097 = vunpack.c.h.b16 %v5901
    %v6098 = vunpack.c.l.b16 %v5902
    %v6099 = vunpack.c.h.b16 %v5902
    %v6100 = vunpack.c.l.b16 %v5903
    %v6101 = vunpack.c.h.b16 %v5903
    %v6102 = vunpack.c.l.b16 %v5904
    %v6103 = vunpack.c.h.b16 %v5904
    %v6104 = vunpack.c.l.b16 %v5905
    %v6105 = vunpack.c.h.b16 %v5905
    %v6106 = vunpack.c.l.b16 %v5906
    %v6107 = vunpack.c.h.b16 %v5906
    %v6108 = vunpack.c.l.b16 %v5907
    %v6109 = vunpack.c.h.b16 %v5907
    %v6110 = vunpack.c.l.b16 %v5908
    %v6111 = vunpack.c.h.b16 %v5908
    %v6112 = vunpack.c.l.b16 %v5909
    %v6113 = vunpack.c.h.b16 %v5909
    %v6114 = vunpack.c.l.b16 %v5910
    %v6115 = vunpack.c.h.b16 %v5910
    %v6116 = vunpack.c.l.b16 %v5911
    %v6117 = vunpack.c.h.b16 %v5911
    %v6118 = vunpack.c.l.b16 %v5912
    %v6119 = vunpack.c.h.b16 %v5912
    %v6120 = vunpack.c.l.b16 %v5913
    %v6121 = vunpack.c.h.b16 %v5913
    %v6122 = vunpack.c.l.b16 %v5914
    %v6123 = vunpack.c.h.b16 %v5914
    %v6124 = vunpack.c.l.b16 %v5915
    %v6125 = vunpack.c.h.b16 %v5915
    %v6126 = vunpack.c.l.b16 %v5916
    %v6127 = vunpack.c.h.b16 %v5916
    %v6128 = vunpack.c.l.b16 %v5917
    %v6129 = vunpack.c.h.b16 %v5917
    %v6130 = vunpack.c.l.b16 %v5918
    %v6131 = vunpack.c.h.b16 %v5918
    %v6132 = vunpack.c.l.b16 %v5919
    %v6133 = vunpack.c.h.b16 %v5919
    %v6134 = vunpack.c.l.b16 %v5920
    %v6135 = vunpack.c.h.b16 %v5920
    %v6136 = vunpack.c.l.b16 %v5921
    %v6137 = vunpack.c.h.b16 %v5921
    %v6138 = vunpack.c.l.b16 %v5922
    %v6139 = vunpack.c.h.b16 %v5922
    %v6140 = vunpack.c.l.b16 %v5923
    %v6141 = vunpack.c.h.b16 %v5923
    %v6142 = vunpack.c.l.b16 %v5924
    %v6143 = vunpack.c.h.b16 %v5924
    %v6144 = vunpack.c.l.b16 %v5925
    %v6145 = vunpack.c.h.b16 %v5925
    %v6146 = vunpack.c.l.b16 %v5926
    %v6147 = vunpack.c.h.b16 %v5926
    %v6148 = vunpack.c.l.b16 %v5927
    %v6149 = vunpack.c.h.b16 %v5927
    %v6150 = vunpack.c.l.b16 %v5928
    %v6151 = vunpack.c.h.b16 %v5928
    %v6152 = vunpack.c.l.b16 %v5929
    %v6153 = vunpack.c.h.b16 %v5929
    %v6154 = vunpack.c.l.b16 %v5930
    %v6155 = vunpack.c.h.b16 %v5930
    %v6156 = vunpack.c.l.b16 %v5931
    %v6157 = vunpack.c.h.b16 %v5931
    %v6158 = vunpack.c.l.b16 %v5932
    %v6159 = vunpack.c.h.b16 %v5932
    %v6160 = vunpack.c.l.b16 %v5933
    %v6161 = vunpack.c.h.b16 %v5933
    %v6162 = vunpack.c.l.b16 %v5934
    %v6163 = vunpack.c.h.b16 %v5934
    %v6164 = vunpack.c.l.b16 %v5935
    %v6165 = vunpack.c.h.b16 %v5935
    %v6166 = vunpack.c.l.b16 %v5936
    %v6167 = vunpack.c.h.b16 %v5936
    %v6168 = vunpack.c.l.b16 %v5937
    %v6169 = vunpack.c.h.b16 %v5937
    %v6170 = vunpack.c.l.b16 %v5938
    %v6171 = vunpack.c.h.b16 %v5938
    %v6172 = vunpack.c.l.b16 %v5939
    %v6173 = vunpack.c.h.b16 %v5939
    %v6174 = vunpack.c.l.b16 %v5940
    %v6175 = vunpack.c.h.b16 %v5940
    %v6176 = vunpack.c.l.b16 %v5941
    %v6177 = vunpack.c.h.b16 %v5941
    %v6178 = vunpack.c.l.b16 %v5942
    %v6179 = vunpack.c.h.b16 %v5942
    %v6180 = vunpack.c.l.b16 %v5943
    %v6181 = vunpack.c.h.b16 %v5943
    %v6182 = vunpack.c.l.b16 %v5944
    %v6183 = vunpack.c.h.b16 %v5944
    %v6184 = vunpack.c.l.b16 %v5945
    %v6185 = vunpack.c.h.b16 %v5945
    %v6186 = vunpack.c.l.b16 %v5946
    %v6187 = vunpack.c.h.b16 %v5946
    %v6188 = vunpack.c.l.b16 %v5947
    %v6189 = vunpack.c.h.b16 %v5947
    %v6190 = vunpack.c.l.b16 %v5948
    %v6191 = vunpack.c.h.b16 %v5948
    %v6192 = vunpack.c.l.b16 %v5949
    %v6193 = vunpack.c.h.b16 %v5949
    %v6194 = vunpack.c.l.b16 %v5950
    %v6195 = vunpack.c.h.b16 %v5950
    %v6196 = vunpack.c.l.b16 %v5951
    %v6197 = vunpack.c.h.b16 %v5951
    %v6198 = vunpack.c.l.b16 %v5952
    %v6199 = vunpack.c.h.b16 %v5952
    %v6200 = vunpack.c.l.b16 %v5953
    %v6201 = vunpack.c.h.b16 %v5953
    %v6202 = vunpack.c.l.b16 %v5954
    %v6203 = vunpack.c.h.b16 %v5954
    %v6204 = vunpack.c.l.b16 %v5955
    %v6205 = vunpack.c.h.b16 %v5955
    %v6206 = vunpack.c.l.b16 %v5956
    %v6207 = vunpack.c.h.b16 %v5956
    %v6208 = vunpack.c.l.b16 %v5957
    %v6209 = vunpack.c.h.b16 %v5957
    %v6210 = vunpack.c.l.b16 %v5958
    %v6211 = vunpack.c.h.b16 %v5958
    %v6212 = vunpack.c.l.b16 %v5959
    %v6213 = vunpack.c.h.b16 %v5959
    %v6214 = vunpack.c.l.b16 %v5960
    %v6215 = vunpack.c.h.b16 %v5960
    %v6216 = vunpack.c.l.b16 %v5961
    %v6217 = vunpack.c.h.b16 %v5961
    %v6218 = vunpack.c.l.b16 %v5962
    %v6219 = vunpack.c.h.b16 %v5962
    %v6220 = vunpack.c.l.b16 %v5963
    %v6221 = vunpack.c.h.b16 %v5963
    %v6222 = vunpack.c.l.b16 %v5964
    %v6223 = vunpack.c.h.b16 %v5964
    %v6224 = vunpack.c.l.b16 %v5965
    %v6225 = vunpack.c.h.b16 %v5965
    %v6226 = vunpack.c.l.b16 %v5966
    %v6227 = vunpack.c.h.b16 %v5966
    %v6228 = vunpack.c.l.b16 %v5967
    %v6229 = vunpack.c.h.b16 %v5967
    %v6230 = vunpack.c.l.b16 %v5968
    %v6231 = vunpack.c.h.b16 %v5968
    %v6232 = vunpack.c.l.b16 %v5969
    %v6233 = vunpack.c.h.b16 %v5969
    %v6234 = vunpack.c.l.b16 %v5970
    %v6235 = vunpack.c.h.b16 %v5970
    %v6236 = vunpack.c.l.b16 %v5971
    %v6237 = vunpack.c.h.b16 %v5971
    %v6238 = vunpack.c.l.b16 %v5972
    %v6239 = vunpack.c.h.b16 %v5972
    %v6240 = vunpack.c.l.b16 %v5973
    %v6241 = vunpack.c.h.b16 %v5973
    %v6242 = vunpack.c.l.b16 %v5974
    %v6243 = vunpack.c.h.b16 %v5974
    %v6244 = vunpack.c.l.b16 %v5975
    %v6245 = vunpack.c.h.b16 %v5975
    %v6246 = vunpack.c.l.b16 %v5976
    %v6247 = vunpack.c.h.b16 %v5976
    %v6248 = vunpack.c.l.b16 %v5977
    %v6249 = vunpack.c.h.b16 %v5977
    %v6250 = vunpack.c.l.b16 %v5978
    %v6251 = vunpack.c.h.b16 %v5978
    %v6252 = vunpack.c.l.b16 %v5979
    %v6253 = vunpack.c.h.b16 %v5979
    %v6254 = vunpack.c.l.b16 %v5980
    %v6255 = vunpack.c.h.b16 %v5980
    %v6256 = vunpack.c.l.b16 %v5981
    %v6257 = vunpack.c.h.b16 %v5981
    %v6258 = vunpack.c.l.b16 %v5982
    %v6259 = vunpack.c.h.b16 %v5982
    %v6260 = vunpack.c.l.b16 %v5983
    %v6261 = vunpack.c.h.b16 %v5983
    %v6262 = vunpack.c.l.b16 %v5984
    %v6263 = vunpack.c.h.b16 %v5984
    %v6264 = vunpack.c.l.b16 %v5985
    %v6265 = vunpack.c.h.b16 %v5985
    %v6266 = vunpack.c.l.b16 %v5986
    %v6267 = vunpack.c.h.b16 %v5986
    %v6268 = vunpack.c.l.b16 %v5987
    %v6269 = vunpack.c.h.b16 %v5987
    %v6270 = vunpack.c.l.b16 %v5988
    %v6271 = vunpack.c.h.b16 %v5988
    %v6272 = vunpack.c.l.b16 %v5989
    %v6273 = vunpack.c.h.b16 %v5989
    %v6274 = vunpack.c.l.b16 %v5990
    %v6275 = vunpack.c.h.b16 %v5990
    %v6276 = vunpack.c.l.b16 %v5991
    %v6277 = vunpack.c.h.b16 %v5991
    %v6278 = vunpack.c.l.b16 %v5992
    %v6279 = vunpack.c.h.b16 %v5992
    %v6280 = vunpack.c.l.b16 %v5993
    %v6281 = vunpack.c.h.b16 %v5993
    %v6282 = vpack.c.b16 %v6092, %v6090
    %v6283 = vpack.c.b16 %v6093, %v6091
    %v6284 = vpack.c.b16 %v6096, %v6094
    %v6285 = vpack.c.b16 %v6097, %v6095
    %v6286 = vpack.c.b16 %v6100, %v6098
    %v6287 = vpack.c.b16 %v6101, %v6099
    %v6288 = vpack.c.b16 %v6104, %v6102
    %v6289 = vpack.c.b16 %v6105, %v6103
    %v6290 = vpack.c.b16 %v6108, %v6106
    %v6291 = vpack.c.b16 %v6109, %v6107
    %v6292 = vpack.c.b16 %v6112, %v6110
    %v6293 = vpack.c.b16 %v6113, %v6111
    %v6294 = vpack.c.b16 %v6116, %v6114
    %v6295 = vpack.c.b16 %v6117, %v6115
    %v6296 = vpack.c.b16 %v6120, %v6118
    %v6297 = vpack.c.b16 %v6121, %v6119
    %v6298 = vpack.c.b16 %v6124, %v6122
    %v6299 = vpack.c.b16 %v6125, %v6123
    %v6300 = vpack.c.b16 %v6128, %v6126
    %v6301 = vpack.c.b16 %v6129, %v6127
    %v6302 = vpack.c.b16 %v6132, %v6130
    %v6303 = vpack.c.b16 %v6133, %v6131
    %v6304 = vpack.c.b16 %v6136, %v6134
    %v6305 = vpack.c.b16 %v6137, %v6135
    %v6306 = vpack.c.b16 %v6140, %v6138
    %v6307 = vpack.c.b16 %v6141, %v6139
    %v6308 = vpack.c.b16 %v6144, %v6142
    %v6309 = vpack.c.b16 %v6145, %v6143
    %v6310 = vpack.c.b16 %v6148, %v6146
    %v6311 = vpack.c.b16 %v6149, %v6147
    %v6312 = vpack.c.b16 %v6152, %v6150
    %v6313 = vpack.c.b16 %v6153, %v6151
    %v6314 = vpack.c.b16 %v6156, %v6154
    %v6315 = vpack.c.b16 %v6157, %v6155
    %v6316 = vpack.c.b16 %v6160, %v6158
    %v6317 = vpack.c.b16 %v6161, %v6159
    %v6318 = vpack.c.b16 %v6164, %v6162
    %v6319 = vpack.c.b16 %v6165, %v6163
    %v6320 = vpack.c.b16 %v6168, %v6166
    %v6321 = vpack.c.b16 %v6169, %v6167
    %v6322 = vpack.c.b16 %v6172, %v6170
    %v6323 = vpack.c.b16 %v6173, %v6171
    %v6324 = vpack.c.b16 %v6176, %v6174
    %v6325 = vpack.c.b16 %v6177, %v6175
    %v6326 = vpack.c.b16 %v6180, %v6178
    %v6327 = vpack.c.b16 %v6181, %v6179
    %v6328 = vpack.c.b16 %v6184, %v6182
    %v6329 = vpack.c.b16 %v6185, %v6183
    %v6330 = vpack.c.b16 %v6188, %v6186
    %v6331 = vpack.c.b16 %v6189, %v6187
    %v6332 = vpack.c.b16 %v6192, %v6190
    %v6333 = vpack.c.b16 %v6193, %v6191
    %v6334 = vpack.c.b16 %v6196, %v6194
    %v6335 = vpack.c.b16 %v6197, %v6195
    %v6336 = vpack.c.b16 %v6200, %v6198
    %v6337 = vpack.c.b16 %v6201, %v6199
    %v6338 = vpack.c.b16 %v6204, %v6202
    %v6339 = vpack.c.b16 %v6205, %v6203
    %v6340 = vpack.c.b16 %v6208, %v6206
    %v6341 = vpack.c.b16 %v6209, %v6207
    %v6342 = vpack.c.b16 %v6212, %v6210
    %v6343 = vpack.c.b16 %v6213, %v6211
    %v6344 = vpack.c.b16 %v6216, %v6214
    %v6345 = vpack.c.b16 %v6217, %v6215
    %v6346 = vpack.c.b16 %v6220, %v6218
    %v6347 = vpack.c.b16 %v6221, %v6219
    %v6348 = vpack.c.b16 %v6224, %v6222
    %v6349 = vpack.c.b16 %v6225, %v6223
    %v6350 = vpack.c.b16 %v6228, %v6226
    %v6351 = vpack.c.b16 %v6229, %v6227
    %v6352 = vpack.c.b16 %v6232, %v6230
    %v6353 = vpack.c.b16 %v6233, %v6231
    %v6354 = vpack.c.b16 %v6236, %v6234
    %v6355 = vpack.c.b16 %v6237, %v6235
    %v6356 = vpack.c.b16 %v6240, %v6238
    %v6357 = vpack.c.b16 %v6241, %v6239
    %v6358 = vpack.c.b16 %v6244, %v6242
    %v6359 = vpack.c.b16 %v6245, %v6243
    %v6360 = vpack.c.b16 %v6248, %v6246
    %v6361 = vpack.c.b16 %v6249, %v6247
    %v6362 = vpack.c.b16 %v6252, %v6250
    %v6363 = vpack.c.b16 %v6253, %v6251
    %v6364 = vpack.c.b16 %v6256, %v6254
    %v6365 = vpack.c.b16 %v6257, %v6255
    %v6366 = vpack.c.b16 %v6260, %v6258
    %v6367 = vpack.c.b16 %v6261, %v6259
    %v6368 = vpack.c.b16 %v6264, %v6262
    %v6369 = vpack.c.b16 %v6265, %v6263
    %v6370 = vpack.c.b16 %v6268, %v6266
    %v6371 = vpack.c.b16 %v6269, %v6267
    %v6372 = vpack.c.b16 %v6272, %v6270
    %v6373 = vpack.c.b16 %v6273, %v6271
    %v6374 = vpack.c.b16 %v6276, %v6274
    %v6375 = vpack.c.b16 %v6277, %v6275
    %v6376 = vpack.c.b16 %v6280, %v6278
    %v6377 = vpack.c.b16 %v6281, %v6279
    %6474 = vmatprep.subr.bf16.mxu0 %v6297
    %6475 = vmatpush1.bf16.msra.mxu0 %v6296
    %6476 = vmatprep.subr.bf16.mxu0 %v6295
    %6477 = vmatpush1.bf16.msra.mxu0 %v6294
    %6478 = vmatprep.subr.bf16.mxu0 %v6293
    %6479 = vmatpush1.bf16.msra.mxu0 %v6292
    %6480 = vmatprep.subr.bf16.mxu0 %v6291
    %6481 = vmatpush1.bf16.msra.mxu0 %v6290
    %6482 = vmatprep.subr.bf16.mxu0 %v6289
    %6483 = vmatpush1.bf16.msra.mxu0 %v6288
    %6484 = vmatprep.subr.bf16.mxu0 %v6287
    %6485 = vmatpush1.bf16.msra.mxu0 %v6286
    %6486 = vmatprep.subr.bf16.mxu0 %v6285
    %6487 = vmatpush1.bf16.msra.mxu0 %v6284
    %6488 = vmatprep.subr.bf16.mxu0 %v6283
    %6489 = vmatpush1.bf16.msra.mxu0 %v6282
    %6490 = vmatprep.subr.bf16.mxu0 %v6313
    %6491 = vmatpush2.bf16.msra.mxu0 %v6312
    %6492 = vmatprep.subr.bf16.mxu0 %v6311
    %6493 = vmatpush2.bf16.msra.mxu0 %v6310
    %6494 = vmatprep.subr.bf16.mxu0 %v6309
    %6495 = vmatpush2.bf16.msra.mxu0 %v6308
    %6496 = vmatprep.subr.bf16.mxu0 %v6307
    %6497 = vmatpush2.bf16.msra.mxu0 %v6306
    %6498 = vmatprep.subr.bf16.mxu0 %v6305
    %6499 = vmatpush2.bf16.msra.mxu0 %v6304
    %6500 = vmatprep.subr.bf16.mxu0 %v6303
    %6501 = vmatpush2.bf16.msra.mxu0 %v6302
    %6502 = vmatprep.subr.bf16.mxu0 %v6301
    %6503 = vmatpush2.bf16.msra.mxu0 %v6300
    %6504 = vmatprep.subr.bf16.mxu0 %v6299
    %6505 = vmatpush2.bf16.msra.mxu0 %v6298
    %6506 = vmatprep.mubr.bf16.mxu0 %v5867
    %6507 = vmatmul.mubr.bf16.gmra.mxu0 %v5866
    %v6508 = vpop.f32.mrf.mxu0
    %v6509 = vadd.f32 0.0, %v6508
    %v6510 = vpop.f32.mrf.mxu0
    %v6511 = vadd.f32 0.0, %v6510
    %v6512 = vpop.f32.mrf.mxu0
    %v6513 = vpop.f32.mrf.mxu0
    %6514 = vdwg.mxu0
    %6515 = vmatprep.subr.bf16.mxu0 %v6329
    %6516 = vmatpush1.bf16.msra.mxu0 %v6328
    %6517 = vmatprep.subr.bf16.mxu0 %v6327
    %6518 = vmatpush1.bf16.msra.mxu0 %v6326
    %6519 = vmatprep.subr.bf16.mxu0 %v6325
    %6520 = vmatpush1.bf16.msra.mxu0 %v6324
    %6521 = vmatprep.subr.bf16.mxu0 %v6323
    %6522 = vmatpush1.bf16.msra.mxu0 %v6322
    %6523 = vmatprep.subr.bf16.mxu0 %v6321
    %6524 = vmatpush1.bf16.msra.mxu0 %v6320
    %6525 = vmatprep.subr.bf16.mxu0 %v6319
    %6526 = vmatpush1.bf16.msra.mxu0 %v6318
    %6527 = vmatprep.subr.bf16.mxu0 %v6317
    %6528 = vmatpush1.bf16.msra.mxu0 %v6316
    %6529 = vmatprep.subr.bf16.mxu0 %v6315
    %6530 = vmatpush1.bf16.msra.mxu0 %v6314
    %6531 = vmatprep.subr.bf16.mxu0 %v6345
    %6532 = vmatpush2.bf16.msra.mxu0 %v6344
    %6533 = vmatprep.subr.bf16.mxu0 %v6343
    %6534 = vmatpush2.bf16.msra.mxu0 %v6342
    %6535 = vmatprep.subr.bf16.mxu0 %v6341
    %6536 = vmatpush2.bf16.msra.mxu0 %v6340
    %6537 = vmatprep.subr.bf16.mxu0 %v6339
    %6538 = vmatpush2.bf16.msra.mxu0 %v6338
    %6539 = vmatprep.subr.bf16.mxu0 %v6337
    %6540 = vmatpush2.bf16.msra.mxu0 %v6336
    %6541 = vmatprep.subr.bf16.mxu0 %v6335
    %6542 = vmatpush2.bf16.msra.mxu0 %v6334
    %6543 = vmatprep.subr.bf16.mxu0 %v6333
    %6544 = vmatpush2.bf16.msra.mxu0 %v6332
    %6545 = vmatprep.subr.bf16.mxu0 %v6331
    %6546 = vmatpush2.bf16.msra.mxu0 %v6330
    %6547 = vmatprep.mubr.bf16.mxu0 %v5879
    %6548 = vmatmul.mubr.bf16.gmra.mxu0 %v5878
    %v6549 = vpop.f32.mrf.mxu0
    %v6550 = vadd.f32 %v6509, %v6549
    %v6551 = vpop.f32.mrf.mxu0
    %v6552 = vadd.f32 %v6511, %v6551
    %v6553 = vpop.f32.mrf.mxu0
    %v6554 = vpop.f32.mrf.mxu0
    %6555 = vdwg.mxu0
    %6556 = vmatprep.subr.bf16.mxu0 %v6361
    %6557 = vmatpush1.bf16.msra.mxu0 %v6360
    %6558 = vmatprep.subr.bf16.mxu0 %v6359
    %6559 = vmatpush1.bf16.msra.mxu0 %v6358
    %6560 = vmatprep.subr.bf16.mxu0 %v6357
    %6561 = vmatpush1.bf16.msra.mxu0 %v6356
    %6562 = vmatprep.subr.bf16.mxu0 %v6355
    %6563 = vmatpush1.bf16.msra.mxu0 %v6354
    %6564 = vmatprep.subr.bf16.mxu0 %v6353
    %6565 = vmatpush1.bf16.msra.mxu0 %v6352
    %6566 = vmatprep.subr.bf16.mxu0 %v6351
    %6567 = vmatpush1.bf16.msra.mxu0 %v6350
    %6568 = vmatprep.subr.bf16.mxu0 %v6349
    %6569 = vmatpush1.bf16.msra.mxu0 %v6348
    %6570 = vmatprep.subr.bf16.mxu0 %v6347
    %6571 = vmatpush1.bf16.msra.mxu0 %v6346
    %6572 = vmatprep.subr.bf16.mxu0 %v6377
    %6573 = vmatpush2.bf16.msra.mxu0 %v6376
    %6574 = vmatprep.subr.bf16.mxu0 %v6375
    %6575 = vmatpush2.bf16.msra.mxu0 %v6374
    %6576 = vmatprep.subr.bf16.mxu0 %v6373
    %6577 = vmatpush2.bf16.msra.mxu0 %v6372
    %6578 = vmatprep.subr.bf16.mxu0 %v6371
    %6579 = vmatpush2.bf16.msra.mxu0 %v6370
    %6580 = vmatprep.subr.bf16.mxu0 %v6369
    %6581 = vmatpush2.bf16.msra.mxu0 %v6368
    %6582 = vmatprep.subr.bf16.mxu0 %v6367
    %6583 = vmatpush2.bf16.msra.mxu0 %v6366
    %6584 = vmatprep.subr.bf16.mxu0 %v6365
    %6585 = vmatpush2.bf16.msra.mxu0 %v6364
    %6586 = vmatprep.subr.bf16.mxu0 %v6363
    %6587 = vmatpush2.bf16.msra.mxu0 %v6362
    %6588 = vmatprep.mubr.bf16.mxu0 %v5891
    %6589 = vmatmul.mubr.bf16.gmra.mxu0 %v5890
    %v6590 = vpop.f32.mrf.mxu0
    %v6591 = vadd.f32 %v6550, %v6590
    %v6592 = vpop.f32.mrf.mxu0
    %v6593 = vadd.f32 %v6552, %v6592
    %v6594 = vpop.f32.mrf.mxu0
    %v6595 = vpop.f32.mrf.mxu0
    %6596 = vdwg.mxu0
    %v6597 = vrot.slane %v6591, 4
    %v6598 = vadd.f32 %v6591, %v6597
    %v6599 = vrot.slane %v6598, 2
    %v6600 = vadd.f32 %v6598, %v6599
    %v6601 = vrot.slane %v6600, 1
    %v6602 = vadd.f32 %v6600, %v6601
    %v6603 = vrot.slane %v6593, 4
    %v6604 = vadd.f32 %v6593, %v6603
    %v6605 = vrot.slane %v6604, 2
    %v6606 = vadd.f32 %v6604, %v6605
    %v6607 = vrot.slane %v6606, 1
    %v6608 = vadd.f32 %v6606, %v6607
    %v6609 = vadd.f32 %v6602, %v6608
    %6611 = vrot.lane.b32.xlu0 %v6609, 64
    %v6612 = vpop.permute.xlu0 %6611
    %v6614 = vadd.f32 %v6609, %v6612
    %v6615 = vmul.f32 %v6614, 0.03125
    %6617 = vrot.lane.b32.xlu0 %v6615, 64
    %v6618 = vpop.permute.xlu0 %6617
    %v6620 = vsel %vm1487, %v6615, %v6618
    %v6621 = vlaneseq
    %v6622 = vshrl.u32 %v6621, 7
    %v6623 = vsub.s32 0, %v6622
    %v6624 = vrot.slane %v6620, %v6623
    %v6625 = vsub.f32 %v6591, %v6624
    %v6626 = vsub.f32 %v6593, %v6624
    %v6627 = vmul.f32 %v6625, %v6625
    %v6628 = vmul.f32 %v6626, %v6626
    %v6629 = vrot.slane %v6627, 4
    %v6630 = vadd.f32 %v6627, %v6629
    %v6631 = vrot.slane %v6630, 2
    %v6632 = vadd.f32 %v6630, %v6631
    %v6633 = vrot.slane %v6632, 1
    %v6634 = vadd.f32 %v6632, %v6633
    %v6635 = vrot.slane %v6628, 4
    %v6636 = vadd.f32 %v6628, %v6635
    %v6637 = vrot.slane %v6636, 2
    %v6638 = vadd.f32 %v6636, %v6637
    %v6639 = vrot.slane %v6638, 1
    %v6640 = vadd.f32 %v6638, %v6639
    %v6641 = vadd.f32 %v6634, %v6640
    %6643 = vrot.lane.b32.xlu0 %v6641, 64
    %v6644 = vpop.permute.xlu0 %6643
    %v6646 = vadd.f32 %v6641, %v6644
    %v6647 = vmul.f32 %v6646, 0.03125
    %v6648 = vld [vmem:[%s5 + $0x2] sm:$0x1]
    %v6649 = vadd.f32 %v6647, 1e-05
    %v6650 = vrsqrt.pop %v6649
    %v6651 = vmul.f32 %v6648, %v6650
    %6653 = vrot.lane.b32.xlu0 %v6651, 64
    %v6654 = vpop.permute.xlu0 %6653
    %v6656 = vsel %vm1487, %v6651, %v6654
    %v6657 = vld [vmem:[%s6 + $0x2] sm:$0x1]
    %6659 = vrot.lane.b32.xlu0 %v6657, 64
    %v6660 = vpop.permute.xlu0 %6659
    %v6662 = vsel %vm1487, %v6657, %v6660
    %v6663 = vlaneseq
    %v6664 = vshrl.u32 %v6663, 7
    %v6665 = vsub.s32 0, %v6664
    %v6666 = vrot.slane %v6656, %v6665
    %v6667 = vmul.f32 %v6625, %v6666
    %v6668 = vmul.f32 %v6626, %v6666
    %v6669 = vlaneseq
    %v6670 = vshrl.u32 %v6669, 7
    %v6671 = vsub.s32 0, %v6670
    %v6672 = vrot.slane %v6662, %v6671
    %v6673 = vadd.f32 %v6667, %v6672
    %v6674 = vadd.f32 %v6668, %v6672
    %v6675 = vmax.f32 %v6673, 0.0
    %v6676 = vmax.f32 %v6674, 0.0
    %6679 = vrot.lane.b32.xlu0 %v6675, 64
    %v6680 = vpop.permute.xlu0 %6679
    %6681 = vrot.lane.b32.xlu0 %v6676, 64
    %v6682 = vpop.permute.xlu0 %6681
    %v6683 = vsel %vm1487, %v6680, %v6682
    %v6686 = vmax.f32 %v6675, %v6683
    %v6687 = vmax.f32 %v6676, %v6682
    %6689 = vrot.lane.b32.xlu0 %v6687, 64
    %v6690 = vpop.permute.xlu0 %6689
    %v6692 = vsel %vm1487, %v6686, %v6690
    %v6693 = vld [vmem:[%s9] sm:$0xff]
    %vm6694 = vcmask 64512
    %v6696 = vsel %vm6694, %v6693, 0
    %6698 = vmatprep.subr.mxu0 0.0
    %6699 = vmatpush1.msra.mxu0 0.0
    %6700 = vmatprep.subr.mxu0 0.0
    %6701 = vmatpush1.msra.mxu0 0.0
    %6702 = vmatprep.subr.mxu0 0.0
    %6703 = vmatpush1.msra.mxu0 0.0
    %6704 = vmatprep.subr.mxu0 0.0
    %6705 = vmatpush1.msra.mxu0 0.0
    %6706 = vmatprep.subr.mxu0 0.0
    %6707 = vmatpush1.msra.mxu0 0.0
    %6708 = vmatprep.subr.mxu0 0.0
    %6709 = vmatpush1.msra.mxu0 0.0
    %6710 = vmatprep.subr.mxu0 0.0
    %6711 = vmatpush1.msra.mxu0 0.0
    %6712 = vmatprep.subr.mxu0 0.0
    %6713 = vmatpush1.msra.mxu0 0.0
    %6714 = vmatprep.subr.mxu0 0.0
    %6715 = vmatpush1.msra.mxu0 0.0
    %6716 = vmatprep.subr.mxu0 0.0
    %6717 = vmatpush1.msra.mxu0 0.0
    %6718 = vmatprep.subr.mxu0 0.0
    %6719 = vmatpush1.msra.mxu0 0.0
    %6720 = vmatprep.subr.mxu0 0.0
    %6721 = vmatpush1.msra.mxu0 0.0
    %6722 = vmatprep.subr.mxu0 0.0
    %6723 = vmatpush1.msra.mxu0 0.0
    %6724 = vmatprep.subr.mxu0 0.0
    %6725 = vmatpush1.msra.mxu0 0.0
    %6726 = vmatprep.subr.mxu0 0.0
    %6727 = vmatpush1.msra.mxu0 0.0
    %6728 = vmatprep.subr.mxu0 0.0
    %6729 = vmatpush1.msra.mxu0 %v6692
    %6730 = vmatprep.subr.mxu0 0.0
    %6731 = vmatpush2.msra.mxu0 0.0
    %6732 = vmatprep.subr.mxu0 0.0
    %6733 = vmatpush2.msra.mxu0 0.0
    %6734 = vmatprep.subr.mxu0 0.0
    %6735 = vmatpush2.msra.mxu0 0.0
    %6736 = vmatprep.subr.mxu0 0.0
    %6737 = vmatpush2.msra.mxu0 0.0
    %6738 = vmatprep.subr.mxu0 0.0
    %6739 = vmatpush2.msra.mxu0 0.0
    %6740 = vmatprep.subr.mxu0 0.0
    %6741 = vmatpush2.msra.mxu0 0.0
    %6742 = vmatprep.subr.mxu0 0.0
    %6743 = vmatpush2.msra.mxu0 0.0
    %6744 = vmatprep.subr.mxu0 0.0
    %6745 = vmatpush2.msra.mxu0 0.0
    %6746 = vmatprep.subr.mxu0 0.0
    %6747 = vmatpush2.msra.mxu0 0.0
    %6748 = vmatprep.subr.mxu0 0.0
    %6749 = vmatpush2.msra.mxu0 0.0
    %6750 = vmatprep.subr.mxu0 0.0
    %6751 = vmatpush2.msra.mxu0 0.0
    %6752 = vmatprep.subr.mxu0 0.0
    %6753 = vmatpush2.msra.mxu0 0.0
    %6754 = vmatprep.subr.mxu0 0.0
    %6755 = vmatpush2.msra.mxu0 0.0
    %6756 = vmatprep.subr.mxu0 0.0
    %6757 = vmatpush2.msra.mxu0 0.0
    %6758 = vmatprep.subr.mxu0 0.0
    %6759 = vmatpush2.msra.mxu0 0.0
    %6760 = vmatprep.subr.mxu0 0.0
    %6761 = vmatpush2.msra.mxu0 0.0
    %6762 = vmatprep.mubr.f32.mxu0 0.0
    %6763 = vmatmul.mubr.f32.gmra.mxu0 %v6696
    %v6764 = vpop.f32.mrf.mxu0
    %v6765 = vadd.f32 0.0, %v6764
    %v6766 = vpop.f32.mrf.mxu0
    %6767 = vdwg.mxu0
    %v6769 = vrot.slane %v6765, 4
    %v6771 = vmax.f32 %v6765, %v6769
    %v6772 = vpack.c.bf16 %v6771, %v6771
    %v6774 = vrot.slane %v6772, 7
    %v6776 = vsel %vm2551, 0, %v6774
    %vm6777 = vcmask 1042432
    %v6778 = vsel %vm6777, %v6776, 0
    %6780 = vst [vmem:[#allocation8] sm:$0xf] %v6778
    %v6781 = vld [vmem:[#allocation8] sm:$0x3]
    %v6782 = vld [vmem:[#allocation8] sm:$0x6]
    %v6783 = vld [vmem:[#allocation8] sm:$0xc]
    %v6785 = vunpack.c.l.b16 %v6782
    %v6786 = vpack.c.b16 %v6785, %v6785
    %v6787 = vrot.slane %v6786, 1
    %v6790 = vunpack.c.l.b16 %v6783
    %v6791 = vpack.c.b16 %v6790, %v6790
    %v6792 = vrot.slane %v6791, 2
    %s6794 = smul.u32 4, 48
    %s6795 = smul.u32 %s6794, 1
    %s6796 = sshll.u32 %s6795, 4
    %6797 = dma.done %s1187, %s6796
    %v6798 = vld [vmem:[#allocation5] sm:$0xf]
    %v6799 = vld [vmem:[#allocation5 + $0x4] sm:$0xf]
    %v6800 = vld [vmem:[#allocation5 + $0x8] sm:$0xf]
    %v6801 = vld [vmem:[#allocation5 + $0xc] sm:$0xf]
    %v6802 = vld [vmem:[#allocation5 + $0x10] sm:$0xf]
    %v6803 = vld [vmem:[#allocation5 + $0x14] sm:$0xf]
    %v6804 = vld [vmem:[#allocation5 + $0x18] sm:$0xf]
    %v6805 = vld [vmem:[#allocation5 + $0x1c] sm:$0xf]
    %v6806 = vld [vmem:[#allocation5 + $0x20] sm:$0xf]
    %v6807 = vld [vmem:[#allocation5 + $0x24] sm:$0xf]
    %v6808 = vld [vmem:[#allocation5 + $0x28] sm:$0xf]
    %v6809 = vld [vmem:[#allocation5 + $0x2c] sm:$0xf]
    %v6810 = vld [vmem:[#allocation5 + $0x30] sm:$0xf]
    %v6811 = vld [vmem:[#allocation5 + $0x34] sm:$0xf]
    %v6812 = vld [vmem:[#allocation5 + $0x38] sm:$0xf]
    %v6813 = vld [vmem:[#allocation5 + $0x3c] sm:$0xf]
    %v6814 = vld [vmem:[#allocation5 + $0x40] sm:$0xf]
    %v6815 = vld [vmem:[#allocation5 + $0x44] sm:$0xf]
    %v6816 = vld [vmem:[#allocation5 + $0x48] sm:$0xf]
    %v6817 = vld [vmem:[#allocation5 + $0x4c] sm:$0xf]
    %v6818 = vld [vmem:[#allocation5 + $0x50] sm:$0xf]
    %v6819 = vld [vmem:[#allocation5 + $0x54] sm:$0xf]
    %v6820 = vld [vmem:[#allocation5 + $0x58] sm:$0xf]
    %v6821 = vld [vmem:[#allocation5 + $0x5c] sm:$0xf]
    %v6822 = vld [vmem:[#allocation5 + $0x60] sm:$0xf]
    %v6823 = vld [vmem:[#allocation5 + $0x64] sm:$0xf]
    %v6824 = vld [vmem:[#allocation5 + $0x68] sm:$0xf]
    %v6825 = vld [vmem:[#allocation5 + $0x6c] sm:$0xf]
    %v6826 = vld [vmem:[#allocation5 + $0x70] sm:$0xf]
    %v6827 = vld [vmem:[#allocation5 + $0x74] sm:$0xf]
    %v6828 = vld [vmem:[#allocation5 + $0x78] sm:$0xf]
    %v6829 = vld [vmem:[#allocation5 + $0x7c] sm:$0xf]
    %v6830 = vld [vmem:[#allocation5 + $0x80] sm:$0xf]
    %v6831 = vld [vmem:[#allocation5 + $0x84] sm:$0xf]
    %v6832 = vld [vmem:[#allocation5 + $0x88] sm:$0xf]
    %v6833 = vld [vmem:[#allocation5 + $0x8c] sm:$0xf]
    %v6834 = vld [vmem:[#allocation5 + $0x90] sm:$0xf]
    %v6835 = vld [vmem:[#allocation5 + $0x94] sm:$0xf]
    %v6836 = vld [vmem:[#allocation5 + $0x98] sm:$0xf]
    %v6837 = vld [vmem:[#allocation5 + $0x9c] sm:$0xf]
    %v6838 = vld [vmem:[#allocation5 + $0xa0] sm:$0xf]
    %v6839 = vld [vmem:[#allocation5 + $0xa4] sm:$0xf]
    %v6840 = vld [vmem:[#allocation5 + $0xa8] sm:$0xf]
    %v6841 = vld [vmem:[#allocation5 + $0xac] sm:$0xf]
    %v6842 = vld [vmem:[#allocation5 + $0xb0] sm:$0xf]
    %v6843 = vld [vmem:[#allocation5 + $0xb4] sm:$0xf]
    %v6844 = vld [vmem:[#allocation5 + $0xb8] sm:$0xf]
    %v6845 = vld [vmem:[#allocation5 + $0xbc] sm:$0xf]
    %v6894 = vunpack.c.l.b16 %v6798
    %v6895 = vunpack.c.l.b16 %v6799
    %v6896 = vunpack.c.l.b16 %v6800
    %v6897 = vunpack.c.l.b16 %v6801
    %v6898 = vunpack.c.l.b16 %v6802
    %v6899 = vunpack.c.l.b16 %v6803
    %v6900 = vunpack.c.l.b16 %v6804
    %v6901 = vunpack.c.l.b16 %v6805
    %v6902 = vunpack.c.l.b16 %v6806
    %v6903 = vunpack.c.l.b16 %v6807
    %v6904 = vunpack.c.l.b16 %v6808
    %v6905 = vunpack.c.l.b16 %v6809
    %v6906 = vunpack.c.l.b16 %v6810
    %v6907 = vunpack.c.l.b16 %v6811
    %v6908 = vunpack.c.l.b16 %v6812
    %v6909 = vunpack.c.l.b16 %v6813
    %v6910 = vunpack.c.l.b16 %v6814
    %v6911 = vunpack.c.l.b16 %v6815
    %v6912 = vunpack.c.l.b16 %v6816
    %v6913 = vunpack.c.l.b16 %v6817
    %v6914 = vunpack.c.l.b16 %v6818
    %v6915 = vunpack.c.l.b16 %v6819
    %v6916 = vunpack.c.l.b16 %v6820
    %v6917 = vunpack.c.l.b16 %v6821
    %v6918 = vunpack.c.l.b16 %v6822
    %v6919 = vunpack.c.l.b16 %v6823
    %v6920 = vunpack.c.l.b16 %v6824
    %v6921 = vunpack.c.l.b16 %v6825
    %v6922 = vunpack.c.l.b16 %v6826
    %v6923 = vunpack.c.l.b16 %v6827
    %v6924 = vunpack.c.l.b16 %v6828
    %v6925 = vunpack.c.l.b16 %v6829
    %v6926 = vunpack.c.l.b16 %v6830
    %v6927 = vunpack.c.l.b16 %v6831
    %v6928 = vunpack.c.l.b16 %v6832
    %v6929 = vunpack.c.l.b16 %v6833
    %v6930 = vunpack.c.l.b16 %v6834
    %v6931 = vunpack.c.l.b16 %v6835
    %v6932 = vunpack.c.l.b16 %v6836
    %v6933 = vunpack.c.l.b16 %v6837
    %v6934 = vunpack.c.l.b16 %v6838
    %v6935 = vunpack.c.l.b16 %v6839
    %v6936 = vunpack.c.l.b16 %v6840
    %v6937 = vunpack.c.l.b16 %v6841
    %v6938 = vunpack.c.l.b16 %v6842
    %v6939 = vunpack.c.l.b16 %v6843
    %v6940 = vunpack.c.l.b16 %v6844
    %v6941 = vunpack.c.l.b16 %v6845
    %v6942 = vpack.c.b16 %v6895, %v6894
    %v6943 = vpack.c.b16 %v6897, %v6896
    %v6944 = vpack.c.b16 %v6899, %v6898
    %v6945 = vpack.c.b16 %v6901, %v6900
    %v6946 = vpack.c.b16 %v6903, %v6902
    %v6947 = vpack.c.b16 %v6905, %v6904
    %v6948 = vpack.c.b16 %v6907, %v6906
    %v6949 = vpack.c.b16 %v6909, %v6908
    %v6950 = vpack.c.b16 %v6911, %v6910
    %v6951 = vpack.c.b16 %v6913, %v6912
    %v6952 = vpack.c.b16 %v6915, %v6914
    %v6953 = vpack.c.b16 %v6917, %v6916
    %v6954 = vpack.c.b16 %v6919, %v6918
    %v6955 = vpack.c.b16 %v6921, %v6920
    %v6956 = vpack.c.b16 %v6923, %v6922
    %v6957 = vpack.c.b16 %v6925, %v6924
    %v6958 = vpack.c.b16 %v6927, %v6926
    %v6959 = vpack.c.b16 %v6929, %v6928
    %v6960 = vpack.c.b16 %v6931, %v6930
    %v6961 = vpack.c.b16 %v6933, %v6932
    %v6962 = vpack.c.b16 %v6935, %v6934
    %v6963 = vpack.c.b16 %v6937, %v6936
    %v6964 = vpack.c.b16 %v6939, %v6938
    %v6965 = vpack.c.b16 %v6941, %v6940
    %6990 = vmatprep.subr.bf16.mxu0 0
    %6991 = vmatpush1.bf16.msra.mxu0 %v6949
    %6992 = vmatprep.subr.bf16.mxu0 0
    %6993 = vmatpush1.bf16.msra.mxu0 %v6948
    %6994 = vmatprep.subr.bf16.mxu0 0
    %6995 = vmatpush1.bf16.msra.mxu0 %v6947
    %6996 = vmatprep.subr.bf16.mxu0 0
    %6997 = vmatpush1.bf16.msra.mxu0 %v6946
    %6998 = vmatprep.subr.bf16.mxu0 0
    %6999 = vmatpush1.bf16.msra.mxu0 %v6945
    %7000 = vmatprep.subr.bf16.mxu0 0
    %7001 = vmatpush1.bf16.msra.mxu0 %v6944
    %7002 = vmatprep.subr.bf16.mxu0 0
    %7003 = vmatpush1.bf16.msra.mxu0 %v6943
    %7004 = vmatprep.subr.bf16.mxu0 0
    %7005 = vmatpush1.bf16.msra.mxu0 %v6942
    %7006 = vmatprep.subr.bf16.mxu0 0
    %7007 = vmatpush2.bf16.msra.mxu0 %v6957
    %7008 = vmatprep.subr.bf16.mxu0 0
    %7009 = vmatpush2.bf16.msra.mxu0 %v6956
    %7010 = vmatprep.subr.bf16.mxu0 0
    %7011 = vmatpush2.bf16.msra.mxu0 %v6955
    %7012 = vmatprep.subr.bf16.mxu0 0
    %7013 = vmatpush2.bf16.msra.mxu0 %v6954
    %7014 = vmatprep.subr.bf16.mxu0 0
    %7015 = vmatpush2.bf16.msra.mxu0 %v6953
    %7016 = vmatprep.subr.bf16.mxu0 0
    %7017 = vmatpush2.bf16.msra.mxu0 %v6952
    %7018 = vmatprep.subr.bf16.mxu0 0
    %7019 = vmatpush2.bf16.msra.mxu0 %v6951
    %7020 = vmatprep.subr.bf16.mxu0 0
    %7021 = vmatpush2.bf16.msra.mxu0 %v6950
    %7022 = vmatprep.mubr.bf16.mxu0 %v6787
    %7023 = vmatmul.mubr.bf16.gmra.mxu0 %v6781
    %v7024 = vpop.f32.mrf.mxu0
    %v7025 = vadd.f32 0.0, %v7024
    %v7026 = vpop.f32.mrf.mxu0
    %v7027 = vpop.f32.mrf.mxu0
    %v7028 = vpop.f32.mrf.mxu0
    %7029 = vdwg.mxu0
    %7030 = vmatprep.subr.bf16.mxu0 0
    %7031 = vmatpush1.bf16.msra.mxu0 %v6965
    %7032 = vmatprep.subr.bf16.mxu0 0
    %7033 = vmatpush1.bf16.msra.mxu0 %v6964
    %7034 = vmatprep.subr.bf16.mxu0 0
    %7035 = vmatpush1.bf16.msra.mxu0 %v6963
    %7036 = vmatprep.subr.bf16.mxu0 0
    %7037 = vmatpush1.bf16.msra.mxu0 %v6962
    %7038 = vmatprep.subr.bf16.mxu0 0
    %7039 = vmatpush1.bf16.msra.mxu0 %v6961
    %7040 = vmatprep.subr.bf16.mxu0 0
    %7041 = vmatpush1.bf16.msra.mxu0 %v6960
    %7042 = vmatprep.subr.bf16.mxu0 0
    %7043 = vmatpush1.bf16.msra.mxu0 %v6959
    %7044 = vmatprep.subr.bf16.mxu0 0
    %7045 = vmatpush1.bf16.msra.mxu0 %v6958
    %7046 = vmatprep.subr.bf16.mxu0 0
    %7047 = vmatpush2.bf16.msra.mxu0 0
    %7048 = vmatprep.subr.bf16.mxu0 0
    %7049 = vmatpush2.bf16.msra.mxu0 0
    %7050 = vmatprep.subr.bf16.mxu0 0
    %7051 = vmatpush2.bf16.msra.mxu0 0
    %7052 = vmatprep.subr.bf16.mxu0 0
    %7053 = vmatpush2.bf16.msra.mxu0 0
    %7054 = vmatprep.subr.bf16.mxu0 0
    %7055 = vmatpush2.bf16.msra.mxu0 0
    %7056 = vmatprep.subr.bf16.mxu0 0
    %7057 = vmatpush2.bf16.msra.mxu0 0
    %7058 = vmatprep.subr.bf16.mxu0 0
    %7059 = vmatpush2.bf16.msra.mxu0 0
    %7060 = vmatprep.subr.bf16.mxu0 0
    %7061 = vmatpush2.bf16.msra.mxu0 0
    %7062 = vmatprep.mubr.bf16.mxu0 0
    %7063 = vmatmul.mubr.bf16.gmra.mxu0 %v6792
    %v7064 = vpop.f32.mrf.mxu0
    %v7065 = vadd.f32 %v7025, %v7064
    %v7066 = vpop.f32.mrf.mxu0
    %v7067 = vpop.f32.mrf.mxu0
    %v7068 = vpop.f32.mrf.mxu0
    %7069 = vdwg.mxu0
    %vm7070 = vcmask 1043456
    %v7071 = vsel %vm7070, %v7065, 0.0
    %v7072 = vrot.slane %v7071, 4
    %v7073 = vadd.f32 %v7071, %v7072
    %v7074 = vrot.slane %v7073, 2
    %v7075 = vadd.f32 %v7073, %v7074
    %v7076 = vrot.slane %v7075, 1
    %v7077 = vadd.f32 %v7075, %v7076
    %7079 = vrot.lane.b32.xlu0 %v7077, 64
    %v7080 = vpop.permute.xlu0 %7079
    %v7082 = vadd.f32 %v7077, %v7080
    %v7083 = vmul.f32 %v7082, 0.125
    %7085 = vrot.lane.b32.xlu0 %v7083, 64
    %v7086 = vpop.permute.xlu0 %7085
    %v7088 = vsel %vm1487, %v7083, %v7086
    %v7089 = vlaneseq
    %v7090 = vshrl.u32 %v7089, 7
    %v7091 = vsub.s32 0, %v7090
    %v7092 = vrot.slane %v7088, %v7091
    %v7093 = vsub.f32 %v7065, %v7092
    %v7094 = vmul.f32 %v7093, %v7093
    %v7095 = vsel %vm7070, %v7094, 0.0
    %v7096 = vrot.slane %v7095, 4
    %v7097 = vadd.f32 %v7095, %v7096
    %v7098 = vrot.slane %v7097, 2
    %v7099 = vadd.f32 %v7097, %v7098
    %v7100 = vrot.slane %v7099, 1
    %v7101 = vadd.f32 %v7099, %v7100
    %7103 = vrot.lane.b32.xlu0 %v7101, 64
    %v7104 = vpop.permute.xlu0 %7103
    %v7106 = vadd.f32 %v7101, %v7104
    %v7107 = vmul.f32 %v7106, 0.125
    %v7108 = vld [vmem:[%s5 + $0x3] sm:$0x1]
    %v7109 = vadd.f32 %v7107, 1e-05
    %v7110 = vrsqrt.pop %v7109
    %v7111 = vmul.f32 %v7108, %v7110
    %7113 = vrot.lane.b32.xlu0 %v7111, 64
    %v7114 = vpop.permute.xlu0 %7113
    %v7116 = vsel %vm1487, %v7111, %v7114
    %v7117 = vld [vmem:[%s6 + $0x3] sm:$0x1]
    %7119 = vrot.lane.b32.xlu0 %v7117, 64
    %v7120 = vpop.permute.xlu0 %7119
    %v7122 = vsel %vm1487, %v7117, %v7120
    %v7123 = vlaneseq
    %v7124 = vshrl.u32 %v7123, 7
    %v7125 = vsub.s32 0, %v7124
    %v7126 = vrot.slane %v7116, %v7125
    %v7127 = vmul.f32 %v7093, %v7126
    %v7128 = vlaneseq
    %v7129 = vshrl.u32 %v7128, 7
    %v7130 = vsub.s32 0, %v7129
    %v7131 = vrot.slane %v7122, %v7130
    %v7132 = vadd.f32 %v7127, %v7131
    %v7133 = vmax.f32 %v7132, 0.0
    %7135 = vrot.lane.b32.xlu0 %v7133, 64
    %v7136 = vpop.permute.xlu0 %7135
    %v7138 = vmax.f32 %v7133, %v7136
    %v7139 = vld [vmem:[%s10] sm:$0xf]
    %vm7140 = vcmask 31744
    %v7142 = vsel %vm7140, %v7139, 0
    %v7145 = vsel %vm7070, %v7138, 0
    %7147 = vmatprep.subr.mxu0 0.0
    %7148 = vmatpush1.msra.mxu0 0.0
    %7149 = vmatprep.subr.mxu0 0.0
    %7150 = vmatpush1.msra.mxu0 0.0
    %7151 = vmatprep.subr.mxu0 0.0
    %7152 = vmatpush1.msra.mxu0 0.0
    %7153 = vmatprep.subr.mxu0 0.0
    %7154 = vmatpush1.msra.mxu0 0.0
    %7155 = vmatprep.subr.mxu0 0.0
    %7156 = vmatpush1.msra.mxu0 0.0
    %7157 = vmatprep.subr.mxu0 0.0
    %7158 = vmatpush1.msra.mxu0 0.0
    %7159 = vmatprep.subr.mxu0 0.0
    %7160 = vmatpush1.msra.mxu0 0.0
    %7161 = vmatprep.subr.mxu0 0.0
    %7162 = vmatpush1.msra.mxu0 0.0
    %7163 = vmatprep.subr.mxu0 0.0
    %7164 = vmatpush1.msra.mxu0 0.0
    %7165 = vmatprep.subr.mxu0 0.0
    %7166 = vmatpush1.msra.mxu0 0.0
    %7167 = vmatprep.subr.mxu0 0.0
    %7168 = vmatpush1.msra.mxu0 0.0
    %7169 = vmatprep.subr.mxu0 0.0
    %7170 = vmatpush1.msra.mxu0 0.0
    %7171 = vmatprep.subr.mxu0 0.0
    %7172 = vmatpush1.msra.mxu0 0.0
    %7173 = vmatprep.subr.mxu0 0.0
    %7174 = vmatpush1.msra.mxu0 0.0
    %7175 = vmatprep.subr.mxu0 0.0
    %7176 = vmatpush1.msra.mxu0 0.0
    %7177 = vmatprep.subr.mxu0 0.0
    %7178 = vmatpush1.msra.mxu0 %v7145
    %7179 = vmatprep.subr.mxu0 0.0
    %7180 = vmatpush2.msra.mxu0 0.0
    %7181 = vmatprep.subr.mxu0 0.0
    %7182 = vmatpush2.msra.mxu0 0.0
    %7183 = vmatprep.subr.mxu0 0.0
    %7184 = vmatpush2.msra.mxu0 0.0
    %7185 = vmatprep.subr.mxu0 0.0
    %7186 = vmatpush2.msra.mxu0 0.0
    %7187 = vmatprep.subr.mxu0 0.0
    %7188 = vmatpush2.msra.mxu0 0.0
    %7189 = vmatprep.subr.mxu0 0.0
    %7190 = vmatpush2.msra.mxu0 0.0
    %7191 = vmatprep.subr.mxu0 0.0
    %7192 = vmatpush2.msra.mxu0 0.0
    %7193 = vmatprep.subr.mxu0 0.0
    %7194 = vmatpush2.msra.mxu0 0.0
    %7195 = vmatprep.subr.mxu0 0.0
    %7196 = vmatpush2.msra.mxu0 0.0
    %7197 = vmatprep.subr.mxu0 0.0
    %7198 = vmatpush2.msra.mxu0 0.0
    %7199 = vmatprep.subr.mxu0 0.0
    %7200 = vmatpush2.msra.mxu0 0.0
    %7201 = vmatprep.subr.mxu0 0.0
    %7202 = vmatpush2.msra.mxu0 0.0
    %7203 = vmatprep.subr.mxu0 0.0
    %7204 = vmatpush2.msra.mxu0 0.0
    %7205 = vmatprep.subr.mxu0 0.0
    %7206 = vmatpush2.msra.mxu0 0.0
    %7207 = vmatprep.subr.mxu0 0.0
    %7208 = vmatpush2.msra.mxu0 0.0
    %7209 = vmatprep.subr.mxu0 0.0
    %7210 = vmatpush2.msra.mxu0 0.0
    %7211 = vmatprep.mubr.f32.mxu0 0.0
    %7212 = vmatmul.mubr.f32.gmra.mxu0 %v7142
    %v7213 = vpop.f32.mrf.mxu0
    %v7214 = vadd.f32 0.0, %v7213
    %v7215 = vpop.f32.mrf.mxu0
    %7216 = vdwg.mxu0
    %v7218 = vrot.slane %v7214, 2
    %v7220 = vmax.f32 %v7214, %v7218
    %v7221 = vld [vmem:[%s11] sm:$0xff]
    %v7222 = vld [vmem:[%s11 + $0x8] sm:$0xff]
    %v7223 = vld [vmem:[%s11 + $0x10] sm:$0xff]
    %v7224 = vld [vmem:[%s11 + $0x18] sm:$0xff]
    %v7225 = vld [vmem:[%s11 + $0x20] sm:$0xff]
    %v7226 = vld [vmem:[%s11 + $0x28] sm:$0xff]
    %v7227 = vld [vmem:[%s11 + $0x30] sm:$0xff]
    %v7228 = vld [vmem:[%s11 + $0x38] sm:$0xff]
    %v7229 = vld [vmem:[%s12] sm:$0x1]
    %v7231 = vlaneseq
    %v7232 = vshrl.u32 %v7231, 7
    %v7233 = vsub.s32 0, %v7232
    %v7234 = vrot.slane %v7229, %v7233
    %v7237 = vsel %vm1487, %v7220, 0
    %7239 = vmatprep.subr.mxu0 0.0
    %7240 = vmatpush1.msra.mxu0 0.0
    %7241 = vmatprep.subr.mxu0 0.0
    %7242 = vmatpush1.msra.mxu0 0.0
    %7243 = vmatprep.subr.mxu0 0.0
    %7244 = vmatpush1.msra.mxu0 0.0
    %7245 = vmatprep.subr.mxu0 0.0
    %7246 = vmatpush1.msra.mxu0 0.0
    %7247 = vmatprep.subr.mxu0 0.0
    %7248 = vmatpush1.msra.mxu0 0.0
    %7249 = vmatprep.subr.mxu0 0.0
    %7250 = vmatpush1.msra.mxu0 0.0
    %7251 = vmatprep.subr.mxu0 0.0
    %7252 = vmatpush1.msra.mxu0 0.0
    %7253 = vmatprep.subr.mxu0 0.0
    %7254 = vmatpush1.msra.mxu0 0.0
    %7255 = vmatprep.subr.mxu0 0.0
    %7256 = vmatpush1.msra.mxu0 %v7228
    %7257 = vmatprep.subr.mxu0 0.0
    %7258 = vmatpush1.msra.mxu0 %v7227
    %7259 = vmatprep.subr.mxu0 0.0
    %7260 = vmatpush1.msra.mxu0 %v7226
    %7261 = vmatprep.subr.mxu0 0.0
    %7262 = vmatpush1.msra.mxu0 %v7225
    %7263 = vmatprep.subr.mxu0 0.0
    %7264 = vmatpush1.msra.mxu0 %v7224
    %7265 = vmatprep.subr.mxu0 0.0
    %7266 = vmatpush1.msra.mxu0 %v7223
    %7267 = vmatprep.subr.mxu0 0.0
    %7268 = vmatpush1.msra.mxu0 %v7222
    %7269 = vmatprep.subr.mxu0 0.0
    %7270 = vmatpush1.msra.mxu0 %v7221
    %7271 = vmatprep.subr.mxu0 0.0
    %7272 = vmatpush2.msra.mxu0 0.0
    %7273 = vmatprep.subr.mxu0 0.0
    %7274 = vmatpush2.msra.mxu0 0.0
    %7275 = vmatprep.subr.mxu0 0.0
    %7276 = vmatpush2.msra.mxu0 0.0
    %7277 = vmatprep.subr.mxu0 0.0
    %7278 = vmatpush2.msra.mxu0 0.0
    %7279 = vmatprep.subr.mxu0 0.0
    %7280 = vmatpush2.msra.mxu0 0.0
    %7281 = vmatprep.subr.mxu0 0.0
    %7282 = vmatpush2.msra.mxu0 0.0
    %7283 = vmatprep.subr.mxu0 0.0
    %7284 = vmatpush2.msra.mxu0 0.0
    %7285 = vmatprep.subr.mxu0 0.0
    %7286 = vmatpush2.msra.mxu0 0.0
    %7287 = vmatprep.subr.mxu0 0.0
    %7288 = vmatpush2.msra.mxu0 0.0
    %7289 = vmatprep.subr.mxu0 0.0
    %7290 = vmatpush2.msra.mxu0 0.0
    %7291 = vmatprep.subr.mxu0 0.0
    %7292 = vmatpush2.msra.mxu0 0.0
    %7293 = vmatprep.subr.mxu0 0.0
    %7294 = vmatpush2.msra.mxu0 0.0
    %7295 = vmatprep.subr.mxu0 0.0
    %7296 = vmatpush2.msra.mxu0 0.0
    %7297 = vmatprep.subr.mxu0 0.0
    %7298 = vmatpush2.msra.mxu0 0.0
    %7299 = vmatprep.subr.mxu0 0.0
    %7300 = vmatpush2.msra.mxu0 0.0
    %7301 = vmatprep.subr.mxu0 0.0
    %7302 = vmatpush2.msra.mxu0 0.0
    %7303 = vmatprep.mubr.f32.mxu0 0.0
    %7304 = vmatmul.mubr.f32.gmra.mxu0 %v7237
    %v7305 = vpop.f32.mrf.mxu0
    %v7306 = vadd.f32 %v7234, %v7305
    %v7307 = vpop.f32.mrf.mxu0
    %7308 = vdwg.mxu0
    %7309 = vst [vmem:[#allocation10] sm:$0x3] %v7306
    // Predicated region
    $region174: #{few_shot_classifier_forward.1} parent=1 // pred_check
      _
    $region175: #{few_shot_classifier_forward.1} parent=1 // pred_check_branch
      %7311 = sbr.rel (0) target = $region177
    $region176: #{few_shot_classifier_forward.1} parent=1 // pred_region
      %s7313 = ssub.s32 32, 32
      %7314 = vsyncadd [#allocation11], %s7313
      %s7316 = sshll.u32 [#allocation10], 4
      %s7317 = int_to_ptr.vmem [resolvable:$true] %s7316
      %7319 = dma.vmem_to_hbm [thread:$0]  %s7317, 32, %s13, [#allocation11]
    $region177: #{few_shot_classifier_forward.1} parent=1 // pred_fallthru
      _
    // Predicated region
    $region178: #{few_shot_classifier_forward.1} parent=1 // pred_check
      _
    $region179: #{few_shot_classifier_forward.1} parent=1 // pred_check_branch
      %7321 = sbr.rel (0) target = $region181
    $region180: #{few_shot_classifier_forward.1} parent=1 // pred_region
      %7322 = dma.done [#allocation11], 32
    $region181: #{few_shot_classifier_forward.1} parent=1 // pred_fallthru
      _
    %7323 = vsyncpa [#allocation11], 1
  %7324 = vsyncmov [#allocation9]
  %s7325 = vpop.sfrf %7324
  %p7326 = scmp.eq.s32.totalorder %s7325, 0
  %p7327 = pneg %p7326
  %7329 = shalt.err (%p7327)
  %s7330 = scalar_lea.sflag [#allocation9], 1
  %7331 = vsyncmov %s7330
  %s7332 = vpop.sfrf %7331
  %p7333 = scmp.eq.s32.totalorder %s7332, 0
  %p7334 = pneg %p7333
  %7336 = shalt.err (%p7334)
  %s7337 = scalar_lea.sflag [#allocation9], 2
  %7338 = vsyncmov %s7337
  %s7339 = vpop.sfrf %7338
  %p7340 = scmp.eq.s32.totalorder %s7339, 0
  %p7341 = pneg %p7340
  %7343 = shalt.err (%p7341)
  %s7344 = scalar_lea.sflag [#allocation9], 3
  %7345 = vsyncmov %s7344
  %s7346 = vpop.sfrf %7345
  %p7347 = scmp.eq.s32.totalorder %s7346, 0
  %p7348 = pneg %p7347
  %7350 = shalt.err (%p7348)

</llo_original>
